<compile_context>
chip_gen: v7x
topology: tpu7x:2x2x1
jax: 0.10.0
libtpu: 0.0.40
codegen_flags: <defaults>
</compile_context>

<pallas_src>
import math
from functools import partial

import jax
import jax.numpy as jnp
from jax.experimental import pallas as pl
from jax.experimental.pallas import tpu as pltpu

LN_EPS = 1e-5

# ----------------------------------------------------------------------------- erf / gelu
_ERF_ALPHA = (0.00022905065861350646, 0.0034082910107109506,
              0.050955695062380861, 0.18520832239976145, 1.128379143519084)
_ERF_BETA = (-1.1791602954361697e-07, 2.3547966471313185e-05,
             0.0010179625278914885, 0.014070470171167667,
             0.11098505178285362, 0.49746925110067538, 1.0)
_ERF_CLAMP = 3.832506856900711


def _erf_poly(x):
    x = jnp.clip(x, -_ERF_CLAMP, _ERF_CLAMP)
    x2 = x * x
    pa = _ERF_ALPHA[0]
    for c in _ERF_ALPHA[1:]:
        pa = pa * x2 + c
    pb = _ERF_BETA[0]
    for c in _ERF_BETA[1:]:
        pb = pb * x2 + c
    inv_pb = pl.reciprocal(pb, approx=True)        # EUP slot instead of VALU divide
    inv_pb = inv_pb * (2.0 - pb * inv_pb)          # one Newton step -> ~exact f32
    return x * pa * inv_pb


def _gelu_exact(x):
    return 0.5 * x * (1.0 + _erf_poly(x * (1.0 / math.sqrt(2.0))))


# ----------------------------------------------------------------------------- fused kernel
# vec_ref row layout:
#   0: proj_b | 1: attn_ln_g | 2: attn_ln_b | 3: fc1_b | 4: fc2_b
#   5: ln1_g  | 6: ln1_b | 7: ln2_g | 8: ln2_b | 9: ln3_g | 10: ln3_b | 11: pre_ln_g | 12: pre_ln_b
def _mrformer_kernel(x_ref, qkvw_ref, projw_ref, fc1w_ref, fc2w_ref, dww_ref, vec_ref,
                     o_ref,
                     qkv_scr, ctx_scr, pad_scr, mask_scr, x_scr,
                     *, D, H, W, C, heads, scale, padr):
    f32 = jnp.float32
    L = D * H * W
    hd = C // heads
    layer = pl.program_id(1)

    # ------ per-batch-row one-time setup (scratch persists across the layer axis) ------
    @pl.when(layer == 0)
    def _():
        x_scr[...] = x_ref[...]                     # activation becomes VMEM-resident
        pad_scr[...] = jnp.zeros_like(pad_scr)      # zero the conv shift buffer (borders stay 0)
        # Composite (kh, kw) boundary masks, broadcast to (L, C).  The d-boundary is covered by
        # the zero border of pad_scr, so only h/w wrap-around needs masking (8 non-trivial masks).
        lin = jax.lax.broadcasted_iota(jnp.int32, (L, 1), 0).astype(f32)
        d_f = jnp.floor((lin + 0.5) * (1.0 / (H * W)))
        rem = lin - d_f * (H * W)
        h_f = jnp.floor((rem + 0.5) * (1.0 / W))
        w_f = rem - h_f * W
        ones = jnp.ones((L, C), f32)
        for kh in range(3):
            for kw in range(3):
                if kh == 1 and kw == 1:
                    continue
                m = jnp.ones((L, 1), f32)
                if kh == 0:
                    m = m * (h_f >= 1.0).astype(f32)
                if kh == 2:
                    m = m * (h_f <= H - 2).astype(f32)
                if kw == 0:
                    m = m * (w_f >= 1.0).astype(f32)
                if kw == 2:
                    m = m * (w_f <= W - 2).astype(f32)
                mask_scr[kh * 3 + kw] = m * ones    # broadcast to (L, C) once, reused everywhere

    def ln(v, row):
        mu = jnp.mean(v, axis=-1, keepdims=True)
        var = jnp.mean(jnp.square(v - mu), axis=-1, keepdims=True)
        g = vec_ref[row:row + 1, :]
        b = vec_ref[row + 1:row + 2, :]
        return (v - mu) * jax.lax.rsqrt(var + LN_EPS) * g + b

    x = x_scr[...]                                                        # (L, C)

    # -------------------- Residual(PreNormDrop(SelfAttention)) --------------------
    qkv_scr[...] = jnp.dot(x, qkvw_ref[...], preferred_element_type=f32)  # (L, 3C)
    for h in range(heads):
        lo = h * hd
        q = qkv_scr[:, lo:lo + hd] * scale                                # scale folded into q
        k = qkv_scr[:, C + lo:C + lo + hd]
        v = qkv_scr[:, 2 * C + lo:2 * C + lo + hd]
        # q @ k^T without materializing a transpose: contract the hd axis of both.
        s = jax.lax.dot_general(q, k, (((1,), (1,)), ((), ())),
                                preferred_element_type=f32)               # (L, L)
        s = s - jnp.max(s, axis=-1, keepdims=True)
        p = jnp.exp(s)
        den = jnp.sum(p, axis=-1, keepdims=True)
        inv = pl.reciprocal(den, approx=True)
        inv = inv * (2.0 - den * inv)              # one Newton step -> ~exact f32 reciprocal
        p = p * inv
        # head merge: write each head's context into its lane slice, project once afterwards
        ctx_scr[:, lo:lo + hd] = jnp.dot(p, v, preferred_element_type=f32)
    attn = jnp.dot(ctx_scr[...], projw_ref[...],
                   preferred_element_type=f32) + vec_ref[0:1, :]          # single (L,C)@(C,C)
    x = x + ln(attn, 1)                                                   # x + LN(attn(x))

    # -------------------- Residual(PreNorm(FeedForward)) --------------------
    sc = jnp.dot(x, fc1w_ref[...], preferred_element_type=f32) + vec_ref[3:4, :]   # fc1

    def dwconv_gelu(v, ci):
        # depthwise 3x3x3 conv (stride 1, pad 1, groups=C, no bias) on the flattened (L, C)
        # activation via a zero-bordered VMEM shift buffer, then exact GELU.
        pad_scr[padr:padr + L, :] = v
        acc = jnp.zeros((L, C), f32)
        for kh in range(3):
            for kw in range(3):
                part = None
                for kd in range(3):
                    off = (kd - 1) * H * W + (kh - 1) * W + (kw - 1)
                    ti = ci * 27 + kd * 9 + kh * 3 + kw
                    tap = dww_ref[ti:ti + 1, :]                           # (1, C)
                    shifted = pad_scr[padr + off:padr + off + L, :]       # (L, C), zero outside
                    t = shifted * tap
                    part = t if part is None else part + t
                if not (kh == 1 and kw == 1):
                    part = part * mask_scr[kh * 3 + kw]                   # kill h/w wrap-around
                acc = acc + part
        return _gelu_exact(acc)

    y1 = dwconv_gelu(sc, 0)
    x1 = sc + ln(y1, 5)
    s01 = sc + x1
    y2 = dwconv_gelu(x1, 1)
    x2 = s01 + ln(y2, 7)
    s012 = s01 + x2
    y3 = dwconv_gelu(x2, 2)
    x3 = s012 + ln(y3, 9)
    f = jnp.dot(x3, fc2w_ref[...], preferred_element_type=f32) + vec_ref[4:5, :]    # fc2
    x_new = x + ln(f, 11)                                                 # x + LN(FF(x))

    x_scr[...] = x_new                                                    # carry to next layer

    @pl.when(layer == pl.num_programs(1) - 1)
    def _():
        o_ref[...] = x_new                                                # single HBM writeback


def mrformer_fused(x, qkv_w, proj_w, fc1_w, fc2_w, dw_w, vec, *, D, H, W, heads, scale):
    B, L, C = x.shape
    depth = qkv_w.shape[0]
    # pad rows >= max |tap offset| (H*W + W + 1), rounded up to a sublane multiple (8)
    padr = ((H * W + W + 1 + 7) // 8) * 8
    kernel = partial(_mrformer_kernel, D=D, H=H, W=W, C=C,
                     heads=heads, scale=scale, padr=padr)
    return pl.pallas_call(
        kernel,
        out_shape=jax.ShapeDtypeStruct((B, L, C), jnp.float32),
        grid=(B, depth),
        in_specs=[
            pl.BlockSpec((None, L, C), lambda b, l: (b, 0, 0)),      # x (read once per b)
            pl.BlockSpec((None, C, 3 * C), lambda b, l: (l, 0, 0)),  # qkv_w[layer]
            pl.BlockSpec((None, C, C), lambda b, l: (l, 0, 0)),      # proj_w[layer]
            pl.BlockSpec((None, C, C), lambda b, l: (l, 0, 0)),      # fc1_w[layer]
            pl.BlockSpec((None, C, C), lambda b, l: (l, 0, 0)),      # fc2_w[layer]
            pl.BlockSpec((None, 81, C), lambda b, l: (l, 0, 0)),     # 3 convs x 27 taps
            pl.BlockSpec((None, 13, C), lambda b, l: (l, 0, 0)),     # stacked per-channel vecs
        ],
        out_specs=pl.BlockSpec((None, L, C), lambda b, l: (b, 0, 0)),
        scratch_shapes=[
            pltpu.VMEM((L, 3 * C), jnp.float32),            # qkv (head slicing)
            pltpu.VMEM((L, C), jnp.float32),                # head-contiguous attention context
            pltpu.VMEM((L + 2 * padr, C), jnp.float32),     # zero-bordered conv shift buffer
            pltpu.VMEM((9, L, C), jnp.float32),             # (kh, kw) boundary masks
            pltpu.VMEM((L, C), jnp.float32),                # layer-resident activation
        ],
        compiler_params=pltpu.CompilerParams(
            dimension_semantics=("parallel", "arbitrary"),
            vmem_limit_bytes=32 * 1024 * 1024),
    )(x, qkv_w, proj_w, fc1_w, fc2_w, dw_w, vec)


# ----------------------------------------------------------------------------- model
def init_params(key, depth, C):
    params = []
    for _ in range(depth):
        key, *ks = jax.random.split(key, 12)
        ks = iter(ks)

        def nrm(shape, s=0.05):
            return (s * jax.random.normal(next(ks), shape)).astype(jnp.float32)

        ones = jnp.ones((C,), jnp.float32)
        zeros = jnp.zeros((C,), jnp.float32)
        params.append(dict(
            qkv_w=nrm((C, 3 * C)),                       # qkv_bias=False
            proj_w=nrm((C, C)), proj_b=nrm((C,)),
            attn_ln_g=ones, attn_ln_b=zeros,             # PreNormDrop LN (torch default init)
            fc1_w=nrm((C, C)), fc1_b=nrm((C,)),          # hidden_features == in_dim
            dw1_w=nrm((3, 3, 3, C), 0.2),
            dw2_w=nrm((3, 3, 3, C), 0.2),
            dw3_w=nrm((3, 3, 3, C), 0.2),
            ln1_g=ones, ln1_b=zeros,
            ln2_g=ones, ln2_b=zeros,
            ln3_g=ones, ln3_b=zeros,
            fc2_w=nrm((C, C)), fc2_b=nrm((C,)),
            pre_ln_g=ones, pre_ln_b=zeros,               # PreNorm LN
        ))
    return params


def mrformer_forward(x, params, *, D, H, W, heads):
    # x: (B, L, C) with L == D*H*W.  Returns final layer output (B, L, C).
    B, L, C = x.shape
    assert L == D * H * W
    hd = C // heads
    scale = hd ** -0.5

    # Stack every layer's weights along a leading "layer" axis so the whole depth runs in one
    # pallas_call (layer grid axis indexes the weight BlockSpecs).
    qkv_w = jnp.stack([p['qkv_w'] for p in params])
    proj_w = jnp.stack([p['proj_w'] for p in params])
    fc1_w = jnp.stack([p['fc1_w'] for p in params])
    fc2_w = jnp.stack([p['fc2_w'] for p in params])
    dw_w = jnp.stack([jnp.concatenate([p['dw1_w'].reshape(27, C),
                                       p['dw2_w'].reshape(27, C),
                                       p['dw3_w'].reshape(27, C)], axis=0) for p in params])
    vec = jnp.stack([jnp.stack([p['proj_b'], p['attn_ln_g'], p['attn_ln_b'],
                                p['fc1_b'], p['fc2_b'],
                                p['ln1_g'], p['ln1_b'], p['ln2_g'], p['ln2_b'],
                                p['ln3_g'], p['ln3_b'], p['pre_ln_g'], p['pre_ln_b']], axis=0)
                     for p in params])
    return mrformer_fused(x, qkv_w, proj_w, fc1_w, fc2_w, dw_w, vec,
                          D=D, H=H, W=W, heads=heads, scale=scale)


# ----------------------------------------------------------------------------- pure-JAX reference
def _ref_ln(y, g, b):
    mu = y.mean(-1, keepdims=True)
    var = ((y - mu) ** 2).mean(-1, keepdims=True)
    return (y - mu) / jnp.sqrt(var + LN_EPS) * g + b


def _ref_dwconv(x, w):
    B, D, H, W, C = x.shape
    xp = jnp.pad(x, ((0, 0), (1, 1), (1, 1), (1, 1), (0, 0)))
    out = jnp.zeros_like(x)
    for kd in range(3):
        for kh in range(3):
            for kw in range(3):
                out = out + xp[:, kd:kd + D, kh:kh + H, kw:kw + W, :] * w[kd, kh, kw]
    return out


def mrformer_reference(x, params, *, D, H, W, heads):
    B, L, C = x.shape
    hd = C // heads
    scale = hd ** -0.5
    P = jax.lax.Precision.HIGHEST
    gelu = lambda z: jax.nn.gelu(z, approximate=False)
    lin = lambda z, w, b: jnp.dot(z, w, precision=P) + b

    for p in params:
        qkv = jnp.dot(x, p['qkv_w'], precision=P)
        qkv = qkv.reshape(B, L, 3, heads, hd).transpose(2, 0, 3, 1, 4)
        q, k, v = qkv[0], qkv[1], qkv[2]
        s = jnp.einsum('bhnd,bhmd->bhnm', q, k, precision=P) * scale
        a = jax.nn.softmax(s, axis=-1)
        o = jnp.einsum('bhnm,bhmd->bhnd', a, v, precision=P)
        o = o.transpose(0, 2, 1, 3).reshape(B, L, C)
        o = lin(o, p['proj_w'], p['proj_b'])
        x = x + _ref_ln(o, p['attn_ln_g'], p['attn_ln_b'])

        sc = lin(x, p['fc1_w'], p['fc1_b'])

        def blk(z, w):
            y = gelu(_ref_dwconv(z.reshape(B, D, H, W, C), w))
            return y.reshape(B, L, C)

        x1 = sc + _ref_ln(blk(sc, p['dw1_w']), p['ln1_g'], p['ln1_b'])
        x2 = sc + x1 + _ref_ln(blk(x1, p['dw2_w']), p['ln2_g'], p['ln2_b'])
        x3 = sc + x1 + x2 + _ref_ln(blk(x2, p['dw3_w']), p['ln3_g'], p['ln3_b'])
        f = lin(x3, p['fc2_w'], p['fc2_b'])
        x = x + _ref_ln(f, p['pre_ln_g'], p['pre_ln_b'])
    return x


# ----------------------------------------------------------------------------- main
if __name__ == "__main__":
    # MRFormer(dim=32, depth=2, heads=4, mlp_dim=64, input_resolution=(B,4,4,4,32))
    # NOTE: mlp_dim is unused by FeedForward (hidden_features = in_dim), matching the module.
    B, D, H, W, C = 2, 4, 4, 4, 32
    heads, depth = 4, 2
    L = D * H * W

    key = jax.random.PRNGKey(0)
    kx, kp = jax.random.split(key)
    x = jax.random.normal(kx, (B, L, C), dtype=jnp.float32)
    params = init_params(kp, depth, C)

    fwd = jax.jit(partial(mrformer_forward, D=D, H=H, W=W, heads=heads))
    out = fwd(x, params)
    out = jax.block_until_ready(out)
    assert out.shape == (B, L, C)
    assert bool(jnp.all(jnp.isfinite(out)))

    ref = mrformer_reference(x, params, D=D, H=H, W=W, heads=heads)
    ref = jax.block_until_ready(ref)
    max_err = float(jnp.max(jnp.abs(out - ref)))
    assert max_err < 2e-2, f"kernel/reference mismatch: max abs err = {max_err}"

    # TODO(synk): IntermediateSequential also returns per-layer intermediates; only the
    # final output is returned here.  Dropout layers are identity (eval mode).
    print("KERNEL_OK")
</pallas_src>

<mosaic_0001>
module attributes {stable_mosaic.version = 11 : i64} {
  func.func @_mrformer_kernel(%arg0: i32, %arg1: i32, %arg2: memref<1x64x32xf32, #tpu.memory_space<vmem>>, %arg3: memref<1x32x96xf32, #tpu.memory_space<vmem>>, %arg4: memref<1x32x32xf32, #tpu.memory_space<vmem>>, %arg5: memref<1x32x32xf32, #tpu.memory_space<vmem>>, %arg6: memref<1x32x32xf32, #tpu.memory_space<vmem>>, %arg7: memref<1x81x32xf32, #tpu.memory_space<vmem>>, %arg8: memref<1x13x32xf32, #tpu.memory_space<vmem>>, %arg9: memref<1x64x32xf32, #tpu.memory_space<vmem>>, %arg10: memref<64x96xf32, #tpu.memory_space<vmem>>, %arg11: memref<64x32xf32, #tpu.memory_space<vmem>>, %arg12: memref<112x32xf32, #tpu.memory_space<vmem>>, %arg13: memref<9x64x32xf32, #tpu.memory_space<vmem>>, %arg14: memref<64x32xf32, #tpu.memory_space<vmem>>) attributes {dimension_semantics = [#tpu.dimension_semantics<parallel>, #tpu.dimension_semantics<arbitrary>], iteration_bounds = array<i64: 2, 2>, scalar_prefetch = 0 : i64, scratch_operands = 5 : i64, tpu.core_type = #tpu.core_type<tc>, window_params = [{transform_indices = @transform_0, window_bounds = array<i64: 1, 64, 32>}, {transform_indices = @transform_1, window_bounds = array<i64: 1, 32, 96>}, {transform_indices = @transform_2, window_bounds = array<i64: 1, 32, 32>}, {transform_indices = @transform_3, window_bounds = array<i64: 1, 32, 32>}, {transform_indices = @transform_4, window_bounds = array<i64: 1, 32, 32>}, {transform_indices = @transform_5, window_bounds = array<i64: 1, 81, 32>}, {transform_indices = @transform_6, window_bounds = array<i64: 1, 13, 32>}, {transform_indices = @transform_7, window_bounds = array<i64: 1, 64, 32>}]} {
    %c0_i32 = arith.constant 0 : i32
    %0 = arith.cmpi eq, %arg1, %c0_i32 : i32
    %1 = arith.extui %0 : i1 to i32
    %c0_i32_0 = arith.constant 0 : i32
    %2 = arith.cmpi ne, %1, %c0_i32_0 : i32
    scf.if %2 {
      %c0_603 = arith.constant 0 : index
      %c0_604 = arith.constant 0 : index
      %c0_605 = arith.constant 0 : index
      %976 = vector.load %arg2[%c0_603, %c0_604, %c0_605] : memref<1x64x32xf32, #tpu.memory_space<vmem>>, vector<1x64x32xf32>
      %977 = vector.shape_cast %976 : vector<1x64x32xf32> to vector<64x32xf32>
      %c0_606 = arith.constant 0 : index
      %c0_607 = arith.constant 0 : index
      %978 = vector.load %arg14[%c0_606, %c0_607] : memref<64x32xf32, #tpu.memory_space<vmem>>, vector<64x32xf32>
      tpu.vector_store %arg14[%c0_606, %c0_607], %977 {strides = array<i32>} : memref<64x32xf32, #tpu.memory_space<vmem>>, vector<64x32xf32>,
      %cst_608 = arith.constant 0.000000e+00 : f32
      %979 = vector.broadcast %cst_608 : f32 to vector<112x32xf32>
      %c0_609 = arith.constant 0 : index
      %c0_610 = arith.constant 0 : index
      %980 = vector.load %arg12[%c0_609, %c0_610] : memref<112x32xf32, #tpu.memory_space<vmem>>, vector<112x32xf32>
      tpu.vector_store %arg12[%c0_609, %c0_610], %979 {strides = array<i32>} : memref<112x32xf32, #tpu.memory_space<vmem>>, vector<112x32xf32>,
      %981 = tpu.iota {dimensions = array<i32: 0>} : vector<64x1xi32>
      %982 = arith.sitofp %981 : vector<64x1xi32> to vector<64x1xf32>
      %cst_611 = arith.constant 5.000000e-01 : f32
      %983 = vector.broadcast %cst_611 : f32 to vector<64x1xf32>
      %984 = arith.addf %982, %983 : vector<64x1xf32>
      %cst_612 = arith.constant 6.250000e-02 : f32
      %985 = vector.broadcast %cst_612 : f32 to vector<64x1xf32>
      %986 = arith.mulf %984, %985 : vector<64x1xf32>
      %987 = math.floor %986 : vector<64x1xf32>
      %cst_613 = arith.constant 1.600000e+01 : f32
      %988 = vector.broadcast %cst_613 : f32 to vector<64x1xf32>
      %989 = arith.mulf %987, %988 : vector<64x1xf32>
      %990 = arith.subf %982, %989 : vector<64x1xf32>
      %cst_614 = arith.constant 5.000000e-01 : f32
      %991 = vector.broadcast %cst_614 : f32 to vector<64x1xf32>
      %992 = arith.addf %990, %991 : vector<64x1xf32>
      %cst_615 = arith.constant 2.500000e-01 : f32
      %993 = vector.broadcast %cst_615 : f32 to vector<64x1xf32>
      %994 = arith.mulf %992, %993 : vector<64x1xf32>
      %995 = math.floor %994 : vector<64x1xf32>
      %cst_616 = arith.constant 4.000000e+00 : f32
      %996 = vector.broadcast %cst_616 : f32 to vector<64x1xf32>
      %997 = arith.mulf %995, %996 : vector<64x1xf32>
      %998 = arith.subf %990, %997 : vector<64x1xf32>
      %cst_617 = arith.constant 1.000000e+00 : f32
      %999 = vector.broadcast %cst_617 : f32 to vector<64x32xf32>
      %cst_618 = arith.constant 1.000000e+00 : f32
      %1000 = vector.broadcast %cst_618 : f32 to vector<64x1xf32>
      %cst_619 = arith.constant 1.000000e+00 : f32
      %1001 = vector.broadcast %cst_619 : f32 to vector<64x1xf32>
      %1002 = arith.cmpf oge, %995, %1001 : vector<64x1xf32>
      %1003 = arith.extui %1002 : vector<64x1xi1> to vector<64x1xi32>
      %1004 = arith.sitofp %1003 : vector<64x1xi32> to vector<64x1xf32>
      %1005 = arith.mulf %1000, %1004 : vector<64x1xf32>
      %cst_620 = arith.constant 1.000000e+00 : f32
      %1006 = vector.broadcast %cst_620 : f32 to vector<64x1xf32>
      %1007 = arith.cmpf oge, %998, %1006 : vector<64x1xf32>
      %1008 = arith.extui %1007 : vector<64x1xi1> to vector<64x1xi32>
      %1009 = arith.sitofp %1008 : vector<64x1xi32> to vector<64x1xf32>
      %1010 = arith.mulf %1005, %1009 : vector<64x1xf32>
      %1011 = vector.broadcast %1010 : vector<64x1xf32> to vector<64x32xf32>
      %1012 = arith.mulf %1011, %999 : vector<64x32xf32>
      %c0_621 = arith.constant 0 : index
      %c0_622 = arith.constant 0 : index
      %c0_623 = arith.constant 0 : index
      %1013 = vector.load %arg13[%c0_621, %c0_622, %c0_623] : memref<9x64x32xf32, #tpu.memory_space<vmem>>, vector<1x64x32xf32>
      %1014 = vector.shape_cast %1013 : vector<1x64x32xf32> to vector<64x32xf32>
      %1015 = vector.shape_cast %1012 : vector<64x32xf32> to vector<1x64x32xf32>
      tpu.vector_store %arg13[%c0_621, %c0_622, %c0_623], %1015 {strides = array<i32>} : memref<9x64x32xf32, #tpu.memory_space<vmem>>, vector<1x64x32xf32>,
      %cst_624 = arith.constant 1.000000e+00 : f32
      %1016 = vector.broadcast %cst_624 : f32 to vector<64x1xf32>
      %cst_625 = arith.constant 1.000000e+00 : f32
      %1017 = vector.broadcast %cst_625 : f32 to vector<64x1xf32>
      %1018 = arith.cmpf oge, %995, %1017 : vector<64x1xf32>
      %1019 = arith.extui %1018 : vector<64x1xi1> to vector<64x1xi32>
      %1020 = arith.sitofp %1019 : vector<64x1xi32> to vector<64x1xf32>
      %1021 = arith.mulf %1016, %1020 : vector<64x1xf32>
      %1022 = vector.broadcast %1021 : vector<64x1xf32> to vector<64x32xf32>
      %1023 = arith.mulf %1022, %999 : vector<64x32xf32>
      %c1_626 = arith.constant 1 : index
      %c0_627 = arith.constant 0 : index
      %c0_628 = arith.constant 0 : index
      %1024 = vector.load %arg13[%c1_626, %c0_627, %c0_628] : memref<9x64x32xf32, #tpu.memory_space<vmem>>, vector<1x64x32xf32>
      %1025 = vector.shape_cast %1024 : vector<1x64x32xf32> to vector<64x32xf32>
      %1026 = vector.shape_cast %1023 : vector<64x32xf32> to vector<1x64x32xf32>
      tpu.vector_store %arg13[%c1_626, %c0_627, %c0_628], %1026 {strides = array<i32>} : memref<9x64x32xf32, #tpu.memory_space<vmem>>, vector<1x64x32xf32>,
      %cst_629 = arith.constant 1.000000e+00 : f32
      %1027 = vector.broadcast %cst_629 : f32 to vector<64x1xf32>
      %cst_630 = arith.constant 1.000000e+00 : f32
      %1028 = vector.broadcast %cst_630 : f32 to vector<64x1xf32>
      %1029 = arith.cmpf oge, %995, %1028 : vector<64x1xf32>
      %1030 = arith.extui %1029 : vector<64x1xi1> to vector<64x1xi32>
      %1031 = arith.sitofp %1030 : vector<64x1xi32> to vector<64x1xf32>
      %1032 = arith.mulf %1027, %1031 : vector<64x1xf32>
      %cst_631 = arith.constant 2.000000e+00 : f32
      %1033 = vector.broadcast %cst_631 : f32 to vector<64x1xf32>
      %1034 = arith.cmpf ole, %998, %1033 : vector<64x1xf32>
      %1035 = arith.extui %1034 : vector<64x1xi1> to vector<64x1xi32>
      %1036 = arith.sitofp %1035 : vector<64x1xi32> to vector<64x1xf32>
      %1037 = arith.mulf %1032, %1036 : vector<64x1xf32>
      %1038 = vector.broadcast %1037 : vector<64x1xf32> to vector<64x32xf32>
      %1039 = arith.mulf %1038, %999 : vector<64x32xf32>
      %c2_632 = arith.constant 2 : index
      %c0_633 = arith.constant 0 : index
      %c0_634 = arith.constant 0 : index
      %1040 = vector.load %arg13[%c2_632, %c0_633, %c0_634] : memref<9x64x32xf32, #tpu.memory_space<vmem>>, vector<1x64x32xf32>
      %1041 = vector.shape_cast %1040 : vector<1x64x32xf32> to vector<64x32xf32>
      %1042 = vector.shape_cast %1039 : vector<64x32xf32> to vector<1x64x32xf32>
      tpu.vector_store %arg13[%c2_632, %c0_633, %c0_634], %1042 {strides = array<i32>} : memref<9x64x32xf32, #tpu.memory_space<vmem>>, vector<1x64x32xf32>,
      %cst_635 = arith.constant 1.000000e+00 : f32
      %1043 = vector.broadcast %cst_635 : f32 to vector<64x1xf32>
      %cst_636 = arith.constant 1.000000e+00 : f32
      %1044 = vector.broadcast %cst_636 : f32 to vector<64x1xf32>
      %1045 = arith.cmpf oge, %998, %1044 : vector<64x1xf32>
      %1046 = arith.extui %1045 : vector<64x1xi1> to vector<64x1xi32>
      %1047 = arith.sitofp %1046 : vector<64x1xi32> to vector<64x1xf32>
      %1048 = arith.mulf %1043, %1047 : vector<64x1xf32>
      %1049 = vector.broadcast %1048 : vector<64x1xf32> to vector<64x32xf32>
      %1050 = arith.mulf %1049, %999 : vector<64x32xf32>
      %c3_637 = arith.constant 3 : index
      %c0_638 = arith.constant 0 : index
      %c0_639 = arith.constant 0 : index
      %1051 = vector.load %arg13[%c3_637, %c0_638, %c0_639] : memref<9x64x32xf32, #tpu.memory_space<vmem>>, vector<1x64x32xf32>
      %1052 = vector.shape_cast %1051 : vector<1x64x32xf32> to vector<64x32xf32>
      %1053 = vector.shape_cast %1050 : vector<64x32xf32> to vector<1x64x32xf32>
      tpu.vector_store %arg13[%c3_637, %c0_638, %c0_639], %1053 {strides = array<i32>} : memref<9x64x32xf32, #tpu.memory_space<vmem>>, vector<1x64x32xf32>,
      %cst_640 = arith.constant 1.000000e+00 : f32
      %1054 = vector.broadcast %cst_640 : f32 to vector<64x1xf32>
      %cst_641 = arith.constant 2.000000e+00 : f32
      %1055 = vector.broadcast %cst_641 : f32 to vector<64x1xf32>
      %1056 = arith.cmpf ole, %998, %1055 : vector<64x1xf32>
      %1057 = arith.extui %1056 : vector<64x1xi1> to vector<64x1xi32>
      %1058 = arith.sitofp %1057 : vector<64x1xi32> to vector<64x1xf32>
      %1059 = arith.mulf %1054, %1058 : vector<64x1xf32>
      %1060 = vector.broadcast %1059 : vector<64x1xf32> to vector<64x32xf32>
      %1061 = arith.mulf %1060, %999 : vector<64x32xf32>
      %c5_642 = arith.constant 5 : index
      %c0_643 = arith.constant 0 : index
      %c0_644 = arith.constant 0 : index
      %1062 = vector.load %arg13[%c5_642, %c0_643, %c0_644] : memref<9x64x32xf32, #tpu.memory_space<vmem>>, vector<1x64x32xf32>
      %1063 = vector.shape_cast %1062 : vector<1x64x32xf32> to vector<64x32xf32>
      %1064 = vector.shape_cast %1061 : vector<64x32xf32> to vector<1x64x32xf32>
      tpu.vector_store %arg13[%c5_642, %c0_643, %c0_644], %1064 {strides = array<i32>} : memref<9x64x32xf32, #tpu.memory_space<vmem>>, vector<1x64x32xf32>,
      %cst_645 = arith.constant 1.000000e+00 : f32
      %1065 = vector.broadcast %cst_645 : f32 to vector<64x1xf32>
      %cst_646 = arith.constant 2.000000e+00 : f32
      %1066 = vector.broadcast %cst_646 : f32 to vector<64x1xf32>
      %1067 = arith.cmpf ole, %995, %1066 : vector<64x1xf32>
      %1068 = arith.extui %1067 : vector<64x1xi1> to vector<64x1xi32>
      %1069 = arith.sitofp %1068 : vector<64x1xi32> to vector<64x1xf32>
      %1070 = arith.mulf %1065, %1069 : vector<64x1xf32>
      %cst_647 = arith.constant 1.000000e+00 : f32
      %1071 = vector.broadcast %cst_647 : f32 to vector<64x1xf32>
      %1072 = arith.cmpf oge, %998, %1071 : vector<64x1xf32>
      %1073 = arith.extui %1072 : vector<64x1xi1> to vector<64x1xi32>
      %1074 = arith.sitofp %1073 : vector<64x1xi32> to vector<64x1xf32>
      %1075 = arith.mulf %1070, %1074 : vector<64x1xf32>
      %1076 = vector.broadcast %1075 : vector<64x1xf32> to vector<64x32xf32>
      %1077 = arith.mulf %1076, %999 : vector<64x32xf32>
      %c6_648 = arith.constant 6 : index
      %c0_649 = arith.constant 0 : index
      %c0_650 = arith.constant 0 : index
      %1078 = vector.load %arg13[%c6_648, %c0_649, %c0_650] : memref<9x64x32xf32, #tpu.memory_space<vmem>>, vector<1x64x32xf32>
      %1079 = vector.shape_cast %1078 : vector<1x64x32xf32> to vector<64x32xf32>
      %1080 = vector.shape_cast %1077 : vector<64x32xf32> to vector<1x64x32xf32>
      tpu.vector_store %arg13[%c6_648, %c0_649, %c0_650], %1080 {strides = array<i32>} : memref<9x64x32xf32, #tpu.memory_space<vmem>>, vector<1x64x32xf32>,
      %cst_651 = arith.constant 1.000000e+00 : f32
      %1081 = vector.broadcast %cst_651 : f32 to vector<64x1xf32>
      %cst_652 = arith.constant 2.000000e+00 : f32
      %1082 = vector.broadcast %cst_652 : f32 to vector<64x1xf32>
      %1083 = arith.cmpf ole, %995, %1082 : vector<64x1xf32>
      %1084 = arith.extui %1083 : vector<64x1xi1> to vector<64x1xi32>
      %1085 = arith.sitofp %1084 : vector<64x1xi32> to vector<64x1xf32>
      %1086 = arith.mulf %1081, %1085 : vector<64x1xf32>
      %1087 = vector.broadcast %1086 : vector<64x1xf32> to vector<64x32xf32>
      %1088 = arith.mulf %1087, %999 : vector<64x32xf32>
      %c7_653 = arith.constant 7 : index
      %c0_654 = arith.constant 0 : index
      %c0_655 = arith.constant 0 : index
      %1089 = vector.load %arg13[%c7_653, %c0_654, %c0_655] : memref<9x64x32xf32, #tpu.memory_space<vmem>>, vector<1x64x32xf32>
      %1090 = vector.shape_cast %1089 : vector<1x64x32xf32> to vector<64x32xf32>
      %1091 = vector.shape_cast %1088 : vector<64x32xf32> to vector<1x64x32xf32>
      tpu.vector_store %arg13[%c7_653, %c0_654, %c0_655], %1091 {strides = array<i32>} : memref<9x64x32xf32, #tpu.memory_space<vmem>>, vector<1x64x32xf32>,
      %cst_656 = arith.constant 1.000000e+00 : f32
      %1092 = vector.broadcast %cst_656 : f32 to vector<64x1xf32>
      %cst_657 = arith.constant 2.000000e+00 : f32
      %1093 = vector.broadcast %cst_657 : f32 to vector<64x1xf32>
      %1094 = arith.cmpf ole, %995, %1093 : vector<64x1xf32>
      %1095 = arith.extui %1094 : vector<64x1xi1> to vector<64x1xi32>
      %1096 = arith.sitofp %1095 : vector<64x1xi32> to vector<64x1xf32>
      %1097 = arith.mulf %1092, %1096 : vector<64x1xf32>
      %cst_658 = arith.constant 2.000000e+00 : f32
      %1098 = vector.broadcast %cst_658 : f32 to vector<64x1xf32>
      %1099 = arith.cmpf ole, %998, %1098 : vector<64x1xf32>
      %1100 = arith.extui %1099 : vector<64x1xi1> to vector<64x1xi32>
      %1101 = arith.sitofp %1100 : vector<64x1xi32> to vector<64x1xf32>
      %1102 = arith.mulf %1097, %1101 : vector<64x1xf32>
      %1103 = vector.broadcast %1102 : vector<64x1xf32> to vector<64x32xf32>
      %1104 = arith.mulf %1103, %999 : vector<64x32xf32>
      %c8_659 = arith.constant 8 : index
      %c0_660 = arith.constant 0 : index
      %c0_661 = arith.constant 0 : index
      %1105 = vector.load %arg13[%c8_659, %c0_660, %c0_661] : memref<9x64x32xf32, #tpu.memory_space<vmem>>, vector<1x64x32xf32>
      %1106 = vector.shape_cast %1105 : vector<1x64x32xf32> to vector<64x32xf32>
      %1107 = vector.shape_cast %1104 : vector<64x32xf32> to vector<1x64x32xf32>
      tpu.vector_store %arg13[%c8_659, %c0_660, %c0_661], %1107 {strides = array<i32>} : memref<9x64x32xf32, #tpu.memory_space<vmem>>, vector<1x64x32xf32>,
    } else {
    }
    %c0 = arith.constant 0 : index
    %c0_1 = arith.constant 0 : index
    %3 = vector.load %arg14[%c0, %c0_1] : memref<64x32xf32, #tpu.memory_space<vmem>>, vector<64x32xf32>
    %c0_2 = arith.constant 0 : index
    %c0_3 = arith.constant 0 : index
    %c0_4 = arith.constant 0 : index
    %4 = vector.load %arg3[%c0_2, %c0_3, %c0_4] : memref<1x32x96xf32, #tpu.memory_space<vmem>>, vector<1x32x96xf32>
    %5 = vector.shape_cast %4 : vector<1x32x96xf32> to vector<32x96xf32>
    %cst = arith.constant dense<0.000000e+00> : vector<64x96xf32>
    %6 = tpu.matmul %3, %5, %cst {dimension_numbers = #tpu.dot_dimension_numbers<[1], [0], [0], [1], [0, 0, 1, 1], [], []>} : vector<64x32xf32>, vector<32x96xf32>, vector<64x96xf32> -> vector<64x96xf32>
    %c0_5 = arith.constant 0 : index
    %c0_6 = arith.constant 0 : index
    %7 = vector.load %arg10[%c0_5, %c0_6] : memref<64x96xf32, #tpu.memory_space<vmem>>, vector<64x96xf32>
    tpu.vector_store %arg10[%c0_5, %c0_6], %6 {strides = array<i32>} : memref<64x96xf32, #tpu.memory_space<vmem>>, vector<64x96xf32>,
    %c0_7 = arith.constant 0 : index
    %c0_8 = arith.constant 0 : index
    %8 = vector.load %arg10[%c0_7, %c0_8] : memref<64x96xf32, #tpu.memory_space<vmem>>, vector<64x8xf32>
    %cst_9 = arith.constant 0.353553385 : f32
    %9 = vector.broadcast %cst_9 : f32 to vector<64x8xf32>
    %10 = arith.mulf %8, %9 : vector<64x8xf32>
    %c0_10 = arith.constant 0 : index
    %c32 = arith.constant 32 : index
    %11 = vector.load %arg10[%c0_10, %c32] : memref<64x96xf32, #tpu.memory_space<vmem>>, vector<64x8xf32>
    %c0_11 = arith.constant 0 : index
    %c64 = arith.constant 64 : index
    %12 = vector.load %arg10[%c0_11, %c64] : memref<64x96xf32, #tpu.memory_space<vmem>>, vector<64x8xf32>
    %cst_12 = arith.constant dense<0.000000e+00> : vector<64x64xf32>
    %13 = tpu.matmul %10, %11, %cst_12 {dimension_numbers = #tpu.dot_dimension_numbers<[1], [1], [0], [0], [0, 0, 1, 0], [], []>} : vector<64x8xf32>, vector<64x8xf32>, vector<64x64xf32> -> vector<64x64xf32>
    %cst_13 = arith.constant dense<0xFF800000> : vector<64xf32>
    %14 = vector.multi_reduction <maximumf>, %13, %cst_13 [1] : vector<64x64xf32> to vector<64xf32>
    %15 = vector.shape_cast %14 : vector<64xf32> to vector<64x1xf32>
    %16 = vector.broadcast %15 : vector<64x1xf32> to vector<64x64xf32>
    %17 = arith.subf %13, %16 : vector<64x64xf32>
    %18 = math.exp %17 : vector<64x64xf32>
    %cst_14 = arith.constant dense<0.000000e+00> : vector<64xf32>
    %19 = vector.multi_reduction <add>, %18, %cst_14 [1] : vector<64x64xf32> to vector<64xf32>
    %20 = vector.shape_cast %19 : vector<64xf32> to vector<64x1xf32>
    %21 = tpu.reciprocal %20 {approx = true} : vector<64x1xf32> -> vector<64x1xf32>
    %22 = arith.mulf %20, %21 : vector<64x1xf32>
    %cst_15 = arith.constant 2.000000e+00 : f32
    %23 = vector.broadcast %cst_15 : f32 to vector<64x1xf32>
    %24 = arith.subf %23, %22 : vector<64x1xf32>
    %25 = arith.mulf %21, %24 : vector<64x1xf32>
    %26 = vector.broadcast %25 : vector<64x1xf32> to vector<64x64xf32>
    %27 = arith.mulf %18, %26 : vector<64x64xf32>
    %cst_16 = arith.constant dense<0.000000e+00> : vector<64x8xf32>
    %28 = tpu.matmul %27, %12, %cst_16 {dimension_numbers = #tpu.dot_dimension_numbers<[1], [0], [0], [1], [0, 0, 1, 1], [], []>} : vector<64x64xf32>, vector<64x8xf32>, vector<64x8xf32> -> vector<64x8xf32>
    %c0_17 = arith.constant 0 : index
    %c0_18 = arith.constant 0 : index
    %29 = vector.load %arg11[%c0_17, %c0_18] : memref<64x32xf32, #tpu.memory_space<vmem>>, vector<64x8xf32>
    tpu.vector_store %arg11[%c0_17, %c0_18], %28 {strides = array<i32>} : memref<64x32xf32, #tpu.memory_space<vmem>>, vector<64x8xf32>,
    %c0_19 = arith.constant 0 : index
    %c8 = arith.constant 8 : index
    %30 = vector.load %arg10[%c0_19, %c8] : memref<64x96xf32, #tpu.memory_space<vmem>>, vector<64x8xf32>
    %cst_20 = arith.constant 0.353553385 : f32
    %31 = vector.broadcast %cst_20 : f32 to vector<64x8xf32>
    %32 = arith.mulf %30, %31 : vector<64x8xf32>
    %c0_21 = arith.constant 0 : index
    %c40 = arith.constant 40 : index
    %33 = vector.load %arg10[%c0_21, %c40] : memref<64x96xf32, #tpu.memory_space<vmem>>, vector<64x8xf32>
    %c0_22 = arith.constant 0 : index
    %c72 = arith.constant 72 : index
    %34 = vector.load %arg10[%c0_22, %c72] : memref<64x96xf32, #tpu.memory_space<vmem>>, vector<64x8xf32>
    %cst_23 = arith.constant dense<0.000000e+00> : vector<64x64xf32>
    %35 = tpu.matmul %32, %33, %cst_23 {dimension_numbers = #tpu.dot_dimension_numbers<[1], [1], [0], [0], [0, 0, 1, 0], [], []>} : vector<64x8xf32>, vector<64x8xf32>, vector<64x64xf32> -> vector<64x64xf32>
    %cst_24 = arith.constant dense<0xFF800000> : vector<64xf32>
    %36 = vector.multi_reduction <maximumf>, %35, %cst_24 [1] : vector<64x64xf32> to vector<64xf32>
    %37 = vector.shape_cast %36 : vector<64xf32> to vector<64x1xf32>
    %38 = vector.broadcast %37 : vector<64x1xf32> to vector<64x64xf32>
    %39 = arith.subf %35, %38 : vector<64x64xf32>
    %40 = math.exp %39 : vector<64x64xf32>
    %cst_25 = arith.constant dense<0.000000e+00> : vector<64xf32>
    %41 = vector.multi_reduction <add>, %40, %cst_25 [1] : vector<64x64xf32> to vector<64xf32>
    %42 = vector.shape_cast %41 : vector<64xf32> to vector<64x1xf32>
    %43 = tpu.reciprocal %42 {approx = true} : vector<64x1xf32> -> vector<64x1xf32>
    %44 = arith.mulf %42, %43 : vector<64x1xf32>
    %cst_26 = arith.constant 2.000000e+00 : f32
    %45 = vector.broadcast %cst_26 : f32 to vector<64x1xf32>
    %46 = arith.subf %45, %44 : vector<64x1xf32>
    %47 = arith.mulf %43, %46 : vector<64x1xf32>
    %48 = vector.broadcast %47 : vector<64x1xf32> to vector<64x64xf32>
    %49 = arith.mulf %40, %48 : vector<64x64xf32>
    %cst_27 = arith.constant dense<0.000000e+00> : vector<64x8xf32>
    %50 = tpu.matmul %49, %34, %cst_27 {dimension_numbers = #tpu.dot_dimension_numbers<[1], [0], [0], [1], [0, 0, 1, 1], [], []>} : vector<64x64xf32>, vector<64x8xf32>, vector<64x8xf32> -> vector<64x8xf32>
    %c0_28 = arith.constant 0 : index
    %c8_29 = arith.constant 8 : index
    %51 = vector.load %arg11[%c0_28, %c8_29] : memref<64x32xf32, #tpu.memory_space<vmem>>, vector<64x8xf32>
    tpu.vector_store %arg11[%c0_28, %c8_29], %50 {strides = array<i32>} : memref<64x32xf32, #tpu.memory_space<vmem>>, vector<64x8xf32>,
    %c0_30 = arith.constant 0 : index
    %c16 = arith.constant 16 : index
    %52 = vector.load %arg10[%c0_30, %c16] : memref<64x96xf32, #tpu.memory_space<vmem>>, vector<64x8xf32>
    %cst_31 = arith.constant 0.353553385 : f32
    %53 = vector.broadcast %cst_31 : f32 to vector<64x8xf32>
    %54 = arith.mulf %52, %53 : vector<64x8xf32>
    %c0_32 = arith.constant 0 : index
    %c48 = arith.constant 48 : index
    %55 = vector.load %arg10[%c0_32, %c48] : memref<64x96xf32, #tpu.memory_space<vmem>>, vector<64x8xf32>
    %c0_33 = arith.constant 0 : index
    %c80 = arith.constant 80 : index
    %56 = vector.load %arg10[%c0_33, %c80] : memref<64x96xf32, #tpu.memory_space<vmem>>, vector<64x8xf32>
    %cst_34 = arith.constant dense<0.000000e+00> : vector<64x64xf32>
    %57 = tpu.matmul %54, %55, %cst_34 {dimension_numbers = #tpu.dot_dimension_numbers<[1], [1], [0], [0], [0, 0, 1, 0], [], []>} : vector<64x8xf32>, vector<64x8xf32>, vector<64x64xf32> -> vector<64x64xf32>
    %cst_35 = arith.constant dense<0xFF800000> : vector<64xf32>
    %58 = vector.multi_reduction <maximumf>, %57, %cst_35 [1] : vector<64x64xf32> to vector<64xf32>
    %59 = vector.shape_cast %58 : vector<64xf32> to vector<64x1xf32>
    %60 = vector.broadcast %59 : vector<64x1xf32> to vector<64x64xf32>
    %61 = arith.subf %57, %60 : vector<64x64xf32>
    %62 = math.exp %61 : vector<64x64xf32>
    %cst_36 = arith.constant dense<0.000000e+00> : vector<64xf32>
    %63 = vector.multi_reduction <add>, %62, %cst_36 [1] : vector<64x64xf32> to vector<64xf32>
    %64 = vector.shape_cast %63 : vector<64xf32> to vector<64x1xf32>
    %65 = tpu.reciprocal %64 {approx = true} : vector<64x1xf32> -> vector<64x1xf32>
    %66 = arith.mulf %64, %65 : vector<64x1xf32>
    %cst_37 = arith.constant 2.000000e+00 : f32
    %67 = vector.broadcast %cst_37 : f32 to vector<64x1xf32>
    %68 = arith.subf %67, %66 : vector<64x1xf32>
    %69 = arith.mulf %65, %68 : vector<64x1xf32>
    %70 = vector.broadcast %69 : vector<64x1xf32> to vector<64x64xf32>
    %71 = arith.mulf %62, %70 : vector<64x64xf32>
    %cst_38 = arith.constant dense<0.000000e+00> : vector<64x8xf32>
    %72 = tpu.matmul %71, %56, %cst_38 {dimension_numbers = #tpu.dot_dimension_numbers<[1], [0], [0], [1], [0, 0, 1, 1], [], []>} : vector<64x64xf32>, vector<64x8xf32>, vector<64x8xf32> -> vector<64x8xf32>
    %c0_39 = arith.constant 0 : index
    %c16_40 = arith.constant 16 : index
    %73 = vector.load %arg11[%c0_39, %c16_40] : memref<64x32xf32, #tpu.memory_space<vmem>>, vector<64x8xf32>
    tpu.vector_store %arg11[%c0_39, %c16_40], %72 {strides = array<i32>} : memref<64x32xf32, #tpu.memory_space<vmem>>, vector<64x8xf32>,
    %c0_41 = arith.constant 0 : index
    %c24 = arith.constant 24 : index
    %74 = vector.load %arg10[%c0_41, %c24] : memref<64x96xf32, #tpu.memory_space<vmem>>, vector<64x8xf32>
    %cst_42 = arith.constant 0.353553385 : f32
    %75 = vector.broadcast %cst_42 : f32 to vector<64x8xf32>
    %76 = arith.mulf %74, %75 : vector<64x8xf32>
    %c0_43 = arith.constant 0 : index
    %c56 = arith.constant 56 : index
    %77 = vector.load %arg10[%c0_43, %c56] : memref<64x96xf32, #tpu.memory_space<vmem>>, vector<64x8xf32>
    %c0_44 = arith.constant 0 : index
    %c88 = arith.constant 88 : index
    %78 = vector.load %arg10[%c0_44, %c88] : memref<64x96xf32, #tpu.memory_space<vmem>>, vector<64x8xf32>
    %cst_45 = arith.constant dense<0.000000e+00> : vector<64x64xf32>
    %79 = tpu.matmul %76, %77, %cst_45 {dimension_numbers = #tpu.dot_dimension_numbers<[1], [1], [0], [0], [0, 0, 1, 0], [], []>} : vector<64x8xf32>, vector<64x8xf32>, vector<64x64xf32> -> vector<64x64xf32>
    %cst_46 = arith.constant dense<0xFF800000> : vector<64xf32>
    %80 = vector.multi_reduction <maximumf>, %79, %cst_46 [1] : vector<64x64xf32> to vector<64xf32>
    %81 = vector.shape_cast %80 : vector<64xf32> to vector<64x1xf32>
    %82 = vector.broadcast %81 : vector<64x1xf32> to vector<64x64xf32>
    %83 = arith.subf %79, %82 : vector<64x64xf32>
    %84 = math.exp %83 : vector<64x64xf32>
    %cst_47 = arith.constant dense<0.000000e+00> : vector<64xf32>
    %85 = vector.multi_reduction <add>, %84, %cst_47 [1] : vector<64x64xf32> to vector<64xf32>
    %86 = vector.shape_cast %85 : vector<64xf32> to vector<64x1xf32>
    %87 = tpu.reciprocal %86 {approx = true} : vector<64x1xf32> -> vector<64x1xf32>
    %88 = arith.mulf %86, %87 : vector<64x1xf32>
    %cst_48 = arith.constant 2.000000e+00 : f32
    %89 = vector.broadcast %cst_48 : f32 to vector<64x1xf32>
    %90 = arith.subf %89, %88 : vector<64x1xf32>
    %91 = arith.mulf %87, %90 : vector<64x1xf32>
    %92 = vector.broadcast %91 : vector<64x1xf32> to vector<64x64xf32>
    %93 = arith.mulf %84, %92 : vector<64x64xf32>
    %cst_49 = arith.constant dense<0.000000e+00> : vector<64x8xf32>
    %94 = tpu.matmul %93, %78, %cst_49 {dimension_numbers = #tpu.dot_dimension_numbers<[1], [0], [0], [1], [0, 0, 1, 1], [], []>} : vector<64x64xf32>, vector<64x8xf32>, vector<64x8xf32> -> vector<64x8xf32>
    %c0_50 = arith.constant 0 : index
    %c24_51 = arith.constant 24 : index
    %95 = vector.load %arg11[%c0_50, %c24_51] : memref<64x32xf32, #tpu.memory_space<vmem>>, vector<64x8xf32>
    tpu.vector_store %arg11[%c0_50, %c24_51], %94 {strides = array<i32>} : memref<64x32xf32, #tpu.memory_space<vmem>>, vector<64x8xf32>,
    %c0_52 = arith.constant 0 : index
    %c0_53 = arith.constant 0 : index
    %96 = vector.load %arg11[%c0_52, %c0_53] : memref<64x32xf32, #tpu.memory_space<vmem>>, vector<64x32xf32>
    %c0_54 = arith.constant 0 : index
    %c0_55 = arith.constant 0 : index
    %c0_56 = arith.constant 0 : index
    %97 = vector.load %arg4[%c0_54, %c0_55, %c0_56] : memref<1x32x32xf32, #tpu.memory_space<vmem>>, vector<1x32x32xf32>
    %98 = vector.shape_cast %97 : vector<1x32x32xf32> to vector<32x32xf32>
    %cst_57 = arith.constant dense<0.000000e+00> : vector<64x32xf32>
    %99 = tpu.matmul %96, %98, %cst_57 {dimension_numbers = #tpu.dot_dimension_numbers<[1], [0], [0], [1], [0, 0, 1, 1], [], []>} : vector<64x32xf32>, vector<32x32xf32>, vector<64x32xf32> -> vector<64x32xf32>
    %c0_58 = arith.constant 0 : index
    %c0_59 = arith.constant 0 : index
    %c0_60 = arith.constant 0 : index
    %100 = vector.load %arg8[%c0_58, %c0_59, %c0_60] : memref<1x13x32xf32, #tpu.memory_space<vmem>>, vector<1x1x32xf32>
    %101 = vector.shape_cast %100 : vector<1x1x32xf32> to vector<1x32xf32>
    %102 = vector.broadcast %101 : vector<1x32xf32> to vector<64x32xf32>
    %103 = arith.addf %99, %102 : vector<64x32xf32>
    %cst_61 = arith.constant dense<0.000000e+00> : vector<64xf32>
    %104 = vector.multi_reduction <add>, %103, %cst_61 [1] : vector<64x32xf32> to vector<64xf32>
    %105 = vector.shape_cast %104 : vector<64xf32> to vector<64x1xf32>
    %cst_62 = arith.constant 3.200000e+01 : f32
    %106 = vector.broadcast %cst_62 : f32 to vector<64x1xf32>
    %107 = arith.divf %105, %106 : vector<64x1xf32>
    %108 = vector.broadcast %107 : vector<64x1xf32> to vector<64x32xf32>
    %109 = arith.subf %103, %108 : vector<64x32xf32>
    %110 = arith.mulf %109, %109 : vector<64x32xf32>
    %cst_63 = arith.constant dense<0.000000e+00> : vector<64xf32>
    %111 = vector.multi_reduction <add>, %110, %cst_63 [1] : vector<64x32xf32> to vector<64xf32>
    %112 = vector.shape_cast %111 : vector<64xf32> to vector<64x1xf32>
    %cst_64 = arith.constant 3.200000e+01 : f32
    %113 = vector.broadcast %cst_64 : f32 to vector<64x1xf32>
    %114 = arith.divf %112, %113 : vector<64x1xf32>
    %c0_65 = arith.constant 0 : index
    %c1 = arith.constant 1 : index
    %c0_66 = arith.constant 0 : index
    %115 = vector.load %arg8[%c0_65, %c1, %c0_66] : memref<1x13x32xf32, #tpu.memory_space<vmem>>, vector<1x1x32xf32>
    %116 = vector.shape_cast %115 : vector<1x1x32xf32> to vector<1x32xf32>
    %c0_67 = arith.constant 0 : index
    %c2 = arith.constant 2 : index
    %c0_68 = arith.constant 0 : index
    %117 = vector.load %arg8[%c0_67, %c2, %c0_68] : memref<1x13x32xf32, #tpu.memory_space<vmem>>, vector<1x1x32xf32>
    %118 = vector.shape_cast %117 : vector<1x1x32xf32> to vector<1x32xf32>
    %119 = vector.broadcast %107 : vector<64x1xf32> to vector<64x32xf32>
    %120 = arith.subf %103, %119 : vector<64x32xf32>
    %cst_69 = arith.constant 9.99999974E-6 : f32
    %121 = vector.broadcast %cst_69 : f32 to vector<64x1xf32>
    %122 = arith.addf %114, %121 : vector<64x1xf32>
    %123 = math.rsqrt %122 : vector<64x1xf32>
    %124 = vector.broadcast %123 : vector<64x1xf32> to vector<64x32xf32>
    %125 = arith.mulf %120, %124 : vector<64x32xf32>
    %126 = vector.broadcast %116 : vector<1x32xf32> to vector<64x32xf32>
    %127 = arith.mulf %125, %126 : vector<64x32xf32>
    %128 = vector.broadcast %118 : vector<1x32xf32> to vector<64x32xf32>
    %129 = arith.addf %127, %128 : vector<64x32xf32>
    %130 = arith.addf %3, %129 : vector<64x32xf32>
    %c0_70 = arith.constant 0 : index
    %c0_71 = arith.constant 0 : index
    %c0_72 = arith.constant 0 : index
    %131 = vector.load %arg5[%c0_70, %c0_71, %c0_72] : memref<1x32x32xf32, #tpu.memory_space<vmem>>, vector<1x32x32xf32>
    %132 = vector.shape_cast %131 : vector<1x32x32xf32> to vector<32x32xf32>
    %cst_73 = arith.constant dense<0.000000e+00> : vector<64x32xf32>
    %133 = tpu.matmul %130, %132, %cst_73 {dimension_numbers = #tpu.dot_dimension_numbers<[1], [0], [0], [1], [0, 0, 1, 1], [], []>} : vector<64x32xf32>, vector<32x32xf32>, vector<64x32xf32> -> vector<64x32xf32>
    %c0_74 = arith.constant 0 : index
    %c3 = arith.constant 3 : index
    %c0_75 = arith.constant 0 : index
    %134 = vector.load %arg8[%c0_74, %c3, %c0_75] : memref<1x13x32xf32, #tpu.memory_space<vmem>>, vector<1x1x32xf32>
    %135 = vector.shape_cast %134 : vector<1x1x32xf32> to vector<1x32xf32>
    %136 = vector.broadcast %135 : vector<1x32xf32> to vector<64x32xf32>
    %137 = arith.addf %133, %136 : vector<64x32xf32>
    %c24_76 = arith.constant 24 : index
    %c0_77 = arith.constant 0 : index
    %138 = vector.load %arg12[%c24_76, %c0_77] : memref<112x32xf32, #tpu.memory_space<vmem>>, vector<64x32xf32>
    tpu.vector_store %arg12[%c24_76, %c0_77], %137 {strides = array<i32>} : memref<112x32xf32, #tpu.memory_space<vmem>>, vector<64x32xf32>,
    %cst_78 = arith.constant 0.000000e+00 : f32
    %139 = vector.broadcast %cst_78 : f32 to vector<64x32xf32>
    %c0_79 = arith.constant 0 : index
    %c0_80 = arith.constant 0 : index
    %c0_81 = arith.constant 0 : index
    %140 = vector.load %arg7[%c0_79, %c0_80, %c0_81] : memref<1x81x32xf32, #tpu.memory_space<vmem>>, vector<1x1x32xf32>
    %141 = vector.shape_cast %140 : vector<1x1x32xf32> to vector<1x32xf32>
    %c3_82 = arith.constant 3 : index
    %c0_83 = arith.constant 0 : index
    %142 = vector.load %arg12[%c3_82, %c0_83] : memref<112x32xf32, #tpu.memory_space<vmem>>, vector<64x32xf32>
    %143 = vector.broadcast %141 : vector<1x32xf32> to vector<64x32xf32>
    %144 = arith.mulf %142, %143 : vector<64x32xf32>
    %c0_84 = arith.constant 0 : index
    %c9 = arith.constant 9 : index
    %c0_85 = arith.constant 0 : index
    %145 = vector.load %arg7[%c0_84, %c9, %c0_85] : memref<1x81x32xf32, #tpu.memory_space<vmem>>, vector<1x1x32xf32>
    %146 = vector.shape_cast %145 : vector<1x1x32xf32> to vector<1x32xf32>
    %c19 = arith.constant 19 : index
    %c0_86 = arith.constant 0 : index
    %147 = vector.load %arg12[%c19, %c0_86] : memref<112x32xf32, #tpu.memory_space<vmem>>, vector<64x32xf32>
    %148 = vector.broadcast %146 : vector<1x32xf32> to vector<64x32xf32>
    %149 = arith.mulf %147, %148 : vector<64x32xf32>
    %150 = arith.addf %144, %149 : vector<64x32xf32>
    %c0_87 = arith.constant 0 : index
    %c18 = arith.constant 18 : index
    %c0_88 = arith.constant 0 : index
    %151 = vector.load %arg7[%c0_87, %c18, %c0_88] : memref<1x81x32xf32, #tpu.memory_space<vmem>>, vector<1x1x32xf32>
    %152 = vector.shape_cast %151 : vector<1x1x32xf32> to vector<1x32xf32>
    %c35 = arith.constant 35 : index
    %c0_89 = arith.constant 0 : index
    %153 = vector.load %arg12[%c35, %c0_89] : memref<112x32xf32, #tpu.memory_space<vmem>>, vector<64x32xf32>
    %154 = vector.broadcast %152 : vector<1x32xf32> to vector<64x32xf32>
    %155 = arith.mulf %153, %154 : vector<64x32xf32>
    %156 = arith.addf %150, %155 : vector<64x32xf32>
    %c0_90 = arith.constant 0 : index
    %c0_91 = arith.constant 0 : index
    %c0_92 = arith.constant 0 : index
    %157 = vector.load %arg13[%c0_90, %c0_91, %c0_92] : memref<9x64x32xf32, #tpu.memory_space<vmem>>, vector<1x64x32xf32>
    %158 = vector.shape_cast %157 : vector<1x64x32xf32> to vector<64x32xf32>
    %159 = arith.mulf %156, %158 : vector<64x32xf32>
    %160 = arith.addf %139, %159 : vector<64x32xf32>
    %c0_93 = arith.constant 0 : index
    %c1_94 = arith.constant 1 : index
    %c0_95 = arith.constant 0 : index
    %161 = vector.load %arg7[%c0_93, %c1_94, %c0_95] : memref<1x81x32xf32, #tpu.memory_space<vmem>>, vector<1x1x32xf32>
    %162 = vector.shape_cast %161 : vector<1x1x32xf32> to vector<1x32xf32>
    %c4 = arith.constant 4 : index
    %c0_96 = arith.constant 0 : index
    %163 = vector.load %arg12[%c4, %c0_96] : memref<112x32xf32, #tpu.memory_space<vmem>>, vector<64x32xf32>
    %164 = vector.broadcast %162 : vector<1x32xf32> to vector<64x32xf32>
    %165 = arith.mulf %163, %164 : vector<64x32xf32>
    %c0_97 = arith.constant 0 : index
    %c10 = arith.constant 10 : index
    %c0_98 = arith.constant 0 : index
    %166 = vector.load %arg7[%c0_97, %c10, %c0_98] : memref<1x81x32xf32, #tpu.memory_space<vmem>>, vector<1x1x32xf32>
    %167 = vector.shape_cast %166 : vector<1x1x32xf32> to vector<1x32xf32>
    %c20 = arith.constant 20 : index
    %c0_99 = arith.constant 0 : index
    %168 = vector.load %arg12[%c20, %c0_99] : memref<112x32xf32, #tpu.memory_space<vmem>>, vector<64x32xf32>
    %169 = vector.broadcast %167 : vector<1x32xf32> to vector<64x32xf32>
    %170 = arith.mulf %168, %169 : vector<64x32xf32>
    %171 = arith.addf %165, %170 : vector<64x32xf32>
    %c0_100 = arith.constant 0 : index
    %c19_101 = arith.constant 19 : index
    %c0_102 = arith.constant 0 : index
    %172 = vector.load %arg7[%c0_100, %c19_101, %c0_102] : memref<1x81x32xf32, #tpu.memory_space<vmem>>, vector<1x1x32xf32>
    %173 = vector.shape_cast %172 : vector<1x1x32xf32> to vector<1x32xf32>
    %c36 = arith.constant 36 : index
    %c0_103 = arith.constant 0 : index
    %174 = vector.load %arg12[%c36, %c0_103] : memref<112x32xf32, #tpu.memory_space<vmem>>, vector<64x32xf32>
    %175 = vector.broadcast %173 : vector<1x32xf32> to vector<64x32xf32>
    %176 = arith.mulf %174, %175 : vector<64x32xf32>
    %177 = arith.addf %171, %176 : vector<64x32xf32>
    %c1_104 = arith.constant 1 : index
    %c0_105 = arith.constant 0 : index
    %c0_106 = arith.constant 0 : index
    %178 = vector.load %arg13[%c1_104, %c0_105, %c0_106] : memref<9x64x32xf32, #tpu.memory_space<vmem>>, vector<1x64x32xf32>
    %179 = vector.shape_cast %178 : vector<1x64x32xf32> to vector<64x32xf32>
    %180 = arith.mulf %177, %179 : vector<64x32xf32>
    %181 = arith.addf %160, %180 : vector<64x32xf32>
    %c0_107 = arith.constant 0 : index
    %c2_108 = arith.constant 2 : index
    %c0_109 = arith.constant 0 : index
    %182 = vector.load %arg7[%c0_107, %c2_108, %c0_109] : memref<1x81x32xf32, #tpu.memory_space<vmem>>, vector<1x1x32xf32>
    %183 = vector.shape_cast %182 : vector<1x1x32xf32> to vector<1x32xf32>
    %c5 = arith.constant 5 : index
    %c0_110 = arith.constant 0 : index
    %184 = vector.load %arg12[%c5, %c0_110] : memref<112x32xf32, #tpu.memory_space<vmem>>, vector<64x32xf32>
    %185 = vector.broadcast %183 : vector<1x32xf32> to vector<64x32xf32>
    %186 = arith.mulf %184, %185 : vector<64x32xf32>
    %c0_111 = arith.constant 0 : index
    %c11 = arith.constant 11 : index
    %c0_112 = arith.constant 0 : index
    %187 = vector.load %arg7[%c0_111, %c11, %c0_112] : memref<1x81x32xf32, #tpu.memory_space<vmem>>, vector<1x1x32xf32>
    %188 = vector.shape_cast %187 : vector<1x1x32xf32> to vector<1x32xf32>
    %c21 = arith.constant 21 : index
    %c0_113 = arith.constant 0 : index
    %189 = vector.load %arg12[%c21, %c0_113] : memref<112x32xf32, #tpu.memory_space<vmem>>, vector<64x32xf32>
    %190 = vector.broadcast %188 : vector<1x32xf32> to vector<64x32xf32>
    %191 = arith.mulf %189, %190 : vector<64x32xf32>
    %192 = arith.addf %186, %191 : vector<64x32xf32>
    %c0_114 = arith.constant 0 : index
    %c20_115 = arith.constant 20 : index
    %c0_116 = arith.constant 0 : index
    %193 = vector.load %arg7[%c0_114, %c20_115, %c0_116] : memref<1x81x32xf32, #tpu.memory_space<vmem>>, vector<1x1x32xf32>
    %194 = vector.shape_cast %193 : vector<1x1x32xf32> to vector<1x32xf32>
    %c37 = arith.constant 37 : index
    %c0_117 = arith.constant 0 : index
    %195 = vector.load %arg12[%c37, %c0_117] : memref<112x32xf32, #tpu.memory_space<vmem>>, vector<64x32xf32>
    %196 = vector.broadcast %194 : vector<1x32xf32> to vector<64x32xf32>
    %197 = arith.mulf %195, %196 : vector<64x32xf32>
    %198 = arith.addf %192, %197 : vector<64x32xf32>
    %c2_118 = arith.constant 2 : index
    %c0_119 = arith.constant 0 : index
    %c0_120 = arith.constant 0 : index
    %199 = vector.load %arg13[%c2_118, %c0_119, %c0_120] : memref<9x64x32xf32, #tpu.memory_space<vmem>>, vector<1x64x32xf32>
    %200 = vector.shape_cast %199 : vector<1x64x32xf32> to vector<64x32xf32>
    %201 = arith.mulf %198, %200 : vector<64x32xf32>
    %202 = arith.addf %181, %201 : vector<64x32xf32>
    %c0_121 = arith.constant 0 : index
    %c3_122 = arith.constant 3 : index
    %c0_123 = arith.constant 0 : index
    %203 = vector.load %arg7[%c0_121, %c3_122, %c0_123] : memref<1x81x32xf32, #tpu.memory_space<vmem>>, vector<1x1x32xf32>
    %204 = vector.shape_cast %203 : vector<1x1x32xf32> to vector<1x32xf32>
    %c7 = arith.constant 7 : index
    %c0_124 = arith.constant 0 : index
    %205 = vector.load %arg12[%c7, %c0_124] : memref<112x32xf32, #tpu.memory_space<vmem>>, vector<64x32xf32>
    %206 = vector.broadcast %204 : vector<1x32xf32> to vector<64x32xf32>
    %207 = arith.mulf %205, %206 : vector<64x32xf32>
    %c0_125 = arith.constant 0 : index
    %c12 = arith.constant 12 : index
    %c0_126 = arith.constant 0 : index
    %208 = vector.load %arg7[%c0_125, %c12, %c0_126] : memref<1x81x32xf32, #tpu.memory_space<vmem>>, vector<1x1x32xf32>
    %209 = vector.shape_cast %208 : vector<1x1x32xf32> to vector<1x32xf32>
    %c23 = arith.constant 23 : index
    %c0_127 = arith.constant 0 : index
    %210 = vector.load %arg12[%c23, %c0_127] : memref<112x32xf32, #tpu.memory_space<vmem>>, vector<64x32xf32>
    %211 = vector.broadcast %209 : vector<1x32xf32> to vector<64x32xf32>
    %212 = arith.mulf %210, %211 : vector<64x32xf32>
    %213 = arith.addf %207, %212 : vector<64x32xf32>
    %c0_128 = arith.constant 0 : index
    %c21_129 = arith.constant 21 : index
    %c0_130 = arith.constant 0 : index
    %214 = vector.load %arg7[%c0_128, %c21_129, %c0_130] : memref<1x81x32xf32, #tpu.memory_space<vmem>>, vector<1x1x32xf32>
    %215 = vector.shape_cast %214 : vector<1x1x32xf32> to vector<1x32xf32>
    %c39 = arith.constant 39 : index
    %c0_131 = arith.constant 0 : index
    %216 = vector.load %arg12[%c39, %c0_131] : memref<112x32xf32, #tpu.memory_space<vmem>>, vector<64x32xf32>
    %217 = vector.broadcast %215 : vector<1x32xf32> to vector<64x32xf32>
    %218 = arith.mulf %216, %217 : vector<64x32xf32>
    %219 = arith.addf %213, %218 : vector<64x32xf32>
    %c3_132 = arith.constant 3 : index
    %c0_133 = arith.constant 0 : index
    %c0_134 = arith.constant 0 : index
    %220 = vector.load %arg13[%c3_132, %c0_133, %c0_134] : memref<9x64x32xf32, #tpu.memory_space<vmem>>, vector<1x64x32xf32>
    %221 = vector.shape_cast %220 : vector<1x64x32xf32> to vector<64x32xf32>
    %222 = arith.mulf %219, %221 : vector<64x32xf32>
    %223 = arith.addf %202, %222 : vector<64x32xf32>
    %c0_135 = arith.constant 0 : index
    %c4_136 = arith.constant 4 : index
    %c0_137 = arith.constant 0 : index
    %224 = vector.load %arg7[%c0_135, %c4_136, %c0_137] : memref<1x81x32xf32, #tpu.memory_space<vmem>>, vector<1x1x32xf32>
    %225 = vector.shape_cast %224 : vector<1x1x32xf32> to vector<1x32xf32>
    %c8_138 = arith.constant 8 : index
    %c0_139 = arith.constant 0 : index
    %226 = vector.load %arg12[%c8_138, %c0_139] : memref<112x32xf32, #tpu.memory_space<vmem>>, vector<64x32xf32>
    %227 = vector.broadcast %225 : vector<1x32xf32> to vector<64x32xf32>
    %228 = arith.mulf %226, %227 : vector<64x32xf32>
    %c0_140 = arith.constant 0 : index
    %c13 = arith.constant 13 : index
    %c0_141 = arith.constant 0 : index
    %229 = vector.load %arg7[%c0_140, %c13, %c0_141] : memref<1x81x32xf32, #tpu.memory_space<vmem>>, vector<1x1x32xf32>
    %230 = vector.shape_cast %229 : vector<1x1x32xf32> to vector<1x32xf32>
    %c24_142 = arith.constant 24 : index
    %c0_143 = arith.constant 0 : index
    %231 = vector.load %arg12[%c24_142, %c0_143] : memref<112x32xf32, #tpu.memory_space<vmem>>, vector<64x32xf32>
    %232 = vector.broadcast %230 : vector<1x32xf32> to vector<64x32xf32>
    %233 = arith.mulf %231, %232 : vector<64x32xf32>
    %234 = arith.addf %228, %233 : vector<64x32xf32>
    %c0_144 = arith.constant 0 : index
    %c22 = arith.constant 22 : index
    %c0_145 = arith.constant 0 : index
    %235 = vector.load %arg7[%c0_144, %c22, %c0_145] : memref<1x81x32xf32, #tpu.memory_space<vmem>>, vector<1x1x32xf32>
    %236 = vector.shape_cast %235 : vector<1x1x32xf32> to vector<1x32xf32>
    %c40_146 = arith.constant 40 : index
    %c0_147 = arith.constant 0 : index
    %237 = vector.load %arg12[%c40_146, %c0_147] : memref<112x32xf32, #tpu.memory_space<vmem>>, vector<64x32xf32>
    %238 = vector.broadcast %236 : vector<1x32xf32> to vector<64x32xf32>
    %239 = arith.mulf %237, %238 : vector<64x32xf32>
    %240 = arith.addf %234, %239 : vector<64x32xf32>
    %241 = arith.addf %223, %240 : vector<64x32xf32>
    %c0_148 = arith.constant 0 : index
    %c5_149 = arith.constant 5 : index
    %c0_150 = arith.constant 0 : index
    %242 = vector.load %arg7[%c0_148, %c5_149, %c0_150] : memref<1x81x32xf32, #tpu.memory_space<vmem>>, vector<1x1x32xf32>
    %243 = vector.shape_cast %242 : vector<1x1x32xf32> to vector<1x32xf32>
    %c9_151 = arith.constant 9 : index
    %c0_152 = arith.constant 0 : index
    %244 = vector.load %arg12[%c9_151, %c0_152] : memref<112x32xf32, #tpu.memory_space<vmem>>, vector<64x32xf32>
    %245 = vector.broadcast %243 : vector<1x32xf32> to vector<64x32xf32>
    %246 = arith.mulf %244, %245 : vector<64x32xf32>
    %c0_153 = arith.constant 0 : index
    %c14 = arith.constant 14 : index
    %c0_154 = arith.constant 0 : index
    %247 = vector.load %arg7[%c0_153, %c14, %c0_154] : memref<1x81x32xf32, #tpu.memory_space<vmem>>, vector<1x1x32xf32>
    %248 = vector.shape_cast %247 : vector<1x1x32xf32> to vector<1x32xf32>
    %c25 = arith.constant 25 : index
    %c0_155 = arith.constant 0 : index
    %249 = vector.load %arg12[%c25, %c0_155] : memref<112x32xf32, #tpu.memory_space<vmem>>, vector<64x32xf32>
    %250 = vector.broadcast %248 : vector<1x32xf32> to vector<64x32xf32>
    %251 = arith.mulf %249, %250 : vector<64x32xf32>
    %252 = arith.addf %246, %251 : vector<64x32xf32>
    %c0_156 = arith.constant 0 : index
    %c23_157 = arith.constant 23 : index
    %c0_158 = arith.constant 0 : index
    %253 = vector.load %arg7[%c0_156, %c23_157, %c0_158] : memref<1x81x32xf32, #tpu.memory_space<vmem>>, vector<1x1x32xf32>
    %254 = vector.shape_cast %253 : vector<1x1x32xf32> to vector<1x32xf32>
    %c41 = arith.constant 41 : index
    %c0_159 = arith.constant 0 : index
    %255 = vector.load %arg12[%c41, %c0_159] : memref<112x32xf32, #tpu.memory_space<vmem>>, vector<64x32xf32>
    %256 = vector.broadcast %254 : vector<1x32xf32> to vector<64x32xf32>
    %257 = arith.mulf %255, %256 : vector<64x32xf32>
    %258 = arith.addf %252, %257 : vector<64x32xf32>
    %c5_160 = arith.constant 5 : index
    %c0_161 = arith.constant 0 : index
    %c0_162 = arith.constant 0 : index
    %259 = vector.load %arg13[%c5_160, %c0_161, %c0_162] : memref<9x64x32xf32, #tpu.memory_space<vmem>>, vector<1x64x32xf32>
    %260 = vector.shape_cast %259 : vector<1x64x32xf32> to vector<64x32xf32>
    %261 = arith.mulf %258, %260 : vector<64x32xf32>
    %262 = arith.addf %241, %261 : vector<64x32xf32>
    %c0_163 = arith.constant 0 : index
    %c6 = arith.constant 6 : index
    %c0_164 = arith.constant 0 : index
    %263 = vector.load %arg7[%c0_163, %c6, %c0_164] : memref<1x81x32xf32, #tpu.memory_space<vmem>>, vector<1x1x32xf32>
    %264 = vector.shape_cast %263 : vector<1x1x32xf32> to vector<1x32xf32>
    %c11_165 = arith.constant 11 : index
    %c0_166 = arith.constant 0 : index
    %265 = vector.load %arg12[%c11_165, %c0_166] : memref<112x32xf32, #tpu.memory_space<vmem>>, vector<64x32xf32>
    %266 = vector.broadcast %264 : vector<1x32xf32> to vector<64x32xf32>
    %267 = arith.mulf %265, %266 : vector<64x32xf32>
    %c0_167 = arith.constant 0 : index
    %c15 = arith.constant 15 : index
    %c0_168 = arith.constant 0 : index
    %268 = vector.load %arg7[%c0_167, %c15, %c0_168] : memref<1x81x32xf32, #tpu.memory_space<vmem>>, vector<1x1x32xf32>
    %269 = vector.shape_cast %268 : vector<1x1x32xf32> to vector<1x32xf32>
    %c27 = arith.constant 27 : index
    %c0_169 = arith.constant 0 : index
    %270 = vector.load %arg12[%c27, %c0_169] : memref<112x32xf32, #tpu.memory_space<vmem>>, vector<64x32xf32>
    %271 = vector.broadcast %269 : vector<1x32xf32> to vector<64x32xf32>
    %272 = arith.mulf %270, %271 : vector<64x32xf32>
    %273 = arith.addf %267, %272 : vector<64x32xf32>
    %c0_170 = arith.constant 0 : index
    %c24_171 = arith.constant 24 : index
    %c0_172 = arith.constant 0 : index
    %274 = vector.load %arg7[%c0_170, %c24_171, %c0_172] : memref<1x81x32xf32, #tpu.memory_space<vmem>>, vector<1x1x32xf32>
    %275 = vector.shape_cast %274 : vector<1x1x32xf32> to vector<1x32xf32>
    %c43 = arith.constant 43 : index
    %c0_173 = arith.constant 0 : index
    %276 = vector.load %arg12[%c43, %c0_173] : memref<112x32xf32, #tpu.memory_space<vmem>>, vector<64x32xf32>
    %277 = vector.broadcast %275 : vector<1x32xf32> to vector<64x32xf32>
    %278 = arith.mulf %276, %277 : vector<64x32xf32>
    %279 = arith.addf %273, %278 : vector<64x32xf32>
    %c6_174 = arith.constant 6 : index
    %c0_175 = arith.constant 0 : index
    %c0_176 = arith.constant 0 : index
    %280 = vector.load %arg13[%c6_174, %c0_175, %c0_176] : memref<9x64x32xf32, #tpu.memory_space<vmem>>, vector<1x64x32xf32>
    %281 = vector.shape_cast %280 : vector<1x64x32xf32> to vector<64x32xf32>
    %282 = arith.mulf %279, %281 : vector<64x32xf32>
    %283 = arith.addf %262, %282 : vector<64x32xf32>
    %c0_177 = arith.constant 0 : index
    %c7_178 = arith.constant 7 : index
    %c0_179 = arith.constant 0 : index
    %284 = vector.load %arg7[%c0_177, %c7_178, %c0_179] : memref<1x81x32xf32, #tpu.memory_space<vmem>>, vector<1x1x32xf32>
    %285 = vector.shape_cast %284 : vector<1x1x32xf32> to vector<1x32xf32>
    %c12_180 = arith.constant 12 : index
    %c0_181 = arith.constant 0 : index
    %286 = vector.load %arg12[%c12_180, %c0_181] : memref<112x32xf32, #tpu.memory_space<vmem>>, vector<64x32xf32>
    %287 = vector.broadcast %285 : vector<1x32xf32> to vector<64x32xf32>
    %288 = arith.mulf %286, %287 : vector<64x32xf32>
    %c0_182 = arith.constant 0 : index
    %c16_183 = arith.constant 16 : index
    %c0_184 = arith.constant 0 : index
    %289 = vector.load %arg7[%c0_182, %c16_183, %c0_184] : memref<1x81x32xf32, #tpu.memory_space<vmem>>, vector<1x1x32xf32>
    %290 = vector.shape_cast %289 : vector<1x1x32xf32> to vector<1x32xf32>
    %c28 = arith.constant 28 : index
    %c0_185 = arith.constant 0 : index
    %291 = vector.load %arg12[%c28, %c0_185] : memref<112x32xf32, #tpu.memory_space<vmem>>, vector<64x32xf32>
    %292 = vector.broadcast %290 : vector<1x32xf32> to vector<64x32xf32>
    %293 = arith.mulf %291, %292 : vector<64x32xf32>
    %294 = arith.addf %288, %293 : vector<64x32xf32>
    %c0_186 = arith.constant 0 : index
    %c25_187 = arith.constant 25 : index
    %c0_188 = arith.constant 0 : index
    %295 = vector.load %arg7[%c0_186, %c25_187, %c0_188] : memref<1x81x32xf32, #tpu.memory_space<vmem>>, vector<1x1x32xf32>
    %296 = vector.shape_cast %295 : vector<1x1x32xf32> to vector<1x32xf32>
    %c44 = arith.constant 44 : index
    %c0_189 = arith.constant 0 : index
    %297 = vector.load %arg12[%c44, %c0_189] : memref<112x32xf32, #tpu.memory_space<vmem>>, vector<64x32xf32>
    %298 = vector.broadcast %296 : vector<1x32xf32> to vector<64x32xf32>
    %299 = arith.mulf %297, %298 : vector<64x32xf32>
    %300 = arith.addf %294, %299 : vector<64x32xf32>
    %c7_190 = arith.constant 7 : index
    %c0_191 = arith.constant 0 : index
    %c0_192 = arith.constant 0 : index
    %301 = vector.load %arg13[%c7_190, %c0_191, %c0_192] : memref<9x64x32xf32, #tpu.memory_space<vmem>>, vector<1x64x32xf32>
    %302 = vector.shape_cast %301 : vector<1x64x32xf32> to vector<64x32xf32>
    %303 = arith.mulf %300, %302 : vector<64x32xf32>
    %304 = arith.addf %283, %303 : vector<64x32xf32>
    %c0_193 = arith.constant 0 : index
    %c8_194 = arith.constant 8 : index
    %c0_195 = arith.constant 0 : index
    %305 = vector.load %arg7[%c0_193, %c8_194, %c0_195] : memref<1x81x32xf32, #tpu.memory_space<vmem>>, vector<1x1x32xf32>
    %306 = vector.shape_cast %305 : vector<1x1x32xf32> to vector<1x32xf32>
    %c13_196 = arith.constant 13 : index
    %c0_197 = arith.constant 0 : index
    %307 = vector.load %arg12[%c13_196, %c0_197] : memref<112x32xf32, #tpu.memory_space<vmem>>, vector<64x32xf32>
    %308 = vector.broadcast %306 : vector<1x32xf32> to vector<64x32xf32>
    %309 = arith.mulf %307, %308 : vector<64x32xf32>
    %c0_198 = arith.constant 0 : index
    %c17 = arith.constant 17 : index
    %c0_199 = arith.constant 0 : index
    %310 = vector.load %arg7[%c0_198, %c17, %c0_199] : memref<1x81x32xf32, #tpu.memory_space<vmem>>, vector<1x1x32xf32>
    %311 = vector.shape_cast %310 : vector<1x1x32xf32> to vector<1x32xf32>
    %c29 = arith.constant 29 : index
    %c0_200 = arith.constant 0 : index
    %312 = vector.load %arg12[%c29, %c0_200] : memref<112x32xf32, #tpu.memory_space<vmem>>, vector<64x32xf32>
    %313 = vector.broadcast %311 : vector<1x32xf32> to vector<64x32xf32>
    %314 = arith.mulf %312, %313 : vector<64x32xf32>
    %315 = arith.addf %309, %314 : vector<64x32xf32>
    %c0_201 = arith.constant 0 : index
    %c26 = arith.constant 26 : index
    %c0_202 = arith.constant 0 : index
    %316 = vector.load %arg7[%c0_201, %c26, %c0_202] : memref<1x81x32xf32, #tpu.memory_space<vmem>>, vector<1x1x32xf32>
    %317 = vector.shape_cast %316 : vector<1x1x32xf32> to vector<1x32xf32>
    %c45 = arith.constant 45 : index
    %c0_203 = arith.constant 0 : index
    %318 = vector.load %arg12[%c45, %c0_203] : memref<112x32xf32, #tpu.memory_space<vmem>>, vector<64x32xf32>
    %319 = vector.broadcast %317 : vector<1x32xf32> to vector<64x32xf32>
    %320 = arith.mulf %318, %319 : vector<64x32xf32>
    %321 = arith.addf %315, %320 : vector<64x32xf32>
    %c8_204 = arith.constant 8 : index
    %c0_205 = arith.constant 0 : index
    %c0_206 = arith.constant 0 : index
    %322 = vector.load %arg13[%c8_204, %c0_205, %c0_206] : memref<9x64x32xf32, #tpu.memory_space<vmem>>, vector<1x64x32xf32>
    %323 = vector.shape_cast %322 : vector<1x64x32xf32> to vector<64x32xf32>
    %324 = arith.mulf %321, %323 : vector<64x32xf32>
    %325 = arith.addf %304, %324 : vector<64x32xf32>
    %cst_207 = arith.constant 5.000000e-01 : f32
    %326 = vector.broadcast %cst_207 : f32 to vector<64x32xf32>
    %327 = arith.mulf %326, %325 : vector<64x32xf32>
    %cst_208 = arith.constant 0.707106769 : f32
    %328 = vector.broadcast %cst_208 : f32 to vector<64x32xf32>
    %329 = arith.mulf %325, %328 : vector<64x32xf32>
    %cst_209 = arith.constant -3.8325069 : f32
    %cst_210 = arith.constant 3.8325069 : f32
    %330 = vector.broadcast %cst_209 : f32 to vector<64x32xf32>
    %331 = arith.maximumf %330, %329 : vector<64x32xf32>
    %332 = vector.broadcast %cst_210 : f32 to vector<64x32xf32>
    %333 = arith.minimumf %332, %331 : vector<64x32xf32>
    %334 = arith.mulf %333, %333 : vector<64x32xf32>
    %cst_211 = arith.constant 2.29050653E-4 : f32
    %335 = vector.broadcast %cst_211 : f32 to vector<64x32xf32>
    %336 = arith.mulf %335, %334 : vector<64x32xf32>
    %cst_212 = arith.constant 0.00340829091 : f32
    %337 = vector.broadcast %cst_212 : f32 to vector<64x32xf32>
    %338 = arith.addf %336, %337 : vector<64x32xf32>
    %339 = arith.mulf %338, %334 : vector<64x32xf32>
    %cst_213 = arith.constant 0.0509556942 : f32
    %340 = vector.broadcast %cst_213 : f32 to vector<64x32xf32>
    %341 = arith.addf %339, %340 : vector<64x32xf32>
    %342 = arith.mulf %341, %334 : vector<64x32xf32>
    %cst_214 = arith.constant 0.185208321 : f32
    %343 = vector.broadcast %cst_214 : f32 to vector<64x32xf32>
    %344 = arith.addf %342, %343 : vector<64x32xf32>
    %345 = arith.mulf %344, %334 : vector<64x32xf32>
    %cst_215 = arith.constant 1.12837911 : f32
    %346 = vector.broadcast %cst_215 : f32 to vector<64x32xf32>
    %347 = arith.addf %345, %346 : vector<64x32xf32>
    %cst_216 = arith.constant -1.17916031E-7 : f32
    %348 = vector.broadcast %cst_216 : f32 to vector<64x32xf32>
    %349 = arith.mulf %348, %334 : vector<64x32xf32>
    %cst_217 = arith.constant 2.35479656E-5 : f32
    %350 = vector.broadcast %cst_217 : f32 to vector<64x32xf32>
    %351 = arith.addf %349, %350 : vector<64x32xf32>
    %352 = arith.mulf %351, %334 : vector<64x32xf32>
    %cst_218 = arith.constant 0.00101796258 : f32
    %353 = vector.broadcast %cst_218 : f32 to vector<64x32xf32>
    %354 = arith.addf %352, %353 : vector<64x32xf32>
    %355 = arith.mulf %354, %334 : vector<64x32xf32>
    %cst_219 = arith.constant 0.0140704699 : f32
    %356 = vector.broadcast %cst_219 : f32 to vector<64x32xf32>
    %357 = arith.addf %355, %356 : vector<64x32xf32>
    %358 = arith.mulf %357, %334 : vector<64x32xf32>
    %cst_220 = arith.constant 0.110985048 : f32
    %359 = vector.broadcast %cst_220 : f32 to vector<64x32xf32>
    %360 = arith.addf %358, %359 : vector<64x32xf32>
    %361 = arith.mulf %360, %334 : vector<64x32xf32>
    %cst_221 = arith.constant 0.497469246 : f32
    %362 = vector.broadcast %cst_221 : f32 to vector<64x32xf32>
    %363 = arith.addf %361, %362 : vector<64x32xf32>
    %364 = arith.mulf %363, %334 : vector<64x32xf32>
    %cst_222 = arith.constant 1.000000e+00 : f32
    %365 = vector.broadcast %cst_222 : f32 to vector<64x32xf32>
    %366 = arith.addf %364, %365 : vector<64x32xf32>
    %367 = tpu.reciprocal %366 {approx = true} : vector<64x32xf32> -> vector<64x32xf32>
    %368 = arith.mulf %366, %367 : vector<64x32xf32>
    %cst_223 = arith.constant 2.000000e+00 : f32
    %369 = vector.broadcast %cst_223 : f32 to vector<64x32xf32>
    %370 = arith.subf %369, %368 : vector<64x32xf32>
    %371 = arith.mulf %367, %370 : vector<64x32xf32>
    %372 = arith.mulf %333, %347 : vector<64x32xf32>
    %373 = arith.mulf %372, %371 : vector<64x32xf32>
    %cst_224 = arith.constant 1.000000e+00 : f32
    %374 = vector.broadcast %cst_224 : f32 to vector<64x32xf32>
    %375 = arith.addf %374, %373 : vector<64x32xf32>
    %376 = arith.mulf %327, %375 : vector<64x32xf32>
    %cst_225 = arith.constant dense<0.000000e+00> : vector<64xf32>
    %377 = vector.multi_reduction <add>, %376, %cst_225 [1] : vector<64x32xf32> to vector<64xf32>
    %378 = vector.shape_cast %377 : vector<64xf32> to vector<64x1xf32>
    %cst_226 = arith.constant 3.200000e+01 : f32
    %379 = vector.broadcast %cst_226 : f32 to vector<64x1xf32>
    %380 = arith.divf %378, %379 : vector<64x1xf32>
    %381 = vector.broadcast %380 : vector<64x1xf32> to vector<64x32xf32>
    %382 = arith.subf %376, %381 : vector<64x32xf32>
    %383 = arith.mulf %382, %382 : vector<64x32xf32>
    %cst_227 = arith.constant dense<0.000000e+00> : vector<64xf32>
    %384 = vector.multi_reduction <add>, %383, %cst_227 [1] : vector<64x32xf32> to vector<64xf32>
    %385 = vector.shape_cast %384 : vector<64xf32> to vector<64x1xf32>
    %cst_228 = arith.constant 3.200000e+01 : f32
    %386 = vector.broadcast %cst_228 : f32 to vector<64x1xf32>
    %387 = arith.divf %385, %386 : vector<64x1xf32>
    %c0_229 = arith.constant 0 : index
    %c5_230 = arith.constant 5 : index
    %c0_231 = arith.constant 0 : index
    %388 = vector.load %arg8[%c0_229, %c5_230, %c0_231] : memref<1x13x32xf32, #tpu.memory_space<vmem>>, vector<1x1x32xf32>
    %389 = vector.shape_cast %388 : vector<1x1x32xf32> to vector<1x32xf32>
    %c0_232 = arith.constant 0 : index
    %c6_233 = arith.constant 6 : index
    %c0_234 = arith.constant 0 : index
    %390 = vector.load %arg8[%c0_232, %c6_233, %c0_234] : memref<1x13x32xf32, #tpu.memory_space<vmem>>, vector<1x1x32xf32>
    %391 = vector.shape_cast %390 : vector<1x1x32xf32> to vector<1x32xf32>
    %392 = vector.broadcast %380 : vector<64x1xf32> to vector<64x32xf32>
    %393 = arith.subf %376, %392 : vector<64x32xf32>
    %cst_235 = arith.constant 9.99999974E-6 : f32
    %394 = vector.broadcast %cst_235 : f32 to vector<64x1xf32>
    %395 = arith.addf %387, %394 : vector<64x1xf32>
    %396 = math.rsqrt %395 : vector<64x1xf32>
    %397 = vector.broadcast %396 : vector<64x1xf32> to vector<64x32xf32>
    %398 = arith.mulf %393, %397 : vector<64x32xf32>
    %399 = vector.broadcast %389 : vector<1x32xf32> to vector<64x32xf32>
    %400 = arith.mulf %398, %399 : vector<64x32xf32>
    %401 = vector.broadcast %391 : vector<1x32xf32> to vector<64x32xf32>
    %402 = arith.addf %400, %401 : vector<64x32xf32>
    %403 = arith.addf %137, %402 : vector<64x32xf32>
    %404 = arith.addf %137, %403 : vector<64x32xf32>
    %c24_236 = arith.constant 24 : index
    %c0_237 = arith.constant 0 : index
    %405 = vector.load %arg12[%c24_236, %c0_237] : memref<112x32xf32, #tpu.memory_space<vmem>>, vector<64x32xf32>
    tpu.vector_store %arg12[%c24_236, %c0_237], %403 {strides = array<i32>} : memref<112x32xf32, #tpu.memory_space<vmem>>, vector<64x32xf32>,
    %cst_238 = arith.constant 0.000000e+00 : f32
    %406 = vector.broadcast %cst_238 : f32 to vector<64x32xf32>
    %c0_239 = arith.constant 0 : index
    %c27_240 = arith.constant 27 : index
    %c0_241 = arith.constant 0 : index
    %407 = vector.load %arg7[%c0_239, %c27_240, %c0_241] : memref<1x81x32xf32, #tpu.memory_space<vmem>>, vector<1x1x32xf32>
    %408 = vector.shape_cast %407 : vector<1x1x32xf32> to vector<1x32xf32>
    %c3_242 = arith.constant 3 : index
    %c0_243 = arith.constant 0 : index
    %409 = vector.load %arg12[%c3_242, %c0_243] : memref<112x32xf32, #tpu.memory_space<vmem>>, vector<64x32xf32>
    %410 = vector.broadcast %408 : vector<1x32xf32> to vector<64x32xf32>
    %411 = arith.mulf %409, %410 : vector<64x32xf32>
    %c0_244 = arith.constant 0 : index
    %c36_245 = arith.constant 36 : index
    %c0_246 = arith.constant 0 : index
    %412 = vector.load %arg7[%c0_244, %c36_245, %c0_246] : memref<1x81x32xf32, #tpu.memory_space<vmem>>, vector<1x1x32xf32>
    %413 = vector.shape_cast %412 : vector<1x1x32xf32> to vector<1x32xf32>
    %c19_247 = arith.constant 19 : index
    %c0_248 = arith.constant 0 : index
    %414 = vector.load %arg12[%c19_247, %c0_248] : memref<112x32xf32, #tpu.memory_space<vmem>>, vector<64x32xf32>
    %415 = vector.broadcast %413 : vector<1x32xf32> to vector<64x32xf32>
    %416 = arith.mulf %414, %415 : vector<64x32xf32>
    %417 = arith.addf %411, %416 : vector<64x32xf32>
    %c0_249 = arith.constant 0 : index
    %c45_250 = arith.constant 45 : index
    %c0_251 = arith.constant 0 : index
    %418 = vector.load %arg7[%c0_249, %c45_250, %c0_251] : memref<1x81x32xf32, #tpu.memory_space<vmem>>, vector<1x1x32xf32>
    %419 = vector.shape_cast %418 : vector<1x1x32xf32> to vector<1x32xf32>
    %c35_252 = arith.constant 35 : index
    %c0_253 = arith.constant 0 : index
    %420 = vector.load %arg12[%c35_252, %c0_253] : memref<112x32xf32, #tpu.memory_space<vmem>>, vector<64x32xf32>
    %421 = vector.broadcast %419 : vector<1x32xf32> to vector<64x32xf32>
    %422 = arith.mulf %420, %421 : vector<64x32xf32>
    %423 = arith.addf %417, %422 : vector<64x32xf32>
    %c0_254 = arith.constant 0 : index
    %c0_255 = arith.constant 0 : index
    %c0_256 = arith.constant 0 : index
    %424 = vector.load %arg13[%c0_254, %c0_255, %c0_256] : memref<9x64x32xf32, #tpu.memory_space<vmem>>, vector<1x64x32xf32>
    %425 = vector.shape_cast %424 : vector<1x64x32xf32> to vector<64x32xf32>
    %426 = arith.mulf %423, %425 : vector<64x32xf32>
    %427 = arith.addf %406, %426 : vector<64x32xf32>
    %c0_257 = arith.constant 0 : index
    %c28_258 = arith.constant 28 : index
    %c0_259 = arith.constant 0 : index
    %428 = vector.load %arg7[%c0_257, %c28_258, %c0_259] : memref<1x81x32xf32, #tpu.memory_space<vmem>>, vector<1x1x32xf32>
    %429 = vector.shape_cast %428 : vector<1x1x32xf32> to vector<1x32xf32>
    %c4_260 = arith.constant 4 : index
    %c0_261 = arith.constant 0 : index
    %430 = vector.load %arg12[%c4_260, %c0_261] : memref<112x32xf32, #tpu.memory_space<vmem>>, vector<64x32xf32>
    %431 = vector.broadcast %429 : vector<1x32xf32> to vector<64x32xf32>
    %432 = arith.mulf %430, %431 : vector<64x32xf32>
    %c0_262 = arith.constant 0 : index
    %c37_263 = arith.constant 37 : index
    %c0_264 = arith.constant 0 : index
    %433 = vector.load %arg7[%c0_262, %c37_263, %c0_264] : memref<1x81x32xf32, #tpu.memory_space<vmem>>, vector<1x1x32xf32>
    %434 = vector.shape_cast %433 : vector<1x1x32xf32> to vector<1x32xf32>
    %c20_265 = arith.constant 20 : index
    %c0_266 = arith.constant 0 : index
    %435 = vector.load %arg12[%c20_265, %c0_266] : memref<112x32xf32, #tpu.memory_space<vmem>>, vector<64x32xf32>
    %436 = vector.broadcast %434 : vector<1x32xf32> to vector<64x32xf32>
    %437 = arith.mulf %435, %436 : vector<64x32xf32>
    %438 = arith.addf %432, %437 : vector<64x32xf32>
    %c0_267 = arith.constant 0 : index
    %c46 = arith.constant 46 : index
    %c0_268 = arith.constant 0 : index
    %439 = vector.load %arg7[%c0_267, %c46, %c0_268] : memref<1x81x32xf32, #tpu.memory_space<vmem>>, vector<1x1x32xf32>
    %440 = vector.shape_cast %439 : vector<1x1x32xf32> to vector<1x32xf32>
    %c36_269 = arith.constant 36 : index
    %c0_270 = arith.constant 0 : index
    %441 = vector.load %arg12[%c36_269, %c0_270] : memref<112x32xf32, #tpu.memory_space<vmem>>, vector<64x32xf32>
    %442 = vector.broadcast %440 : vector<1x32xf32> to vector<64x32xf32>
    %443 = arith.mulf %441, %442 : vector<64x32xf32>
    %444 = arith.addf %438, %443 : vector<64x32xf32>
    %c1_271 = arith.constant 1 : index
    %c0_272 = arith.constant 0 : index
    %c0_273 = arith.constant 0 : index
    %445 = vector.load %arg13[%c1_271, %c0_272, %c0_273] : memref<9x64x32xf32, #tpu.memory_space<vmem>>, vector<1x64x32xf32>
    %446 = vector.shape_cast %445 : vector<1x64x32xf32> to vector<64x32xf32>
    %447 = arith.mulf %444, %446 : vector<64x32xf32>
    %448 = arith.addf %427, %447 : vector<64x32xf32>
    %c0_274 = arith.constant 0 : index
    %c29_275 = arith.constant 29 : index
    %c0_276 = arith.constant 0 : index
    %449 = vector.load %arg7[%c0_274, %c29_275, %c0_276] : memref<1x81x32xf32, #tpu.memory_space<vmem>>, vector<1x1x32xf32>
    %450 = vector.shape_cast %449 : vector<1x1x32xf32> to vector<1x32xf32>
    %c5_277 = arith.constant 5 : index
    %c0_278 = arith.constant 0 : index
    %451 = vector.load %arg12[%c5_277, %c0_278] : memref<112x32xf32, #tpu.memory_space<vmem>>, vector<64x32xf32>
    %452 = vector.broadcast %450 : vector<1x32xf32> to vector<64x32xf32>
    %453 = arith.mulf %451, %452 : vector<64x32xf32>
    %c0_279 = arith.constant 0 : index
    %c38 = arith.constant 38 : index
    %c0_280 = arith.constant 0 : index
    %454 = vector.load %arg7[%c0_279, %c38, %c0_280] : memref<1x81x32xf32, #tpu.memory_space<vmem>>, vector<1x1x32xf32>
    %455 = vector.shape_cast %454 : vector<1x1x32xf32> to vector<1x32xf32>
    %c21_281 = arith.constant 21 : index
    %c0_282 = arith.constant 0 : index
    %456 = vector.load %arg12[%c21_281, %c0_282] : memref<112x32xf32, #tpu.memory_space<vmem>>, vector<64x32xf32>
    %457 = vector.broadcast %455 : vector<1x32xf32> to vector<64x32xf32>
    %458 = arith.mulf %456, %457 : vector<64x32xf32>
    %459 = arith.addf %453, %458 : vector<64x32xf32>
    %c0_283 = arith.constant 0 : index
    %c47 = arith.constant 47 : index
    %c0_284 = arith.constant 0 : index
    %460 = vector.load %arg7[%c0_283, %c47, %c0_284] : memref<1x81x32xf32, #tpu.memory_space<vmem>>, vector<1x1x32xf32>
    %461 = vector.shape_cast %460 : vector<1x1x32xf32> to vector<1x32xf32>
    %c37_285 = arith.constant 37 : index
    %c0_286 = arith.constant 0 : index
    %462 = vector.load %arg12[%c37_285, %c0_286] : memref<112x32xf32, #tpu.memory_space<vmem>>, vector<64x32xf32>
    %463 = vector.broadcast %461 : vector<1x32xf32> to vector<64x32xf32>
    %464 = arith.mulf %462, %463 : vector<64x32xf32>
    %465 = arith.addf %459, %464 : vector<64x32xf32>
    %c2_287 = arith.constant 2 : index
    %c0_288 = arith.constant 0 : index
    %c0_289 = arith.constant 0 : index
    %466 = vector.load %arg13[%c2_287, %c0_288, %c0_289] : memref<9x64x32xf32, #tpu.memory_space<vmem>>, vector<1x64x32xf32>
    %467 = vector.shape_cast %466 : vector<1x64x32xf32> to vector<64x32xf32>
    %468 = arith.mulf %465, %467 : vector<64x32xf32>
    %469 = arith.addf %448, %468 : vector<64x32xf32>
    %c0_290 = arith.constant 0 : index
    %c30 = arith.constant 30 : index
    %c0_291 = arith.constant 0 : index
    %470 = vector.load %arg7[%c0_290, %c30, %c0_291] : memref<1x81x32xf32, #tpu.memory_space<vmem>>, vector<1x1x32xf32>
    %471 = vector.shape_cast %470 : vector<1x1x32xf32> to vector<1x32xf32>
    %c7_292 = arith.constant 7 : index
    %c0_293 = arith.constant 0 : index
    %472 = vector.load %arg12[%c7_292, %c0_293] : memref<112x32xf32, #tpu.memory_space<vmem>>, vector<64x32xf32>
    %473 = vector.broadcast %471 : vector<1x32xf32> to vector<64x32xf32>
    %474 = arith.mulf %472, %473 : vector<64x32xf32>
    %c0_294 = arith.constant 0 : index
    %c39_295 = arith.constant 39 : index
    %c0_296 = arith.constant 0 : index
    %475 = vector.load %arg7[%c0_294, %c39_295, %c0_296] : memref<1x81x32xf32, #tpu.memory_space<vmem>>, vector<1x1x32xf32>
    %476 = vector.shape_cast %475 : vector<1x1x32xf32> to vector<1x32xf32>
    %c23_297 = arith.constant 23 : index
    %c0_298 = arith.constant 0 : index
    %477 = vector.load %arg12[%c23_297, %c0_298] : memref<112x32xf32, #tpu.memory_space<vmem>>, vector<64x32xf32>
    %478 = vector.broadcast %476 : vector<1x32xf32> to vector<64x32xf32>
    %479 = arith.mulf %477, %478 : vector<64x32xf32>
    %480 = arith.addf %474, %479 : vector<64x32xf32>
    %c0_299 = arith.constant 0 : index
    %c48_300 = arith.constant 48 : index
    %c0_301 = arith.constant 0 : index
    %481 = vector.load %arg7[%c0_299, %c48_300, %c0_301] : memref<1x81x32xf32, #tpu.memory_space<vmem>>, vector<1x1x32xf32>
    %482 = vector.shape_cast %481 : vector<1x1x32xf32> to vector<1x32xf32>
    %c39_302 = arith.constant 39 : index
    %c0_303 = arith.constant 0 : index
    %483 = vector.load %arg12[%c39_302, %c0_303] : memref<112x32xf32, #tpu.memory_space<vmem>>, vector<64x32xf32>
    %484 = vector.broadcast %482 : vector<1x32xf32> to vector<64x32xf32>
    %485 = arith.mulf %483, %484 : vector<64x32xf32>
    %486 = arith.addf %480, %485 : vector<64x32xf32>
    %c3_304 = arith.constant 3 : index
    %c0_305 = arith.constant 0 : index
    %c0_306 = arith.constant 0 : index
    %487 = vector.load %arg13[%c3_304, %c0_305, %c0_306] : memref<9x64x32xf32, #tpu.memory_space<vmem>>, vector<1x64x32xf32>
    %488 = vector.shape_cast %487 : vector<1x64x32xf32> to vector<64x32xf32>
    %489 = arith.mulf %486, %488 : vector<64x32xf32>
    %490 = arith.addf %469, %489 : vector<64x32xf32>
    %c0_307 = arith.constant 0 : index
    %c31 = arith.constant 31 : index
    %c0_308 = arith.constant 0 : index
    %491 = vector.load %arg7[%c0_307, %c31, %c0_308] : memref<1x81x32xf32, #tpu.memory_space<vmem>>, vector<1x1x32xf32>
    %492 = vector.shape_cast %491 : vector<1x1x32xf32> to vector<1x32xf32>
    %c8_309 = arith.constant 8 : index
    %c0_310 = arith.constant 0 : index
    %493 = vector.load %arg12[%c8_309, %c0_310] : memref<112x32xf32, #tpu.memory_space<vmem>>, vector<64x32xf32>
    %494 = vector.broadcast %492 : vector<1x32xf32> to vector<64x32xf32>
    %495 = arith.mulf %493, %494 : vector<64x32xf32>
    %c0_311 = arith.constant 0 : index
    %c40_312 = arith.constant 40 : index
    %c0_313 = arith.constant 0 : index
    %496 = vector.load %arg7[%c0_311, %c40_312, %c0_313] : memref<1x81x32xf32, #tpu.memory_space<vmem>>, vector<1x1x32xf32>
    %497 = vector.shape_cast %496 : vector<1x1x32xf32> to vector<1x32xf32>
    %c24_314 = arith.constant 24 : index
    %c0_315 = arith.constant 0 : index
    %498 = vector.load %arg12[%c24_314, %c0_315] : memref<112x32xf32, #tpu.memory_space<vmem>>, vector<64x32xf32>
    %499 = vector.broadcast %497 : vector<1x32xf32> to vector<64x32xf32>
    %500 = arith.mulf %498, %499 : vector<64x32xf32>
    %501 = arith.addf %495, %500 : vector<64x32xf32>
    %c0_316 = arith.constant 0 : index
    %c49 = arith.constant 49 : index
    %c0_317 = arith.constant 0 : index
    %502 = vector.load %arg7[%c0_316, %c49, %c0_317] : memref<1x81x32xf32, #tpu.memory_space<vmem>>, vector<1x1x32xf32>
    %503 = vector.shape_cast %502 : vector<1x1x32xf32> to vector<1x32xf32>
    %c40_318 = arith.constant 40 : index
    %c0_319 = arith.constant 0 : index
    %504 = vector.load %arg12[%c40_318, %c0_319] : memref<112x32xf32, #tpu.memory_space<vmem>>, vector<64x32xf32>
    %505 = vector.broadcast %503 : vector<1x32xf32> to vector<64x32xf32>
    %506 = arith.mulf %504, %505 : vector<64x32xf32>
    %507 = arith.addf %501, %506 : vector<64x32xf32>
    %508 = arith.addf %490, %507 : vector<64x32xf32>
    %c0_320 = arith.constant 0 : index
    %c32_321 = arith.constant 32 : index
    %c0_322 = arith.constant 0 : index
    %509 = vector.load %arg7[%c0_320, %c32_321, %c0_322] : memref<1x81x32xf32, #tpu.memory_space<vmem>>, vector<1x1x32xf32>
    %510 = vector.shape_cast %509 : vector<1x1x32xf32> to vector<1x32xf32>
    %c9_323 = arith.constant 9 : index
    %c0_324 = arith.constant 0 : index
    %511 = vector.load %arg12[%c9_323, %c0_324] : memref<112x32xf32, #tpu.memory_space<vmem>>, vector<64x32xf32>
    %512 = vector.broadcast %510 : vector<1x32xf32> to vector<64x32xf32>
    %513 = arith.mulf %511, %512 : vector<64x32xf32>
    %c0_325 = arith.constant 0 : index
    %c41_326 = arith.constant 41 : index
    %c0_327 = arith.constant 0 : index
    %514 = vector.load %arg7[%c0_325, %c41_326, %c0_327] : memref<1x81x32xf32, #tpu.memory_space<vmem>>, vector<1x1x32xf32>
    %515 = vector.shape_cast %514 : vector<1x1x32xf32> to vector<1x32xf32>
    %c25_328 = arith.constant 25 : index
    %c0_329 = arith.constant 0 : index
    %516 = vector.load %arg12[%c25_328, %c0_329] : memref<112x32xf32, #tpu.memory_space<vmem>>, vector<64x32xf32>
    %517 = vector.broadcast %515 : vector<1x32xf32> to vector<64x32xf32>
    %518 = arith.mulf %516, %517 : vector<64x32xf32>
    %519 = arith.addf %513, %518 : vector<64x32xf32>
    %c0_330 = arith.constant 0 : index
    %c50 = arith.constant 50 : index
    %c0_331 = arith.constant 0 : index
    %520 = vector.load %arg7[%c0_330, %c50, %c0_331] : memref<1x81x32xf32, #tpu.memory_space<vmem>>, vector<1x1x32xf32>
    %521 = vector.shape_cast %520 : vector<1x1x32xf32> to vector<1x32xf32>
    %c41_332 = arith.constant 41 : index
    %c0_333 = arith.constant 0 : index
    %522 = vector.load %arg12[%c41_332, %c0_333] : memref<112x32xf32, #tpu.memory_space<vmem>>, vector<64x32xf32>
    %523 = vector.broadcast %521 : vector<1x32xf32> to vector<64x32xf32>
    %524 = arith.mulf %522, %523 : vector<64x32xf32>
    %525 = arith.addf %519, %524 : vector<64x32xf32>
    %c5_334 = arith.constant 5 : index
    %c0_335 = arith.constant 0 : index
    %c0_336 = arith.constant 0 : index
    %526 = vector.load %arg13[%c5_334, %c0_335, %c0_336] : memref<9x64x32xf32, #tpu.memory_space<vmem>>, vector<1x64x32xf32>
    %527 = vector.shape_cast %526 : vector<1x64x32xf32> to vector<64x32xf32>
    %528 = arith.mulf %525, %527 : vector<64x32xf32>
    %529 = arith.addf %508, %528 : vector<64x32xf32>
    %c0_337 = arith.constant 0 : index
    %c33 = arith.constant 33 : index
    %c0_338 = arith.constant 0 : index
    %530 = vector.load %arg7[%c0_337, %c33, %c0_338] : memref<1x81x32xf32, #tpu.memory_space<vmem>>, vector<1x1x32xf32>
    %531 = vector.shape_cast %530 : vector<1x1x32xf32> to vector<1x32xf32>
    %c11_339 = arith.constant 11 : index
    %c0_340 = arith.constant 0 : index
    %532 = vector.load %arg12[%c11_339, %c0_340] : memref<112x32xf32, #tpu.memory_space<vmem>>, vector<64x32xf32>
    %533 = vector.broadcast %531 : vector<1x32xf32> to vector<64x32xf32>
    %534 = arith.mulf %532, %533 : vector<64x32xf32>
    %c0_341 = arith.constant 0 : index
    %c42 = arith.constant 42 : index
    %c0_342 = arith.constant 0 : index
    %535 = vector.load %arg7[%c0_341, %c42, %c0_342] : memref<1x81x32xf32, #tpu.memory_space<vmem>>, vector<1x1x32xf32>
    %536 = vector.shape_cast %535 : vector<1x1x32xf32> to vector<1x32xf32>
    %c27_343 = arith.constant 27 : index
    %c0_344 = arith.constant 0 : index
    %537 = vector.load %arg12[%c27_343, %c0_344] : memref<112x32xf32, #tpu.memory_space<vmem>>, vector<64x32xf32>
    %538 = vector.broadcast %536 : vector<1x32xf32> to vector<64x32xf32>
    %539 = arith.mulf %537, %538 : vector<64x32xf32>
    %540 = arith.addf %534, %539 : vector<64x32xf32>
    %c0_345 = arith.constant 0 : index
    %c51 = arith.constant 51 : index
    %c0_346 = arith.constant 0 : index
    %541 = vector.load %arg7[%c0_345, %c51, %c0_346] : memref<1x81x32xf32, #tpu.memory_space<vmem>>, vector<1x1x32xf32>
    %542 = vector.shape_cast %541 : vector<1x1x32xf32> to vector<1x32xf32>
    %c43_347 = arith.constant 43 : index
    %c0_348 = arith.constant 0 : index
    %543 = vector.load %arg12[%c43_347, %c0_348] : memref<112x32xf32, #tpu.memory_space<vmem>>, vector<64x32xf32>
    %544 = vector.broadcast %542 : vector<1x32xf32> to vector<64x32xf32>
    %545 = arith.mulf %543, %544 : vector<64x32xf32>
    %546 = arith.addf %540, %545 : vector<64x32xf32>
    %c6_349 = arith.constant 6 : index
    %c0_350 = arith.constant 0 : index
    %c0_351 = arith.constant 0 : index
    %547 = vector.load %arg13[%c6_349, %c0_350, %c0_351] : memref<9x64x32xf32, #tpu.memory_space<vmem>>, vector<1x64x32xf32>
    %548 = vector.shape_cast %547 : vector<1x64x32xf32> to vector<64x32xf32>
    %549 = arith.mulf %546, %548 : vector<64x32xf32>
    %550 = arith.addf %529, %549 : vector<64x32xf32>
    %c0_352 = arith.constant 0 : index
    %c34 = arith.constant 34 : index
    %c0_353 = arith.constant 0 : index
    %551 = vector.load %arg7[%c0_352, %c34, %c0_353] : memref<1x81x32xf32, #tpu.memory_space<vmem>>, vector<1x1x32xf32>
    %552 = vector.shape_cast %551 : vector<1x1x32xf32> to vector<1x32xf32>
    %c12_354 = arith.constant 12 : index
    %c0_355 = arith.constant 0 : index
    %553 = vector.load %arg12[%c12_354, %c0_355] : memref<112x32xf32, #tpu.memory_space<vmem>>, vector<64x32xf32>
    %554 = vector.broadcast %552 : vector<1x32xf32> to vector<64x32xf32>
    %555 = arith.mulf %553, %554 : vector<64x32xf32>
    %c0_356 = arith.constant 0 : index
    %c43_357 = arith.constant 43 : index
    %c0_358 = arith.constant 0 : index
    %556 = vector.load %arg7[%c0_356, %c43_357, %c0_358] : memref<1x81x32xf32, #tpu.memory_space<vmem>>, vector<1x1x32xf32>
    %557 = vector.shape_cast %556 : vector<1x1x32xf32> to vector<1x32xf32>
    %c28_359 = arith.constant 28 : index
    %c0_360 = arith.constant 0 : index
    %558 = vector.load %arg12[%c28_359, %c0_360] : memref<112x32xf32, #tpu.memory_space<vmem>>, vector<64x32xf32>
    %559 = vector.broadcast %557 : vector<1x32xf32> to vector<64x32xf32>
    %560 = arith.mulf %558, %559 : vector<64x32xf32>
    %561 = arith.addf %555, %560 : vector<64x32xf32>
    %c0_361 = arith.constant 0 : index
    %c52 = arith.constant 52 : index
    %c0_362 = arith.constant 0 : index
    %562 = vector.load %arg7[%c0_361, %c52, %c0_362] : memref<1x81x32xf32, #tpu.memory_space<vmem>>, vector<1x1x32xf32>
    %563 = vector.shape_cast %562 : vector<1x1x32xf32> to vector<1x32xf32>
    %c44_363 = arith.constant 44 : index
    %c0_364 = arith.constant 0 : index
    %564 = vector.load %arg12[%c44_363, %c0_364] : memref<112x32xf32, #tpu.memory_space<vmem>>, vector<64x32xf32>
    %565 = vector.broadcast %563 : vector<1x32xf32> to vector<64x32xf32>
    %566 = arith.mulf %564, %565 : vector<64x32xf32>
    %567 = arith.addf %561, %566 : vector<64x32xf32>
    %c7_365 = arith.constant 7 : index
    %c0_366 = arith.constant 0 : index
    %c0_367 = arith.constant 0 : index
    %568 = vector.load %arg13[%c7_365, %c0_366, %c0_367] : memref<9x64x32xf32, #tpu.memory_space<vmem>>, vector<1x64x32xf32>
    %569 = vector.shape_cast %568 : vector<1x64x32xf32> to vector<64x32xf32>
    %570 = arith.mulf %567, %569 : vector<64x32xf32>
    %571 = arith.addf %550, %570 : vector<64x32xf32>
    %c0_368 = arith.constant 0 : index
    %c35_369 = arith.constant 35 : index
    %c0_370 = arith.constant 0 : index
    %572 = vector.load %arg7[%c0_368, %c35_369, %c0_370] : memref<1x81x32xf32, #tpu.memory_space<vmem>>, vector<1x1x32xf32>
    %573 = vector.shape_cast %572 : vector<1x1x32xf32> to vector<1x32xf32>
    %c13_371 = arith.constant 13 : index
    %c0_372 = arith.constant 0 : index
    %574 = vector.load %arg12[%c13_371, %c0_372] : memref<112x32xf32, #tpu.memory_space<vmem>>, vector<64x32xf32>
    %575 = vector.broadcast %573 : vector<1x32xf32> to vector<64x32xf32>
    %576 = arith.mulf %574, %575 : vector<64x32xf32>
    %c0_373 = arith.constant 0 : index
    %c44_374 = arith.constant 44 : index
    %c0_375 = arith.constant 0 : index
    %577 = vector.load %arg7[%c0_373, %c44_374, %c0_375] : memref<1x81x32xf32, #tpu.memory_space<vmem>>, vector<1x1x32xf32>
    %578 = vector.shape_cast %577 : vector<1x1x32xf32> to vector<1x32xf32>
    %c29_376 = arith.constant 29 : index
    %c0_377 = arith.constant 0 : index
    %579 = vector.load %arg12[%c29_376, %c0_377] : memref<112x32xf32, #tpu.memory_space<vmem>>, vector<64x32xf32>
    %580 = vector.broadcast %578 : vector<1x32xf32> to vector<64x32xf32>
    %581 = arith.mulf %579, %580 : vector<64x32xf32>
    %582 = arith.addf %576, %581 : vector<64x32xf32>
    %c0_378 = arith.constant 0 : index
    %c53 = arith.constant 53 : index
    %c0_379 = arith.constant 0 : index
    %583 = vector.load %arg7[%c0_378, %c53, %c0_379] : memref<1x81x32xf32, #tpu.memory_space<vmem>>, vector<1x1x32xf32>
    %584 = vector.shape_cast %583 : vector<1x1x32xf32> to vector<1x32xf32>
    %c45_380 = arith.constant 45 : index
    %c0_381 = arith.constant 0 : index
    %585 = vector.load %arg12[%c45_380, %c0_381] : memref<112x32xf32, #tpu.memory_space<vmem>>, vector<64x32xf32>
    %586 = vector.broadcast %584 : vector<1x32xf32> to vector<64x32xf32>
    %587 = arith.mulf %585, %586 : vector<64x32xf32>
    %588 = arith.addf %582, %587 : vector<64x32xf32>
    %c8_382 = arith.constant 8 : index
    %c0_383 = arith.constant 0 : index
    %c0_384 = arith.constant 0 : index
    %589 = vector.load %arg13[%c8_382, %c0_383, %c0_384] : memref<9x64x32xf32, #tpu.memory_space<vmem>>, vector<1x64x32xf32>
    %590 = vector.shape_cast %589 : vector<1x64x32xf32> to vector<64x32xf32>
    %591 = arith.mulf %588, %590 : vector<64x32xf32>
    %592 = arith.addf %571, %591 : vector<64x32xf32>
    %cst_385 = arith.constant 5.000000e-01 : f32
    %593 = vector.broadcast %cst_385 : f32 to vector<64x32xf32>
    %594 = arith.mulf %593, %592 : vector<64x32xf32>
    %cst_386 = arith.constant 0.707106769 : f32
    %595 = vector.broadcast %cst_386 : f32 to vector<64x32xf32>
    %596 = arith.mulf %592, %595 : vector<64x32xf32>
    %cst_387 = arith.constant -3.8325069 : f32
    %cst_388 = arith.constant 3.8325069 : f32
    %597 = vector.broadcast %cst_387 : f32 to vector<64x32xf32>
    %598 = arith.maximumf %597, %596 : vector<64x32xf32>
    %599 = vector.broadcast %cst_388 : f32 to vector<64x32xf32>
    %600 = arith.minimumf %599, %598 : vector<64x32xf32>
    %601 = arith.mulf %600, %600 : vector<64x32xf32>
    %cst_389 = arith.constant 2.29050653E-4 : f32
    %602 = vector.broadcast %cst_389 : f32 to vector<64x32xf32>
    %603 = arith.mulf %602, %601 : vector<64x32xf32>
    %cst_390 = arith.constant 0.00340829091 : f32
    %604 = vector.broadcast %cst_390 : f32 to vector<64x32xf32>
    %605 = arith.addf %603, %604 : vector<64x32xf32>
    %606 = arith.mulf %605, %601 : vector<64x32xf32>
    %cst_391 = arith.constant 0.0509556942 : f32
    %607 = vector.broadcast %cst_391 : f32 to vector<64x32xf32>
    %608 = arith.addf %606, %607 : vector<64x32xf32>
    %609 = arith.mulf %608, %601 : vector<64x32xf32>
    %cst_392 = arith.constant 0.185208321 : f32
    %610 = vector.broadcast %cst_392 : f32 to vector<64x32xf32>
    %611 = arith.addf %609, %610 : vector<64x32xf32>
    %612 = arith.mulf %611, %601 : vector<64x32xf32>
    %cst_393 = arith.constant 1.12837911 : f32
    %613 = vector.broadcast %cst_393 : f32 to vector<64x32xf32>
    %614 = arith.addf %612, %613 : vector<64x32xf32>
    %cst_394 = arith.constant -1.17916031E-7 : f32
    %615 = vector.broadcast %cst_394 : f32 to vector<64x32xf32>
    %616 = arith.mulf %615, %601 : vector<64x32xf32>
    %cst_395 = arith.constant 2.35479656E-5 : f32
    %617 = vector.broadcast %cst_395 : f32 to vector<64x32xf32>
    %618 = arith.addf %616, %617 : vector<64x32xf32>
    %619 = arith.mulf %618, %601 : vector<64x32xf32>
    %cst_396 = arith.constant 0.00101796258 : f32
    %620 = vector.broadcast %cst_396 : f32 to vector<64x32xf32>
    %621 = arith.addf %619, %620 : vector<64x32xf32>
    %622 = arith.mulf %621, %601 : vector<64x32xf32>
    %cst_397 = arith.constant 0.0140704699 : f32
    %623 = vector.broadcast %cst_397 : f32 to vector<64x32xf32>
    %624 = arith.addf %622, %623 : vector<64x32xf32>
    %625 = arith.mulf %624, %601 : vector<64x32xf32>
    %cst_398 = arith.constant 0.110985048 : f32
    %626 = vector.broadcast %cst_398 : f32 to vector<64x32xf32>
    %627 = arith.addf %625, %626 : vector<64x32xf32>
    %628 = arith.mulf %627, %601 : vector<64x32xf32>
    %cst_399 = arith.constant 0.497469246 : f32
    %629 = vector.broadcast %cst_399 : f32 to vector<64x32xf32>
    %630 = arith.addf %628, %629 : vector<64x32xf32>
    %631 = arith.mulf %630, %601 : vector<64x32xf32>
    %cst_400 = arith.constant 1.000000e+00 : f32
    %632 = vector.broadcast %cst_400 : f32 to vector<64x32xf32>
    %633 = arith.addf %631, %632 : vector<64x32xf32>
    %634 = tpu.reciprocal %633 {approx = true} : vector<64x32xf32> -> vector<64x32xf32>
    %635 = arith.mulf %633, %634 : vector<64x32xf32>
    %cst_401 = arith.constant 2.000000e+00 : f32
    %636 = vector.broadcast %cst_401 : f32 to vector<64x32xf32>
    %637 = arith.subf %636, %635 : vector<64x32xf32>
    %638 = arith.mulf %634, %637 : vector<64x32xf32>
    %639 = arith.mulf %600, %614 : vector<64x32xf32>
    %640 = arith.mulf %639, %638 : vector<64x32xf32>
    %cst_402 = arith.constant 1.000000e+00 : f32
    %641 = vector.broadcast %cst_402 : f32 to vector<64x32xf32>
    %642 = arith.addf %641, %640 : vector<64x32xf32>
    %643 = arith.mulf %594, %642 : vector<64x32xf32>
    %cst_403 = arith.constant dense<0.000000e+00> : vector<64xf32>
    %644 = vector.multi_reduction <add>, %643, %cst_403 [1] : vector<64x32xf32> to vector<64xf32>
    %645 = vector.shape_cast %644 : vector<64xf32> to vector<64x1xf32>
    %cst_404 = arith.constant 3.200000e+01 : f32
    %646 = vector.broadcast %cst_404 : f32 to vector<64x1xf32>
    %647 = arith.divf %645, %646 : vector<64x1xf32>
    %648 = vector.broadcast %647 : vector<64x1xf32> to vector<64x32xf32>
    %649 = arith.subf %643, %648 : vector<64x32xf32>
    %650 = arith.mulf %649, %649 : vector<64x32xf32>
    %cst_405 = arith.constant dense<0.000000e+00> : vector<64xf32>
    %651 = vector.multi_reduction <add>, %650, %cst_405 [1] : vector<64x32xf32> to vector<64xf32>
    %652 = vector.shape_cast %651 : vector<64xf32> to vector<64x1xf32>
    %cst_406 = arith.constant 3.200000e+01 : f32
    %653 = vector.broadcast %cst_406 : f32 to vector<64x1xf32>
    %654 = arith.divf %652, %653 : vector<64x1xf32>
    %c0_407 = arith.constant 0 : index
    %c7_408 = arith.constant 7 : index
    %c0_409 = arith.constant 0 : index
    %655 = vector.load %arg8[%c0_407, %c7_408, %c0_409] : memref<1x13x32xf32, #tpu.memory_space<vmem>>, vector<1x1x32xf32>
    %656 = vector.shape_cast %655 : vector<1x1x32xf32> to vector<1x32xf32>
    %c0_410 = arith.constant 0 : index
    %c8_411 = arith.constant 8 : index
    %c0_412 = arith.constant 0 : index
    %657 = vector.load %arg8[%c0_410, %c8_411, %c0_412] : memref<1x13x32xf32, #tpu.memory_space<vmem>>, vector<1x1x32xf32>
    %658 = vector.shape_cast %657 : vector<1x1x32xf32> to vector<1x32xf32>
    %659 = vector.broadcast %647 : vector<64x1xf32> to vector<64x32xf32>
    %660 = arith.subf %643, %659 : vector<64x32xf32>
    %cst_413 = arith.constant 9.99999974E-6 : f32
    %661 = vector.broadcast %cst_413 : f32 to vector<64x1xf32>
    %662 = arith.addf %654, %661 : vector<64x1xf32>
    %663 = math.rsqrt %662 : vector<64x1xf32>
    %664 = vector.broadcast %663 : vector<64x1xf32> to vector<64x32xf32>
    %665 = arith.mulf %660, %664 : vector<64x32xf32>
    %666 = vector.broadcast %656 : vector<1x32xf32> to vector<64x32xf32>
    %667 = arith.mulf %665, %666 : vector<64x32xf32>
    %668 = vector.broadcast %658 : vector<1x32xf32> to vector<64x32xf32>
    %669 = arith.addf %667, %668 : vector<64x32xf32>
    %670 = arith.addf %404, %669 : vector<64x32xf32>
    %671 = arith.addf %404, %670 : vector<64x32xf32>
    %c24_414 = arith.constant 24 : index
    %c0_415 = arith.constant 0 : index
    %672 = vector.load %arg12[%c24_414, %c0_415] : memref<112x32xf32, #tpu.memory_space<vmem>>, vector<64x32xf32>
    tpu.vector_store %arg12[%c24_414, %c0_415], %670 {strides = array<i32>} : memref<112x32xf32, #tpu.memory_space<vmem>>, vector<64x32xf32>,
    %cst_416 = arith.constant 0.000000e+00 : f32
    %673 = vector.broadcast %cst_416 : f32 to vector<64x32xf32>
    %c0_417 = arith.constant 0 : index
    %c54 = arith.constant 54 : index
    %c0_418 = arith.constant 0 : index
    %674 = vector.load %arg7[%c0_417, %c54, %c0_418] : memref<1x81x32xf32, #tpu.memory_space<vmem>>, vector<1x1x32xf32>
    %675 = vector.shape_cast %674 : vector<1x1x32xf32> to vector<1x32xf32>
    %c3_419 = arith.constant 3 : index
    %c0_420 = arith.constant 0 : index
    %676 = vector.load %arg12[%c3_419, %c0_420] : memref<112x32xf32, #tpu.memory_space<vmem>>, vector<64x32xf32>
    %677 = vector.broadcast %675 : vector<1x32xf32> to vector<64x32xf32>
    %678 = arith.mulf %676, %677 : vector<64x32xf32>
    %c0_421 = arith.constant 0 : index
    %c63 = arith.constant 63 : index
    %c0_422 = arith.constant 0 : index
    %679 = vector.load %arg7[%c0_421, %c63, %c0_422] : memref<1x81x32xf32, #tpu.memory_space<vmem>>, vector<1x1x32xf32>
    %680 = vector.shape_cast %679 : vector<1x1x32xf32> to vector<1x32xf32>
    %c19_423 = arith.constant 19 : index
    %c0_424 = arith.constant 0 : index
    %681 = vector.load %arg12[%c19_423, %c0_424] : memref<112x32xf32, #tpu.memory_space<vmem>>, vector<64x32xf32>
    %682 = vector.broadcast %680 : vector<1x32xf32> to vector<64x32xf32>
    %683 = arith.mulf %681, %682 : vector<64x32xf32>
    %684 = arith.addf %678, %683 : vector<64x32xf32>
    %c0_425 = arith.constant 0 : index
    %c72_426 = arith.constant 72 : index
    %c0_427 = arith.constant 0 : index
    %685 = vector.load %arg7[%c0_425, %c72_426, %c0_427] : memref<1x81x32xf32, #tpu.memory_space<vmem>>, vector<1x1x32xf32>
    %686 = vector.shape_cast %685 : vector<1x1x32xf32> to vector<1x32xf32>
    %c35_428 = arith.constant 35 : index
    %c0_429 = arith.constant 0 : index
    %687 = vector.load %arg12[%c35_428, %c0_429] : memref<112x32xf32, #tpu.memory_space<vmem>>, vector<64x32xf32>
    %688 = vector.broadcast %686 : vector<1x32xf32> to vector<64x32xf32>
    %689 = arith.mulf %687, %688 : vector<64x32xf32>
    %690 = arith.addf %684, %689 : vector<64x32xf32>
    %c0_430 = arith.constant 0 : index
    %c0_431 = arith.constant 0 : index
    %c0_432 = arith.constant 0 : index
    %691 = vector.load %arg13[%c0_430, %c0_431, %c0_432] : memref<9x64x32xf32, #tpu.memory_space<vmem>>, vector<1x64x32xf32>
    %692 = vector.shape_cast %691 : vector<1x64x32xf32> to vector<64x32xf32>
    %693 = arith.mulf %690, %692 : vector<64x32xf32>
    %694 = arith.addf %673, %693 : vector<64x32xf32>
    %c0_433 = arith.constant 0 : index
    %c55 = arith.constant 55 : index
    %c0_434 = arith.constant 0 : index
    %695 = vector.load %arg7[%c0_433, %c55, %c0_434] : memref<1x81x32xf32, #tpu.memory_space<vmem>>, vector<1x1x32xf32>
    %696 = vector.shape_cast %695 : vector<1x1x32xf32> to vector<1x32xf32>
    %c4_435 = arith.constant 4 : index
    %c0_436 = arith.constant 0 : index
    %697 = vector.load %arg12[%c4_435, %c0_436] : memref<112x32xf32, #tpu.memory_space<vmem>>, vector<64x32xf32>
    %698 = vector.broadcast %696 : vector<1x32xf32> to vector<64x32xf32>
    %699 = arith.mulf %697, %698 : vector<64x32xf32>
    %c0_437 = arith.constant 0 : index
    %c64_438 = arith.constant 64 : index
    %c0_439 = arith.constant 0 : index
    %700 = vector.load %arg7[%c0_437, %c64_438, %c0_439] : memref<1x81x32xf32, #tpu.memory_space<vmem>>, vector<1x1x32xf32>
    %701 = vector.shape_cast %700 : vector<1x1x32xf32> to vector<1x32xf32>
    %c20_440 = arith.constant 20 : index
    %c0_441 = arith.constant 0 : index
    %702 = vector.load %arg12[%c20_440, %c0_441] : memref<112x32xf32, #tpu.memory_space<vmem>>, vector<64x32xf32>
    %703 = vector.broadcast %701 : vector<1x32xf32> to vector<64x32xf32>
    %704 = arith.mulf %702, %703 : vector<64x32xf32>
    %705 = arith.addf %699, %704 : vector<64x32xf32>
    %c0_442 = arith.constant 0 : index
    %c73 = arith.constant 73 : index
    %c0_443 = arith.constant 0 : index
    %706 = vector.load %arg7[%c0_442, %c73, %c0_443] : memref<1x81x32xf32, #tpu.memory_space<vmem>>, vector<1x1x32xf32>
    %707 = vector.shape_cast %706 : vector<1x1x32xf32> to vector<1x32xf32>
    %c36_444 = arith.constant 36 : index
    %c0_445 = arith.constant 0 : index
    %708 = vector.load %arg12[%c36_444, %c0_445] : memref<112x32xf32, #tpu.memory_space<vmem>>, vector<64x32xf32>
    %709 = vector.broadcast %707 : vector<1x32xf32> to vector<64x32xf32>
    %710 = arith.mulf %708, %709 : vector<64x32xf32>
    %711 = arith.addf %705, %710 : vector<64x32xf32>
    %c1_446 = arith.constant 1 : index
    %c0_447 = arith.constant 0 : index
    %c0_448 = arith.constant 0 : index
    %712 = vector.load %arg13[%c1_446, %c0_447, %c0_448] : memref<9x64x32xf32, #tpu.memory_space<vmem>>, vector<1x64x32xf32>
    %713 = vector.shape_cast %712 : vector<1x64x32xf32> to vector<64x32xf32>
    %714 = arith.mulf %711, %713 : vector<64x32xf32>
    %715 = arith.addf %694, %714 : vector<64x32xf32>
    %c0_449 = arith.constant 0 : index
    %c56_450 = arith.constant 56 : index
    %c0_451 = arith.constant 0 : index
    %716 = vector.load %arg7[%c0_449, %c56_450, %c0_451] : memref<1x81x32xf32, #tpu.memory_space<vmem>>, vector<1x1x32xf32>
    %717 = vector.shape_cast %716 : vector<1x1x32xf32> to vector<1x32xf32>
    %c5_452 = arith.constant 5 : index
    %c0_453 = arith.constant 0 : index
    %718 = vector.load %arg12[%c5_452, %c0_453] : memref<112x32xf32, #tpu.memory_space<vmem>>, vector<64x32xf32>
    %719 = vector.broadcast %717 : vector<1x32xf32> to vector<64x32xf32>
    %720 = arith.mulf %718, %719 : vector<64x32xf32>
    %c0_454 = arith.constant 0 : index
    %c65 = arith.constant 65 : index
    %c0_455 = arith.constant 0 : index
    %721 = vector.load %arg7[%c0_454, %c65, %c0_455] : memref<1x81x32xf32, #tpu.memory_space<vmem>>, vector<1x1x32xf32>
    %722 = vector.shape_cast %721 : vector<1x1x32xf32> to vector<1x32xf32>
    %c21_456 = arith.constant 21 : index
    %c0_457 = arith.constant 0 : index
    %723 = vector.load %arg12[%c21_456, %c0_457] : memref<112x32xf32, #tpu.memory_space<vmem>>, vector<64x32xf32>
    %724 = vector.broadcast %722 : vector<1x32xf32> to vector<64x32xf32>
    %725 = arith.mulf %723, %724 : vector<64x32xf32>
    %726 = arith.addf %720, %725 : vector<64x32xf32>
    %c0_458 = arith.constant 0 : index
    %c74 = arith.constant 74 : index
    %c0_459 = arith.constant 0 : index
    %727 = vector.load %arg7[%c0_458, %c74, %c0_459] : memref<1x81x32xf32, #tpu.memory_space<vmem>>, vector<1x1x32xf32>
    %728 = vector.shape_cast %727 : vector<1x1x32xf32> to vector<1x32xf32>
    %c37_460 = arith.constant 37 : index
    %c0_461 = arith.constant 0 : index
    %729 = vector.load %arg12[%c37_460, %c0_461] : memref<112x32xf32, #tpu.memory_space<vmem>>, vector<64x32xf32>
    %730 = vector.broadcast %728 : vector<1x32xf32> to vector<64x32xf32>
    %731 = arith.mulf %729, %730 : vector<64x32xf32>
    %732 = arith.addf %726, %731 : vector<64x32xf32>
    %c2_462 = arith.constant 2 : index
    %c0_463 = arith.constant 0 : index
    %c0_464 = arith.constant 0 : index
    %733 = vector.load %arg13[%c2_462, %c0_463, %c0_464] : memref<9x64x32xf32, #tpu.memory_space<vmem>>, vector<1x64x32xf32>
    %734 = vector.shape_cast %733 : vector<1x64x32xf32> to vector<64x32xf32>
    %735 = arith.mulf %732, %734 : vector<64x32xf32>
    %736 = arith.addf %715, %735 : vector<64x32xf32>
    %c0_465 = arith.constant 0 : index
    %c57 = arith.constant 57 : index
    %c0_466 = arith.constant 0 : index
    %737 = vector.load %arg7[%c0_465, %c57, %c0_466] : memref<1x81x32xf32, #tpu.memory_space<vmem>>, vector<1x1x32xf32>
    %738 = vector.shape_cast %737 : vector<1x1x32xf32> to vector<1x32xf32>
    %c7_467 = arith.constant 7 : index
    %c0_468 = arith.constant 0 : index
    %739 = vector.load %arg12[%c7_467, %c0_468] : memref<112x32xf32, #tpu.memory_space<vmem>>, vector<64x32xf32>
    %740 = vector.broadcast %738 : vector<1x32xf32> to vector<64x32xf32>
    %741 = arith.mulf %739, %740 : vector<64x32xf32>
    %c0_469 = arith.constant 0 : index
    %c66 = arith.constant 66 : index
    %c0_470 = arith.constant 0 : index
    %742 = vector.load %arg7[%c0_469, %c66, %c0_470] : memref<1x81x32xf32, #tpu.memory_space<vmem>>, vector<1x1x32xf32>
    %743 = vector.shape_cast %742 : vector<1x1x32xf32> to vector<1x32xf32>
    %c23_471 = arith.constant 23 : index
    %c0_472 = arith.constant 0 : index
    %744 = vector.load %arg12[%c23_471, %c0_472] : memref<112x32xf32, #tpu.memory_space<vmem>>, vector<64x32xf32>
    %745 = vector.broadcast %743 : vector<1x32xf32> to vector<64x32xf32>
    %746 = arith.mulf %744, %745 : vector<64x32xf32>
    %747 = arith.addf %741, %746 : vector<64x32xf32>
    %c0_473 = arith.constant 0 : index
    %c75 = arith.constant 75 : index
    %c0_474 = arith.constant 0 : index
    %748 = vector.load %arg7[%c0_473, %c75, %c0_474] : memref<1x81x32xf32, #tpu.memory_space<vmem>>, vector<1x1x32xf32>
    %749 = vector.shape_cast %748 : vector<1x1x32xf32> to vector<1x32xf32>
    %c39_475 = arith.constant 39 : index
    %c0_476 = arith.constant 0 : index
    %750 = vector.load %arg12[%c39_475, %c0_476] : memref<112x32xf32, #tpu.memory_space<vmem>>, vector<64x32xf32>
    %751 = vector.broadcast %749 : vector<1x32xf32> to vector<64x32xf32>
    %752 = arith.mulf %750, %751 : vector<64x32xf32>
    %753 = arith.addf %747, %752 : vector<64x32xf32>
    %c3_477 = arith.constant 3 : index
    %c0_478 = arith.constant 0 : index
    %c0_479 = arith.constant 0 : index
    %754 = vector.load %arg13[%c3_477, %c0_478, %c0_479] : memref<9x64x32xf32, #tpu.memory_space<vmem>>, vector<1x64x32xf32>
    %755 = vector.shape_cast %754 : vector<1x64x32xf32> to vector<64x32xf32>
    %756 = arith.mulf %753, %755 : vector<64x32xf32>
    %757 = arith.addf %736, %756 : vector<64x32xf32>
    %c0_480 = arith.constant 0 : index
    %c58 = arith.constant 58 : index
    %c0_481 = arith.constant 0 : index
    %758 = vector.load %arg7[%c0_480, %c58, %c0_481] : memref<1x81x32xf32, #tpu.memory_space<vmem>>, vector<1x1x32xf32>
    %759 = vector.shape_cast %758 : vector<1x1x32xf32> to vector<1x32xf32>
    %c8_482 = arith.constant 8 : index
    %c0_483 = arith.constant 0 : index
    %760 = vector.load %arg12[%c8_482, %c0_483] : memref<112x32xf32, #tpu.memory_space<vmem>>, vector<64x32xf32>
    %761 = vector.broadcast %759 : vector<1x32xf32> to vector<64x32xf32>
    %762 = arith.mulf %760, %761 : vector<64x32xf32>
    %c0_484 = arith.constant 0 : index
    %c67 = arith.constant 67 : index
    %c0_485 = arith.constant 0 : index
    %763 = vector.load %arg7[%c0_484, %c67, %c0_485] : memref<1x81x32xf32, #tpu.memory_space<vmem>>, vector<1x1x32xf32>
    %764 = vector.shape_cast %763 : vector<1x1x32xf32> to vector<1x32xf32>
    %c24_486 = arith.constant 24 : index
    %c0_487 = arith.constant 0 : index
    %765 = vector.load %arg12[%c24_486, %c0_487] : memref<112x32xf32, #tpu.memory_space<vmem>>, vector<64x32xf32>
    %766 = vector.broadcast %764 : vector<1x32xf32> to vector<64x32xf32>
    %767 = arith.mulf %765, %766 : vector<64x32xf32>
    %768 = arith.addf %762, %767 : vector<64x32xf32>
    %c0_488 = arith.constant 0 : index
    %c76 = arith.constant 76 : index
    %c0_489 = arith.constant 0 : index
    %769 = vector.load %arg7[%c0_488, %c76, %c0_489] : memref<1x81x32xf32, #tpu.memory_space<vmem>>, vector<1x1x32xf32>
    %770 = vector.shape_cast %769 : vector<1x1x32xf32> to vector<1x32xf32>
    %c40_490 = arith.constant 40 : index
    %c0_491 = arith.constant 0 : index
    %771 = vector.load %arg12[%c40_490, %c0_491] : memref<112x32xf32, #tpu.memory_space<vmem>>, vector<64x32xf32>
    %772 = vector.broadcast %770 : vector<1x32xf32> to vector<64x32xf32>
    %773 = arith.mulf %771, %772 : vector<64x32xf32>
    %774 = arith.addf %768, %773 : vector<64x32xf32>
    %775 = arith.addf %757, %774 : vector<64x32xf32>
    %c0_492 = arith.constant 0 : index
    %c59 = arith.constant 59 : index
    %c0_493 = arith.constant 0 : index
    %776 = vector.load %arg7[%c0_492, %c59, %c0_493] : memref<1x81x32xf32, #tpu.memory_space<vmem>>, vector<1x1x32xf32>
    %777 = vector.shape_cast %776 : vector<1x1x32xf32> to vector<1x32xf32>
    %c9_494 = arith.constant 9 : index
    %c0_495 = arith.constant 0 : index
    %778 = vector.load %arg12[%c9_494, %c0_495] : memref<112x32xf32, #tpu.memory_space<vmem>>, vector<64x32xf32>
    %779 = vector.broadcast %777 : vector<1x32xf32> to vector<64x32xf32>
    %780 = arith.mulf %778, %779 : vector<64x32xf32>
    %c0_496 = arith.constant 0 : index
    %c68 = arith.constant 68 : index
    %c0_497 = arith.constant 0 : index
    %781 = vector.load %arg7[%c0_496, %c68, %c0_497] : memref<1x81x32xf32, #tpu.memory_space<vmem>>, vector<1x1x32xf32>
    %782 = vector.shape_cast %781 : vector<1x1x32xf32> to vector<1x32xf32>
    %c25_498 = arith.constant 25 : index
    %c0_499 = arith.constant 0 : index
    %783 = vector.load %arg12[%c25_498, %c0_499] : memref<112x32xf32, #tpu.memory_space<vmem>>, vector<64x32xf32>
    %784 = vector.broadcast %782 : vector<1x32xf32> to vector<64x32xf32>
    %785 = arith.mulf %783, %784 : vector<64x32xf32>
    %786 = arith.addf %780, %785 : vector<64x32xf32>
    %c0_500 = arith.constant 0 : index
    %c77 = arith.constant 77 : index
    %c0_501 = arith.constant 0 : index
    %787 = vector.load %arg7[%c0_500, %c77, %c0_501] : memref<1x81x32xf32, #tpu.memory_space<vmem>>, vector<1x1x32xf32>
    %788 = vector.shape_cast %787 : vector<1x1x32xf32> to vector<1x32xf32>
    %c41_502 = arith.constant 41 : index
    %c0_503 = arith.constant 0 : index
    %789 = vector.load %arg12[%c41_502, %c0_503] : memref<112x32xf32, #tpu.memory_space<vmem>>, vector<64x32xf32>
    %790 = vector.broadcast %788 : vector<1x32xf32> to vector<64x32xf32>
    %791 = arith.mulf %789, %790 : vector<64x32xf32>
    %792 = arith.addf %786, %791 : vector<64x32xf32>
    %c5_504 = arith.constant 5 : index
    %c0_505 = arith.constant 0 : index
    %c0_506 = arith.constant 0 : index
    %793 = vector.load %arg13[%c5_504, %c0_505, %c0_506] : memref<9x64x32xf32, #tpu.memory_space<vmem>>, vector<1x64x32xf32>
    %794 = vector.shape_cast %793 : vector<1x64x32xf32> to vector<64x32xf32>
    %795 = arith.mulf %792, %794 : vector<64x32xf32>
    %796 = arith.addf %775, %795 : vector<64x32xf32>
    %c0_507 = arith.constant 0 : index
    %c60 = arith.constant 60 : index
    %c0_508 = arith.constant 0 : index
    %797 = vector.load %arg7[%c0_507, %c60, %c0_508] : memref<1x81x32xf32, #tpu.memory_space<vmem>>, vector<1x1x32xf32>
    %798 = vector.shape_cast %797 : vector<1x1x32xf32> to vector<1x32xf32>
    %c11_509 = arith.constant 11 : index
    %c0_510 = arith.constant 0 : index
    %799 = vector.load %arg12[%c11_509, %c0_510] : memref<112x32xf32, #tpu.memory_space<vmem>>, vector<64x32xf32>
    %800 = vector.broadcast %798 : vector<1x32xf32> to vector<64x32xf32>
    %801 = arith.mulf %799, %800 : vector<64x32xf32>
    %c0_511 = arith.constant 0 : index
    %c69 = arith.constant 69 : index
    %c0_512 = arith.constant 0 : index
    %802 = vector.load %arg7[%c0_511, %c69, %c0_512] : memref<1x81x32xf32, #tpu.memory_space<vmem>>, vector<1x1x32xf32>
    %803 = vector.shape_cast %802 : vector<1x1x32xf32> to vector<1x32xf32>
    %c27_513 = arith.constant 27 : index
    %c0_514 = arith.constant 0 : index
    %804 = vector.load %arg12[%c27_513, %c0_514] : memref<112x32xf32, #tpu.memory_space<vmem>>, vector<64x32xf32>
    %805 = vector.broadcast %803 : vector<1x32xf32> to vector<64x32xf32>
    %806 = arith.mulf %804, %805 : vector<64x32xf32>
    %807 = arith.addf %801, %806 : vector<64x32xf32>
    %c0_515 = arith.constant 0 : index
    %c78 = arith.constant 78 : index
    %c0_516 = arith.constant 0 : index
    %808 = vector.load %arg7[%c0_515, %c78, %c0_516] : memref<1x81x32xf32, #tpu.memory_space<vmem>>, vector<1x1x32xf32>
    %809 = vector.shape_cast %808 : vector<1x1x32xf32> to vector<1x32xf32>
    %c43_517 = arith.constant 43 : index
    %c0_518 = arith.constant 0 : index
    %810 = vector.load %arg12[%c43_517, %c0_518] : memref<112x32xf32, #tpu.memory_space<vmem>>, vector<64x32xf32>
    %811 = vector.broadcast %809 : vector<1x32xf32> to vector<64x32xf32>
    %812 = arith.mulf %810, %811 : vector<64x32xf32>
    %813 = arith.addf %807, %812 : vector<64x32xf32>
    %c6_519 = arith.constant 6 : index
    %c0_520 = arith.constant 0 : index
    %c0_521 = arith.constant 0 : index
    %814 = vector.load %arg13[%c6_519, %c0_520, %c0_521] : memref<9x64x32xf32, #tpu.memory_space<vmem>>, vector<1x64x32xf32>
    %815 = vector.shape_cast %814 : vector<1x64x32xf32> to vector<64x32xf32>
    %816 = arith.mulf %813, %815 : vector<64x32xf32>
    %817 = arith.addf %796, %816 : vector<64x32xf32>
    %c0_522 = arith.constant 0 : index
    %c61 = arith.constant 61 : index
    %c0_523 = arith.constant 0 : index
    %818 = vector.load %arg7[%c0_522, %c61, %c0_523] : memref<1x81x32xf32, #tpu.memory_space<vmem>>, vector<1x1x32xf32>
    %819 = vector.shape_cast %818 : vector<1x1x32xf32> to vector<1x32xf32>
    %c12_524 = arith.constant 12 : index
    %c0_525 = arith.constant 0 : index
    %820 = vector.load %arg12[%c12_524, %c0_525] : memref<112x32xf32, #tpu.memory_space<vmem>>, vector<64x32xf32>
    %821 = vector.broadcast %819 : vector<1x32xf32> to vector<64x32xf32>
    %822 = arith.mulf %820, %821 : vector<64x32xf32>
    %c0_526 = arith.constant 0 : index
    %c70 = arith.constant 70 : index
    %c0_527 = arith.constant 0 : index
    %823 = vector.load %arg7[%c0_526, %c70, %c0_527] : memref<1x81x32xf32, #tpu.memory_space<vmem>>, vector<1x1x32xf32>
    %824 = vector.shape_cast %823 : vector<1x1x32xf32> to vector<1x32xf32>
    %c28_528 = arith.constant 28 : index
    %c0_529 = arith.constant 0 : index
    %825 = vector.load %arg12[%c28_528, %c0_529] : memref<112x32xf32, #tpu.memory_space<vmem>>, vector<64x32xf32>
    %826 = vector.broadcast %824 : vector<1x32xf32> to vector<64x32xf32>
    %827 = arith.mulf %825, %826 : vector<64x32xf32>
    %828 = arith.addf %822, %827 : vector<64x32xf32>
    %c0_530 = arith.constant 0 : index
    %c79 = arith.constant 79 : index
    %c0_531 = arith.constant 0 : index
    %829 = vector.load %arg7[%c0_530, %c79, %c0_531] : memref<1x81x32xf32, #tpu.memory_space<vmem>>, vector<1x1x32xf32>
    %830 = vector.shape_cast %829 : vector<1x1x32xf32> to vector<1x32xf32>
    %c44_532 = arith.constant 44 : index
    %c0_533 = arith.constant 0 : index
    %831 = vector.load %arg12[%c44_532, %c0_533] : memref<112x32xf32, #tpu.memory_space<vmem>>, vector<64x32xf32>
    %832 = vector.broadcast %830 : vector<1x32xf32> to vector<64x32xf32>
    %833 = arith.mulf %831, %832 : vector<64x32xf32>
    %834 = arith.addf %828, %833 : vector<64x32xf32>
    %c7_534 = arith.constant 7 : index
    %c0_535 = arith.constant 0 : index
    %c0_536 = arith.constant 0 : index
    %835 = vector.load %arg13[%c7_534, %c0_535, %c0_536] : memref<9x64x32xf32, #tpu.memory_space<vmem>>, vector<1x64x32xf32>
    %836 = vector.shape_cast %835 : vector<1x64x32xf32> to vector<64x32xf32>
    %837 = arith.mulf %834, %836 : vector<64x32xf32>
    %838 = arith.addf %817, %837 : vector<64x32xf32>
    %c0_537 = arith.constant 0 : index
    %c62 = arith.constant 62 : index
    %c0_538 = arith.constant 0 : index
    %839 = vector.load %arg7[%c0_537, %c62, %c0_538] : memref<1x81x32xf32, #tpu.memory_space<vmem>>, vector<1x1x32xf32>
    %840 = vector.shape_cast %839 : vector<1x1x32xf32> to vector<1x32xf32>
    %c13_539 = arith.constant 13 : index
    %c0_540 = arith.constant 0 : index
    %841 = vector.load %arg12[%c13_539, %c0_540] : memref<112x32xf32, #tpu.memory_space<vmem>>, vector<64x32xf32>
    %842 = vector.broadcast %840 : vector<1x32xf32> to vector<64x32xf32>
    %843 = arith.mulf %841, %842 : vector<64x32xf32>
    %c0_541 = arith.constant 0 : index
    %c71 = arith.constant 71 : index
    %c0_542 = arith.constant 0 : index
    %844 = vector.load %arg7[%c0_541, %c71, %c0_542] : memref<1x81x32xf32, #tpu.memory_space<vmem>>, vector<1x1x32xf32>
    %845 = vector.shape_cast %844 : vector<1x1x32xf32> to vector<1x32xf32>
    %c29_543 = arith.constant 29 : index
    %c0_544 = arith.constant 0 : index
    %846 = vector.load %arg12[%c29_543, %c0_544] : memref<112x32xf32, #tpu.memory_space<vmem>>, vector<64x32xf32>
    %847 = vector.broadcast %845 : vector<1x32xf32> to vector<64x32xf32>
    %848 = arith.mulf %846, %847 : vector<64x32xf32>
    %849 = arith.addf %843, %848 : vector<64x32xf32>
    %c0_545 = arith.constant 0 : index
    %c80_546 = arith.constant 80 : index
    %c0_547 = arith.constant 0 : index
    %850 = vector.load %arg7[%c0_545, %c80_546, %c0_547] : memref<1x81x32xf32, #tpu.memory_space<vmem>>, vector<1x1x32xf32>
    %851 = vector.shape_cast %850 : vector<1x1x32xf32> to vector<1x32xf32>
    %c45_548 = arith.constant 45 : index
    %c0_549 = arith.constant 0 : index
    %852 = vector.load %arg12[%c45_548, %c0_549] : memref<112x32xf32, #tpu.memory_space<vmem>>, vector<64x32xf32>
    %853 = vector.broadcast %851 : vector<1x32xf32> to vector<64x32xf32>
    %854 = arith.mulf %852, %853 : vector<64x32xf32>
    %855 = arith.addf %849, %854 : vector<64x32xf32>
    %c8_550 = arith.constant 8 : index
    %c0_551 = arith.constant 0 : index
    %c0_552 = arith.constant 0 : index
    %856 = vector.load %arg13[%c8_550, %c0_551, %c0_552] : memref<9x64x32xf32, #tpu.memory_space<vmem>>, vector<1x64x32xf32>
    %857 = vector.shape_cast %856 : vector<1x64x32xf32> to vector<64x32xf32>
    %858 = arith.mulf %855, %857 : vector<64x32xf32>
    %859 = arith.addf %838, %858 : vector<64x32xf32>
    %cst_553 = arith.constant 5.000000e-01 : f32
    %860 = vector.broadcast %cst_553 : f32 to vector<64x32xf32>
    %861 = arith.mulf %860, %859 : vector<64x32xf32>
    %cst_554 = arith.constant 0.707106769 : f32
    %862 = vector.broadcast %cst_554 : f32 to vector<64x32xf32>
    %863 = arith.mulf %859, %862 : vector<64x32xf32>
    %cst_555 = arith.constant -3.8325069 : f32
    %cst_556 = arith.constant 3.8325069 : f32
    %864 = vector.broadcast %cst_555 : f32 to vector<64x32xf32>
    %865 = arith.maximumf %864, %863 : vector<64x32xf32>
    %866 = vector.broadcast %cst_556 : f32 to vector<64x32xf32>
    %867 = arith.minimumf %866, %865 : vector<64x32xf32>
    %868 = arith.mulf %867, %867 : vector<64x32xf32>
    %cst_557 = arith.constant 2.29050653E-4 : f32
    %869 = vector.broadcast %cst_557 : f32 to vector<64x32xf32>
    %870 = arith.mulf %869, %868 : vector<64x32xf32>
    %cst_558 = arith.constant 0.00340829091 : f32
    %871 = vector.broadcast %cst_558 : f32 to vector<64x32xf32>
    %872 = arith.addf %870, %871 : vector<64x32xf32>
    %873 = arith.mulf %872, %868 : vector<64x32xf32>
    %cst_559 = arith.constant 0.0509556942 : f32
    %874 = vector.broadcast %cst_559 : f32 to vector<64x32xf32>
    %875 = arith.addf %873, %874 : vector<64x32xf32>
    %876 = arith.mulf %875, %868 : vector<64x32xf32>
    %cst_560 = arith.constant 0.185208321 : f32
    %877 = vector.broadcast %cst_560 : f32 to vector<64x32xf32>
    %878 = arith.addf %876, %877 : vector<64x32xf32>
    %879 = arith.mulf %878, %868 : vector<64x32xf32>
    %cst_561 = arith.constant 1.12837911 : f32
    %880 = vector.broadcast %cst_561 : f32 to vector<64x32xf32>
    %881 = arith.addf %879, %880 : vector<64x32xf32>
    %cst_562 = arith.constant -1.17916031E-7 : f32
    %882 = vector.broadcast %cst_562 : f32 to vector<64x32xf32>
    %883 = arith.mulf %882, %868 : vector<64x32xf32>
    %cst_563 = arith.constant 2.35479656E-5 : f32
    %884 = vector.broadcast %cst_563 : f32 to vector<64x32xf32>
    %885 = arith.addf %883, %884 : vector<64x32xf32>
    %886 = arith.mulf %885, %868 : vector<64x32xf32>
    %cst_564 = arith.constant 0.00101796258 : f32
    %887 = vector.broadcast %cst_564 : f32 to vector<64x32xf32>
    %888 = arith.addf %886, %887 : vector<64x32xf32>
    %889 = arith.mulf %888, %868 : vector<64x32xf32>
    %cst_565 = arith.constant 0.0140704699 : f32
    %890 = vector.broadcast %cst_565 : f32 to vector<64x32xf32>
    %891 = arith.addf %889, %890 : vector<64x32xf32>
    %892 = arith.mulf %891, %868 : vector<64x32xf32>
    %cst_566 = arith.constant 0.110985048 : f32
    %893 = vector.broadcast %cst_566 : f32 to vector<64x32xf32>
    %894 = arith.addf %892, %893 : vector<64x32xf32>
    %895 = arith.mulf %894, %868 : vector<64x32xf32>
    %cst_567 = arith.constant 0.497469246 : f32
    %896 = vector.broadcast %cst_567 : f32 to vector<64x32xf32>
    %897 = arith.addf %895, %896 : vector<64x32xf32>
    %898 = arith.mulf %897, %868 : vector<64x32xf32>
    %cst_568 = arith.constant 1.000000e+00 : f32
    %899 = vector.broadcast %cst_568 : f32 to vector<64x32xf32>
    %900 = arith.addf %898, %899 : vector<64x32xf32>
    %901 = tpu.reciprocal %900 {approx = true} : vector<64x32xf32> -> vector<64x32xf32>
    %902 = arith.mulf %900, %901 : vector<64x32xf32>
    %cst_569 = arith.constant 2.000000e+00 : f32
    %903 = vector.broadcast %cst_569 : f32 to vector<64x32xf32>
    %904 = arith.subf %903, %902 : vector<64x32xf32>
    %905 = arith.mulf %901, %904 : vector<64x32xf32>
    %906 = arith.mulf %867, %881 : vector<64x32xf32>
    %907 = arith.mulf %906, %905 : vector<64x32xf32>
    %cst_570 = arith.constant 1.000000e+00 : f32
    %908 = vector.broadcast %cst_570 : f32 to vector<64x32xf32>
    %909 = arith.addf %908, %907 : vector<64x32xf32>
    %910 = arith.mulf %861, %909 : vector<64x32xf32>
    %cst_571 = arith.constant dense<0.000000e+00> : vector<64xf32>
    %911 = vector.multi_reduction <add>, %910, %cst_571 [1] : vector<64x32xf32> to vector<64xf32>
    %912 = vector.shape_cast %911 : vector<64xf32> to vector<64x1xf32>
    %cst_572 = arith.constant 3.200000e+01 : f32
    %913 = vector.broadcast %cst_572 : f32 to vector<64x1xf32>
    %914 = arith.divf %912, %913 : vector<64x1xf32>
    %915 = vector.broadcast %914 : vector<64x1xf32> to vector<64x32xf32>
    %916 = arith.subf %910, %915 : vector<64x32xf32>
    %917 = arith.mulf %916, %916 : vector<64x32xf32>
    %cst_573 = arith.constant dense<0.000000e+00> : vector<64xf32>
    %918 = vector.multi_reduction <add>, %917, %cst_573 [1] : vector<64x32xf32> to vector<64xf32>
    %919 = vector.shape_cast %918 : vector<64xf32> to vector<64x1xf32>
    %cst_574 = arith.constant 3.200000e+01 : f32
    %920 = vector.broadcast %cst_574 : f32 to vector<64x1xf32>
    %921 = arith.divf %919, %920 : vector<64x1xf32>
    %c0_575 = arith.constant 0 : index
    %c9_576 = arith.constant 9 : index
    %c0_577 = arith.constant 0 : index
    %922 = vector.load %arg8[%c0_575, %c9_576, %c0_577] : memref<1x13x32xf32, #tpu.memory_space<vmem>>, vector<1x1x32xf32>
    %923 = vector.shape_cast %922 : vector<1x1x32xf32> to vector<1x32xf32>
    %c0_578 = arith.constant 0 : index
    %c10_579 = arith.constant 10 : index
    %c0_580 = arith.constant 0 : index
    %924 = vector.load %arg8[%c0_578, %c10_579, %c0_580] : memref<1x13x32xf32, #tpu.memory_space<vmem>>, vector<1x1x32xf32>
    %925 = vector.shape_cast %924 : vector<1x1x32xf32> to vector<1x32xf32>
    %926 = vector.broadcast %914 : vector<64x1xf32> to vector<64x32xf32>
    %927 = arith.subf %910, %926 : vector<64x32xf32>
    %cst_581 = arith.constant 9.99999974E-6 : f32
    %928 = vector.broadcast %cst_581 : f32 to vector<64x1xf32>
    %929 = arith.addf %921, %928 : vector<64x1xf32>
    %930 = math.rsqrt %929 : vector<64x1xf32>
    %931 = vector.broadcast %930 : vector<64x1xf32> to vector<64x32xf32>
    %932 = arith.mulf %927, %931 : vector<64x32xf32>
    %933 = vector.broadcast %923 : vector<1x32xf32> to vector<64x32xf32>
    %934 = arith.mulf %932, %933 : vector<64x32xf32>
    %935 = vector.broadcast %925 : vector<1x32xf32> to vector<64x32xf32>
    %936 = arith.addf %934, %935 : vector<64x32xf32>
    %937 = arith.addf %671, %936 : vector<64x32xf32>
    %c0_582 = arith.constant 0 : index
    %c0_583 = arith.constant 0 : index
    %c0_584 = arith.constant 0 : index
    %938 = vector.load %arg6[%c0_582, %c0_583, %c0_584] : memref<1x32x32xf32, #tpu.memory_space<vmem>>, vector<1x32x32xf32>
    %939 = vector.shape_cast %938 : vector<1x32x32xf32> to vector<32x32xf32>
    %cst_585 = arith.constant dense<0.000000e+00> : vector<64x32xf32>
    %940 = tpu.matmul %937, %939, %cst_585 {dimension_numbers = #tpu.dot_dimension_numbers<[1], [0], [0], [1], [0, 0, 1, 1], [], []>} : vector<64x32xf32>, vector<32x32xf32>, vector<64x32xf32> -> vector<64x32xf32>
    %c0_586 = arith.constant 0 : index
    %c4_587 = arith.constant 4 : index
    %c0_588 = arith.constant 0 : index
    %941 = vector.load %arg8[%c0_586, %c4_587, %c0_588] : memref<1x13x32xf32, #tpu.memory_space<vmem>>, vector<1x1x32xf32>
    %942 = vector.shape_cast %941 : vector<1x1x32xf32> to vector<1x32xf32>
    %943 = vector.broadcast %942 : vector<1x32xf32> to vector<64x32xf32>
    %944 = arith.addf %940, %943 : vector<64x32xf32>
    %cst_589 = arith.constant dense<0.000000e+00> : vector<64xf32>
    %945 = vector.multi_reduction <add>, %944, %cst_589 [1] : vector<64x32xf32> to vector<64xf32>
    %946 = vector.shape_cast %945 : vector<64xf32> to vector<64x1xf32>
    %cst_590 = arith.constant 3.200000e+01 : f32
    %947 = vector.broadcast %cst_590 : f32 to vector<64x1xf32>
    %948 = arith.divf %946, %947 : vector<64x1xf32>
    %949 = vector.broadcast %948 : vector<64x1xf32> to vector<64x32xf32>
    %950 = arith.subf %944, %949 : vector<64x32xf32>
    %951 = arith.mulf %950, %950 : vector<64x32xf32>
    %cst_591 = arith.constant dense<0.000000e+00> : vector<64xf32>
    %952 = vector.multi_reduction <add>, %951, %cst_591 [1] : vector<64x32xf32> to vector<64xf32>
    %953 = vector.shape_cast %952 : vector<64xf32> to vector<64x1xf32>
    %cst_592 = arith.constant 3.200000e+01 : f32
    %954 = vector.broadcast %cst_592 : f32 to vector<64x1xf32>
    %955 = arith.divf %953, %954 : vector<64x1xf32>
    %c0_593 = arith.constant 0 : index
    %c11_594 = arith.constant 11 : index
    %c0_595 = arith.constant 0 : index
    %956 = vector.load %arg8[%c0_593, %c11_594, %c0_595] : memref<1x13x32xf32, #tpu.memory_space<vmem>>, vector<1x1x32xf32>
    %957 = vector.shape_cast %956 : vector<1x1x32xf32> to vector<1x32xf32>
    %c0_596 = arith.constant 0 : index
    %c12_597 = arith.constant 12 : index
    %c0_598 = arith.constant 0 : index
    %958 = vector.load %arg8[%c0_596, %c12_597, %c0_598] : memref<1x13x32xf32, #tpu.memory_space<vmem>>, vector<1x1x32xf32>
    %959 = vector.shape_cast %958 : vector<1x1x32xf32> to vector<1x32xf32>
    %960 = vector.broadcast %948 : vector<64x1xf32> to vector<64x32xf32>
    %961 = arith.subf %944, %960 : vector<64x32xf32>
    %cst_599 = arith.constant 9.99999974E-6 : f32
    %962 = vector.broadcast %cst_599 : f32 to vector<64x1xf32>
    %963 = arith.addf %955, %962 : vector<64x1xf32>
    %964 = math.rsqrt %963 : vector<64x1xf32>
    %965 = vector.broadcast %964 : vector<64x1xf32> to vector<64x32xf32>
    %966 = arith.mulf %961, %965 : vector<64x32xf32>
    %967 = vector.broadcast %957 : vector<1x32xf32> to vector<64x32xf32>
    %968 = arith.mulf %966, %967 : vector<64x32xf32>
    %969 = vector.broadcast %959 : vector<1x32xf32> to vector<64x32xf32>
    %970 = arith.addf %968, %969 : vector<64x32xf32>
    %971 = arith.addf %130, %970 : vector<64x32xf32>
    %c0_600 = arith.constant 0 : index
    %c0_601 = arith.constant 0 : index
    %972 = vector.load %arg14[%c0_600, %c0_601] : memref<64x32xf32, #tpu.memory_space<vmem>>, vector<64x32xf32>
    tpu.vector_store %arg14[%c0_600, %c0_601], %971 {strides = array<i32>} : memref<64x32xf32, #tpu.memory_space<vmem>>, vector<64x32xf32>,
    %c1_i32 = arith.constant 1 : i32
    %973 = arith.cmpi eq, %arg1, %c1_i32 : i32
    %974 = arith.extui %973 : i1 to i32
    %c0_i32_602 = arith.constant 0 : i32
    %975 = arith.cmpi ne, %974, %c0_i32_602 : i32
    scf.if %975 {
      %c0_603 = arith.constant 0 : index
      %c0_604 = arith.constant 0 : index
      %c0_605 = arith.constant 0 : index
      %976 = vector.load %arg9[%c0_603, %c0_604, %c0_605] : memref<1x64x32xf32, #tpu.memory_space<vmem>>, vector<1x64x32xf32>
      %977 = vector.shape_cast %976 : vector<1x64x32xf32> to vector<64x32xf32>
      %978 = vector.shape_cast %971 : vector<64x32xf32> to vector<1x64x32xf32>
      tpu.vector_store %arg9[%c0_603, %c0_604, %c0_605], %978 {strides = array<i32>} : memref<1x64x32xf32, #tpu.memory_space<vmem>>, vector<1x64x32xf32>,
    } else {
    }
    return
  }
  func.func @transform_0(%arg0: i32, %arg1: i32) -> (i32, i32, i32) {
    %c0_i32 = arith.constant 0 : i32
    %c0_i32_0 = arith.constant 0 : i32
    %c0_i32_1 = arith.constant 0 : i32
    return %arg0, %c0_i32, %c0_i32_0 : i32, i32, i32
  }
  func.func @transform_1(%arg0: i32, %arg1: i32) -> (i32, i32, i32) {
    %c0_i32 = arith.constant 0 : i32
    %c0_i32_0 = arith.constant 0 : i32
    %c0_i32_1 = arith.constant 0 : i32
    return %arg1, %c0_i32, %c0_i32_0 : i32, i32, i32
  }
  func.func @transform_2(%arg0: i32, %arg1: i32) -> (i32, i32, i32) {
    %c0_i32 = arith.constant 0 : i32
    %c0_i32_0 = arith.constant 0 : i32
    %c0_i32_1 = arith.constant 0 : i32
    return %arg1, %c0_i32, %c0_i32_0 : i32, i32, i32
  }
  func.func @transform_3(%arg0: i32, %arg1: i32) -> (i32, i32, i32) {
    %c0_i32 = arith.constant 0 : i32
    %c0_i32_0 = arith.constant 0 : i32
    %c0_i32_1 = arith.constant 0 : i32
    return %arg1, %c0_i32, %c0_i32_0 : i32, i32, i32
  }
  func.func @transform_4(%arg0: i32, %arg1: i32) -> (i32, i32, i32) {
    %c0_i32 = arith.constant 0 : i32
    %c0_i32_0 = arith.constant 0 : i32
    %c0_i32_1 = arith.constant 0 : i32
    return %arg1, %c0_i32, %c0_i32_0 : i32, i32, i32
  }
  func.func @transform_5(%arg0: i32, %arg1: i32) -> (i32, i32, i32) {
    %c0_i32 = arith.constant 0 : i32
    %c0_i32_0 = arith.constant 0 : i32
    %c0_i32_1 = arith.constant 0 : i32
    return %arg1, %c0_i32, %c0_i32_0 : i32, i32, i32
  }
  func.func @transform_6(%arg0: i32, %arg1: i32) -> (i32, i32, i32) {
    %c0_i32 = arith.constant 0 : i32
    %c0_i32_0 = arith.constant 0 : i32
    %c0_i32_1 = arith.constant 0 : i32
    return %arg1, %c0_i32, %c0_i32_0 : i32, i32, i32
  }
  func.func @transform_7(%arg0: i32, %arg1: i32) -> (i32, i32, i32) {
    %c0_i32 = arith.constant 0 : i32
    %c0_i32_0 = arith.constant 0 : i32
    %c0_i32_1 = arith.constant 0 : i32
    return %arg0, %c0_i32, %c0_i32_0 : i32, i32, i32
  }
}

</mosaic_0001>

<llo_original>
// kernel: mrformer_forward.1
$region0: #{mrformer_forward.1}
  #allocation0 [shape = 'u32[]', space=smem, size = 0x4, offset = 0x4, fixed_abs, tag = 'smem constant byte address 0x4 - core index']
  #allocation1 [shape = 'u32[144,128]{1,0:T(1,128)}', space=vmem, size = 0x12000, scoped, tag = 'internal scratch']
  #allocation2 [shape = 'f32[64,96]{1,0:T(8,128)}', space=vmem, size = 0x8000, scoped, tag = 'scratch operand']
  #allocation3 [shape = 'f32[64,32]{1,0:T(8,128)}', space=vmem, size = 0x8000, scoped, tag = 'scratch operand']
  #allocation4 [shape = 'f32[112,32]{1,0:T(8,128)}', space=vmem, size = 0xe000, scoped, tag = 'scratch operand']
  #allocation5 [shape = 'f32[9,64,32]{2,1,0:T(8,128)}', space=vmem, size = 0x48000, scoped, tag = 'scratch operand']
  #allocation6 [shape = 'f32[64,32]{1,0:T(8,128)}', space=vmem, size = 0x8000, scoped, tag = 'scratch operand']
  %s0 = inlined_call_operand.vmem [shape: f32[2,64,32], index: 0, kind: input, shape index: {}]
  %s1 = inlined_call_operand.vmem [shape: f32[2,32,96], index: 1, kind: input, shape index: {}]
  %s2 = inlined_call_operand.vmem [shape: f32[2,32,32], index: 2, kind: input, shape index: {}]
  %s3 = inlined_call_operand.vmem [shape: f32[2,32,32], index: 3, kind: input, shape index: {}]
  %s4 = inlined_call_operand.vmem [shape: f32[2,32,32], index: 4, kind: input, shape index: {}]
  %s5 = inlined_call_operand.vmem [shape: f32[2,81,32], index: 5, kind: input, shape index: {}]
  %s6 = inlined_call_operand.vmem [shape: f32[2,13,32], index: 6, kind: input, shape index: {}]
  %s7 = inlined_call_operand.vmem [shape: f32[2,64,32], index: 7, kind: output, shape index: {}]
  %s8 = sld [smem:[#allocation0]]
  $region69: #{mrformer_forward.1} parent=0
    _
  %s10 = ssub.s32 1, %s8
  %s11 = scalar_select 0, %s10, %s8
  loop: start=0, step=1, limit=6
  $region2: #{mrformer_forward.1} parent=0 // loop_pre_header
    _
  $region3: #{mrformer_forward.1} parent=0 // loop_header
    %s13 = sphi 0, %s17
    %p14 = scmp.ge.s32.totalorder %s13, 6
    %s20 = sphi 0, %s32
    %s21 = sphi 0, %s28
    %s22 = sphi 0, %s20
    %s23 = sphi 0, %s21
    %s24 = sphi 0, %s22
    %s25 = sphi 0, %s23
    %s35 = sphi 0, %s37
    %s38 = sphi 0, %s35
    %s39 = sphi 0, %s38
    %s55 = sphi 0, %s39
    %s61 = sphi 0, %s63
    %s64 = sphi 0, %s61
    %s65 = sphi 0, %s64
    %s81 = sphi 0, %s65
    %s87 = sphi 0, %s89
    %s90 = sphi 0, %s87
    %s91 = sphi 0, %s90
    %s107 = sphi 0, %s91
    %s113 = sphi 0, %s115
    %s116 = sphi 0, %s113
    %s117 = sphi 0, %s116
    %s133 = sphi 0, %s117
    %s139 = sphi 0, %s141
    %s142 = sphi 0, %s139
    %s143 = sphi 0, %s142
    %s159 = sphi 0, %s143
    %s165 = sphi 0, %s167
    %s168 = sphi 0, %s165
    %s169 = sphi 0, %s168
    %s185 = sphi 0, %s169
    %s191 = sphi 0, %s193
    %s194 = sphi 0, %s191
    %s195 = sphi 0, %s194
    %s211 = sphi 0, %s195
    %s217 = sphi 0, %s219
    %s220 = sphi 0, %s217
    %s221 = sphi 0, %s220
    %s237 = sphi 0, %s221
  $region4: #{mrformer_forward.1} parent=0 // loop_header_branch
    %16 = sbr.rel (%p14) target = $region8
  $region5: #{mrformer_forward.1} parent=0 // loop_body
    %s18 = ssub.s32 %s13, 1
    %s19 = ssub.s32 %s13, 2
    %s26 = sadd.s32 1, %s21
    %p27 = scmp.ge.s32.totalorder %s26, 2
    %s28 = scalar_select %p27, 0, %s26
    %s29 = sadd.s32 1, %s20
    %s30 = scalar_select %p27, %s29, %s20
    %p31 = scmp.ge.s32.totalorder %s30, 2
    %s32 = scalar_select %p31, 0, %s30
    %s33 = ssub.s32 %s20, %s32
    %p34 = scmp.eq.s32.totalorder %s33, 0
    %s36 = sadd.s32 %s35, 1
    %s37 = scalar_select %p34, %s35, %s36
    %p40 = pneg %p34
    %p41 = scmp.eq.s32.totalorder %s13, 3
    %p42 = por %p40, %p41
    %p43 = scmp.ne.s32.totalorder %s35, %s38
    %p44 = scmp.eq.s32.totalorder %s13, 0
    %p45 = por %p43, %p44
    %p46 = scmp.ne.s32.totalorder %s35, %s38
    %p47 = scmp.eq.s32.totalorder %s18, 3
    %p48 = por %p46, %p47
    %p49 = scmp.ne.s32.totalorder %s38, %s39
    %p50 = scmp.eq.s32.totalorder %s18, 0
    %p51 = por %p49, %p50
    %p52 = scmp.ne.s32.totalorder %s38, %s39
    %p53 = scmp.eq.s32.totalorder %s19, 3
    %p54 = por %p52, %p53
    %p56 = scmp.ne.s32.totalorder %s39, %s55
    %p57 = scmp.eq.s32.totalorder %s19, 0
    %p58 = por %p56, %p57
    %s59 = ssub.s32 %s21, %s28
    %p60 = scmp.eq.s32.totalorder %s59, 0
    %s62 = sadd.s32 %s61, 1
    %s63 = scalar_select %p60, %s61, %s62
    %p66 = pneg %p60
    %p67 = scmp.eq.s32.totalorder %s13, 3
    %p68 = por %p66, %p67
    %p69 = scmp.ne.s32.totalorder %s61, %s64
    %p70 = scmp.eq.s32.totalorder %s13, 0
    %p71 = por %p69, %p70
    %p72 = scmp.ne.s32.totalorder %s61, %s64
    %p73 = scmp.eq.s32.totalorder %s18, 3
    %p74 = por %p72, %p73
    %p75 = scmp.ne.s32.totalorder %s64, %s65
    %p76 = scmp.eq.s32.totalorder %s18, 0
    %p77 = por %p75, %p76
    %p78 = scmp.ne.s32.totalorder %s64, %s65
    %p79 = scmp.eq.s32.totalorder %s19, 3
    %p80 = por %p78, %p79
    %p82 = scmp.ne.s32.totalorder %s65, %s81
    %p83 = scmp.eq.s32.totalorder %s19, 0
    %p84 = por %p82, %p83
    %s85 = ssub.s32 %s21, %s28
    %p86 = scmp.eq.s32.totalorder %s85, 0
    %s88 = sadd.s32 %s87, 1
    %s89 = scalar_select %p86, %s87, %s88
    %p92 = pneg %p86
    %p93 = scmp.eq.s32.totalorder %s13, 3
    %p94 = por %p92, %p93
    %p95 = scmp.ne.s32.totalorder %s87, %s90
    %p96 = scmp.eq.s32.totalorder %s13, 0
    %p97 = por %p95, %p96
    %p98 = scmp.ne.s32.totalorder %s87, %s90
    %p99 = scmp.eq.s32.totalorder %s18, 3
    %p100 = por %p98, %p99
    %p101 = scmp.ne.s32.totalorder %s90, %s91
    %p102 = scmp.eq.s32.totalorder %s18, 0
    %p103 = por %p101, %p102
    %p104 = scmp.ne.s32.totalorder %s90, %s91
    %p105 = scmp.eq.s32.totalorder %s19, 3
    %p106 = por %p104, %p105
    %p108 = scmp.ne.s32.totalorder %s91, %s107
    %p109 = scmp.eq.s32.totalorder %s19, 0
    %p110 = por %p108, %p109
    %s111 = ssub.s32 %s21, %s28
    %p112 = scmp.eq.s32.totalorder %s111, 0
    %s114 = sadd.s32 %s113, 1
    %s115 = scalar_select %p112, %s113, %s114
    %p118 = pneg %p112
    %p119 = scmp.eq.s32.totalorder %s13, 3
    %p120 = por %p118, %p119
    %p121 = scmp.ne.s32.totalorder %s113, %s116
    %p122 = scmp.eq.s32.totalorder %s13, 0
    %p123 = por %p121, %p122
    %p124 = scmp.ne.s32.totalorder %s113, %s116
    %p125 = scmp.eq.s32.totalorder %s18, 3
    %p126 = por %p124, %p125
    %p127 = scmp.ne.s32.totalorder %s116, %s117
    %p128 = scmp.eq.s32.totalorder %s18, 0
    %p129 = por %p127, %p128
    %p130 = scmp.ne.s32.totalorder %s116, %s117
    %p131 = scmp.eq.s32.totalorder %s19, 3
    %p132 = por %p130, %p131
    %p134 = scmp.ne.s32.totalorder %s117, %s133
    %p135 = scmp.eq.s32.totalorder %s19, 0
    %p136 = por %p134, %p135
    %s137 = ssub.s32 %s21, %s28
    %p138 = scmp.eq.s32.totalorder %s137, 0
    %s140 = sadd.s32 %s139, 1
    %s141 = scalar_select %p138, %s139, %s140
    %p144 = pneg %p138
    %p145 = scmp.eq.s32.totalorder %s13, 3
    %p146 = por %p144, %p145
    %p147 = scmp.ne.s32.totalorder %s139, %s142
    %p148 = scmp.eq.s32.totalorder %s13, 0
    %p149 = por %p147, %p148
    %p150 = scmp.ne.s32.totalorder %s139, %s142
    %p151 = scmp.eq.s32.totalorder %s18, 3
    %p152 = por %p150, %p151
    %p153 = scmp.ne.s32.totalorder %s142, %s143
    %p154 = scmp.eq.s32.totalorder %s18, 0
    %p155 = por %p153, %p154
    %p156 = scmp.ne.s32.totalorder %s142, %s143
    %p157 = scmp.eq.s32.totalorder %s19, 3
    %p158 = por %p156, %p157
    %p160 = scmp.ne.s32.totalorder %s143, %s159
    %p161 = scmp.eq.s32.totalorder %s19, 0
    %p162 = por %p160, %p161
    %s163 = ssub.s32 %s21, %s28
    %p164 = scmp.eq.s32.totalorder %s163, 0
    %s166 = sadd.s32 %s165, 1
    %s167 = scalar_select %p164, %s165, %s166
    %p170 = pneg %p164
    %p171 = scmp.eq.s32.totalorder %s13, 3
    %p172 = por %p170, %p171
    %p173 = scmp.ne.s32.totalorder %s165, %s168
    %p174 = scmp.eq.s32.totalorder %s13, 0
    %p175 = por %p173, %p174
    %p176 = scmp.ne.s32.totalorder %s165, %s168
    %p177 = scmp.eq.s32.totalorder %s18, 3
    %p178 = por %p176, %p177
    %p179 = scmp.ne.s32.totalorder %s168, %s169
    %p180 = scmp.eq.s32.totalorder %s18, 0
    %p181 = por %p179, %p180
    %p182 = scmp.ne.s32.totalorder %s168, %s169
    %p183 = scmp.eq.s32.totalorder %s19, 3
    %p184 = por %p182, %p183
    %p186 = scmp.ne.s32.totalorder %s169, %s185
    %p187 = scmp.eq.s32.totalorder %s19, 0
    %p188 = por %p186, %p187
    %s189 = ssub.s32 %s21, %s28
    %p190 = scmp.eq.s32.totalorder %s189, 0
    %s192 = sadd.s32 %s191, 1
    %s193 = scalar_select %p190, %s191, %s192
    %p196 = pneg %p190
    %p197 = scmp.eq.s32.totalorder %s13, 3
    %p198 = por %p196, %p197
    %p199 = scmp.ne.s32.totalorder %s191, %s194
    %p200 = scmp.eq.s32.totalorder %s13, 0
    %p201 = por %p199, %p200
    %p202 = scmp.ne.s32.totalorder %s191, %s194
    %p203 = scmp.eq.s32.totalorder %s18, 3
    %p204 = por %p202, %p203
    %p205 = scmp.ne.s32.totalorder %s194, %s195
    %p206 = scmp.eq.s32.totalorder %s18, 0
    %p207 = por %p205, %p206
    %p208 = scmp.ne.s32.totalorder %s194, %s195
    %p209 = scmp.eq.s32.totalorder %s19, 3
    %p210 = por %p208, %p209
    %p212 = scmp.ne.s32.totalorder %s195, %s211
    %p213 = scmp.eq.s32.totalorder %s19, 0
    %p214 = por %p212, %p213
    %s215 = ssub.s32 %s20, %s32
    %p216 = scmp.eq.s32.totalorder %s215, 0
    %s218 = sadd.s32 %s217, 1
    %s219 = scalar_select %p216, %s217, %s218
    %p222 = pneg %p216
    %p223 = scmp.eq.s32.totalorder %s13, 3
    %p224 = por %p222, %p223
    %p225 = scmp.ne.s32.totalorder %s217, %s220
    %p226 = scmp.eq.s32.totalorder %s13, 0
    %p227 = por %p225, %p226
    %p228 = scmp.ne.s32.totalorder %s217, %s220
    %p229 = scmp.eq.s32.totalorder %s18, 3
    %p230 = por %p228, %p229
    %p231 = scmp.ne.s32.totalorder %s220, %s221
    %p232 = scmp.eq.s32.totalorder %s18, 0
    %p233 = por %p231, %p232
    %p234 = scmp.ne.s32.totalorder %s220, %s221
    %p235 = scmp.eq.s32.totalorder %s19, 3
    %p236 = por %p234, %p235
    %p238 = scmp.ne.s32.totalorder %s221, %s237
    %p239 = scmp.eq.s32.totalorder %s19, 0
    %p240 = por %p238, %p239
    %p241 = scmp.le.s32.totalorder 1, %s13
    %p242 = scmp.lt.s32.totalorder %s13, 5
    %p243 = pnand %p241, %p242
    %p244 = pneg %p243
    // Predicated region
    $region9: #{mrformer_forward.1} parent=5 // pred_check
      _
    $region10: #{mrformer_forward.1} parent=5 // pred_check_branch
      %246 = sbr.rel (%p243) target = $region12
    $region11: #{mrformer_forward.1} parent=5 // pred_region
      %s247 = ssub.s32 %s13, 1
    $region12: #{mrformer_forward.1} parent=5 // pred_fallthru
      _
    %p248 = scmp.lt.s32.totalorder %s13, 4
    // Predicated region
    $region13: #{mrformer_forward.1} parent=5 // pred_check
      %p249 = pneg %p248
    $region14: #{mrformer_forward.1} parent=5 // pred_check_branch
      %251 = sbr.rel (%p249) target = $region16
    $region15: #{mrformer_forward.1} parent=5 // pred_region
      // Predicated region
      $region17: #{mrformer_forward.1} parent=15 // pred_check
        %p252 = pneg %p45
      $region18: #{mrformer_forward.1} parent=15 // pred_check_branch
        %254 = sbr.rel (%p252) target = $region20
      $region19: #{mrformer_forward.1} parent=15 // pred_region
        %p255 = scmp.lt.s32.totalorder %s20, 1
        %s256 = scalar_select %p255, %s20, 1
        %s257 = smul.addr %s256, 8
        %s258 = smul.addr %s257, 8
        %s259 = scalar_lea.vmem %s0, %s258
      $region20: #{mrformer_forward.1} parent=15 // pred_fallthru
        _
      // Predicated region
      $region21: #{mrformer_forward.1} parent=15 // pred_check
        %p260 = pneg %p71
      $region22: #{mrformer_forward.1} parent=15 // pred_check_branch
        %262 = sbr.rel (%p260) target = $region24
      $region23: #{mrformer_forward.1} parent=15 // pred_region
        %p263 = scmp.lt.s32.totalorder %s21, 1
        %s264 = scalar_select %p263, %s21, 1
        %s265 = smul.addr %s264, 4
        %s266 = smul.addr %s265, 8
        %s267 = scalar_lea.vmem %s1, %s266
      $region24: #{mrformer_forward.1} parent=15 // pred_fallthru
        _
      // Predicated region
      $region25: #{mrformer_forward.1} parent=15 // pred_check
        %p268 = pneg %p97
      $region26: #{mrformer_forward.1} parent=15 // pred_check_branch
        %270 = sbr.rel (%p268) target = $region28
      $region27: #{mrformer_forward.1} parent=15 // pred_region
        %p271 = scmp.lt.s32.totalorder %s21, 1
        %s272 = scalar_select %p271, %s21, 1
        %s273 = smul.addr %s272, 4
        %s274 = smul.addr %s273, 8
        %s275 = scalar_lea.vmem %s2, %s274
      $region28: #{mrformer_forward.1} parent=15 // pred_fallthru
        _
      // Predicated region
      $region29: #{mrformer_forward.1} parent=15 // pred_check
        %p276 = pneg %p123
      $region30: #{mrformer_forward.1} parent=15 // pred_check_branch
        %278 = sbr.rel (%p276) target = $region32
      $region31: #{mrformer_forward.1} parent=15 // pred_region
        %p279 = scmp.lt.s32.totalorder %s21, 1
        %s280 = scalar_select %p279, %s21, 1
        %s281 = smul.addr %s280, 4
        %s282 = smul.addr %s281, 8
        %s283 = scalar_lea.vmem %s3, %s282
      $region32: #{mrformer_forward.1} parent=15 // pred_fallthru
        _
      // Predicated region
      $region33: #{mrformer_forward.1} parent=15 // pred_check
        %p284 = pneg %p149
      $region34: #{mrformer_forward.1} parent=15 // pred_check_branch
        %286 = sbr.rel (%p284) target = $region36
      $region35: #{mrformer_forward.1} parent=15 // pred_region
        %p287 = scmp.lt.s32.totalorder %s21, 1
        %s288 = scalar_select %p287, %s21, 1
        %s289 = smul.addr %s288, 4
        %s290 = smul.addr %s289, 8
        %s291 = scalar_lea.vmem %s4, %s290
      $region36: #{mrformer_forward.1} parent=15 // pred_fallthru
        _
      // Predicated region
      $region37: #{mrformer_forward.1} parent=15 // pred_check
        %p292 = pneg %p175
      $region38: #{mrformer_forward.1} parent=15 // pred_check_branch
        %294 = sbr.rel (%p292) target = $region40
      $region39: #{mrformer_forward.1} parent=15 // pred_region
        %p295 = scmp.lt.s32.totalorder %s21, 1
        %s296 = scalar_select %p295, %s21, 1
        %s297 = smul.addr %s296, 11
        %s298 = smul.addr %s297, 8
        %s299 = scalar_lea.vmem %s5, %s298
      $region40: #{mrformer_forward.1} parent=15 // pred_fallthru
        _
      // Predicated region
      $region41: #{mrformer_forward.1} parent=15 // pred_check
        %p300 = pneg %p201
      $region42: #{mrformer_forward.1} parent=15 // pred_check_branch
        %302 = sbr.rel (%p300) target = $region44
      $region43: #{mrformer_forward.1} parent=15 // pred_region
        %p303 = scmp.lt.s32.totalorder %s21, 1
        %s304 = scalar_select %p303, %s21, 1
        %s305 = smul.addr %s304, 2
        %s306 = smul.addr %s305, 8
        %s307 = scalar_lea.vmem %s6, %s306
      $region44: #{mrformer_forward.1} parent=15 // pred_fallthru
        _
    $region16: #{mrformer_forward.1} parent=5 // pred_fallthru
      _
    %p308 = scmp.le.s32.totalorder 1, %s13
    %p309 = scmp.lt.s32.totalorder %s13, 5
    %p310 = pnand %p308, %p309
    %p311 = pneg %p310
    // Predicated region
    $region45: #{mrformer_forward.1} parent=5 // pred_check
      _
    $region46: #{mrformer_forward.1} parent=5 // pred_check_branch
      %313 = sbr.rel (%p310) target = $region48
    $region47: #{mrformer_forward.1} parent=5 // pred_region
      %s314 = ssub.s32 %s13, 1
      %p315 = scmp.lt.s32.totalorder %s22, 1
      %s316 = scalar_select %p315, %s22, 1
      %s317 = smul.addr %s316, 8
      %s318 = smul.addr %s317, 8
      %s319 = scalar_lea.vmem %s0, %s318
      %p320 = pneg %p51
      %p321 = pneg %p48
      %p322 = scmp.lt.s32.totalorder %s23, 1
      %s323 = scalar_select %p322, %s23, 1
      %s324 = smul.addr %s323, 4
      %s325 = smul.addr %s324, 8
      %s326 = scalar_lea.vmem %s1, %s325
      %p327 = pneg %p77
      %p328 = pneg %p74
      %p329 = scmp.lt.s32.totalorder %s23, 1
      %s330 = scalar_select %p329, %s23, 1
      %s331 = smul.addr %s330, 4
      %s332 = smul.addr %s331, 8
      %s333 = scalar_lea.vmem %s2, %s332
      %p334 = pneg %p103
      %p335 = pneg %p100
      %p336 = scmp.lt.s32.totalorder %s23, 1
      %s337 = scalar_select %p336, %s23, 1
      %s338 = smul.addr %s337, 4
      %s339 = smul.addr %s338, 8
      %s340 = scalar_lea.vmem %s3, %s339
      %p341 = pneg %p129
      %p342 = pneg %p126
      %p343 = scmp.lt.s32.totalorder %s23, 1
      %s344 = scalar_select %p343, %s23, 1
      %s345 = smul.addr %s344, 4
      %s346 = smul.addr %s345, 8
      %s347 = scalar_lea.vmem %s4, %s346
      %p348 = pneg %p155
      %p349 = pneg %p152
      %p350 = scmp.lt.s32.totalorder %s23, 1
      %s351 = scalar_select %p350, %s23, 1
      %s352 = smul.addr %s351, 11
      %s353 = smul.addr %s352, 8
      %s354 = scalar_lea.vmem %s5, %s353
      %p355 = pneg %p181
      %p356 = pneg %p178
      %p357 = scmp.lt.s32.totalorder %s23, 1
      %s358 = scalar_select %p357, %s23, 1
      %s359 = smul.addr %s358, 2
      %s360 = smul.addr %s359, 8
      %s361 = scalar_lea.vmem %s6, %s360
      %p362 = pneg %p207
      %p363 = pneg %p204
      %p364 = pneg %p233
      %p365 = pneg %p230
      %p366 = scmp.lt.s32.totalorder %s22, 1
      %s367 = scalar_select %p366, %s22, 1
      %s368 = smul.addr %s367, 8
      %s369 = smul.addr %s368, 8
      %s370 = scalar_lea.vmem %s7, %s369
      %p371 = scmp.lt.s32.totalorder %s22, 1
      %s372 = scalar_select %p371, %s22, 1
      %s373 = smul.addr %s372, 8
      %s374 = smul.addr %s373, 8
      %s375 = scalar_lea.vmem %s0, %s374
      %p376 = scmp.lt.s32.totalorder %s23, 1
      %s377 = scalar_select %p376, %s23, 1
      %s378 = smul.addr %s377, 4
      %s379 = smul.addr %s378, 8
      %s380 = scalar_lea.vmem %s1, %s379
      %p381 = scmp.lt.s32.totalorder %s23, 1
      %s382 = scalar_select %p381, %s23, 1
      %s383 = smul.addr %s382, 4
      %s384 = smul.addr %s383, 8
      %s385 = scalar_lea.vmem %s2, %s384
      %p386 = scmp.lt.s32.totalorder %s23, 1
      %s387 = scalar_select %p386, %s23, 1
      %s388 = smul.addr %s387, 4
      %s389 = smul.addr %s388, 8
      %s390 = scalar_lea.vmem %s3, %s389
      %p391 = scmp.lt.s32.totalorder %s23, 1
      %s392 = scalar_select %p391, %s23, 1
      %s393 = smul.addr %s392, 4
      %s394 = smul.addr %s393, 8
      %s395 = scalar_lea.vmem %s4, %s394
      %p396 = scmp.lt.s32.totalorder %s23, 1
      %s397 = scalar_select %p396, %s23, 1
      %s398 = smul.addr %s397, 11
      %s399 = smul.addr %s398, 8
      %s400 = scalar_lea.vmem %s5, %s399
      %p401 = scmp.lt.s32.totalorder %s23, 1
      %s402 = scalar_select %p401, %s23, 1
      %s403 = smul.addr %s402, 2
      %s404 = smul.addr %s403, 8
      %s405 = scalar_lea.vmem %s6, %s404
      %p406 = scmp.lt.s32.totalorder %s22, 1
      %s407 = scalar_select %p406, %s22, 1
      %s408 = smul.addr %s407, 8
      %s409 = smul.addr %s408, 8
      %s410 = scalar_lea.vmem %s7, %s409
      %p411 = scmp.eq.s32.totalorder %s23, 0
      // Predicated region
      $region49: #{mrformer_forward.1} parent=47 // pred_check
        %p412 = pneg %p411
      $region50: #{mrformer_forward.1} parent=47 // pred_check_branch
        %414 = sbr.rel (%p412) target = $region52
      $region51: #{mrformer_forward.1} parent=47 // pred_region
        %v415 = vld [vmem:[%s375] sm:$0xff]
        %v416 = vld [vmem:[%s375 + $0x8] sm:$0xff]
        %v417 = vld [vmem:[%s375 + $0x10] sm:$0xff]
        %v418 = vld [vmem:[%s375 + $0x18] sm:$0xff]
        %v419 = vld [vmem:[%s375 + $0x20] sm:$0xff]
        %v420 = vld [vmem:[%s375 + $0x28] sm:$0xff]
        %v421 = vld [vmem:[%s375 + $0x30] sm:$0xff]
        %v422 = vld [vmem:[%s375 + $0x38] sm:$0xff]
        %vm423 = vcmask 261120
        %424 = vst.msk [vmem:[#allocation6] sm:$0xff] %vm423, %v415
        %425 = vst.msk [vmem:[#allocation6 + $0x8] sm:$0xff] %vm423, %v416
        %426 = vst.msk [vmem:[#allocation6 + $0x10] sm:$0xff] %vm423, %v417
        %427 = vst.msk [vmem:[#allocation6 + $0x18] sm:$0xff] %vm423, %v418
        %428 = vst.msk [vmem:[#allocation6 + $0x20] sm:$0xff] %vm423, %v419
        %429 = vst.msk [vmem:[#allocation6 + $0x28] sm:$0xff] %vm423, %v420
        %430 = vst.msk [vmem:[#allocation6 + $0x30] sm:$0xff] %vm423, %v421
        %431 = vst.msk [vmem:[#allocation6 + $0x38] sm:$0xff] %vm423, %v422
        %432 = vst.msk [vmem:[#allocation4] sm:$0xff] %vm423, 0.0
        %433 = vst.msk [vmem:[#allocation4 + $0x8] sm:$0xff] %vm423, 0.0
        %434 = vst.msk [vmem:[#allocation4 + $0x10] sm:$0xff] %vm423, 0.0
        %435 = vst.msk [vmem:[#allocation4 + $0x18] sm:$0xff] %vm423, 0.0
        %436 = vst.msk [vmem:[#allocation4 + $0x20] sm:$0xff] %vm423, 0.0
        %437 = vst.msk [vmem:[#allocation4 + $0x28] sm:$0xff] %vm423, 0.0
        %438 = vst.msk [vmem:[#allocation4 + $0x30] sm:$0xff] %vm423, 0.0
        %439 = vst.msk [vmem:[#allocation4 + $0x38] sm:$0xff] %vm423, 0.0
        %440 = vst.msk [vmem:[#allocation4 + $0x40] sm:$0xff] %vm423, 0.0
        %441 = vst.msk [vmem:[#allocation4 + $0x48] sm:$0xff] %vm423, 0.0
        %442 = vst.msk [vmem:[#allocation4 + $0x50] sm:$0xff] %vm423, 0.0
        %443 = vst.msk [vmem:[#allocation4 + $0x58] sm:$0xff] %vm423, 0.0
        %444 = vst.msk [vmem:[#allocation4 + $0x60] sm:$0xff] %vm423, 0.0
        %445 = vst.msk [vmem:[#allocation4 + $0x68] sm:$0xff] %vm423, 0.0
        %v446 = vlaneseq
        %v447 = vshrl.u32 %v446, 7
        %v448 = vadd.s32 %v447, 8
        %v449 = vadd.s32 %v447, 16
        %v450 = vadd.s32 %v447, 24
        %v451 = vadd.s32 %v447, 32
        %v452 = vadd.s32 %v447, 40
        %v453 = vadd.s32 %v447, 48
        %v454 = vadd.s32 %v447, 56
        %v455 = vcvt.s32.f32 %v447
        %v456 = vcvt.s32.f32 %v448
        %v457 = vcvt.s32.f32 %v449
        %v458 = vcvt.s32.f32 %v450
        %v459 = vcvt.s32.f32 %v451
        %v460 = vcvt.s32.f32 %v452
        %v461 = vcvt.s32.f32 %v453
        %v462 = vcvt.s32.f32 %v454
        %v463 = vadd.f32 %v455, 0.5
        %v464 = vadd.f32 %v456, 0.5
        %v465 = vadd.f32 %v457, 0.5
        %v466 = vadd.f32 %v458, 0.5
        %v467 = vadd.f32 %v459, 0.5
        %v468 = vadd.f32 %v460, 0.5
        %v469 = vadd.f32 %v461, 0.5
        %v470 = vadd.f32 %v462, 0.5
        %v471 = vmul.f32 %v463, 0.0625
        %v472 = vmul.f32 %v464, 0.0625
        %v473 = vmul.f32 %v465, 0.0625
        %v474 = vmul.f32 %v466, 0.0625
        %v475 = vmul.f32 %v467, 0.0625
        %v476 = vmul.f32 %v468, 0.0625
        %v477 = vmul.f32 %v469, 0.0625
        %v478 = vmul.f32 %v470, 0.0625
        %v479 = vfloor.f32 %v471
        %v480 = vfloor.f32 %v472
        %v481 = vfloor.f32 %v473
        %v482 = vfloor.f32 %v474
        %v483 = vfloor.f32 %v475
        %v484 = vfloor.f32 %v476
        %v485 = vfloor.f32 %v477
        %v486 = vfloor.f32 %v478
        %v487 = vmul.f32 %v479, 16.0
        %v488 = vmul.f32 %v480, 16.0
        %v489 = vmul.f32 %v481, 16.0
        %v490 = vmul.f32 %v482, 16.0
        %v491 = vmul.f32 %v483, 16.0
        %v492 = vmul.f32 %v484, 16.0
        %v493 = vmul.f32 %v485, 16.0
        %v494 = vmul.f32 %v486, 16.0
        %v495 = vsub.f32 %v455, %v487
        %v496 = vsub.f32 %v456, %v488
        %v497 = vsub.f32 %v457, %v489
        %v498 = vsub.f32 %v458, %v490
        %v499 = vsub.f32 %v459, %v491
        %v500 = vsub.f32 %v460, %v492
        %v501 = vsub.f32 %v461, %v493
        %v502 = vsub.f32 %v462, %v494
        %v503 = vadd.f32 %v495, 0.5
        %v504 = vadd.f32 %v496, 0.5
        %v505 = vadd.f32 %v497, 0.5
        %v506 = vadd.f32 %v498, 0.5
        %v507 = vadd.f32 %v499, 0.5
        %v508 = vadd.f32 %v500, 0.5
        %v509 = vadd.f32 %v501, 0.5
        %v510 = vadd.f32 %v502, 0.5
        %v511 = vmul.f32 %v503, 0.25
        %v512 = vmul.f32 %v504, 0.25
        %v513 = vmul.f32 %v505, 0.25
        %v514 = vmul.f32 %v506, 0.25
        %v515 = vmul.f32 %v507, 0.25
        %v516 = vmul.f32 %v508, 0.25
        %v517 = vmul.f32 %v509, 0.25
        %v518 = vmul.f32 %v510, 0.25
        %v519 = vfloor.f32 %v511
        %v520 = vfloor.f32 %v512
        %v521 = vfloor.f32 %v513
        %v522 = vfloor.f32 %v514
        %v523 = vfloor.f32 %v515
        %v524 = vfloor.f32 %v516
        %v525 = vfloor.f32 %v517
        %v526 = vfloor.f32 %v518
        %v527 = vmul.f32 %v519, 4.0
        %v528 = vmul.f32 %v520, 4.0
        %v529 = vmul.f32 %v521, 4.0
        %v530 = vmul.f32 %v522, 4.0
        %v531 = vmul.f32 %v523, 4.0
        %v532 = vmul.f32 %v524, 4.0
        %v533 = vmul.f32 %v525, 4.0
        %v534 = vmul.f32 %v526, 4.0
        %v535 = vsub.f32 %v495, %v527
        %v536 = vsub.f32 %v496, %v528
        %v537 = vsub.f32 %v497, %v529
        %v538 = vsub.f32 %v498, %v530
        %v539 = vsub.f32 %v499, %v531
        %v540 = vsub.f32 %v500, %v532
        %v541 = vsub.f32 %v501, %v533
        %v542 = vsub.f32 %v502, %v534
        %vm543 = vcmp.ge.f32.partialorder %v519, 1.0
        %vm544 = vcmp.ge.f32.partialorder %v520, 1.0
        %vm545 = vcmp.ge.f32.partialorder %v521, 1.0
        %vm546 = vcmp.ge.f32.partialorder %v522, 1.0
        %vm547 = vcmp.ge.f32.partialorder %v523, 1.0
        %vm548 = vcmp.ge.f32.partialorder %v524, 1.0
        %vm549 = vcmp.ge.f32.partialorder %v525, 1.0
        %vm550 = vcmp.ge.f32.partialorder %v526, 1.0
        %v551 = vsel %vm543, 1, 0
        %v552 = vsel %vm544, 1, 0
        %v553 = vsel %vm545, 1, 0
        %v554 = vsel %vm546, 1, 0
        %v555 = vsel %vm547, 1, 0
        %v556 = vsel %vm548, 1, 0
        %v557 = vsel %vm549, 1, 0
        %v558 = vsel %vm550, 1, 0
        %v559 = vcvt.s32.f32 %v551
        %v560 = vcvt.s32.f32 %v552
        %v561 = vcvt.s32.f32 %v553
        %v562 = vcvt.s32.f32 %v554
        %v563 = vcvt.s32.f32 %v555
        %v564 = vcvt.s32.f32 %v556
        %v565 = vcvt.s32.f32 %v557
        %v566 = vcvt.s32.f32 %v558
        %vm567 = vcmp.ge.f32.partialorder %v535, 1.0
        %vm568 = vcmp.ge.f32.partialorder %v536, 1.0
        %vm569 = vcmp.ge.f32.partialorder %v537, 1.0
        %vm570 = vcmp.ge.f32.partialorder %v538, 1.0
        %vm571 = vcmp.ge.f32.partialorder %v539, 1.0
        %vm572 = vcmp.ge.f32.partialorder %v540, 1.0
        %vm573 = vcmp.ge.f32.partialorder %v541, 1.0
        %vm574 = vcmp.ge.f32.partialorder %v542, 1.0
        %v575 = vsel %vm567, 1, 0
        %v576 = vsel %vm568, 1, 0
        %v577 = vsel %vm569, 1, 0
        %v578 = vsel %vm570, 1, 0
        %v579 = vsel %vm571, 1, 0
        %v580 = vsel %vm572, 1, 0
        %v581 = vsel %vm573, 1, 0
        %v582 = vsel %vm574, 1, 0
        %v583 = vcvt.s32.f32 %v575
        %v584 = vcvt.s32.f32 %v576
        %v585 = vcvt.s32.f32 %v577
        %v586 = vcvt.s32.f32 %v578
        %v587 = vcvt.s32.f32 %v579
        %v588 = vcvt.s32.f32 %v580
        %v589 = vcvt.s32.f32 %v581
        %v590 = vcvt.s32.f32 %v582
        %v591 = vmul.f32 %v559, %v583
        %v592 = vmul.f32 %v560, %v584
        %v593 = vmul.f32 %v561, %v585
        %v594 = vmul.f32 %v562, %v586
        %v595 = vmul.f32 %v563, %v587
        %v596 = vmul.f32 %v564, %v588
        %v597 = vmul.f32 %v565, %v589
        %v598 = vmul.f32 %v566, %v590
        %599 = vst.msk [vmem:[#allocation5] sm:$0xff] %vm423, %v591
        %600 = vst.msk [vmem:[#allocation5 + $0x8] sm:$0xff] %vm423, %v592
        %601 = vst.msk [vmem:[#allocation5 + $0x10] sm:$0xff] %vm423, %v593
        %602 = vst.msk [vmem:[#allocation5 + $0x18] sm:$0xff] %vm423, %v594
        %603 = vst.msk [vmem:[#allocation5 + $0x20] sm:$0xff] %vm423, %v595
        %604 = vst.msk [vmem:[#allocation5 + $0x28] sm:$0xff] %vm423, %v596
        %605 = vst.msk [vmem:[#allocation5 + $0x30] sm:$0xff] %vm423, %v597
        %606 = vst.msk [vmem:[#allocation5 + $0x38] sm:$0xff] %vm423, %v598
        %s607 = scalar_lea.vmem [#allocation5], 64
        %608 = vst.msk [vmem:[%s607] sm:$0xff] %vm423, %v559
        %609 = vst.msk [vmem:[%s607 + $0x8] sm:$0xff] %vm423, %v560
        %610 = vst.msk [vmem:[%s607 + $0x10] sm:$0xff] %vm423, %v561
        %611 = vst.msk [vmem:[%s607 + $0x18] sm:$0xff] %vm423, %v562
        %612 = vst.msk [vmem:[%s607 + $0x20] sm:$0xff] %vm423, %v563
        %613 = vst.msk [vmem:[%s607 + $0x28] sm:$0xff] %vm423, %v564
        %614 = vst.msk [vmem:[%s607 + $0x30] sm:$0xff] %vm423, %v565
        %615 = vst.msk [vmem:[%s607 + $0x38] sm:$0xff] %vm423, %v566
        %vm616 = vcmp.le.f32.partialorder %v535, 2.0
        %vm617 = vcmp.le.f32.partialorder %v536, 2.0
        %vm618 = vcmp.le.f32.partialorder %v537, 2.0
        %vm619 = vcmp.le.f32.partialorder %v538, 2.0
        %vm620 = vcmp.le.f32.partialorder %v539, 2.0
        %vm621 = vcmp.le.f32.partialorder %v540, 2.0
        %vm622 = vcmp.le.f32.partialorder %v541, 2.0
        %vm623 = vcmp.le.f32.partialorder %v542, 2.0
        %v624 = vsel %vm616, 1, 0
        %v625 = vsel %vm617, 1, 0
        %v626 = vsel %vm618, 1, 0
        %v627 = vsel %vm619, 1, 0
        %v628 = vsel %vm620, 1, 0
        %v629 = vsel %vm621, 1, 0
        %v630 = vsel %vm622, 1, 0
        %v631 = vsel %vm623, 1, 0
        %v632 = vcvt.s32.f32 %v624
        %v633 = vcvt.s32.f32 %v625
        %v634 = vcvt.s32.f32 %v626
        %v635 = vcvt.s32.f32 %v627
        %v636 = vcvt.s32.f32 %v628
        %v637 = vcvt.s32.f32 %v629
        %v638 = vcvt.s32.f32 %v630
        %v639 = vcvt.s32.f32 %v631
        %v640 = vmul.f32 %v559, %v632
        %v641 = vmul.f32 %v560, %v633
        %v642 = vmul.f32 %v561, %v634
        %v643 = vmul.f32 %v562, %v635
        %v644 = vmul.f32 %v563, %v636
        %v645 = vmul.f32 %v564, %v637
        %v646 = vmul.f32 %v565, %v638
        %v647 = vmul.f32 %v566, %v639
        %s648 = scalar_lea.vmem [#allocation5], 128
        %649 = vst.msk [vmem:[%s648] sm:$0xff] %vm423, %v640
        %650 = vst.msk [vmem:[%s648 + $0x8] sm:$0xff] %vm423, %v641
        %651 = vst.msk [vmem:[%s648 + $0x10] sm:$0xff] %vm423, %v642
        %652 = vst.msk [vmem:[%s648 + $0x18] sm:$0xff] %vm423, %v643
        %653 = vst.msk [vmem:[%s648 + $0x20] sm:$0xff] %vm423, %v644
        %654 = vst.msk [vmem:[%s648 + $0x28] sm:$0xff] %vm423, %v645
        %655 = vst.msk [vmem:[%s648 + $0x30] sm:$0xff] %vm423, %v646
        %656 = vst.msk [vmem:[%s648 + $0x38] sm:$0xff] %vm423, %v647
        %s657 = scalar_lea.vmem [#allocation5], 192
        %658 = vst.msk [vmem:[%s657] sm:$0xff] %vm423, %v583
        %659 = vst.msk [vmem:[%s657 + $0x8] sm:$0xff] %vm423, %v584
        %660 = vst.msk [vmem:[%s657 + $0x10] sm:$0xff] %vm423, %v585
        %661 = vst.msk [vmem:[%s657 + $0x18] sm:$0xff] %vm423, %v586
        %662 = vst.msk [vmem:[%s657 + $0x20] sm:$0xff] %vm423, %v587
        %663 = vst.msk [vmem:[%s657 + $0x28] sm:$0xff] %vm423, %v588
        %664 = vst.msk [vmem:[%s657 + $0x30] sm:$0xff] %vm423, %v589
        %665 = vst.msk [vmem:[%s657 + $0x38] sm:$0xff] %vm423, %v590
        %s666 = scalar_lea.vmem [#allocation5], 320
        %667 = vst.msk [vmem:[%s666] sm:$0xff] %vm423, %v632
        %668 = vst.msk [vmem:[%s666 + $0x8] sm:$0xff] %vm423, %v633
        %669 = vst.msk [vmem:[%s666 + $0x10] sm:$0xff] %vm423, %v634
        %670 = vst.msk [vmem:[%s666 + $0x18] sm:$0xff] %vm423, %v635
        %671 = vst.msk [vmem:[%s666 + $0x20] sm:$0xff] %vm423, %v636
        %672 = vst.msk [vmem:[%s666 + $0x28] sm:$0xff] %vm423, %v637
        %673 = vst.msk [vmem:[%s666 + $0x30] sm:$0xff] %vm423, %v638
        %674 = vst.msk [vmem:[%s666 + $0x38] sm:$0xff] %vm423, %v639
        %vm675 = vcmp.le.f32.partialorder %v519, 2.0
        %vm676 = vcmp.le.f32.partialorder %v520, 2.0
        %vm677 = vcmp.le.f32.partialorder %v521, 2.0
        %vm678 = vcmp.le.f32.partialorder %v522, 2.0
        %vm679 = vcmp.le.f32.partialorder %v523, 2.0
        %vm680 = vcmp.le.f32.partialorder %v524, 2.0
        %vm681 = vcmp.le.f32.partialorder %v525, 2.0
        %vm682 = vcmp.le.f32.partialorder %v526, 2.0
        %v683 = vsel %vm675, 1, 0
        %v684 = vsel %vm676, 1, 0
        %v685 = vsel %vm677, 1, 0
        %v686 = vsel %vm678, 1, 0
        %v687 = vsel %vm679, 1, 0
        %v688 = vsel %vm680, 1, 0
        %v689 = vsel %vm681, 1, 0
        %v690 = vsel %vm682, 1, 0
        %v691 = vcvt.s32.f32 %v683
        %v692 = vcvt.s32.f32 %v684
        %v693 = vcvt.s32.f32 %v685
        %v694 = vcvt.s32.f32 %v686
        %v695 = vcvt.s32.f32 %v687
        %v696 = vcvt.s32.f32 %v688
        %v697 = vcvt.s32.f32 %v689
        %v698 = vcvt.s32.f32 %v690
        %v699 = vmul.f32 %v691, %v583
        %v700 = vmul.f32 %v692, %v584
        %v701 = vmul.f32 %v693, %v585
        %v702 = vmul.f32 %v694, %v586
        %v703 = vmul.f32 %v695, %v587
        %v704 = vmul.f32 %v696, %v588
        %v705 = vmul.f32 %v697, %v589
        %v706 = vmul.f32 %v698, %v590
        %s707 = scalar_lea.vmem [#allocation5], 384
        %708 = vst.msk [vmem:[%s707] sm:$0xff] %vm423, %v699
        %709 = vst.msk [vmem:[%s707 + $0x8] sm:$0xff] %vm423, %v700
        %710 = vst.msk [vmem:[%s707 + $0x10] sm:$0xff] %vm423, %v701
        %711 = vst.msk [vmem:[%s707 + $0x18] sm:$0xff] %vm423, %v702
        %712 = vst.msk [vmem:[%s707 + $0x20] sm:$0xff] %vm423, %v703
        %713 = vst.msk [vmem:[%s707 + $0x28] sm:$0xff] %vm423, %v704
        %714 = vst.msk [vmem:[%s707 + $0x30] sm:$0xff] %vm423, %v705
        %715 = vst.msk [vmem:[%s707 + $0x38] sm:$0xff] %vm423, %v706
        %s716 = scalar_lea.vmem [#allocation5], 448
        %717 = vst.msk [vmem:[%s716] sm:$0xff] %vm423, %v691
        %718 = vst.msk [vmem:[%s716 + $0x8] sm:$0xff] %vm423, %v692
        %719 = vst.msk [vmem:[%s716 + $0x10] sm:$0xff] %vm423, %v693
        %720 = vst.msk [vmem:[%s716 + $0x18] sm:$0xff] %vm423, %v694
        %721 = vst.msk [vmem:[%s716 + $0x20] sm:$0xff] %vm423, %v695
        %722 = vst.msk [vmem:[%s716 + $0x28] sm:$0xff] %vm423, %v696
        %723 = vst.msk [vmem:[%s716 + $0x30] sm:$0xff] %vm423, %v697
        %724 = vst.msk [vmem:[%s716 + $0x38] sm:$0xff] %vm423, %v698
        %v725 = vmul.f32 %v691, %v632
        %v726 = vmul.f32 %v692, %v633
        %v727 = vmul.f32 %v693, %v634
        %v728 = vmul.f32 %v694, %v635
        %v729 = vmul.f32 %v695, %v636
        %v730 = vmul.f32 %v696, %v637
        %v731 = vmul.f32 %v697, %v638
        %v732 = vmul.f32 %v698, %v639
        %s733 = scalar_lea.vmem [#allocation5], 512
        %734 = vst.msk [vmem:[%s733] sm:$0xff] %vm423, %v725
        %735 = vst.msk [vmem:[%s733 + $0x8] sm:$0xff] %vm423, %v726
        %736 = vst.msk [vmem:[%s733 + $0x10] sm:$0xff] %vm423, %v727
        %737 = vst.msk [vmem:[%s733 + $0x18] sm:$0xff] %vm423, %v728
        %738 = vst.msk [vmem:[%s733 + $0x20] sm:$0xff] %vm423, %v729
        %739 = vst.msk [vmem:[%s733 + $0x28] sm:$0xff] %vm423, %v730
        %740 = vst.msk [vmem:[%s733 + $0x30] sm:$0xff] %vm423, %v731
        %741 = vst.msk [vmem:[%s733 + $0x38] sm:$0xff] %vm423, %v732
      $region52: #{mrformer_forward.1} parent=47 // pred_fallthru
        _
      %v742 = vld [vmem:[#allocation6] sm:$0xff]
      %v743 = vld [vmem:[#allocation6 + $0x8] sm:$0xff]
      %v744 = vld [vmem:[#allocation6 + $0x10] sm:$0xff]
      %v745 = vld [vmem:[#allocation6 + $0x18] sm:$0xff]
      %v746 = vld [vmem:[#allocation6 + $0x20] sm:$0xff]
      %v747 = vld [vmem:[#allocation6 + $0x28] sm:$0xff]
      %v748 = vld [vmem:[#allocation6 + $0x30] sm:$0xff]
      %v749 = vld [vmem:[#allocation6 + $0x38] sm:$0xff]
      %v750 = vld [vmem:[%s380] sm:$0xff]
      %v751 = vld [vmem:[%s380 + $0x8] sm:$0xff]
      %v752 = vld [vmem:[%s380 + $0x10] sm:$0xff]
      %v753 = vld [vmem:[%s380 + $0x18] sm:$0xff]
      %vm754 = vcmask 261120
      %v756 = vsel %vm754, %v742, 0
      %v759 = vsel %vm754, %v743, 0
      %v762 = vsel %vm754, %v744, 0
      %v765 = vsel %vm754, %v745, 0
      %v768 = vsel %vm754, %v746, 0
      %v771 = vsel %vm754, %v747, 0
      %v774 = vsel %vm754, %v748, 0
      %v777 = vsel %vm754, %v749, 0
      %779 = vmatprep.subr.mxu0 0.0
      %780 = vmatpush1.msra.mxu0 %v750
      %781 = vmatprep.subr.mxu0 0.0
      %782 = vmatpush1.msra.mxu0 %v751
      %783 = vmatprep.subr.mxu0 0.0
      %784 = vmatpush1.msra.mxu0 %v752
      %785 = vmatprep.subr.mxu0 0.0
      %786 = vmatpush1.msra.mxu0 %v753
      %787 = vmatprep.subr.mxu0 0.0
      %788 = vmatpush1.msra.mxu0 0.0
      %789 = vmatprep.subr.mxu0 0.0
      %790 = vmatpush1.msra.mxu0 0.0
      %791 = vmatprep.subr.mxu0 0.0
      %792 = vmatpush1.msra.mxu0 0.0
      %793 = vmatprep.subr.mxu0 0.0
      %794 = vmatpush1.msra.mxu0 0.0
      %795 = vmatprep.subr.mxu0 0.0
      %796 = vmatpush1.msra.mxu0 0.0
      %797 = vmatprep.subr.mxu0 0.0
      %798 = vmatpush1.msra.mxu0 0.0
      %799 = vmatprep.subr.mxu0 0.0
      %800 = vmatpush1.msra.mxu0 0.0
      %801 = vmatprep.subr.mxu0 0.0
      %802 = vmatpush1.msra.mxu0 0.0
      %803 = vmatprep.subr.mxu0 0.0
      %804 = vmatpush1.msra.mxu0 0.0
      %805 = vmatprep.subr.mxu0 0.0
      %806 = vmatpush1.msra.mxu0 0.0
      %807 = vmatprep.subr.mxu0 0.0
      %808 = vmatpush1.msra.mxu0 0.0
      %809 = vmatprep.subr.mxu0 0.0
      %810 = vmatpush1.msra.mxu0 0.0
      %811 = vmatprep.subr.mxu0 0.0
      %812 = vmatpush1.msra.mxu0 0.0
      %813 = vmatprep.subr.mxu0 0.0
      %814 = vmatpush1.msra.mxu0 0.0
      %815 = vmatprep.subr.mxu0 0.0
      %816 = vmatpush1.msra.mxu0 0.0
      %817 = vmatprep.subr.mxu0 0.0
      %818 = vmatpush1.msra.mxu0 0.0
      %819 = vmatprep.subr.mxu0 0.0
      %820 = vmatpush1.msra.mxu0 0.0
      %821 = vmatprep.subr.mxu0 0.0
      %822 = vmatpush1.msra.mxu0 0.0
      %823 = vmatprep.subr.mxu0 0.0
      %824 = vmatpush1.msra.mxu0 0.0
      %825 = vmatprep.subr.mxu0 0.0
      %826 = vmatpush1.msra.mxu0 0.0
      %827 = vmatprep.subr.mxu0 0.0
      %828 = vmatpush1.msra.mxu0 0.0
      %829 = vmatprep.subr.mxu0 0.0
      %830 = vmatpush1.msra.mxu0 0.0
      %831 = vmatprep.subr.mxu0 0.0
      %832 = vmatpush1.msra.mxu0 0.0
      %833 = vmatprep.subr.mxu0 0.0
      %834 = vmatpush1.msra.mxu0 0.0
      %835 = vmatprep.subr.mxu0 0.0
      %836 = vmatpush1.msra.mxu0 0.0
      %837 = vmatprep.subr.mxu0 0.0
      %838 = vmatpush1.msra.mxu0 0.0
      %839 = vmatprep.subr.mxu0 0.0
      %840 = vmatpush1.msra.mxu0 0.0
      %841 = vmatprep.subr.mxu0 0.0
      %842 = vmatpush1.msra.mxu0 0.0
      %843 = vmatprep.mubr.f32.mxu0 0.0
      %844 = vmatmul.mubr.f32.gmra.mrb[0].mxu0 %v756
      %v845 = vpop.f32.mrb[0].mxu0
      %v846 = vadd.f32 0.0, %v845
      %v847 = vpop.f32.mrb[0].mxu0
      %848 = vmatprep.mubr.f32.mxu0 0.0
      %849 = vmatmul.mubr.f32.gmra.mrb[0].mxu0 %v759
      %v850 = vpop.f32.mrb[0].mxu0
      %v851 = vadd.f32 0.0, %v850
      %v852 = vpop.f32.mrb[0].mxu0
      %853 = vmatprep.mubr.f32.mxu0 0.0
      %854 = vmatmul.mubr.f32.gmra.mrb[0].mxu0 %v762
      %v855 = vpop.f32.mrb[0].mxu0
      %v856 = vadd.f32 0.0, %v855
      %v857 = vpop.f32.mrb[0].mxu0
      %858 = vmatprep.mubr.f32.mxu0 0.0
      %859 = vmatmul.mubr.f32.gmra.mrb[0].mxu0 %v765
      %v860 = vpop.f32.mrb[0].mxu0
      %v861 = vadd.f32 0.0, %v860
      %v862 = vpop.f32.mrb[0].mxu0
      %863 = vmatprep.mubr.f32.mxu0 0.0
      %864 = vmatmul.mubr.f32.gmra.mrb[0].mxu0 %v768
      %v865 = vpop.f32.mrb[0].mxu0
      %v866 = vadd.f32 0.0, %v865
      %v867 = vpop.f32.mrb[0].mxu0
      %868 = vmatprep.mubr.f32.mxu0 0.0
      %869 = vmatmul.mubr.f32.gmra.mrb[0].mxu0 %v771
      %v870 = vpop.f32.mrb[0].mxu0
      %v871 = vadd.f32 0.0, %v870
      %v872 = vpop.f32.mrb[0].mxu0
      %873 = vmatprep.mubr.f32.mxu0 0.0
      %874 = vmatmul.mubr.f32.gmra.mrb[0].mxu0 %v774
      %v875 = vpop.f32.mrb[0].mxu0
      %v876 = vadd.f32 0.0, %v875
      %v877 = vpop.f32.mrb[0].mxu0
      %878 = vmatprep.mubr.f32.mxu0 0.0
      %879 = vmatmul.mubr.f32.gmra.mrb[0].mxu0 %v777
      %v880 = vpop.f32.mrb[0].mxu0
      %v881 = vadd.f32 0.0, %v880
      %v882 = vpop.f32.mrb[0].mxu0
      %883 = vdwg.mxu0
      %vm884 = vcmask 785408
      %885 = vst.msk [vmem:[#allocation2] sm:$0xff] %vm884, %v846
      %886 = vst.msk [vmem:[#allocation2 + $0x8] sm:$0xff] %vm884, %v851
      %887 = vst.msk [vmem:[#allocation2 + $0x10] sm:$0xff] %vm884, %v856
      %888 = vst.msk [vmem:[#allocation2 + $0x18] sm:$0xff] %vm884, %v861
      %889 = vst.msk [vmem:[#allocation2 + $0x20] sm:$0xff] %vm884, %v866
      %890 = vst.msk [vmem:[#allocation2 + $0x28] sm:$0xff] %vm884, %v871
      %891 = vst.msk [vmem:[#allocation2 + $0x30] sm:$0xff] %vm884, %v876
      %892 = vst.msk [vmem:[#allocation2 + $0x38] sm:$0xff] %vm884, %v881
      %v893 = vld [vmem:[#allocation2] sm:$0xff]
      %v894 = vld [vmem:[#allocation2 + $0x8] sm:$0xff]
      %v895 = vld [vmem:[#allocation2 + $0x10] sm:$0xff]
      %v896 = vld [vmem:[#allocation2 + $0x18] sm:$0xff]
      %v897 = vld [vmem:[#allocation2 + $0x20] sm:$0xff]
      %v898 = vld [vmem:[#allocation2 + $0x28] sm:$0xff]
      %v899 = vld [vmem:[#allocation2 + $0x30] sm:$0xff]
      %v900 = vld [vmem:[#allocation2 + $0x38] sm:$0xff]
      %v901 = vmul.f32 %v893, 0.35355338
      %v902 = vmul.f32 %v894, 0.35355338
      %v903 = vmul.f32 %v895, 0.35355338
      %v904 = vmul.f32 %v896, 0.35355338
      %v905 = vmul.f32 %v897, 0.35355338
      %v906 = vmul.f32 %v898, 0.35355338
      %v907 = vmul.f32 %v899, 0.35355338
      %v908 = vmul.f32 %v900, 0.35355338
      %917 = vrot.lane.b32.xlu0 %v893, 96
      %v918 = vpop.permute.xlu0 %917
      %919 = vrot.lane.b32.xlu0 %v894, 96
      %v920 = vpop.permute.xlu0 %919
      %921 = vrot.lane.b32.xlu0 %v895, 96
      %v922 = vpop.permute.xlu0 %921
      %923 = vrot.lane.b32.xlu0 %v896, 96
      %v924 = vpop.permute.xlu0 %923
      %925 = vrot.lane.b32.xlu0 %v897, 96
      %v926 = vpop.permute.xlu0 %925
      %927 = vrot.lane.b32.xlu0 %v898, 96
      %v928 = vpop.permute.xlu0 %927
      %929 = vrot.lane.b32.xlu0 %v899, 96
      %v930 = vpop.permute.xlu0 %929
      %931 = vrot.lane.b32.xlu0 %v900, 96
      %v932 = vpop.permute.xlu0 %931
      %vm933 = vcmask 64512
      %v935 = vsel %vm933, %v901, 0
      %v938 = vsel %vm933, %v902, 0
      %v941 = vsel %vm933, %v903, 0
      %v944 = vsel %vm933, %v904, 0
      %v947 = vsel %vm933, %v905, 0
      %v950 = vsel %vm933, %v906, 0
      %v953 = vsel %vm933, %v907, 0
      %v956 = vsel %vm933, %v908, 0
      %v958 = vsel %vm933, %v918, 0
      %v960 = vsel %vm933, %v920, 0
      %v962 = vsel %vm933, %v922, 0
      %v964 = vsel %vm933, %v924, 0
      %v966 = vsel %vm933, %v926, 0
      %v968 = vsel %vm933, %v928, 0
      %v970 = vsel %vm933, %v930, 0
      %v972 = vsel %vm933, %v932, 0
      %974 = vmatprep.subr.mxu0 0.0
      %975 = vmatpush1.xpose.msra.mxu0 %v958
      %976 = vmatprep.subr.mxu0 0.0
      %977 = vmatpush1.xpose.msra.mxu0 %v960
      %978 = vmatprep.subr.mxu0 0.0
      %979 = vmatpush1.xpose.msra.mxu0 %v962
      %980 = vmatprep.subr.mxu0 0.0
      %981 = vmatpush1.xpose.msra.mxu0 %v964
      %982 = vmatprep.subr.mxu0 0.0
      %983 = vmatpush1.xpose.msra.mxu0 %v966
      %984 = vmatprep.subr.mxu0 0.0
      %985 = vmatpush1.xpose.msra.mxu0 %v968
      %986 = vmatprep.subr.mxu0 0.0
      %987 = vmatpush1.xpose.msra.mxu0 %v970
      %988 = vmatprep.subr.mxu0 0.0
      %989 = vmatpush1.xpose.msra.mxu0 %v972
      %990 = vmatprep.subr.mxu0 0.0
      %991 = vmatpush1.xpose.msra.mxu0 0.0
      %992 = vmatprep.subr.mxu0 0.0
      %993 = vmatpush1.xpose.msra.mxu0 0.0
      %994 = vmatprep.subr.mxu0 0.0
      %995 = vmatpush1.xpose.msra.mxu0 0.0
      %996 = vmatprep.subr.mxu0 0.0
      %997 = vmatpush1.xpose.msra.mxu0 0.0
      %998 = vmatprep.subr.mxu0 0.0
      %999 = vmatpush1.xpose.msra.mxu0 0.0
      %1000 = vmatprep.subr.mxu0 0.0
      %1001 = vmatpush1.xpose.msra.mxu0 0.0
      %1002 = vmatprep.subr.mxu0 0.0
      %1003 = vmatpush1.xpose.msra.mxu0 0.0
      %1004 = vmatprep.subr.mxu0 0.0
      %1005 = vmatpush1.xpose.msra.mxu0 0.0
      %1006 = vmatprep.subr.mxu0 0.0
      %1007 = vmatpush1.xpose.msra.mxu0 0.0
      %1008 = vmatprep.subr.mxu0 0.0
      %1009 = vmatpush1.xpose.msra.mxu0 0.0
      %1010 = vmatprep.subr.mxu0 0.0
      %1011 = vmatpush1.xpose.msra.mxu0 0.0
      %1012 = vmatprep.subr.mxu0 0.0
      %1013 = vmatpush1.xpose.msra.mxu0 0.0
      %1014 = vmatprep.subr.mxu0 0.0
      %1015 = vmatpush1.xpose.msra.mxu0 0.0
      %1016 = vmatprep.subr.mxu0 0.0
      %1017 = vmatpush1.xpose.msra.mxu0 0.0
      %1018 = vmatprep.subr.mxu0 0.0
      %1019 = vmatpush1.xpose.msra.mxu0 0.0
      %1020 = vmatprep.subr.mxu0 0.0
      %1021 = vmatpush1.xpose.msra.mxu0 0.0
      %1022 = vmatprep.subr.mxu0 0.0
      %1023 = vmatpush1.xpose.msra.mxu0 0.0
      %1024 = vmatprep.subr.mxu0 0.0
      %1025 = vmatpush1.xpose.msra.mxu0 0.0
      %1026 = vmatprep.subr.mxu0 0.0
      %1027 = vmatpush1.xpose.msra.mxu0 0.0
      %1028 = vmatprep.subr.mxu0 0.0
      %1029 = vmatpush1.xpose.msra.mxu0 0.0
      %1030 = vmatprep.subr.mxu0 0.0
      %1031 = vmatpush1.xpose.msra.mxu0 0.0
      %1032 = vmatprep.subr.mxu0 0.0
      %1033 = vmatpush1.xpose.msra.mxu0 0.0
      %1034 = vmatprep.subr.mxu0 0.0
      %1035 = vmatpush1.xpose.msra.mxu0 0.0
      %1036 = vmatprep.subr.mxu0 0.0
      %1037 = vmatpush1.xpose.msra.mxu0 0.0
      %1038 = vmatprep.mubr.f32.mxu0 0.0
      %1039 = vmatmul.mubr.f32.gmra.mrb[0].mxu0 %v935
      %v1040 = vpop.f32.mrb[0].mxu0
      %v1041 = vadd.f32 0.0, %v1040
      %v1042 = vpop.f32.mrb[0].mxu0
      %1043 = vmatprep.mubr.f32.mxu0 0.0
      %1044 = vmatmul.mubr.f32.gmra.mrb[0].mxu0 %v938
      %v1045 = vpop.f32.mrb[0].mxu0
      %v1046 = vadd.f32 0.0, %v1045
      %v1047 = vpop.f32.mrb[0].mxu0
      %1048 = vmatprep.mubr.f32.mxu0 0.0
      %1049 = vmatmul.mubr.f32.gmra.mrb[0].mxu0 %v941
      %v1050 = vpop.f32.mrb[0].mxu0
      %v1051 = vadd.f32 0.0, %v1050
      %v1052 = vpop.f32.mrb[0].mxu0
      %1053 = vmatprep.mubr.f32.mxu0 0.0
      %1054 = vmatmul.mubr.f32.gmra.mrb[0].mxu0 %v944
      %v1055 = vpop.f32.mrb[0].mxu0
      %v1056 = vadd.f32 0.0, %v1055
      %v1057 = vpop.f32.mrb[0].mxu0
      %1058 = vmatprep.mubr.f32.mxu0 0.0
      %1059 = vmatmul.mubr.f32.gmra.mrb[0].mxu0 %v947
      %v1060 = vpop.f32.mrb[0].mxu0
      %v1061 = vadd.f32 0.0, %v1060
      %v1062 = vpop.f32.mrb[0].mxu0
      %1063 = vmatprep.mubr.f32.mxu0 0.0
      %1064 = vmatmul.mubr.f32.gmra.mrb[0].mxu0 %v950
      %v1065 = vpop.f32.mrb[0].mxu0
      %v1066 = vadd.f32 0.0, %v1065
      %v1067 = vpop.f32.mrb[0].mxu0
      %1068 = vmatprep.mubr.f32.mxu0 0.0
      %1069 = vmatmul.mubr.f32.gmra.mrb[0].mxu0 %v953
      %v1070 = vpop.f32.mrb[0].mxu0
      %v1071 = vadd.f32 0.0, %v1070
      %v1072 = vpop.f32.mrb[0].mxu0
      %1073 = vmatprep.mubr.f32.mxu0 0.0
      %1074 = vmatmul.mubr.f32.gmra.mrb[0].mxu0 %v956
      %v1075 = vpop.f32.mrb[0].mxu0
      %v1076 = vadd.f32 0.0, %v1075
      %v1077 = vpop.f32.mrb[0].mxu0
      %1078 = vdwg.mxu0
      %vm1079 = vcmask 523264
      %v1080 = vsel %vm1079, %v1041, -inf
      %1081 = vmax.xlane.f32.xlu0 %v1080
      %v1082 = vpop.xlane.xlu0 %1081
      %v1083 = vsel %vm1079, %v1046, -inf
      %1084 = vmax.xlane.f32.xlu0 %v1083
      %v1085 = vpop.xlane.xlu0 %1084
      %v1086 = vsel %vm1079, %v1051, -inf
      %1087 = vmax.xlane.f32.xlu0 %v1086
      %v1088 = vpop.xlane.xlu0 %1087
      %v1089 = vsel %vm1079, %v1056, -inf
      %1090 = vmax.xlane.f32.xlu0 %v1089
      %v1091 = vpop.xlane.xlu0 %1090
      %v1092 = vsel %vm1079, %v1061, -inf
      %1093 = vmax.xlane.f32.xlu0 %v1092
      %v1094 = vpop.xlane.xlu0 %1093
      %v1095 = vsel %vm1079, %v1066, -inf
      %1096 = vmax.xlane.f32.xlu0 %v1095
      %v1097 = vpop.xlane.xlu0 %1096
      %v1098 = vsel %vm1079, %v1071, -inf
      %1099 = vmax.xlane.f32.xlu0 %v1098
      %v1100 = vpop.xlane.xlu0 %1099
      %v1101 = vsel %vm1079, %v1076, -inf
      %1102 = vmax.xlane.f32.xlu0 %v1101
      %v1103 = vpop.xlane.xlu0 %1102
      %v1104 = vsub.f32 %v1041, %v1082
      %v1105 = vsub.f32 %v1046, %v1085
      %v1106 = vsub.f32 %v1051, %v1088
      %v1107 = vsub.f32 %v1056, %v1091
      %v1108 = vsub.f32 %v1061, %v1094
      %v1109 = vsub.f32 %v1066, %v1097
      %v1110 = vsub.f32 %v1071, %v1100
      %v1111 = vsub.f32 %v1076, %v1103
      %v1112 = vmul.f32 %v1104, 1.442695
      %v1113 = vpow.pop %v1112
      %v1114 = vmul.f32 %v1105, 1.442695
      %v1115 = vpow.pop %v1114
      %v1116 = vmul.f32 %v1106, 1.442695
      %v1117 = vpow.pop %v1116
      %v1118 = vmul.f32 %v1107, 1.442695
      %v1119 = vpow.pop %v1118
      %v1120 = vmul.f32 %v1108, 1.442695
      %v1121 = vpow.pop %v1120
      %v1122 = vmul.f32 %v1109, 1.442695
      %v1123 = vpow.pop %v1122
      %v1124 = vmul.f32 %v1110, 1.442695
      %v1125 = vpow.pop %v1124
      %v1126 = vmul.f32 %v1111, 1.442695
      %v1127 = vpow.pop %v1126
      %v1128 = vsel %vm1079, %v1113, 0.0
      %1129 = vadd.xlane.f32.xlu0 %v1128
      %v1130 = vpop.xlane.xlu0 %1129
      %v1131 = vsel %vm1079, %v1115, 0.0
      %1132 = vadd.xlane.f32.xlu0 %v1131
      %v1133 = vpop.xlane.xlu0 %1132
      %v1134 = vsel %vm1079, %v1117, 0.0
      %1135 = vadd.xlane.f32.xlu0 %v1134
      %v1136 = vpop.xlane.xlu0 %1135
      %v1137 = vsel %vm1079, %v1119, 0.0
      %1138 = vadd.xlane.f32.xlu0 %v1137
      %v1139 = vpop.xlane.xlu0 %1138
      %v1140 = vsel %vm1079, %v1121, 0.0
      %1141 = vadd.xlane.f32.xlu0 %v1140
      %v1142 = vpop.xlane.xlu0 %1141
      %v1143 = vsel %vm1079, %v1123, 0.0
      %1144 = vadd.xlane.f32.xlu0 %v1143
      %v1145 = vpop.xlane.xlu0 %1144
      %v1146 = vsel %vm1079, %v1125, 0.0
      %1147 = vadd.xlane.f32.xlu0 %v1146
      %v1148 = vpop.xlane.xlu0 %1147
      %v1149 = vsel %vm1079, %v1127, 0.0
      %1150 = vadd.xlane.f32.xlu0 %v1149
      %v1151 = vpop.xlane.xlu0 %1150
      %v1152 = vrcp.pop %v1130
      %v1153 = vrcp.pop %v1133
      %v1154 = vrcp.pop %v1136
      %v1155 = vrcp.pop %v1139
      %v1156 = vrcp.pop %v1142
      %v1157 = vrcp.pop %v1145
      %v1158 = vrcp.pop %v1148
      %v1159 = vrcp.pop %v1151
      %v1160 = vmul.f32 %v1130, %v1152
      %v1161 = vmul.f32 %v1133, %v1153
      %v1162 = vmul.f32 %v1136, %v1154
      %v1163 = vmul.f32 %v1139, %v1155
      %v1164 = vmul.f32 %v1142, %v1156
      %v1165 = vmul.f32 %v1145, %v1157
      %v1166 = vmul.f32 %v1148, %v1158
      %v1167 = vmul.f32 %v1151, %v1159
      %v1168 = vsub.f32 2.0, %v1160
      %v1169 = vsub.f32 2.0, %v1161
      %v1170 = vsub.f32 2.0, %v1162
      %v1171 = vsub.f32 2.0, %v1163
      %v1172 = vsub.f32 2.0, %v1164
      %v1173 = vsub.f32 2.0, %v1165
      %v1174 = vsub.f32 2.0, %v1166
      %v1175 = vsub.f32 2.0, %v1167
      %v1176 = vmul.f32 %v1152, %v1168
      %v1177 = vmul.f32 %v1153, %v1169
      %v1178 = vmul.f32 %v1154, %v1170
      %v1179 = vmul.f32 %v1155, %v1171
      %v1180 = vmul.f32 %v1156, %v1172
      %v1181 = vmul.f32 %v1157, %v1173
      %v1182 = vmul.f32 %v1158, %v1174
      %v1183 = vmul.f32 %v1159, %v1175
      %v1184 = vmul.f32 %v1113, %v1176
      %v1185 = vmul.f32 %v1115, %v1177
      %v1186 = vmul.f32 %v1117, %v1178
      %v1187 = vmul.f32 %v1119, %v1179
      %v1188 = vmul.f32 %v1121, %v1180
      %v1189 = vmul.f32 %v1123, %v1181
      %v1190 = vmul.f32 %v1125, %v1182
      %v1191 = vmul.f32 %v1127, %v1183
      %1192 = vrot.lane.b32.xlu0 %v893, 64
      %v1193 = vpop.permute.xlu0 %1192
      %1194 = vrot.lane.b32.xlu0 %v894, 64
      %v1195 = vpop.permute.xlu0 %1194
      %1196 = vrot.lane.b32.xlu0 %v895, 64
      %v1197 = vpop.permute.xlu0 %1196
      %1198 = vrot.lane.b32.xlu0 %v896, 64
      %v1199 = vpop.permute.xlu0 %1198
      %1200 = vrot.lane.b32.xlu0 %v897, 64
      %v1201 = vpop.permute.xlu0 %1200
      %1202 = vrot.lane.b32.xlu0 %v898, 64
      %v1203 = vpop.permute.xlu0 %1202
      %1204 = vrot.lane.b32.xlu0 %v899, 64
      %v1205 = vpop.permute.xlu0 %1204
      %1206 = vrot.lane.b32.xlu0 %v900, 64
      %v1207 = vpop.permute.xlu0 %1206
      %v1217 = vsel %vm1079, %v1184, 0
      %v1220 = vsel %vm1079, %v1185, 0
      %v1223 = vsel %vm1079, %v1186, 0
      %v1226 = vsel %vm1079, %v1187, 0
      %v1229 = vsel %vm1079, %v1188, 0
      %v1232 = vsel %vm1079, %v1189, 0
      %v1235 = vsel %vm1079, %v1190, 0
      %v1238 = vsel %vm1079, %v1191, 0
      %1240 = vmatprep.subr.mxu0 0.0
      %1241 = vmatpush1.msra.mxu0 %v1193
      %1242 = vmatprep.subr.mxu0 0.0
      %1243 = vmatpush1.msra.mxu0 %v1195
      %1244 = vmatprep.subr.mxu0 0.0
      %1245 = vmatpush1.msra.mxu0 %v1197
      %1246 = vmatprep.subr.mxu0 0.0
      %1247 = vmatpush1.msra.mxu0 %v1199
      %1248 = vmatprep.subr.mxu0 0.0
      %1249 = vmatpush1.msra.mxu0 %v1201
      %1250 = vmatprep.subr.mxu0 0.0
      %1251 = vmatpush1.msra.mxu0 %v1203
      %1252 = vmatprep.subr.mxu0 0.0
      %1253 = vmatpush1.msra.mxu0 %v1205
      %1254 = vmatprep.subr.mxu0 0.0
      %1255 = vmatpush1.msra.mxu0 %v1207
      %1256 = vmatprep.subr.mxu0 0.0
      %1257 = vmatpush1.msra.mxu0 0.0
      %1258 = vmatprep.subr.mxu0 0.0
      %1259 = vmatpush1.msra.mxu0 0.0
      %1260 = vmatprep.subr.mxu0 0.0
      %1261 = vmatpush1.msra.mxu0 0.0
      %1262 = vmatprep.subr.mxu0 0.0
      %1263 = vmatpush1.msra.mxu0 0.0
      %1264 = vmatprep.subr.mxu0 0.0
      %1265 = vmatpush1.msra.mxu0 0.0
      %1266 = vmatprep.subr.mxu0 0.0
      %1267 = vmatpush1.msra.mxu0 0.0
      %1268 = vmatprep.subr.mxu0 0.0
      %1269 = vmatpush1.msra.mxu0 0.0
      %1270 = vmatprep.subr.mxu0 0.0
      %1271 = vmatpush1.msra.mxu0 0.0
      %1272 = vmatprep.subr.mxu0 0.0
      %1273 = vmatpush1.msra.mxu0 0.0
      %1274 = vmatprep.subr.mxu0 0.0
      %1275 = vmatpush1.msra.mxu0 0.0
      %1276 = vmatprep.subr.mxu0 0.0
      %1277 = vmatpush1.msra.mxu0 0.0
      %1278 = vmatprep.subr.mxu0 0.0
      %1279 = vmatpush1.msra.mxu0 0.0
      %1280 = vmatprep.subr.mxu0 0.0
      %1281 = vmatpush1.msra.mxu0 0.0
      %1282 = vmatprep.subr.mxu0 0.0
      %1283 = vmatpush1.msra.mxu0 0.0
      %1284 = vmatprep.subr.mxu0 0.0
      %1285 = vmatpush1.msra.mxu0 0.0
      %1286 = vmatprep.subr.mxu0 0.0
      %1287 = vmatpush1.msra.mxu0 0.0
      %1288 = vmatprep.subr.mxu0 0.0
      %1289 = vmatpush1.msra.mxu0 0.0
      %1290 = vmatprep.subr.mxu0 0.0
      %1291 = vmatpush1.msra.mxu0 0.0
      %1292 = vmatprep.subr.mxu0 0.0
      %1293 = vmatpush1.msra.mxu0 0.0
      %1294 = vmatprep.subr.mxu0 0.0
      %1295 = vmatpush1.msra.mxu0 0.0
      %1296 = vmatprep.subr.mxu0 0.0
      %1297 = vmatpush1.msra.mxu0 0.0
      %1298 = vmatprep.subr.mxu0 0.0
      %1299 = vmatpush1.msra.mxu0 0.0
      %1300 = vmatprep.subr.mxu0 0.0
      %1301 = vmatpush1.msra.mxu0 0.0
      %1302 = vmatprep.subr.mxu0 0.0
      %1303 = vmatpush1.msra.mxu0 0.0
      %1304 = vmatprep.mubr.f32.mxu0 0.0
      %1305 = vmatmul.mubr.f32.gmra.mrb[0].mxu0 %v1217
      %v1306 = vpop.f32.mrb[0].mxu0
      %v1307 = vadd.f32 0.0, %v1306
      %v1308 = vpop.f32.mrb[0].mxu0
      %1309 = vmatprep.mubr.f32.mxu0 0.0
      %1310 = vmatmul.mubr.f32.gmra.mrb[0].mxu0 %v1220
      %v1311 = vpop.f32.mrb[0].mxu0
      %v1312 = vadd.f32 0.0, %v1311
      %v1313 = vpop.f32.mrb[0].mxu0
      %1314 = vmatprep.mubr.f32.mxu0 0.0
      %1315 = vmatmul.mubr.f32.gmra.mrb[0].mxu0 %v1223
      %v1316 = vpop.f32.mrb[0].mxu0
      %v1317 = vadd.f32 0.0, %v1316
      %v1318 = vpop.f32.mrb[0].mxu0
      %1319 = vmatprep.mubr.f32.mxu0 0.0
      %1320 = vmatmul.mubr.f32.gmra.mrb[0].mxu0 %v1226
      %v1321 = vpop.f32.mrb[0].mxu0
      %v1322 = vadd.f32 0.0, %v1321
      %v1323 = vpop.f32.mrb[0].mxu0
      %1324 = vmatprep.mubr.f32.mxu0 0.0
      %1325 = vmatmul.mubr.f32.gmra.mrb[0].mxu0 %v1229
      %v1326 = vpop.f32.mrb[0].mxu0
      %v1327 = vadd.f32 0.0, %v1326
      %v1328 = vpop.f32.mrb[0].mxu0
      %1329 = vmatprep.mubr.f32.mxu0 0.0
      %1330 = vmatmul.mubr.f32.gmra.mrb[0].mxu0 %v1232
      %v1331 = vpop.f32.mrb[0].mxu0
      %v1332 = vadd.f32 0.0, %v1331
      %v1333 = vpop.f32.mrb[0].mxu0
      %1334 = vmatprep.mubr.f32.mxu0 0.0
      %1335 = vmatmul.mubr.f32.gmra.mrb[0].mxu0 %v1235
      %v1336 = vpop.f32.mrb[0].mxu0
      %v1337 = vadd.f32 0.0, %v1336
      %v1338 = vpop.f32.mrb[0].mxu0
      %1339 = vmatprep.mubr.f32.mxu0 0.0
      %1340 = vmatmul.mubr.f32.gmra.mrb[0].mxu0 %v1238
      %v1341 = vpop.f32.mrb[0].mxu0
      %v1342 = vadd.f32 0.0, %v1341
      %v1343 = vpop.f32.mrb[0].mxu0
      %1344 = vdwg.mxu0
      %1345 = vst.msk [vmem:[#allocation3] sm:$0xff] %vm933, %v1307
      %1346 = vst.msk [vmem:[#allocation3 + $0x8] sm:$0xff] %vm933, %v1312
      %1347 = vst.msk [vmem:[#allocation3 + $0x10] sm:$0xff] %vm933, %v1317
      %1348 = vst.msk [vmem:[#allocation3 + $0x18] sm:$0xff] %vm933, %v1322
      %1349 = vst.msk [vmem:[#allocation3 + $0x20] sm:$0xff] %vm933, %v1327
      %1350 = vst.msk [vmem:[#allocation3 + $0x28] sm:$0xff] %vm933, %v1332
      %1351 = vst.msk [vmem:[#allocation3 + $0x30] sm:$0xff] %vm933, %v1337
      %1352 = vst.msk [vmem:[#allocation3 + $0x38] sm:$0xff] %vm933, %v1342
      %v1353 = vld [vmem:[#allocation2] sm:$0xff]
      %v1354 = vld [vmem:[#allocation2 + $0x8] sm:$0xff]
      %v1355 = vld [vmem:[#allocation2 + $0x10] sm:$0xff]
      %v1356 = vld [vmem:[#allocation2 + $0x18] sm:$0xff]
      %v1357 = vld [vmem:[#allocation2 + $0x20] sm:$0xff]
      %v1358 = vld [vmem:[#allocation2 + $0x28] sm:$0xff]
      %v1359 = vld [vmem:[#allocation2 + $0x30] sm:$0xff]
      %v1360 = vld [vmem:[#allocation2 + $0x38] sm:$0xff]
      %v1361 = vmul.f32 %v1353, 0.35355338
      %v1362 = vmul.f32 %v1354, 0.35355338
      %v1363 = vmul.f32 %v1355, 0.35355338
      %v1364 = vmul.f32 %v1356, 0.35355338
      %v1365 = vmul.f32 %v1357, 0.35355338
      %v1366 = vmul.f32 %v1358, 0.35355338
      %v1367 = vmul.f32 %v1359, 0.35355338
      %v1368 = vmul.f32 %v1360, 0.35355338
      %1377 = vrot.lane.b32.xlu0 %v1361, 120
      %v1378 = vpop.permute.xlu0 %1377
      %1379 = vrot.lane.b32.xlu0 %v1362, 120
      %v1380 = vpop.permute.xlu0 %1379
      %1381 = vrot.lane.b32.xlu0 %v1363, 120
      %v1382 = vpop.permute.xlu0 %1381
      %1383 = vrot.lane.b32.xlu0 %v1364, 120
      %v1384 = vpop.permute.xlu0 %1383
      %1385 = vrot.lane.b32.xlu0 %v1365, 120
      %v1386 = vpop.permute.xlu0 %1385
      %1387 = vrot.lane.b32.xlu0 %v1366, 120
      %v1388 = vpop.permute.xlu0 %1387
      %1389 = vrot.lane.b32.xlu0 %v1367, 120
      %v1390 = vpop.permute.xlu0 %1389
      %1391 = vrot.lane.b32.xlu0 %v1368, 120
      %v1392 = vpop.permute.xlu0 %1391
      %1401 = vrot.lane.b32.xlu0 %v1353, 88
      %v1402 = vpop.permute.xlu0 %1401
      %1403 = vrot.lane.b32.xlu0 %v1354, 88
      %v1404 = vpop.permute.xlu0 %1403
      %1405 = vrot.lane.b32.xlu0 %v1355, 88
      %v1406 = vpop.permute.xlu0 %1405
      %1407 = vrot.lane.b32.xlu0 %v1356, 88
      %v1408 = vpop.permute.xlu0 %1407
      %1409 = vrot.lane.b32.xlu0 %v1357, 88
      %v1410 = vpop.permute.xlu0 %1409
      %1411 = vrot.lane.b32.xlu0 %v1358, 88
      %v1412 = vpop.permute.xlu0 %1411
      %1413 = vrot.lane.b32.xlu0 %v1359, 88
      %v1414 = vpop.permute.xlu0 %1413
      %1415 = vrot.lane.b32.xlu0 %v1360, 88
      %v1416 = vpop.permute.xlu0 %1415
      %v1417 = vsel %vm933, %v1378, 0
      %v1419 = vsel %vm933, %v1380, 0
      %v1421 = vsel %vm933, %v1382, 0
      %v1423 = vsel %vm933, %v1384, 0
      %v1425 = vsel %vm933, %v1386, 0
      %v1427 = vsel %vm933, %v1388, 0
      %v1429 = vsel %vm933, %v1390, 0
      %v1431 = vsel %vm933, %v1392, 0
      %v1433 = vsel %vm933, %v1402, 0
      %v1435 = vsel %vm933, %v1404, 0
      %v1437 = vsel %vm933, %v1406, 0
      %v1439 = vsel %vm933, %v1408, 0
      %v1441 = vsel %vm933, %v1410, 0
      %v1443 = vsel %vm933, %v1412, 0
      %v1445 = vsel %vm933, %v1414, 0
      %v1447 = vsel %vm933, %v1416, 0
      %1449 = vmatprep.subr.mxu0 0.0
      %1450 = vmatpush1.xpose.msra.mxu0 %v1433
      %1451 = vmatprep.subr.mxu0 0.0
      %1452 = vmatpush1.xpose.msra.mxu0 %v1435
      %1453 = vmatprep.subr.mxu0 0.0
      %1454 = vmatpush1.xpose.msra.mxu0 %v1437
      %1455 = vmatprep.subr.mxu0 0.0
      %1456 = vmatpush1.xpose.msra.mxu0 %v1439
      %1457 = vmatprep.subr.mxu0 0.0
      %1458 = vmatpush1.xpose.msra.mxu0 %v1441
      %1459 = vmatprep.subr.mxu0 0.0
      %1460 = vmatpush1.xpose.msra.mxu0 %v1443
      %1461 = vmatprep.subr.mxu0 0.0
      %1462 = vmatpush1.xpose.msra.mxu0 %v1445
      %1463 = vmatprep.subr.mxu0 0.0
      %1464 = vmatpush1.xpose.msra.mxu0 %v1447
      %1465 = vmatprep.subr.mxu0 0.0
      %1466 = vmatpush1.xpose.msra.mxu0 0.0
      %1467 = vmatprep.subr.mxu0 0.0
      %1468 = vmatpush1.xpose.msra.mxu0 0.0
      %1469 = vmatprep.subr.mxu0 0.0
      %1470 = vmatpush1.xpose.msra.mxu0 0.0
      %1471 = vmatprep.subr.mxu0 0.0
      %1472 = vmatpush1.xpose.msra.mxu0 0.0
      %1473 = vmatprep.subr.mxu0 0.0
      %1474 = vmatpush1.xpose.msra.mxu0 0.0
      %1475 = vmatprep.subr.mxu0 0.0
      %1476 = vmatpush1.xpose.msra.mxu0 0.0
      %1477 = vmatprep.subr.mxu0 0.0
      %1478 = vmatpush1.xpose.msra.mxu0 0.0
      %1479 = vmatprep.subr.mxu0 0.0
      %1480 = vmatpush1.xpose.msra.mxu0 0.0
      %1481 = vmatprep.subr.mxu0 0.0
      %1482 = vmatpush1.xpose.msra.mxu0 0.0
      %1483 = vmatprep.subr.mxu0 0.0
      %1484 = vmatpush1.xpose.msra.mxu0 0.0
      %1485 = vmatprep.subr.mxu0 0.0
      %1486 = vmatpush1.xpose.msra.mxu0 0.0
      %1487 = vmatprep.subr.mxu0 0.0
      %1488 = vmatpush1.xpose.msra.mxu0 0.0
      %1489 = vmatprep.subr.mxu0 0.0
      %1490 = vmatpush1.xpose.msra.mxu0 0.0
      %1491 = vmatprep.subr.mxu0 0.0
      %1492 = vmatpush1.xpose.msra.mxu0 0.0
      %1493 = vmatprep.subr.mxu0 0.0
      %1494 = vmatpush1.xpose.msra.mxu0 0.0
      %1495 = vmatprep.subr.mxu0 0.0
      %1496 = vmatpush1.xpose.msra.mxu0 0.0
      %1497 = vmatprep.subr.mxu0 0.0
      %1498 = vmatpush1.xpose.msra.mxu0 0.0
      %1499 = vmatprep.subr.mxu0 0.0
      %1500 = vmatpush1.xpose.msra.mxu0 0.0
      %1501 = vmatprep.subr.mxu0 0.0
      %1502 = vmatpush1.xpose.msra.mxu0 0.0
      %1503 = vmatprep.subr.mxu0 0.0
      %1504 = vmatpush1.xpose.msra.mxu0 0.0
      %1505 = vmatprep.subr.mxu0 0.0
      %1506 = vmatpush1.xpose.msra.mxu0 0.0
      %1507 = vmatprep.subr.mxu0 0.0
      %1508 = vmatpush1.xpose.msra.mxu0 0.0
      %1509 = vmatprep.subr.mxu0 0.0
      %1510 = vmatpush1.xpose.msra.mxu0 0.0
      %1511 = vmatprep.subr.mxu0 0.0
      %1512 = vmatpush1.xpose.msra.mxu0 0.0
      %1513 = vmatprep.mubr.f32.mxu0 0.0
      %1514 = vmatmul.mubr.f32.gmra.mrb[0].mxu0 %v1417
      %v1515 = vpop.f32.mrb[0].mxu0
      %v1516 = vadd.f32 0.0, %v1515
      %v1517 = vpop.f32.mrb[0].mxu0
      %1518 = vmatprep.mubr.f32.mxu0 0.0
      %1519 = vmatmul.mubr.f32.gmra.mrb[0].mxu0 %v1419
      %v1520 = vpop.f32.mrb[0].mxu0
      %v1521 = vadd.f32 0.0, %v1520
      %v1522 = vpop.f32.mrb[0].mxu0
      %1523 = vmatprep.mubr.f32.mxu0 0.0
      %1524 = vmatmul.mubr.f32.gmra.mrb[0].mxu0 %v1421
      %v1525 = vpop.f32.mrb[0].mxu0
      %v1526 = vadd.f32 0.0, %v1525
      %v1527 = vpop.f32.mrb[0].mxu0
      %1528 = vmatprep.mubr.f32.mxu0 0.0
      %1529 = vmatmul.mubr.f32.gmra.mrb[0].mxu0 %v1423
      %v1530 = vpop.f32.mrb[0].mxu0
      %v1531 = vadd.f32 0.0, %v1530
      %v1532 = vpop.f32.mrb[0].mxu0
      %1533 = vmatprep.mubr.f32.mxu0 0.0
      %1534 = vmatmul.mubr.f32.gmra.mrb[0].mxu0 %v1425
      %v1535 = vpop.f32.mrb[0].mxu0
      %v1536 = vadd.f32 0.0, %v1535
      %v1537 = vpop.f32.mrb[0].mxu0
      %1538 = vmatprep.mubr.f32.mxu0 0.0
      %1539 = vmatmul.mubr.f32.gmra.mrb[0].mxu0 %v1427
      %v1540 = vpop.f32.mrb[0].mxu0
      %v1541 = vadd.f32 0.0, %v1540
      %v1542 = vpop.f32.mrb[0].mxu0
      %1543 = vmatprep.mubr.f32.mxu0 0.0
      %1544 = vmatmul.mubr.f32.gmra.mrb[0].mxu0 %v1429
      %v1545 = vpop.f32.mrb[0].mxu0
      %v1546 = vadd.f32 0.0, %v1545
      %v1547 = vpop.f32.mrb[0].mxu0
      %1548 = vmatprep.mubr.f32.mxu0 0.0
      %1549 = vmatmul.mubr.f32.gmra.mrb[0].mxu0 %v1431
      %v1550 = vpop.f32.mrb[0].mxu0
      %v1551 = vadd.f32 0.0, %v1550
      %v1552 = vpop.f32.mrb[0].mxu0
      %1553 = vdwg.mxu0
      %v1554 = vsel %vm1079, %v1516, -inf
      %1555 = vmax.xlane.f32.xlu0 %v1554
      %v1556 = vpop.xlane.xlu0 %1555
      %v1557 = vsel %vm1079, %v1521, -inf
      %1558 = vmax.xlane.f32.xlu0 %v1557
      %v1559 = vpop.xlane.xlu0 %1558
      %v1560 = vsel %vm1079, %v1526, -inf
      %1561 = vmax.xlane.f32.xlu0 %v1560
      %v1562 = vpop.xlane.xlu0 %1561
      %v1563 = vsel %vm1079, %v1531, -inf
      %1564 = vmax.xlane.f32.xlu0 %v1563
      %v1565 = vpop.xlane.xlu0 %1564
      %v1566 = vsel %vm1079, %v1536, -inf
      %1567 = vmax.xlane.f32.xlu0 %v1566
      %v1568 = vpop.xlane.xlu0 %1567
      %v1569 = vsel %vm1079, %v1541, -inf
      %1570 = vmax.xlane.f32.xlu0 %v1569
      %v1571 = vpop.xlane.xlu0 %1570
      %v1572 = vsel %vm1079, %v1546, -inf
      %1573 = vmax.xlane.f32.xlu0 %v1572
      %v1574 = vpop.xlane.xlu0 %1573
      %v1575 = vsel %vm1079, %v1551, -inf
      %1576 = vmax.xlane.f32.xlu0 %v1575
      %v1577 = vpop.xlane.xlu0 %1576
      %v1578 = vsub.f32 %v1516, %v1556
      %v1579 = vsub.f32 %v1521, %v1559
      %v1580 = vsub.f32 %v1526, %v1562
      %v1581 = vsub.f32 %v1531, %v1565
      %v1582 = vsub.f32 %v1536, %v1568
      %v1583 = vsub.f32 %v1541, %v1571
      %v1584 = vsub.f32 %v1546, %v1574
      %v1585 = vsub.f32 %v1551, %v1577
      %v1586 = vmul.f32 %v1578, 1.442695
      %v1587 = vpow.pop %v1586
      %v1588 = vmul.f32 %v1579, 1.442695
      %v1589 = vpow.pop %v1588
      %v1590 = vmul.f32 %v1580, 1.442695
      %v1591 = vpow.pop %v1590
      %v1592 = vmul.f32 %v1581, 1.442695
      %v1593 = vpow.pop %v1592
      %v1594 = vmul.f32 %v1582, 1.442695
      %v1595 = vpow.pop %v1594
      %v1596 = vmul.f32 %v1583, 1.442695
      %v1597 = vpow.pop %v1596
      %v1598 = vmul.f32 %v1584, 1.442695
      %v1599 = vpow.pop %v1598
      %v1600 = vmul.f32 %v1585, 1.442695
      %v1601 = vpow.pop %v1600
      %v1602 = vsel %vm1079, %v1587, 0.0
      %1603 = vadd.xlane.f32.xlu0 %v1602
      %v1604 = vpop.xlane.xlu0 %1603
      %v1605 = vsel %vm1079, %v1589, 0.0
      %1606 = vadd.xlane.f32.xlu0 %v1605
      %v1607 = vpop.xlane.xlu0 %1606
      %v1608 = vsel %vm1079, %v1591, 0.0
      %1609 = vadd.xlane.f32.xlu0 %v1608
      %v1610 = vpop.xlane.xlu0 %1609
      %v1611 = vsel %vm1079, %v1593, 0.0
      %1612 = vadd.xlane.f32.xlu0 %v1611
      %v1613 = vpop.xlane.xlu0 %1612
      %v1614 = vsel %vm1079, %v1595, 0.0
      %1615 = vadd.xlane.f32.xlu0 %v1614
      %v1616 = vpop.xlane.xlu0 %1615
      %v1617 = vsel %vm1079, %v1597, 0.0
      %1618 = vadd.xlane.f32.xlu0 %v1617
      %v1619 = vpop.xlane.xlu0 %1618
      %v1620 = vsel %vm1079, %v1599, 0.0
      %1621 = vadd.xlane.f32.xlu0 %v1620
      %v1622 = vpop.xlane.xlu0 %1621
      %v1623 = vsel %vm1079, %v1601, 0.0
      %1624 = vadd.xlane.f32.xlu0 %v1623
      %v1625 = vpop.xlane.xlu0 %1624
      %v1626 = vrcp.pop %v1604
      %v1627 = vrcp.pop %v1607
      %v1628 = vrcp.pop %v1610
      %v1629 = vrcp.pop %v1613
      %v1630 = vrcp.pop %v1616
      %v1631 = vrcp.pop %v1619
      %v1632 = vrcp.pop %v1622
      %v1633 = vrcp.pop %v1625
      %v1634 = vmul.f32 %v1604, %v1626
      %v1635 = vmul.f32 %v1607, %v1627
      %v1636 = vmul.f32 %v1610, %v1628
      %v1637 = vmul.f32 %v1613, %v1629
      %v1638 = vmul.f32 %v1616, %v1630
      %v1639 = vmul.f32 %v1619, %v1631
      %v1640 = vmul.f32 %v1622, %v1632
      %v1641 = vmul.f32 %v1625, %v1633
      %v1642 = vsub.f32 2.0, %v1634
      %v1643 = vsub.f32 2.0, %v1635
      %v1644 = vsub.f32 2.0, %v1636
      %v1645 = vsub.f32 2.0, %v1637
      %v1646 = vsub.f32 2.0, %v1638
      %v1647 = vsub.f32 2.0, %v1639
      %v1648 = vsub.f32 2.0, %v1640
      %v1649 = vsub.f32 2.0, %v1641
      %v1650 = vmul.f32 %v1626, %v1642
      %v1651 = vmul.f32 %v1627, %v1643
      %v1652 = vmul.f32 %v1628, %v1644
      %v1653 = vmul.f32 %v1629, %v1645
      %v1654 = vmul.f32 %v1630, %v1646
      %v1655 = vmul.f32 %v1631, %v1647
      %v1656 = vmul.f32 %v1632, %v1648
      %v1657 = vmul.f32 %v1633, %v1649
      %v1658 = vmul.f32 %v1587, %v1650
      %v1659 = vmul.f32 %v1589, %v1651
      %v1660 = vmul.f32 %v1591, %v1652
      %v1661 = vmul.f32 %v1593, %v1653
      %v1662 = vmul.f32 %v1595, %v1654
      %v1663 = vmul.f32 %v1597, %v1655
      %v1664 = vmul.f32 %v1599, %v1656
      %v1665 = vmul.f32 %v1601, %v1657
      %1666 = vrot.lane.b32.xlu0 %v1353, 56
      %v1667 = vpop.permute.xlu0 %1666
      %1668 = vrot.lane.b32.xlu0 %v1354, 56
      %v1669 = vpop.permute.xlu0 %1668
      %1670 = vrot.lane.b32.xlu0 %v1355, 56
      %v1671 = vpop.permute.xlu0 %1670
      %1672 = vrot.lane.b32.xlu0 %v1356, 56
      %v1673 = vpop.permute.xlu0 %1672
      %1674 = vrot.lane.b32.xlu0 %v1357, 56
      %v1675 = vpop.permute.xlu0 %1674
      %1676 = vrot.lane.b32.xlu0 %v1358, 56
      %v1677 = vpop.permute.xlu0 %1676
      %1678 = vrot.lane.b32.xlu0 %v1359, 56
      %v1679 = vpop.permute.xlu0 %1678
      %1680 = vrot.lane.b32.xlu0 %v1360, 56
      %v1681 = vpop.permute.xlu0 %1680
      %v1691 = vsel %vm1079, %v1658, 0
      %v1694 = vsel %vm1079, %v1659, 0
      %v1697 = vsel %vm1079, %v1660, 0
      %v1700 = vsel %vm1079, %v1661, 0
      %v1703 = vsel %vm1079, %v1662, 0
      %v1706 = vsel %vm1079, %v1663, 0
      %v1709 = vsel %vm1079, %v1664, 0
      %v1712 = vsel %vm1079, %v1665, 0
      %1714 = vmatprep.subr.mxu0 0.0
      %1715 = vmatpush1.msra.mxu0 %v1667
      %1716 = vmatprep.subr.mxu0 0.0
      %1717 = vmatpush1.msra.mxu0 %v1669
      %1718 = vmatprep.subr.mxu0 0.0
      %1719 = vmatpush1.msra.mxu0 %v1671
      %1720 = vmatprep.subr.mxu0 0.0
      %1721 = vmatpush1.msra.mxu0 %v1673
      %1722 = vmatprep.subr.mxu0 0.0
      %1723 = vmatpush1.msra.mxu0 %v1675
      %1724 = vmatprep.subr.mxu0 0.0
      %1725 = vmatpush1.msra.mxu0 %v1677
      %1726 = vmatprep.subr.mxu0 0.0
      %1727 = vmatpush1.msra.mxu0 %v1679
      %1728 = vmatprep.subr.mxu0 0.0
      %1729 = vmatpush1.msra.mxu0 %v1681
      %1730 = vmatprep.subr.mxu0 0.0
      %1731 = vmatpush1.msra.mxu0 0.0
      %1732 = vmatprep.subr.mxu0 0.0
      %1733 = vmatpush1.msra.mxu0 0.0
      %1734 = vmatprep.subr.mxu0 0.0
      %1735 = vmatpush1.msra.mxu0 0.0
      %1736 = vmatprep.subr.mxu0 0.0
      %1737 = vmatpush1.msra.mxu0 0.0
      %1738 = vmatprep.subr.mxu0 0.0
      %1739 = vmatpush1.msra.mxu0 0.0
      %1740 = vmatprep.subr.mxu0 0.0
      %1741 = vmatpush1.msra.mxu0 0.0
      %1742 = vmatprep.subr.mxu0 0.0
      %1743 = vmatpush1.msra.mxu0 0.0
      %1744 = vmatprep.subr.mxu0 0.0
      %1745 = vmatpush1.msra.mxu0 0.0
      %1746 = vmatprep.subr.mxu0 0.0
      %1747 = vmatpush1.msra.mxu0 0.0
      %1748 = vmatprep.subr.mxu0 0.0
      %1749 = vmatpush1.msra.mxu0 0.0
      %1750 = vmatprep.subr.mxu0 0.0
      %1751 = vmatpush1.msra.mxu0 0.0
      %1752 = vmatprep.subr.mxu0 0.0
      %1753 = vmatpush1.msra.mxu0 0.0
      %1754 = vmatprep.subr.mxu0 0.0
      %1755 = vmatpush1.msra.mxu0 0.0
      %1756 = vmatprep.subr.mxu0 0.0
      %1757 = vmatpush1.msra.mxu0 0.0
      %1758 = vmatprep.subr.mxu0 0.0
      %1759 = vmatpush1.msra.mxu0 0.0
      %1760 = vmatprep.subr.mxu0 0.0
      %1761 = vmatpush1.msra.mxu0 0.0
      %1762 = vmatprep.subr.mxu0 0.0
      %1763 = vmatpush1.msra.mxu0 0.0
      %1764 = vmatprep.subr.mxu0 0.0
      %1765 = vmatpush1.msra.mxu0 0.0
      %1766 = vmatprep.subr.mxu0 0.0
      %1767 = vmatpush1.msra.mxu0 0.0
      %1768 = vmatprep.subr.mxu0 0.0
      %1769 = vmatpush1.msra.mxu0 0.0
      %1770 = vmatprep.subr.mxu0 0.0
      %1771 = vmatpush1.msra.mxu0 0.0
      %1772 = vmatprep.subr.mxu0 0.0
      %1773 = vmatpush1.msra.mxu0 0.0
      %1774 = vmatprep.subr.mxu0 0.0
      %1775 = vmatpush1.msra.mxu0 0.0
      %1776 = vmatprep.subr.mxu0 0.0
      %1777 = vmatpush1.msra.mxu0 0.0
      %1778 = vmatprep.mubr.f32.mxu0 0.0
      %1779 = vmatmul.mubr.f32.gmra.mrb[0].mxu0 %v1691
      %v1780 = vpop.f32.mrb[0].mxu0
      %v1781 = vadd.f32 0.0, %v1780
      %v1782 = vpop.f32.mrb[0].mxu0
      %1783 = vmatprep.mubr.f32.mxu0 0.0
      %1784 = vmatmul.mubr.f32.gmra.mrb[0].mxu0 %v1694
      %v1785 = vpop.f32.mrb[0].mxu0
      %v1786 = vadd.f32 0.0, %v1785
      %v1787 = vpop.f32.mrb[0].mxu0
      %1788 = vmatprep.mubr.f32.mxu0 0.0
      %1789 = vmatmul.mubr.f32.gmra.mrb[0].mxu0 %v1697
      %v1790 = vpop.f32.mrb[0].mxu0
      %v1791 = vadd.f32 0.0, %v1790
      %v1792 = vpop.f32.mrb[0].mxu0
      %1793 = vmatprep.mubr.f32.mxu0 0.0
      %1794 = vmatmul.mubr.f32.gmra.mrb[0].mxu0 %v1700
      %v1795 = vpop.f32.mrb[0].mxu0
      %v1796 = vadd.f32 0.0, %v1795
      %v1797 = vpop.f32.mrb[0].mxu0
      %1798 = vmatprep.mubr.f32.mxu0 0.0
      %1799 = vmatmul.mubr.f32.gmra.mrb[0].mxu0 %v1703
      %v1800 = vpop.f32.mrb[0].mxu0
      %v1801 = vadd.f32 0.0, %v1800
      %v1802 = vpop.f32.mrb[0].mxu0
      %1803 = vmatprep.mubr.f32.mxu0 0.0
      %1804 = vmatmul.mubr.f32.gmra.mrb[0].mxu0 %v1706
      %v1805 = vpop.f32.mrb[0].mxu0
      %v1806 = vadd.f32 0.0, %v1805
      %v1807 = vpop.f32.mrb[0].mxu0
      %1808 = vmatprep.mubr.f32.mxu0 0.0
      %1809 = vmatmul.mubr.f32.gmra.mrb[0].mxu0 %v1709
      %v1810 = vpop.f32.mrb[0].mxu0
      %v1811 = vadd.f32 0.0, %v1810
      %v1812 = vpop.f32.mrb[0].mxu0
      %1813 = vmatprep.mubr.f32.mxu0 0.0
      %1814 = vmatmul.mubr.f32.gmra.mrb[0].mxu0 %v1712
      %v1815 = vpop.f32.mrb[0].mxu0
      %v1816 = vadd.f32 0.0, %v1815
      %v1817 = vpop.f32.mrb[0].mxu0
      %1818 = vdwg.mxu0
      %1827 = vrot.lane.b32.xlu0 %v1781, 8
      %v1828 = vpop.permute.xlu0 %1827
      %1829 = vrot.lane.b32.xlu0 %v1786, 8
      %v1830 = vpop.permute.xlu0 %1829
      %1831 = vrot.lane.b32.xlu0 %v1791, 8
      %v1832 = vpop.permute.xlu0 %1831
      %1833 = vrot.lane.b32.xlu0 %v1796, 8
      %v1834 = vpop.permute.xlu0 %1833
      %1835 = vrot.lane.b32.xlu0 %v1801, 8
      %v1836 = vpop.permute.xlu0 %1835
      %1837 = vrot.lane.b32.xlu0 %v1806, 8
      %v1838 = vpop.permute.xlu0 %1837
      %1839 = vrot.lane.b32.xlu0 %v1811, 8
      %v1840 = vpop.permute.xlu0 %1839
      %1841 = vrot.lane.b32.xlu0 %v1816, 8
      %v1842 = vpop.permute.xlu0 %1841
      %vm1851 = vcmask 130112
      %1852 = vst.msk [vmem:[#allocation3] sm:$0xff] %vm1851, %v1828
      %1853 = vst.msk [vmem:[#allocation3 + $0x8] sm:$0xff] %vm1851, %v1830
      %1854 = vst.msk [vmem:[#allocation3 + $0x10] sm:$0xff] %vm1851, %v1832
      %1855 = vst.msk [vmem:[#allocation3 + $0x18] sm:$0xff] %vm1851, %v1834
      %1856 = vst.msk [vmem:[#allocation3 + $0x20] sm:$0xff] %vm1851, %v1836
      %1857 = vst.msk [vmem:[#allocation3 + $0x28] sm:$0xff] %vm1851, %v1838
      %1858 = vst.msk [vmem:[#allocation3 + $0x30] sm:$0xff] %vm1851, %v1840
      %1859 = vst.msk [vmem:[#allocation3 + $0x38] sm:$0xff] %vm1851, %v1842
      %v1860 = vld [vmem:[#allocation2] sm:$0xff]
      %v1861 = vld [vmem:[#allocation2 + $0x8] sm:$0xff]
      %v1862 = vld [vmem:[#allocation2 + $0x10] sm:$0xff]
      %v1863 = vld [vmem:[#allocation2 + $0x18] sm:$0xff]
      %v1864 = vld [vmem:[#allocation2 + $0x20] sm:$0xff]
      %v1865 = vld [vmem:[#allocation2 + $0x28] sm:$0xff]
      %v1866 = vld [vmem:[#allocation2 + $0x30] sm:$0xff]
      %v1867 = vld [vmem:[#allocation2 + $0x38] sm:$0xff]
      %v1868 = vmul.f32 %v1860, 0.35355338
      %v1869 = vmul.f32 %v1861, 0.35355338
      %v1870 = vmul.f32 %v1862, 0.35355338
      %v1871 = vmul.f32 %v1863, 0.35355338
      %v1872 = vmul.f32 %v1864, 0.35355338
      %v1873 = vmul.f32 %v1865, 0.35355338
      %v1874 = vmul.f32 %v1866, 0.35355338
      %v1875 = vmul.f32 %v1867, 0.35355338
      %1884 = vrot.lane.b32.xlu0 %v1868, 112
      %v1885 = vpop.permute.xlu0 %1884
      %1886 = vrot.lane.b32.xlu0 %v1869, 112
      %v1887 = vpop.permute.xlu0 %1886
      %1888 = vrot.lane.b32.xlu0 %v1870, 112
      %v1889 = vpop.permute.xlu0 %1888
      %1890 = vrot.lane.b32.xlu0 %v1871, 112
      %v1891 = vpop.permute.xlu0 %1890
      %1892 = vrot.lane.b32.xlu0 %v1872, 112
      %v1893 = vpop.permute.xlu0 %1892
      %1894 = vrot.lane.b32.xlu0 %v1873, 112
      %v1895 = vpop.permute.xlu0 %1894
      %1896 = vrot.lane.b32.xlu0 %v1874, 112
      %v1897 = vpop.permute.xlu0 %1896
      %1898 = vrot.lane.b32.xlu0 %v1875, 112
      %v1899 = vpop.permute.xlu0 %1898
      %1908 = vrot.lane.b32.xlu0 %v1860, 80
      %v1909 = vpop.permute.xlu0 %1908
      %1910 = vrot.lane.b32.xlu0 %v1861, 80
      %v1911 = vpop.permute.xlu0 %1910
      %1912 = vrot.lane.b32.xlu0 %v1862, 80
      %v1913 = vpop.permute.xlu0 %1912
      %1914 = vrot.lane.b32.xlu0 %v1863, 80
      %v1915 = vpop.permute.xlu0 %1914
      %1916 = vrot.lane.b32.xlu0 %v1864, 80
      %v1917 = vpop.permute.xlu0 %1916
      %1918 = vrot.lane.b32.xlu0 %v1865, 80
      %v1919 = vpop.permute.xlu0 %1918
      %1920 = vrot.lane.b32.xlu0 %v1866, 80
      %v1921 = vpop.permute.xlu0 %1920
      %1922 = vrot.lane.b32.xlu0 %v1867, 80
      %v1923 = vpop.permute.xlu0 %1922
      %v1924 = vsel %vm933, %v1885, 0
      %v1926 = vsel %vm933, %v1887, 0
      %v1928 = vsel %vm933, %v1889, 0
      %v1930 = vsel %vm933, %v1891, 0
      %v1932 = vsel %vm933, %v1893, 0
      %v1934 = vsel %vm933, %v1895, 0
      %v1936 = vsel %vm933, %v1897, 0
      %v1938 = vsel %vm933, %v1899, 0
      %v1940 = vsel %vm933, %v1909, 0
      %v1942 = vsel %vm933, %v1911, 0
      %v1944 = vsel %vm933, %v1913, 0
      %v1946 = vsel %vm933, %v1915, 0
      %v1948 = vsel %vm933, %v1917, 0
      %v1950 = vsel %vm933, %v1919, 0
      %v1952 = vsel %vm933, %v1921, 0
      %v1954 = vsel %vm933, %v1923, 0
      %1956 = vmatprep.subr.mxu0 0.0
      %1957 = vmatpush1.xpose.msra.mxu0 %v1940
      %1958 = vmatprep.subr.mxu0 0.0
      %1959 = vmatpush1.xpose.msra.mxu0 %v1942
      %1960 = vmatprep.subr.mxu0 0.0
      %1961 = vmatpush1.xpose.msra.mxu0 %v1944
      %1962 = vmatprep.subr.mxu0 0.0
      %1963 = vmatpush1.xpose.msra.mxu0 %v1946
      %1964 = vmatprep.subr.mxu0 0.0
      %1965 = vmatpush1.xpose.msra.mxu0 %v1948
      %1966 = vmatprep.subr.mxu0 0.0
      %1967 = vmatpush1.xpose.msra.mxu0 %v1950
      %1968 = vmatprep.subr.mxu0 0.0
      %1969 = vmatpush1.xpose.msra.mxu0 %v1952
      %1970 = vmatprep.subr.mxu0 0.0
      %1971 = vmatpush1.xpose.msra.mxu0 %v1954
      %1972 = vmatprep.subr.mxu0 0.0
      %1973 = vmatpush1.xpose.msra.mxu0 0.0
      %1974 = vmatprep.subr.mxu0 0.0
      %1975 = vmatpush1.xpose.msra.mxu0 0.0
      %1976 = vmatprep.subr.mxu0 0.0
      %1977 = vmatpush1.xpose.msra.mxu0 0.0
      %1978 = vmatprep.subr.mxu0 0.0
      %1979 = vmatpush1.xpose.msra.mxu0 0.0
      %1980 = vmatprep.subr.mxu0 0.0
      %1981 = vmatpush1.xpose.msra.mxu0 0.0
      %1982 = vmatprep.subr.mxu0 0.0
      %1983 = vmatpush1.xpose.msra.mxu0 0.0
      %1984 = vmatprep.subr.mxu0 0.0
      %1985 = vmatpush1.xpose.msra.mxu0 0.0
      %1986 = vmatprep.subr.mxu0 0.0
      %1987 = vmatpush1.xpose.msra.mxu0 0.0
      %1988 = vmatprep.subr.mxu0 0.0
      %1989 = vmatpush1.xpose.msra.mxu0 0.0
      %1990 = vmatprep.subr.mxu0 0.0
      %1991 = vmatpush1.xpose.msra.mxu0 0.0
      %1992 = vmatprep.subr.mxu0 0.0
      %1993 = vmatpush1.xpose.msra.mxu0 0.0
      %1994 = vmatprep.subr.mxu0 0.0
      %1995 = vmatpush1.xpose.msra.mxu0 0.0
      %1996 = vmatprep.subr.mxu0 0.0
      %1997 = vmatpush1.xpose.msra.mxu0 0.0
      %1998 = vmatprep.subr.mxu0 0.0
      %1999 = vmatpush1.xpose.msra.mxu0 0.0
      %2000 = vmatprep.subr.mxu0 0.0
      %2001 = vmatpush1.xpose.msra.mxu0 0.0
      %2002 = vmatprep.subr.mxu0 0.0
      %2003 = vmatpush1.xpose.msra.mxu0 0.0
      %2004 = vmatprep.subr.mxu0 0.0
      %2005 = vmatpush1.xpose.msra.mxu0 0.0
      %2006 = vmatprep.subr.mxu0 0.0
      %2007 = vmatpush1.xpose.msra.mxu0 0.0
      %2008 = vmatprep.subr.mxu0 0.0
      %2009 = vmatpush1.xpose.msra.mxu0 0.0
      %2010 = vmatprep.subr.mxu0 0.0
      %2011 = vmatpush1.xpose.msra.mxu0 0.0
      %2012 = vmatprep.subr.mxu0 0.0
      %2013 = vmatpush1.xpose.msra.mxu0 0.0
      %2014 = vmatprep.subr.mxu0 0.0
      %2015 = vmatpush1.xpose.msra.mxu0 0.0
      %2016 = vmatprep.subr.mxu0 0.0
      %2017 = vmatpush1.xpose.msra.mxu0 0.0
      %2018 = vmatprep.subr.mxu0 0.0
      %2019 = vmatpush1.xpose.msra.mxu0 0.0
      %2020 = vmatprep.mubr.f32.mxu0 0.0
      %2021 = vmatmul.mubr.f32.gmra.mrb[0].mxu0 %v1924
      %v2022 = vpop.f32.mrb[0].mxu0
      %v2023 = vadd.f32 0.0, %v2022
      %v2024 = vpop.f32.mrb[0].mxu0
      %2025 = vmatprep.mubr.f32.mxu0 0.0
      %2026 = vmatmul.mubr.f32.gmra.mrb[0].mxu0 %v1926
      %v2027 = vpop.f32.mrb[0].mxu0
      %v2028 = vadd.f32 0.0, %v2027
      %v2029 = vpop.f32.mrb[0].mxu0
      %2030 = vmatprep.mubr.f32.mxu0 0.0
      %2031 = vmatmul.mubr.f32.gmra.mrb[0].mxu0 %v1928
      %v2032 = vpop.f32.mrb[0].mxu0
      %v2033 = vadd.f32 0.0, %v2032
      %v2034 = vpop.f32.mrb[0].mxu0
      %2035 = vmatprep.mubr.f32.mxu0 0.0
      %2036 = vmatmul.mubr.f32.gmra.mrb[0].mxu0 %v1930
      %v2037 = vpop.f32.mrb[0].mxu0
      %v2038 = vadd.f32 0.0, %v2037
      %v2039 = vpop.f32.mrb[0].mxu0
      %2040 = vmatprep.mubr.f32.mxu0 0.0
      %2041 = vmatmul.mubr.f32.gmra.mrb[0].mxu0 %v1932
      %v2042 = vpop.f32.mrb[0].mxu0
      %v2043 = vadd.f32 0.0, %v2042
      %v2044 = vpop.f32.mrb[0].mxu0
      %2045 = vmatprep.mubr.f32.mxu0 0.0
      %2046 = vmatmul.mubr.f32.gmra.mrb[0].mxu0 %v1934
      %v2047 = vpop.f32.mrb[0].mxu0
      %v2048 = vadd.f32 0.0, %v2047
      %v2049 = vpop.f32.mrb[0].mxu0
      %2050 = vmatprep.mubr.f32.mxu0 0.0
      %2051 = vmatmul.mubr.f32.gmra.mrb[0].mxu0 %v1936
      %v2052 = vpop.f32.mrb[0].mxu0
      %v2053 = vadd.f32 0.0, %v2052
      %v2054 = vpop.f32.mrb[0].mxu0
      %2055 = vmatprep.mubr.f32.mxu0 0.0
      %2056 = vmatmul.mubr.f32.gmra.mrb[0].mxu0 %v1938
      %v2057 = vpop.f32.mrb[0].mxu0
      %v2058 = vadd.f32 0.0, %v2057
      %v2059 = vpop.f32.mrb[0].mxu0
      %2060 = vdwg.mxu0
      %v2061 = vsel %vm1079, %v2023, -inf
      %2062 = vmax.xlane.f32.xlu0 %v2061
      %v2063 = vpop.xlane.xlu0 %2062
      %v2064 = vsel %vm1079, %v2028, -inf
      %2065 = vmax.xlane.f32.xlu0 %v2064
      %v2066 = vpop.xlane.xlu0 %2065
      %v2067 = vsel %vm1079, %v2033, -inf
      %2068 = vmax.xlane.f32.xlu0 %v2067
      %v2069 = vpop.xlane.xlu0 %2068
      %v2070 = vsel %vm1079, %v2038, -inf
      %2071 = vmax.xlane.f32.xlu0 %v2070
      %v2072 = vpop.xlane.xlu0 %2071
      %v2073 = vsel %vm1079, %v2043, -inf
      %2074 = vmax.xlane.f32.xlu0 %v2073
      %v2075 = vpop.xlane.xlu0 %2074
      %v2076 = vsel %vm1079, %v2048, -inf
      %2077 = vmax.xlane.f32.xlu0 %v2076
      %v2078 = vpop.xlane.xlu0 %2077
      %v2079 = vsel %vm1079, %v2053, -inf
      %2080 = vmax.xlane.f32.xlu0 %v2079
      %v2081 = vpop.xlane.xlu0 %2080
      %v2082 = vsel %vm1079, %v2058, -inf
      %2083 = vmax.xlane.f32.xlu0 %v2082
      %v2084 = vpop.xlane.xlu0 %2083
      %v2085 = vsub.f32 %v2023, %v2063
      %v2086 = vsub.f32 %v2028, %v2066
      %v2087 = vsub.f32 %v2033, %v2069
      %v2088 = vsub.f32 %v2038, %v2072
      %v2089 = vsub.f32 %v2043, %v2075
      %v2090 = vsub.f32 %v2048, %v2078
      %v2091 = vsub.f32 %v2053, %v2081
      %v2092 = vsub.f32 %v2058, %v2084
      %v2093 = vmul.f32 %v2085, 1.442695
      %v2094 = vpow.pop %v2093
      %v2095 = vmul.f32 %v2086, 1.442695
      %v2096 = vpow.pop %v2095
      %v2097 = vmul.f32 %v2087, 1.442695
      %v2098 = vpow.pop %v2097
      %v2099 = vmul.f32 %v2088, 1.442695
      %v2100 = vpow.pop %v2099
      %v2101 = vmul.f32 %v2089, 1.442695
      %v2102 = vpow.pop %v2101
      %v2103 = vmul.f32 %v2090, 1.442695
      %v2104 = vpow.pop %v2103
      %v2105 = vmul.f32 %v2091, 1.442695
      %v2106 = vpow.pop %v2105
      %v2107 = vmul.f32 %v2092, 1.442695
      %v2108 = vpow.pop %v2107
      %v2109 = vsel %vm1079, %v2094, 0.0
      %2110 = vadd.xlane.f32.xlu0 %v2109
      %v2111 = vpop.xlane.xlu0 %2110
      %v2112 = vsel %vm1079, %v2096, 0.0
      %2113 = vadd.xlane.f32.xlu0 %v2112
      %v2114 = vpop.xlane.xlu0 %2113
      %v2115 = vsel %vm1079, %v2098, 0.0
      %2116 = vadd.xlane.f32.xlu0 %v2115
      %v2117 = vpop.xlane.xlu0 %2116
      %v2118 = vsel %vm1079, %v2100, 0.0
      %2119 = vadd.xlane.f32.xlu0 %v2118
      %v2120 = vpop.xlane.xlu0 %2119
      %v2121 = vsel %vm1079, %v2102, 0.0
      %2122 = vadd.xlane.f32.xlu0 %v2121
      %v2123 = vpop.xlane.xlu0 %2122
      %v2124 = vsel %vm1079, %v2104, 0.0
      %2125 = vadd.xlane.f32.xlu0 %v2124
      %v2126 = vpop.xlane.xlu0 %2125
      %v2127 = vsel %vm1079, %v2106, 0.0
      %2128 = vadd.xlane.f32.xlu0 %v2127
      %v2129 = vpop.xlane.xlu0 %2128
      %v2130 = vsel %vm1079, %v2108, 0.0
      %2131 = vadd.xlane.f32.xlu0 %v2130
      %v2132 = vpop.xlane.xlu0 %2131
      %v2133 = vrcp.pop %v2111
      %v2134 = vrcp.pop %v2114
      %v2135 = vrcp.pop %v2117
      %v2136 = vrcp.pop %v2120
      %v2137 = vrcp.pop %v2123
      %v2138 = vrcp.pop %v2126
      %v2139 = vrcp.pop %v2129
      %v2140 = vrcp.pop %v2132
      %v2141 = vmul.f32 %v2111, %v2133
      %v2142 = vmul.f32 %v2114, %v2134
      %v2143 = vmul.f32 %v2117, %v2135
      %v2144 = vmul.f32 %v2120, %v2136
      %v2145 = vmul.f32 %v2123, %v2137
      %v2146 = vmul.f32 %v2126, %v2138
      %v2147 = vmul.f32 %v2129, %v2139
      %v2148 = vmul.f32 %v2132, %v2140
      %v2149 = vsub.f32 2.0, %v2141
      %v2150 = vsub.f32 2.0, %v2142
      %v2151 = vsub.f32 2.0, %v2143
      %v2152 = vsub.f32 2.0, %v2144
      %v2153 = vsub.f32 2.0, %v2145
      %v2154 = vsub.f32 2.0, %v2146
      %v2155 = vsub.f32 2.0, %v2147
      %v2156 = vsub.f32 2.0, %v2148
      %v2157 = vmul.f32 %v2133, %v2149
      %v2158 = vmul.f32 %v2134, %v2150
      %v2159 = vmul.f32 %v2135, %v2151
      %v2160 = vmul.f32 %v2136, %v2152
      %v2161 = vmul.f32 %v2137, %v2153
      %v2162 = vmul.f32 %v2138, %v2154
      %v2163 = vmul.f32 %v2139, %v2155
      %v2164 = vmul.f32 %v2140, %v2156
      %v2165 = vmul.f32 %v2094, %v2157
      %v2166 = vmul.f32 %v2096, %v2158
      %v2167 = vmul.f32 %v2098, %v2159
      %v2168 = vmul.f32 %v2100, %v2160
      %v2169 = vmul.f32 %v2102, %v2161
      %v2170 = vmul.f32 %v2104, %v2162
      %v2171 = vmul.f32 %v2106, %v2163
      %v2172 = vmul.f32 %v2108, %v2164
      %2173 = vrot.lane.b32.xlu0 %v1860, 48
      %v2174 = vpop.permute.xlu0 %2173
      %2175 = vrot.lane.b32.xlu0 %v1861, 48
      %v2176 = vpop.permute.xlu0 %2175
      %2177 = vrot.lane.b32.xlu0 %v1862, 48
      %v2178 = vpop.permute.xlu0 %2177
      %2179 = vrot.lane.b32.xlu0 %v1863, 48
      %v2180 = vpop.permute.xlu0 %2179
      %2181 = vrot.lane.b32.xlu0 %v1864, 48
      %v2182 = vpop.permute.xlu0 %2181
      %2183 = vrot.lane.b32.xlu0 %v1865, 48
      %v2184 = vpop.permute.xlu0 %2183
      %2185 = vrot.lane.b32.xlu0 %v1866, 48
      %v2186 = vpop.permute.xlu0 %2185
      %2187 = vrot.lane.b32.xlu0 %v1867, 48
      %v2188 = vpop.permute.xlu0 %2187
      %v2198 = vsel %vm1079, %v2165, 0
      %v2201 = vsel %vm1079, %v2166, 0
      %v2204 = vsel %vm1079, %v2167, 0
      %v2207 = vsel %vm1079, %v2168, 0
      %v2210 = vsel %vm1079, %v2169, 0
      %v2213 = vsel %vm1079, %v2170, 0
      %v2216 = vsel %vm1079, %v2171, 0
      %v2219 = vsel %vm1079, %v2172, 0
      %2221 = vmatprep.subr.mxu0 0.0
      %2222 = vmatpush1.msra.mxu0 %v2174
      %2223 = vmatprep.subr.mxu0 0.0
      %2224 = vmatpush1.msra.mxu0 %v2176
      %2225 = vmatprep.subr.mxu0 0.0
      %2226 = vmatpush1.msra.mxu0 %v2178
      %2227 = vmatprep.subr.mxu0 0.0
      %2228 = vmatpush1.msra.mxu0 %v2180
      %2229 = vmatprep.subr.mxu0 0.0
      %2230 = vmatpush1.msra.mxu0 %v2182
      %2231 = vmatprep.subr.mxu0 0.0
      %2232 = vmatpush1.msra.mxu0 %v2184
      %2233 = vmatprep.subr.mxu0 0.0
      %2234 = vmatpush1.msra.mxu0 %v2186
      %2235 = vmatprep.subr.mxu0 0.0
      %2236 = vmatpush1.msra.mxu0 %v2188
      %2237 = vmatprep.subr.mxu0 0.0
      %2238 = vmatpush1.msra.mxu0 0.0
      %2239 = vmatprep.subr.mxu0 0.0
      %2240 = vmatpush1.msra.mxu0 0.0
      %2241 = vmatprep.subr.mxu0 0.0
      %2242 = vmatpush1.msra.mxu0 0.0
      %2243 = vmatprep.subr.mxu0 0.0
      %2244 = vmatpush1.msra.mxu0 0.0
      %2245 = vmatprep.subr.mxu0 0.0
      %2246 = vmatpush1.msra.mxu0 0.0
      %2247 = vmatprep.subr.mxu0 0.0
      %2248 = vmatpush1.msra.mxu0 0.0
      %2249 = vmatprep.subr.mxu0 0.0
      %2250 = vmatpush1.msra.mxu0 0.0
      %2251 = vmatprep.subr.mxu0 0.0
      %2252 = vmatpush1.msra.mxu0 0.0
      %2253 = vmatprep.subr.mxu0 0.0
      %2254 = vmatpush1.msra.mxu0 0.0
      %2255 = vmatprep.subr.mxu0 0.0
      %2256 = vmatpush1.msra.mxu0 0.0
      %2257 = vmatprep.subr.mxu0 0.0
      %2258 = vmatpush1.msra.mxu0 0.0
      %2259 = vmatprep.subr.mxu0 0.0
      %2260 = vmatpush1.msra.mxu0 0.0
      %2261 = vmatprep.subr.mxu0 0.0
      %2262 = vmatpush1.msra.mxu0 0.0
      %2263 = vmatprep.subr.mxu0 0.0
      %2264 = vmatpush1.msra.mxu0 0.0
      %2265 = vmatprep.subr.mxu0 0.0
      %2266 = vmatpush1.msra.mxu0 0.0
      %2267 = vmatprep.subr.mxu0 0.0
      %2268 = vmatpush1.msra.mxu0 0.0
      %2269 = vmatprep.subr.mxu0 0.0
      %2270 = vmatpush1.msra.mxu0 0.0
      %2271 = vmatprep.subr.mxu0 0.0
      %2272 = vmatpush1.msra.mxu0 0.0
      %2273 = vmatprep.subr.mxu0 0.0
      %2274 = vmatpush1.msra.mxu0 0.0
      %2275 = vmatprep.subr.mxu0 0.0
      %2276 = vmatpush1.msra.mxu0 0.0
      %2277 = vmatprep.subr.mxu0 0.0
      %2278 = vmatpush1.msra.mxu0 0.0
      %2279 = vmatprep.subr.mxu0 0.0
      %2280 = vmatpush1.msra.mxu0 0.0
      %2281 = vmatprep.subr.mxu0 0.0
      %2282 = vmatpush1.msra.mxu0 0.0
      %2283 = vmatprep.subr.mxu0 0.0
      %2284 = vmatpush1.msra.mxu0 0.0
      %2285 = vmatprep.mubr.f32.mxu0 0.0
      %2286 = vmatmul.mubr.f32.gmra.mrb[0].mxu0 %v2198
      %v2287 = vpop.f32.mrb[0].mxu0
      %v2288 = vadd.f32 0.0, %v2287
      %v2289 = vpop.f32.mrb[0].mxu0
      %2290 = vmatprep.mubr.f32.mxu0 0.0
      %2291 = vmatmul.mubr.f32.gmra.mrb[0].mxu0 %v2201
      %v2292 = vpop.f32.mrb[0].mxu0
      %v2293 = vadd.f32 0.0, %v2292
      %v2294 = vpop.f32.mrb[0].mxu0
      %2295 = vmatprep.mubr.f32.mxu0 0.0
      %2296 = vmatmul.mubr.f32.gmra.mrb[0].mxu0 %v2204
      %v2297 = vpop.f32.mrb[0].mxu0
      %v2298 = vadd.f32 0.0, %v2297
      %v2299 = vpop.f32.mrb[0].mxu0
      %2300 = vmatprep.mubr.f32.mxu0 0.0
      %2301 = vmatmul.mubr.f32.gmra.mrb[0].mxu0 %v2207
      %v2302 = vpop.f32.mrb[0].mxu0
      %v2303 = vadd.f32 0.0, %v2302
      %v2304 = vpop.f32.mrb[0].mxu0
      %2305 = vmatprep.mubr.f32.mxu0 0.0
      %2306 = vmatmul.mubr.f32.gmra.mrb[0].mxu0 %v2210
      %v2307 = vpop.f32.mrb[0].mxu0
      %v2308 = vadd.f32 0.0, %v2307
      %v2309 = vpop.f32.mrb[0].mxu0
      %2310 = vmatprep.mubr.f32.mxu0 0.0
      %2311 = vmatmul.mubr.f32.gmra.mrb[0].mxu0 %v2213
      %v2312 = vpop.f32.mrb[0].mxu0
      %v2313 = vadd.f32 0.0, %v2312
      %v2314 = vpop.f32.mrb[0].mxu0
      %2315 = vmatprep.mubr.f32.mxu0 0.0
      %2316 = vmatmul.mubr.f32.gmra.mrb[0].mxu0 %v2216
      %v2317 = vpop.f32.mrb[0].mxu0
      %v2318 = vadd.f32 0.0, %v2317
      %v2319 = vpop.f32.mrb[0].mxu0
      %2320 = vmatprep.mubr.f32.mxu0 0.0
      %2321 = vmatmul.mubr.f32.gmra.mrb[0].mxu0 %v2219
      %v2322 = vpop.f32.mrb[0].mxu0
      %v2323 = vadd.f32 0.0, %v2322
      %v2324 = vpop.f32.mrb[0].mxu0
      %2325 = vdwg.mxu0
      %2334 = vrot.lane.b32.xlu0 %v2288, 16
      %v2335 = vpop.permute.xlu0 %2334
      %2336 = vrot.lane.b32.xlu0 %v2293, 16
      %v2337 = vpop.permute.xlu0 %2336
      %2338 = vrot.lane.b32.xlu0 %v2298, 16
      %v2339 = vpop.permute.xlu0 %2338
      %2340 = vrot.lane.b32.xlu0 %v2303, 16
      %v2341 = vpop.permute.xlu0 %2340
      %2342 = vrot.lane.b32.xlu0 %v2308, 16
      %v2343 = vpop.permute.xlu0 %2342
      %2344 = vrot.lane.b32.xlu0 %v2313, 16
      %v2345 = vpop.permute.xlu0 %2344
      %2346 = vrot.lane.b32.xlu0 %v2318, 16
      %v2347 = vpop.permute.xlu0 %2346
      %2348 = vrot.lane.b32.xlu0 %v2323, 16
      %v2349 = vpop.permute.xlu0 %2348
      %vm2358 = vcmask 195712
      %2359 = vst.msk [vmem:[#allocation3] sm:$0xff] %vm2358, %v2335
      %2360 = vst.msk [vmem:[#allocation3 + $0x8] sm:$0xff] %vm2358, %v2337
      %2361 = vst.msk [vmem:[#allocation3 + $0x10] sm:$0xff] %vm2358, %v2339
      %2362 = vst.msk [vmem:[#allocation3 + $0x18] sm:$0xff] %vm2358, %v2341
      %2363 = vst.msk [vmem:[#allocation3 + $0x20] sm:$0xff] %vm2358, %v2343
      %2364 = vst.msk [vmem:[#allocation3 + $0x28] sm:$0xff] %vm2358, %v2345
      %2365 = vst.msk [vmem:[#allocation3 + $0x30] sm:$0xff] %vm2358, %v2347
      %2366 = vst.msk [vmem:[#allocation3 + $0x38] sm:$0xff] %vm2358, %v2349
      %v2367 = vld [vmem:[#allocation2] sm:$0xff]
      %v2368 = vld [vmem:[#allocation2 + $0x8] sm:$0xff]
      %v2369 = vld [vmem:[#allocation2 + $0x10] sm:$0xff]
      %v2370 = vld [vmem:[#allocation2 + $0x18] sm:$0xff]
      %v2371 = vld [vmem:[#allocation2 + $0x20] sm:$0xff]
      %v2372 = vld [vmem:[#allocation2 + $0x28] sm:$0xff]
      %v2373 = vld [vmem:[#allocation2 + $0x30] sm:$0xff]
      %v2374 = vld [vmem:[#allocation2 + $0x38] sm:$0xff]
      %v2375 = vmul.f32 %v2367, 0.35355338
      %v2376 = vmul.f32 %v2368, 0.35355338
      %v2377 = vmul.f32 %v2369, 0.35355338
      %v2378 = vmul.f32 %v2370, 0.35355338
      %v2379 = vmul.f32 %v2371, 0.35355338
      %v2380 = vmul.f32 %v2372, 0.35355338
      %v2381 = vmul.f32 %v2373, 0.35355338
      %v2382 = vmul.f32 %v2374, 0.35355338
      %2391 = vrot.lane.b32.xlu0 %v2375, 104
      %v2392 = vpop.permute.xlu0 %2391
      %2393 = vrot.lane.b32.xlu0 %v2376, 104
      %v2394 = vpop.permute.xlu0 %2393
      %2395 = vrot.lane.b32.xlu0 %v2377, 104
      %v2396 = vpop.permute.xlu0 %2395
      %2397 = vrot.lane.b32.xlu0 %v2378, 104
      %v2398 = vpop.permute.xlu0 %2397
      %2399 = vrot.lane.b32.xlu0 %v2379, 104
      %v2400 = vpop.permute.xlu0 %2399
      %2401 = vrot.lane.b32.xlu0 %v2380, 104
      %v2402 = vpop.permute.xlu0 %2401
      %2403 = vrot.lane.b32.xlu0 %v2381, 104
      %v2404 = vpop.permute.xlu0 %2403
      %2405 = vrot.lane.b32.xlu0 %v2382, 104
      %v2406 = vpop.permute.xlu0 %2405
      %2415 = vrot.lane.b32.xlu0 %v2367, 72
      %v2416 = vpop.permute.xlu0 %2415
      %2417 = vrot.lane.b32.xlu0 %v2368, 72
      %v2418 = vpop.permute.xlu0 %2417
      %2419 = vrot.lane.b32.xlu0 %v2369, 72
      %v2420 = vpop.permute.xlu0 %2419
      %2421 = vrot.lane.b32.xlu0 %v2370, 72
      %v2422 = vpop.permute.xlu0 %2421
      %2423 = vrot.lane.b32.xlu0 %v2371, 72
      %v2424 = vpop.permute.xlu0 %2423
      %2425 = vrot.lane.b32.xlu0 %v2372, 72
      %v2426 = vpop.permute.xlu0 %2425
      %2427 = vrot.lane.b32.xlu0 %v2373, 72
      %v2428 = vpop.permute.xlu0 %2427
      %2429 = vrot.lane.b32.xlu0 %v2374, 72
      %v2430 = vpop.permute.xlu0 %2429
      %v2431 = vsel %vm933, %v2392, 0
      %v2433 = vsel %vm933, %v2394, 0
      %v2435 = vsel %vm933, %v2396, 0
      %v2437 = vsel %vm933, %v2398, 0
      %v2439 = vsel %vm933, %v2400, 0
      %v2441 = vsel %vm933, %v2402, 0
      %v2443 = vsel %vm933, %v2404, 0
      %v2445 = vsel %vm933, %v2406, 0
      %v2447 = vsel %vm933, %v2416, 0
      %v2449 = vsel %vm933, %v2418, 0
      %v2451 = vsel %vm933, %v2420, 0
      %v2453 = vsel %vm933, %v2422, 0
      %v2455 = vsel %vm933, %v2424, 0
      %v2457 = vsel %vm933, %v2426, 0
      %v2459 = vsel %vm933, %v2428, 0
      %v2461 = vsel %vm933, %v2430, 0
      %2463 = vmatprep.subr.mxu0 0.0
      %2464 = vmatpush1.xpose.msra.mxu0 %v2447
      %2465 = vmatprep.subr.mxu0 0.0
      %2466 = vmatpush1.xpose.msra.mxu0 %v2449
      %2467 = vmatprep.subr.mxu0 0.0
      %2468 = vmatpush1.xpose.msra.mxu0 %v2451
      %2469 = vmatprep.subr.mxu0 0.0
      %2470 = vmatpush1.xpose.msra.mxu0 %v2453
      %2471 = vmatprep.subr.mxu0 0.0
      %2472 = vmatpush1.xpose.msra.mxu0 %v2455
      %2473 = vmatprep.subr.mxu0 0.0
      %2474 = vmatpush1.xpose.msra.mxu0 %v2457
      %2475 = vmatprep.subr.mxu0 0.0
      %2476 = vmatpush1.xpose.msra.mxu0 %v2459
      %2477 = vmatprep.subr.mxu0 0.0
      %2478 = vmatpush1.xpose.msra.mxu0 %v2461
      %2479 = vmatprep.subr.mxu0 0.0
      %2480 = vmatpush1.xpose.msra.mxu0 0.0
      %2481 = vmatprep.subr.mxu0 0.0
      %2482 = vmatpush1.xpose.msra.mxu0 0.0
      %2483 = vmatprep.subr.mxu0 0.0
      %2484 = vmatpush1.xpose.msra.mxu0 0.0
      %2485 = vmatprep.subr.mxu0 0.0
      %2486 = vmatpush1.xpose.msra.mxu0 0.0
      %2487 = vmatprep.subr.mxu0 0.0
      %2488 = vmatpush1.xpose.msra.mxu0 0.0
      %2489 = vmatprep.subr.mxu0 0.0
      %2490 = vmatpush1.xpose.msra.mxu0 0.0
      %2491 = vmatprep.subr.mxu0 0.0
      %2492 = vmatpush1.xpose.msra.mxu0 0.0
      %2493 = vmatprep.subr.mxu0 0.0
      %2494 = vmatpush1.xpose.msra.mxu0 0.0
      %2495 = vmatprep.subr.mxu0 0.0
      %2496 = vmatpush1.xpose.msra.mxu0 0.0
      %2497 = vmatprep.subr.mxu0 0.0
      %2498 = vmatpush1.xpose.msra.mxu0 0.0
      %2499 = vmatprep.subr.mxu0 0.0
      %2500 = vmatpush1.xpose.msra.mxu0 0.0
      %2501 = vmatprep.subr.mxu0 0.0
      %2502 = vmatpush1.xpose.msra.mxu0 0.0
      %2503 = vmatprep.subr.mxu0 0.0
      %2504 = vmatpush1.xpose.msra.mxu0 0.0
      %2505 = vmatprep.subr.mxu0 0.0
      %2506 = vmatpush1.xpose.msra.mxu0 0.0
      %2507 = vmatprep.subr.mxu0 0.0
      %2508 = vmatpush1.xpose.msra.mxu0 0.0
      %2509 = vmatprep.subr.mxu0 0.0
      %2510 = vmatpush1.xpose.msra.mxu0 0.0
      %2511 = vmatprep.subr.mxu0 0.0
      %2512 = vmatpush1.xpose.msra.mxu0 0.0
      %2513 = vmatprep.subr.mxu0 0.0
      %2514 = vmatpush1.xpose.msra.mxu0 0.0
      %2515 = vmatprep.subr.mxu0 0.0
      %2516 = vmatpush1.xpose.msra.mxu0 0.0
      %2517 = vmatprep.subr.mxu0 0.0
      %2518 = vmatpush1.xpose.msra.mxu0 0.0
      %2519 = vmatprep.subr.mxu0 0.0
      %2520 = vmatpush1.xpose.msra.mxu0 0.0
      %2521 = vmatprep.subr.mxu0 0.0
      %2522 = vmatpush1.xpose.msra.mxu0 0.0
      %2523 = vmatprep.subr.mxu0 0.0
      %2524 = vmatpush1.xpose.msra.mxu0 0.0
      %2525 = vmatprep.subr.mxu0 0.0
      %2526 = vmatpush1.xpose.msra.mxu0 0.0
      %2527 = vmatprep.mubr.f32.mxu0 0.0
      %2528 = vmatmul.mubr.f32.gmra.mrb[0].mxu0 %v2431
      %v2529 = vpop.f32.mrb[0].mxu0
      %v2530 = vadd.f32 0.0, %v2529
      %v2531 = vpop.f32.mrb[0].mxu0
      %2532 = vmatprep.mubr.f32.mxu0 0.0
      %2533 = vmatmul.mubr.f32.gmra.mrb[0].mxu0 %v2433
      %v2534 = vpop.f32.mrb[0].mxu0
      %v2535 = vadd.f32 0.0, %v2534
      %v2536 = vpop.f32.mrb[0].mxu0
      %2537 = vmatprep.mubr.f32.mxu0 0.0
      %2538 = vmatmul.mubr.f32.gmra.mrb[0].mxu0 %v2435
      %v2539 = vpop.f32.mrb[0].mxu0
      %v2540 = vadd.f32 0.0, %v2539
      %v2541 = vpop.f32.mrb[0].mxu0
      %2542 = vmatprep.mubr.f32.mxu0 0.0
      %2543 = vmatmul.mubr.f32.gmra.mrb[0].mxu0 %v2437
      %v2544 = vpop.f32.mrb[0].mxu0
      %v2545 = vadd.f32 0.0, %v2544
      %v2546 = vpop.f32.mrb[0].mxu0
      %2547 = vmatprep.mubr.f32.mxu0 0.0
      %2548 = vmatmul.mubr.f32.gmra.mrb[0].mxu0 %v2439
      %v2549 = vpop.f32.mrb[0].mxu0
      %v2550 = vadd.f32 0.0, %v2549
      %v2551 = vpop.f32.mrb[0].mxu0
      %2552 = vmatprep.mubr.f32.mxu0 0.0
      %2553 = vmatmul.mubr.f32.gmra.mrb[0].mxu0 %v2441
      %v2554 = vpop.f32.mrb[0].mxu0
      %v2555 = vadd.f32 0.0, %v2554
      %v2556 = vpop.f32.mrb[0].mxu0
      %2557 = vmatprep.mubr.f32.mxu0 0.0
      %2558 = vmatmul.mubr.f32.gmra.mrb[0].mxu0 %v2443
      %v2559 = vpop.f32.mrb[0].mxu0
      %v2560 = vadd.f32 0.0, %v2559
      %v2561 = vpop.f32.mrb[0].mxu0
      %2562 = vmatprep.mubr.f32.mxu0 0.0
      %2563 = vmatmul.mubr.f32.gmra.mrb[0].mxu0 %v2445
      %v2564 = vpop.f32.mrb[0].mxu0
      %v2565 = vadd.f32 0.0, %v2564
      %v2566 = vpop.f32.mrb[0].mxu0
      %2567 = vdwg.mxu0
      %v2568 = vsel %vm1079, %v2530, -inf
      %2569 = vmax.xlane.f32.xlu0 %v2568
      %v2570 = vpop.xlane.xlu0 %2569
      %v2571 = vsel %vm1079, %v2535, -inf
      %2572 = vmax.xlane.f32.xlu0 %v2571
      %v2573 = vpop.xlane.xlu0 %2572
      %v2574 = vsel %vm1079, %v2540, -inf
      %2575 = vmax.xlane.f32.xlu0 %v2574
      %v2576 = vpop.xlane.xlu0 %2575
      %v2577 = vsel %vm1079, %v2545, -inf
      %2578 = vmax.xlane.f32.xlu0 %v2577
      %v2579 = vpop.xlane.xlu0 %2578
      %v2580 = vsel %vm1079, %v2550, -inf
      %2581 = vmax.xlane.f32.xlu0 %v2580
      %v2582 = vpop.xlane.xlu0 %2581
      %v2583 = vsel %vm1079, %v2555, -inf
      %2584 = vmax.xlane.f32.xlu0 %v2583
      %v2585 = vpop.xlane.xlu0 %2584
      %v2586 = vsel %vm1079, %v2560, -inf
      %2587 = vmax.xlane.f32.xlu0 %v2586
      %v2588 = vpop.xlane.xlu0 %2587
      %v2589 = vsel %vm1079, %v2565, -inf
      %2590 = vmax.xlane.f32.xlu0 %v2589
      %v2591 = vpop.xlane.xlu0 %2590
      %v2592 = vsub.f32 %v2530, %v2570
      %v2593 = vsub.f32 %v2535, %v2573
      %v2594 = vsub.f32 %v2540, %v2576
      %v2595 = vsub.f32 %v2545, %v2579
      %v2596 = vsub.f32 %v2550, %v2582
      %v2597 = vsub.f32 %v2555, %v2585
      %v2598 = vsub.f32 %v2560, %v2588
      %v2599 = vsub.f32 %v2565, %v2591
      %v2600 = vmul.f32 %v2592, 1.442695
      %v2601 = vpow.pop %v2600
      %v2602 = vmul.f32 %v2593, 1.442695
      %v2603 = vpow.pop %v2602
      %v2604 = vmul.f32 %v2594, 1.442695
      %v2605 = vpow.pop %v2604
      %v2606 = vmul.f32 %v2595, 1.442695
      %v2607 = vpow.pop %v2606
      %v2608 = vmul.f32 %v2596, 1.442695
      %v2609 = vpow.pop %v2608
      %v2610 = vmul.f32 %v2597, 1.442695
      %v2611 = vpow.pop %v2610
      %v2612 = vmul.f32 %v2598, 1.442695
      %v2613 = vpow.pop %v2612
      %v2614 = vmul.f32 %v2599, 1.442695
      %v2615 = vpow.pop %v2614
      %v2616 = vsel %vm1079, %v2601, 0.0
      %2617 = vadd.xlane.f32.xlu0 %v2616
      %v2618 = vpop.xlane.xlu0 %2617
      %v2619 = vsel %vm1079, %v2603, 0.0
      %2620 = vadd.xlane.f32.xlu0 %v2619
      %v2621 = vpop.xlane.xlu0 %2620
      %v2622 = vsel %vm1079, %v2605, 0.0
      %2623 = vadd.xlane.f32.xlu0 %v2622
      %v2624 = vpop.xlane.xlu0 %2623
      %v2625 = vsel %vm1079, %v2607, 0.0
      %2626 = vadd.xlane.f32.xlu0 %v2625
      %v2627 = vpop.xlane.xlu0 %2626
      %v2628 = vsel %vm1079, %v2609, 0.0
      %2629 = vadd.xlane.f32.xlu0 %v2628
      %v2630 = vpop.xlane.xlu0 %2629
      %v2631 = vsel %vm1079, %v2611, 0.0
      %2632 = vadd.xlane.f32.xlu0 %v2631
      %v2633 = vpop.xlane.xlu0 %2632
      %v2634 = vsel %vm1079, %v2613, 0.0
      %2635 = vadd.xlane.f32.xlu0 %v2634
      %v2636 = vpop.xlane.xlu0 %2635
      %v2637 = vsel %vm1079, %v2615, 0.0
      %2638 = vadd.xlane.f32.xlu0 %v2637
      %v2639 = vpop.xlane.xlu0 %2638
      %v2640 = vrcp.pop %v2618
      %v2641 = vrcp.pop %v2621
      %v2642 = vrcp.pop %v2624
      %v2643 = vrcp.pop %v2627
      %v2644 = vrcp.pop %v2630
      %v2645 = vrcp.pop %v2633
      %v2646 = vrcp.pop %v2636
      %v2647 = vrcp.pop %v2639
      %v2648 = vmul.f32 %v2618, %v2640
      %v2649 = vmul.f32 %v2621, %v2641
      %v2650 = vmul.f32 %v2624, %v2642
      %v2651 = vmul.f32 %v2627, %v2643
      %v2652 = vmul.f32 %v2630, %v2644
      %v2653 = vmul.f32 %v2633, %v2645
      %v2654 = vmul.f32 %v2636, %v2646
      %v2655 = vmul.f32 %v2639, %v2647
      %v2656 = vsub.f32 2.0, %v2648
      %v2657 = vsub.f32 2.0, %v2649
      %v2658 = vsub.f32 2.0, %v2650
      %v2659 = vsub.f32 2.0, %v2651
      %v2660 = vsub.f32 2.0, %v2652
      %v2661 = vsub.f32 2.0, %v2653
      %v2662 = vsub.f32 2.0, %v2654
      %v2663 = vsub.f32 2.0, %v2655
      %v2664 = vmul.f32 %v2640, %v2656
      %v2665 = vmul.f32 %v2641, %v2657
      %v2666 = vmul.f32 %v2642, %v2658
      %v2667 = vmul.f32 %v2643, %v2659
      %v2668 = vmul.f32 %v2644, %v2660
      %v2669 = vmul.f32 %v2645, %v2661
      %v2670 = vmul.f32 %v2646, %v2662
      %v2671 = vmul.f32 %v2647, %v2663
      %v2672 = vmul.f32 %v2601, %v2664
      %v2673 = vmul.f32 %v2603, %v2665
      %v2674 = vmul.f32 %v2605, %v2666
      %v2675 = vmul.f32 %v2607, %v2667
      %v2676 = vmul.f32 %v2609, %v2668
      %v2677 = vmul.f32 %v2611, %v2669
      %v2678 = vmul.f32 %v2613, %v2670
      %v2679 = vmul.f32 %v2615, %v2671
      %2680 = vrot.lane.b32.xlu0 %v2367, 40
      %v2681 = vpop.permute.xlu0 %2680
      %2682 = vrot.lane.b32.xlu0 %v2368, 40
      %v2683 = vpop.permute.xlu0 %2682
      %2684 = vrot.lane.b32.xlu0 %v2369, 40
      %v2685 = vpop.permute.xlu0 %2684
      %2686 = vrot.lane.b32.xlu0 %v2370, 40
      %v2687 = vpop.permute.xlu0 %2686
      %2688 = vrot.lane.b32.xlu0 %v2371, 40
      %v2689 = vpop.permute.xlu0 %2688
      %2690 = vrot.lane.b32.xlu0 %v2372, 40
      %v2691 = vpop.permute.xlu0 %2690
      %2692 = vrot.lane.b32.xlu0 %v2373, 40
      %v2693 = vpop.permute.xlu0 %2692
      %2694 = vrot.lane.b32.xlu0 %v2374, 40
      %v2695 = vpop.permute.xlu0 %2694
      %v2705 = vsel %vm1079, %v2672, 0
      %v2708 = vsel %vm1079, %v2673, 0
      %v2711 = vsel %vm1079, %v2674, 0
      %v2714 = vsel %vm1079, %v2675, 0
      %v2717 = vsel %vm1079, %v2676, 0
      %v2720 = vsel %vm1079, %v2677, 0
      %v2723 = vsel %vm1079, %v2678, 0
      %v2726 = vsel %vm1079, %v2679, 0
      %2728 = vmatprep.subr.mxu0 0.0
      %2729 = vmatpush1.msra.mxu0 %v2681
      %2730 = vmatprep.subr.mxu0 0.0
      %2731 = vmatpush1.msra.mxu0 %v2683
      %2732 = vmatprep.subr.mxu0 0.0
      %2733 = vmatpush1.msra.mxu0 %v2685
      %2734 = vmatprep.subr.mxu0 0.0
      %2735 = vmatpush1.msra.mxu0 %v2687
      %2736 = vmatprep.subr.mxu0 0.0
      %2737 = vmatpush1.msra.mxu0 %v2689
      %2738 = vmatprep.subr.mxu0 0.0
      %2739 = vmatpush1.msra.mxu0 %v2691
      %2740 = vmatprep.subr.mxu0 0.0
      %2741 = vmatpush1.msra.mxu0 %v2693
      %2742 = vmatprep.subr.mxu0 0.0
      %2743 = vmatpush1.msra.mxu0 %v2695
      %2744 = vmatprep.subr.mxu0 0.0
      %2745 = vmatpush1.msra.mxu0 0.0
      %2746 = vmatprep.subr.mxu0 0.0
      %2747 = vmatpush1.msra.mxu0 0.0
      %2748 = vmatprep.subr.mxu0 0.0
      %2749 = vmatpush1.msra.mxu0 0.0
      %2750 = vmatprep.subr.mxu0 0.0
      %2751 = vmatpush1.msra.mxu0 0.0
      %2752 = vmatprep.subr.mxu0 0.0
      %2753 = vmatpush1.msra.mxu0 0.0
      %2754 = vmatprep.subr.mxu0 0.0
      %2755 = vmatpush1.msra.mxu0 0.0
      %2756 = vmatprep.subr.mxu0 0.0
      %2757 = vmatpush1.msra.mxu0 0.0
      %2758 = vmatprep.subr.mxu0 0.0
      %2759 = vmatpush1.msra.mxu0 0.0
      %2760 = vmatprep.subr.mxu0 0.0
      %2761 = vmatpush1.msra.mxu0 0.0
      %2762 = vmatprep.subr.mxu0 0.0
      %2763 = vmatpush1.msra.mxu0 0.0
      %2764 = vmatprep.subr.mxu0 0.0
      %2765 = vmatpush1.msra.mxu0 0.0
      %2766 = vmatprep.subr.mxu0 0.0
      %2767 = vmatpush1.msra.mxu0 0.0
      %2768 = vmatprep.subr.mxu0 0.0
      %2769 = vmatpush1.msra.mxu0 0.0
      %2770 = vmatprep.subr.mxu0 0.0
      %2771 = vmatpush1.msra.mxu0 0.0
      %2772 = vmatprep.subr.mxu0 0.0
      %2773 = vmatpush1.msra.mxu0 0.0
      %2774 = vmatprep.subr.mxu0 0.0
      %2775 = vmatpush1.msra.mxu0 0.0
      %2776 = vmatprep.subr.mxu0 0.0
      %2777 = vmatpush1.msra.mxu0 0.0
      %2778 = vmatprep.subr.mxu0 0.0
      %2779 = vmatpush1.msra.mxu0 0.0
      %2780 = vmatprep.subr.mxu0 0.0
      %2781 = vmatpush1.msra.mxu0 0.0
      %2782 = vmatprep.subr.mxu0 0.0
      %2783 = vmatpush1.msra.mxu0 0.0
      %2784 = vmatprep.subr.mxu0 0.0
      %2785 = vmatpush1.msra.mxu0 0.0
      %2786 = vmatprep.subr.mxu0 0.0
      %2787 = vmatpush1.msra.mxu0 0.0
      %2788 = vmatprep.subr.mxu0 0.0
      %2789 = vmatpush1.msra.mxu0 0.0
      %2790 = vmatprep.subr.mxu0 0.0
      %2791 = vmatpush1.msra.mxu0 0.0
      %2792 = vmatprep.mubr.f32.mxu0 0.0
      %2793 = vmatmul.mubr.f32.gmra.mrb[0].mxu0 %v2705
      %v2794 = vpop.f32.mrb[0].mxu0
      %v2795 = vadd.f32 0.0, %v2794
      %v2796 = vpop.f32.mrb[0].mxu0
      %2797 = vmatprep.mubr.f32.mxu0 0.0
      %2798 = vmatmul.mubr.f32.gmra.mrb[0].mxu0 %v2708
      %v2799 = vpop.f32.mrb[0].mxu0
      %v2800 = vadd.f32 0.0, %v2799
      %v2801 = vpop.f32.mrb[0].mxu0
      %2802 = vmatprep.mubr.f32.mxu0 0.0
      %2803 = vmatmul.mubr.f32.gmra.mrb[0].mxu0 %v2711
      %v2804 = vpop.f32.mrb[0].mxu0
      %v2805 = vadd.f32 0.0, %v2804
      %v2806 = vpop.f32.mrb[0].mxu0
      %2807 = vmatprep.mubr.f32.mxu0 0.0
      %2808 = vmatmul.mubr.f32.gmra.mrb[0].mxu0 %v2714
      %v2809 = vpop.f32.mrb[0].mxu0
      %v2810 = vadd.f32 0.0, %v2809
      %v2811 = vpop.f32.mrb[0].mxu0
      %2812 = vmatprep.mubr.f32.mxu0 0.0
      %2813 = vmatmul.mubr.f32.gmra.mrb[0].mxu0 %v2717
      %v2814 = vpop.f32.mrb[0].mxu0
      %v2815 = vadd.f32 0.0, %v2814
      %v2816 = vpop.f32.mrb[0].mxu0
      %2817 = vmatprep.mubr.f32.mxu0 0.0
      %2818 = vmatmul.mubr.f32.gmra.mrb[0].mxu0 %v2720
      %v2819 = vpop.f32.mrb[0].mxu0
      %v2820 = vadd.f32 0.0, %v2819
      %v2821 = vpop.f32.mrb[0].mxu0
      %2822 = vmatprep.mubr.f32.mxu0 0.0
      %2823 = vmatmul.mubr.f32.gmra.mrb[0].mxu0 %v2723
      %v2824 = vpop.f32.mrb[0].mxu0
      %v2825 = vadd.f32 0.0, %v2824
      %v2826 = vpop.f32.mrb[0].mxu0
      %2827 = vmatprep.mubr.f32.mxu0 0.0
      %2828 = vmatmul.mubr.f32.gmra.mrb[0].mxu0 %v2726
      %v2829 = vpop.f32.mrb[0].mxu0
      %v2830 = vadd.f32 0.0, %v2829
      %v2831 = vpop.f32.mrb[0].mxu0
      %2832 = vdwg.mxu0
      %2841 = vrot.lane.b32.xlu0 %v2795, 24
      %v2842 = vpop.permute.xlu0 %2841
      %2843 = vrot.lane.b32.xlu0 %v2800, 24
      %v2844 = vpop.permute.xlu0 %2843
      %2845 = vrot.lane.b32.xlu0 %v2805, 24
      %v2846 = vpop.permute.xlu0 %2845
      %2847 = vrot.lane.b32.xlu0 %v2810, 24
      %v2848 = vpop.permute.xlu0 %2847
      %2849 = vrot.lane.b32.xlu0 %v2815, 24
      %v2850 = vpop.permute.xlu0 %2849
      %2851 = vrot.lane.b32.xlu0 %v2820, 24
      %v2852 = vpop.permute.xlu0 %2851
      %2853 = vrot.lane.b32.xlu0 %v2825, 24
      %v2854 = vpop.permute.xlu0 %2853
      %2855 = vrot.lane.b32.xlu0 %v2830, 24
      %v2856 = vpop.permute.xlu0 %2855
      %vm2865 = vcmask 261312
      %2866 = vst.msk [vmem:[#allocation3] sm:$0xff] %vm2865, %v2842
      %2867 = vst.msk [vmem:[#allocation3 + $0x8] sm:$0xff] %vm2865, %v2844
      %2868 = vst.msk [vmem:[#allocation3 + $0x10] sm:$0xff] %vm2865, %v2846
      %2869 = vst.msk [vmem:[#allocation3 + $0x18] sm:$0xff] %vm2865, %v2848
      %2870 = vst.msk [vmem:[#allocation3 + $0x20] sm:$0xff] %vm2865, %v2850
      %2871 = vst.msk [vmem:[#allocation3 + $0x28] sm:$0xff] %vm2865, %v2852
      %2872 = vst.msk [vmem:[#allocation3 + $0x30] sm:$0xff] %vm2865, %v2854
      %2873 = vst.msk [vmem:[#allocation3 + $0x38] sm:$0xff] %vm2865, %v2856
      %v2874 = vld [vmem:[#allocation3] sm:$0xff]
      %v2875 = vld [vmem:[#allocation3 + $0x8] sm:$0xff]
      %v2876 = vld [vmem:[#allocation3 + $0x10] sm:$0xff]
      %v2877 = vld [vmem:[#allocation3 + $0x18] sm:$0xff]
      %v2878 = vld [vmem:[#allocation3 + $0x20] sm:$0xff]
      %v2879 = vld [vmem:[#allocation3 + $0x28] sm:$0xff]
      %v2880 = vld [vmem:[#allocation3 + $0x30] sm:$0xff]
      %v2881 = vld [vmem:[#allocation3 + $0x38] sm:$0xff]
      %v2882 = vld [vmem:[%s385] sm:$0xff]
      %v2883 = vld [vmem:[%s385 + $0x8] sm:$0xff]
      %v2884 = vld [vmem:[%s385 + $0x10] sm:$0xff]
      %v2885 = vld [vmem:[%s385 + $0x18] sm:$0xff]
      %v2886 = vld [vmem:[%s405] sm:$0x1]
      %v2887 = vlaneseq
      %v2888 = vshrl.u32 %v2887, 7
      %v2889 = vsub.s32 0, %v2888
      %v2890 = vrot.slane %v2886, %v2889
      %v2892 = vsel %vm754, %v2874, 0
      %v2895 = vsel %vm754, %v2875, 0
      %v2898 = vsel %vm754, %v2876, 0
      %v2901 = vsel %vm754, %v2877, 0
      %v2904 = vsel %vm754, %v2878, 0
      %v2907 = vsel %vm754, %v2879, 0
      %v2910 = vsel %vm754, %v2880, 0
      %v2913 = vsel %vm754, %v2881, 0
      %2915 = vmatprep.subr.mxu0 0.0
      %2916 = vmatpush1.msra.mxu0 %v2882
      %2917 = vmatprep.subr.mxu0 0.0
      %2918 = vmatpush1.msra.mxu0 %v2883
      %2919 = vmatprep.subr.mxu0 0.0
      %2920 = vmatpush1.msra.mxu0 %v2884
      %2921 = vmatprep.subr.mxu0 0.0
      %2922 = vmatpush1.msra.mxu0 %v2885
      %2923 = vmatprep.subr.mxu0 0.0
      %2924 = vmatpush1.msra.mxu0 0.0
      %2925 = vmatprep.subr.mxu0 0.0
      %2926 = vmatpush1.msra.mxu0 0.0
      %2927 = vmatprep.subr.mxu0 0.0
      %2928 = vmatpush1.msra.mxu0 0.0
      %2929 = vmatprep.subr.mxu0 0.0
      %2930 = vmatpush1.msra.mxu0 0.0
      %2931 = vmatprep.subr.mxu0 0.0
      %2932 = vmatpush1.msra.mxu0 0.0
      %2933 = vmatprep.subr.mxu0 0.0
      %2934 = vmatpush1.msra.mxu0 0.0
      %2935 = vmatprep.subr.mxu0 0.0
      %2936 = vmatpush1.msra.mxu0 0.0
      %2937 = vmatprep.subr.mxu0 0.0
      %2938 = vmatpush1.msra.mxu0 0.0
      %2939 = vmatprep.subr.mxu0 0.0
      %2940 = vmatpush1.msra.mxu0 0.0
      %2941 = vmatprep.subr.mxu0 0.0
      %2942 = vmatpush1.msra.mxu0 0.0
      %2943 = vmatprep.subr.mxu0 0.0
      %2944 = vmatpush1.msra.mxu0 0.0
      %2945 = vmatprep.subr.mxu0 0.0
      %2946 = vmatpush1.msra.mxu0 0.0
      %2947 = vmatprep.subr.mxu0 0.0
      %2948 = vmatpush1.msra.mxu0 0.0
      %2949 = vmatprep.subr.mxu0 0.0
      %2950 = vmatpush1.msra.mxu0 0.0
      %2951 = vmatprep.subr.mxu0 0.0
      %2952 = vmatpush1.msra.mxu0 0.0
      %2953 = vmatprep.subr.mxu0 0.0
      %2954 = vmatpush1.msra.mxu0 0.0
      %2955 = vmatprep.subr.mxu0 0.0
      %2956 = vmatpush1.msra.mxu0 0.0
      %2957 = vmatprep.subr.mxu0 0.0
      %2958 = vmatpush1.msra.mxu0 0.0
      %2959 = vmatprep.subr.mxu0 0.0
      %2960 = vmatpush1.msra.mxu0 0.0
      %2961 = vmatprep.subr.mxu0 0.0
      %2962 = vmatpush1.msra.mxu0 0.0
      %2963 = vmatprep.subr.mxu0 0.0
      %2964 = vmatpush1.msra.mxu0 0.0
      %2965 = vmatprep.subr.mxu0 0.0
      %2966 = vmatpush1.msra.mxu0 0.0
      %2967 = vmatprep.subr.mxu0 0.0
      %2968 = vmatpush1.msra.mxu0 0.0
      %2969 = vmatprep.subr.mxu0 0.0
      %2970 = vmatpush1.msra.mxu0 0.0
      %2971 = vmatprep.subr.mxu0 0.0
      %2972 = vmatpush1.msra.mxu0 0.0
      %2973 = vmatprep.subr.mxu0 0.0
      %2974 = vmatpush1.msra.mxu0 0.0
      %2975 = vmatprep.subr.mxu0 0.0
      %2976 = vmatpush1.msra.mxu0 0.0
      %2977 = vmatprep.subr.mxu0 0.0
      %2978 = vmatpush1.msra.mxu0 0.0
      %2979 = vmatprep.mubr.f32.mxu0 0.0
      %2980 = vmatmul.mubr.f32.gmra.mrb[0].mxu0 %v2892
      %v2981 = vpop.f32.mrb[0].mxu0
      %v2982 = vadd.f32 %v2890, %v2981
      %v2983 = vpop.f32.mrb[0].mxu0
      %2984 = vmatprep.mubr.f32.mxu0 0.0
      %2985 = vmatmul.mubr.f32.gmra.mrb[0].mxu0 %v2895
      %v2986 = vpop.f32.mrb[0].mxu0
      %v2987 = vadd.f32 %v2890, %v2986
      %v2988 = vpop.f32.mrb[0].mxu0
      %2989 = vmatprep.mubr.f32.mxu0 0.0
      %2990 = vmatmul.mubr.f32.gmra.mrb[0].mxu0 %v2898
      %v2991 = vpop.f32.mrb[0].mxu0
      %v2992 = vadd.f32 %v2890, %v2991
      %v2993 = vpop.f32.mrb[0].mxu0
      %2994 = vmatprep.mubr.f32.mxu0 0.0
      %2995 = vmatmul.mubr.f32.gmra.mrb[0].mxu0 %v2901
      %v2996 = vpop.f32.mrb[0].mxu0
      %v2997 = vadd.f32 %v2890, %v2996
      %v2998 = vpop.f32.mrb[0].mxu0
      %2999 = vmatprep.mubr.f32.mxu0 0.0
      %3000 = vmatmul.mubr.f32.gmra.mrb[0].mxu0 %v2904
      %v3001 = vpop.f32.mrb[0].mxu0
      %v3002 = vadd.f32 %v2890, %v3001
      %v3003 = vpop.f32.mrb[0].mxu0
      %3004 = vmatprep.mubr.f32.mxu0 0.0
      %3005 = vmatmul.mubr.f32.gmra.mrb[0].mxu0 %v2907
      %v3006 = vpop.f32.mrb[0].mxu0
      %v3007 = vadd.f32 %v2890, %v3006
      %v3008 = vpop.f32.mrb[0].mxu0
      %3009 = vmatprep.mubr.f32.mxu0 0.0
      %3010 = vmatmul.mubr.f32.gmra.mrb[0].mxu0 %v2910
      %v3011 = vpop.f32.mrb[0].mxu0
      %v3012 = vadd.f32 %v2890, %v3011
      %v3013 = vpop.f32.mrb[0].mxu0
      %3014 = vmatprep.mubr.f32.mxu0 0.0
      %3015 = vmatmul.mubr.f32.gmra.mrb[0].mxu0 %v2913
      %v3016 = vpop.f32.mrb[0].mxu0
      %v3017 = vadd.f32 %v2890, %v3016
      %v3018 = vpop.f32.mrb[0].mxu0
      %3019 = vdwg.mxu0
      %v3020 = vsel %vm754, %v2982, 0.0
      %3021 = vadd.xlane.f32.xlu0 %v3020
      %v3022 = vpop.xlane.xlu0 %3021
      %v3023 = vsel %vm754, %v2987, 0.0
      %3024 = vadd.xlane.f32.xlu0 %v3023
      %v3025 = vpop.xlane.xlu0 %3024
      %v3026 = vsel %vm754, %v2992, 0.0
      %3027 = vadd.xlane.f32.xlu0 %v3026
      %v3028 = vpop.xlane.xlu0 %3027
      %v3029 = vsel %vm754, %v2997, 0.0
      %3030 = vadd.xlane.f32.xlu0 %v3029
      %v3031 = vpop.xlane.xlu0 %3030
      %v3032 = vsel %vm754, %v3002, 0.0
      %3033 = vadd.xlane.f32.xlu0 %v3032
      %v3034 = vpop.xlane.xlu0 %3033
      %v3035 = vsel %vm754, %v3007, 0.0
      %3036 = vadd.xlane.f32.xlu0 %v3035
      %v3037 = vpop.xlane.xlu0 %3036
      %v3038 = vsel %vm754, %v3012, 0.0
      %3039 = vadd.xlane.f32.xlu0 %v3038
      %v3040 = vpop.xlane.xlu0 %3039
      %v3041 = vsel %vm754, %v3017, 0.0
      %3042 = vadd.xlane.f32.xlu0 %v3041
      %v3043 = vpop.xlane.xlu0 %3042
      %v3044 = vrcp.pop 32.0
      %v3045 = vmul.f32 %v3022, %v3044
      %v3046 = vmul.f32 %v3025, %v3044
      %v3047 = vmul.f32 %v3028, %v3044
      %v3048 = vmul.f32 %v3031, %v3044
      %v3049 = vmul.f32 %v3034, %v3044
      %v3050 = vmul.f32 %v3037, %v3044
      %v3051 = vmul.f32 %v3040, %v3044
      %v3052 = vmul.f32 %v3043, %v3044
      %v3053 = vsub.f32 %v2982, %v3045
      %v3054 = vsub.f32 %v2987, %v3046
      %v3055 = vsub.f32 %v2992, %v3047
      %v3056 = vsub.f32 %v2997, %v3048
      %v3057 = vsub.f32 %v3002, %v3049
      %v3058 = vsub.f32 %v3007, %v3050
      %v3059 = vsub.f32 %v3012, %v3051
      %v3060 = vsub.f32 %v3017, %v3052
      %v3061 = vmul.f32 %v3053, %v3053
      %v3062 = vmul.f32 %v3054, %v3054
      %v3063 = vmul.f32 %v3055, %v3055
      %v3064 = vmul.f32 %v3056, %v3056
      %v3065 = vmul.f32 %v3057, %v3057
      %v3066 = vmul.f32 %v3058, %v3058
      %v3067 = vmul.f32 %v3059, %v3059
      %v3068 = vmul.f32 %v3060, %v3060
      %v3069 = vsel %vm754, %v3061, 0.0
      %3070 = vadd.xlane.f32.xlu0 %v3069
      %v3071 = vpop.xlane.xlu0 %3070
      %v3072 = vsel %vm754, %v3062, 0.0
      %3073 = vadd.xlane.f32.xlu0 %v3072
      %v3074 = vpop.xlane.xlu0 %3073
      %v3075 = vsel %vm754, %v3063, 0.0
      %3076 = vadd.xlane.f32.xlu0 %v3075
      %v3077 = vpop.xlane.xlu0 %3076
      %v3078 = vsel %vm754, %v3064, 0.0
      %3079 = vadd.xlane.f32.xlu0 %v3078
      %v3080 = vpop.xlane.xlu0 %3079
      %v3081 = vsel %vm754, %v3065, 0.0
      %3082 = vadd.xlane.f32.xlu0 %v3081
      %v3083 = vpop.xlane.xlu0 %3082
      %v3084 = vsel %vm754, %v3066, 0.0
      %3085 = vadd.xlane.f32.xlu0 %v3084
      %v3086 = vpop.xlane.xlu0 %3085
      %v3087 = vsel %vm754, %v3067, 0.0
      %3088 = vadd.xlane.f32.xlu0 %v3087
      %v3089 = vpop.xlane.xlu0 %3088
      %v3090 = vsel %vm754, %v3068, 0.0
      %3091 = vadd.xlane.f32.xlu0 %v3090
      %v3092 = vpop.xlane.xlu0 %3091
      %v3093 = vmul.f32 %v3071, %v3044
      %v3094 = vmul.f32 %v3074, %v3044
      %v3095 = vmul.f32 %v3077, %v3044
      %v3096 = vmul.f32 %v3080, %v3044
      %v3097 = vmul.f32 %v3083, %v3044
      %v3098 = vmul.f32 %v3086, %v3044
      %v3099 = vmul.f32 %v3089, %v3044
      %v3100 = vmul.f32 %v3092, %v3044
      %v3101 = vld [vmem:[%s405 + $0x1] sm:$0x1]
      %v3102 = vld [vmem:[%s405 + $0x2] sm:$0x1]
      %v3103 = vadd.f32 %v3093, 1e-05
      %v3104 = vadd.f32 %v3094, 1e-05
      %v3105 = vadd.f32 %v3095, 1e-05
      %v3106 = vadd.f32 %v3096, 1e-05
      %v3107 = vadd.f32 %v3097, 1e-05
      %v3108 = vadd.f32 %v3098, 1e-05
      %v3109 = vadd.f32 %v3099, 1e-05
      %v3110 = vadd.f32 %v3100, 1e-05
      %v3111 = vrsqrt.pop %v3103
      %v3112 = vrsqrt.pop %v3104
      %v3113 = vrsqrt.pop %v3105
      %v3114 = vrsqrt.pop %v3106
      %v3115 = vrsqrt.pop %v3107
      %v3116 = vrsqrt.pop %v3108
      %v3117 = vrsqrt.pop %v3109
      %v3118 = vrsqrt.pop %v3110
      %v3119 = vmul.f32 %v3053, %v3111
      %v3120 = vmul.f32 %v3054, %v3112
      %v3121 = vmul.f32 %v3055, %v3113
      %v3122 = vmul.f32 %v3056, %v3114
      %v3123 = vmul.f32 %v3057, %v3115
      %v3124 = vmul.f32 %v3058, %v3116
      %v3125 = vmul.f32 %v3059, %v3117
      %v3126 = vmul.f32 %v3060, %v3118
      %v3127 = vlaneseq
      %v3128 = vshrl.u32 %v3127, 7
      %v3129 = vsub.s32 0, %v3128
      %v3130 = vrot.slane %v3101, %v3129
      %v3131 = vmul.f32 %v3119, %v3130
      %v3132 = vmul.f32 %v3120, %v3130
      %v3133 = vmul.f32 %v3121, %v3130
      %v3134 = vmul.f32 %v3122, %v3130
      %v3135 = vmul.f32 %v3123, %v3130
      %v3136 = vmul.f32 %v3124, %v3130
      %v3137 = vmul.f32 %v3125, %v3130
      %v3138 = vmul.f32 %v3126, %v3130
      %v3139 = vlaneseq
      %v3140 = vshrl.u32 %v3139, 7
      %v3141 = vsub.s32 0, %v3140
      %v3142 = vrot.slane %v3102, %v3141
      %v3143 = vadd.f32 %v3131, %v3142
      %v3144 = vadd.f32 %v3132, %v3142
      %v3145 = vadd.f32 %v3133, %v3142
      %v3146 = vadd.f32 %v3134, %v3142
      %v3147 = vadd.f32 %v3135, %v3142
      %v3148 = vadd.f32 %v3136, %v3142
      %v3149 = vadd.f32 %v3137, %v3142
      %v3150 = vadd.f32 %v3138, %v3142
      %v3151 = vadd.f32 %v742, %v3143
      %v3152 = vadd.f32 %v743, %v3144
      %v3153 = vadd.f32 %v744, %v3145
      %v3154 = vadd.f32 %v745, %v3146
      %v3155 = vadd.f32 %v746, %v3147
      %v3156 = vadd.f32 %v747, %v3148
      %v3157 = vadd.f32 %v748, %v3149
      %v3158 = vadd.f32 %v749, %v3150
      %v3159 = vld [vmem:[%s390] sm:$0xff]
      %v3160 = vld [vmem:[%s390 + $0x8] sm:$0xff]
      %v3161 = vld [vmem:[%s390 + $0x10] sm:$0xff]
      %v3162 = vld [vmem:[%s390 + $0x18] sm:$0xff]
      %v3163 = vld [vmem:[%s405 + $0x3] sm:$0x1]
      %v3164 = vlaneseq
      %v3165 = vshrl.u32 %v3164, 7
      %v3166 = vsub.s32 0, %v3165
      %v3167 = vrot.slane %v3163, %v3166
      %v3169 = vsel %vm754, %v3151, 0
      %v3172 = vsel %vm754, %v3152, 0
      %v3175 = vsel %vm754, %v3153, 0
      %v3178 = vsel %vm754, %v3154, 0
      %v3181 = vsel %vm754, %v3155, 0
      %v3184 = vsel %vm754, %v3156, 0
      %v3187 = vsel %vm754, %v3157, 0
      %v3190 = vsel %vm754, %v3158, 0
      %3192 = vmatprep.subr.mxu0 0.0
      %3193 = vmatpush1.msra.mxu0 %v3159
      %3194 = vmatprep.subr.mxu0 0.0
      %3195 = vmatpush1.msra.mxu0 %v3160
      %3196 = vmatprep.subr.mxu0 0.0
      %3197 = vmatpush1.msra.mxu0 %v3161
      %3198 = vmatprep.subr.mxu0 0.0
      %3199 = vmatpush1.msra.mxu0 %v3162
      %3200 = vmatprep.subr.mxu0 0.0
      %3201 = vmatpush1.msra.mxu0 0.0
      %3202 = vmatprep.subr.mxu0 0.0
      %3203 = vmatpush1.msra.mxu0 0.0
      %3204 = vmatprep.subr.mxu0 0.0
      %3205 = vmatpush1.msra.mxu0 0.0
      %3206 = vmatprep.subr.mxu0 0.0
      %3207 = vmatpush1.msra.mxu0 0.0
      %3208 = vmatprep.subr.mxu0 0.0
      %3209 = vmatpush1.msra.mxu0 0.0
      %3210 = vmatprep.subr.mxu0 0.0
      %3211 = vmatpush1.msra.mxu0 0.0
      %3212 = vmatprep.subr.mxu0 0.0
      %3213 = vmatpush1.msra.mxu0 0.0
      %3214 = vmatprep.subr.mxu0 0.0
      %3215 = vmatpush1.msra.mxu0 0.0
      %3216 = vmatprep.subr.mxu0 0.0
      %3217 = vmatpush1.msra.mxu0 0.0
      %3218 = vmatprep.subr.mxu0 0.0
      %3219 = vmatpush1.msra.mxu0 0.0
      %3220 = vmatprep.subr.mxu0 0.0
      %3221 = vmatpush1.msra.mxu0 0.0
      %3222 = vmatprep.subr.mxu0 0.0
      %3223 = vmatpush1.msra.mxu0 0.0
      %3224 = vmatprep.subr.mxu0 0.0
      %3225 = vmatpush1.msra.mxu0 0.0
      %3226 = vmatprep.subr.mxu0 0.0
      %3227 = vmatpush1.msra.mxu0 0.0
      %3228 = vmatprep.subr.mxu0 0.0
      %3229 = vmatpush1.msra.mxu0 0.0
      %3230 = vmatprep.subr.mxu0 0.0
      %3231 = vmatpush1.msra.mxu0 0.0
      %3232 = vmatprep.subr.mxu0 0.0
      %3233 = vmatpush1.msra.mxu0 0.0
      %3234 = vmatprep.subr.mxu0 0.0
      %3235 = vmatpush1.msra.mxu0 0.0
      %3236 = vmatprep.subr.mxu0 0.0
      %3237 = vmatpush1.msra.mxu0 0.0
      %3238 = vmatprep.subr.mxu0 0.0
      %3239 = vmatpush1.msra.mxu0 0.0
      %3240 = vmatprep.subr.mxu0 0.0
      %3241 = vmatpush1.msra.mxu0 0.0
      %3242 = vmatprep.subr.mxu0 0.0
      %3243 = vmatpush1.msra.mxu0 0.0
      %3244 = vmatprep.subr.mxu0 0.0
      %3245 = vmatpush1.msra.mxu0 0.0
      %3246 = vmatprep.subr.mxu0 0.0
      %3247 = vmatpush1.msra.mxu0 0.0
      %3248 = vmatprep.subr.mxu0 0.0
      %3249 = vmatpush1.msra.mxu0 0.0
      %3250 = vmatprep.subr.mxu0 0.0
      %3251 = vmatpush1.msra.mxu0 0.0
      %3252 = vmatprep.subr.mxu0 0.0
      %3253 = vmatpush1.msra.mxu0 0.0
      %3254 = vmatprep.subr.mxu0 0.0
      %3255 = vmatpush1.msra.mxu0 0.0
      %3256 = vmatprep.mubr.f32.mxu0 0.0
      %3257 = vmatmul.mubr.f32.gmra.mrb[0].mxu0 %v3169
      %v3258 = vpop.f32.mrb[0].mxu0
      %v3259 = vadd.f32 %v3167, %v3258
      %v3260 = vpop.f32.mrb[0].mxu0
      %3261 = vmatprep.mubr.f32.mxu0 0.0
      %3262 = vmatmul.mubr.f32.gmra.mrb[0].mxu0 %v3172
      %v3263 = vpop.f32.mrb[0].mxu0
      %v3264 = vadd.f32 %v3167, %v3263
      %v3265 = vpop.f32.mrb[0].mxu0
      %3266 = vmatprep.mubr.f32.mxu0 0.0
      %3267 = vmatmul.mubr.f32.gmra.mrb[0].mxu0 %v3175
      %v3268 = vpop.f32.mrb[0].mxu0
      %v3269 = vadd.f32 %v3167, %v3268
      %v3270 = vpop.f32.mrb[0].mxu0
      %3271 = vmatprep.mubr.f32.mxu0 0.0
      %3272 = vmatmul.mubr.f32.gmra.mrb[0].mxu0 %v3178
      %v3273 = vpop.f32.mrb[0].mxu0
      %v3274 = vadd.f32 %v3167, %v3273
      %v3275 = vpop.f32.mrb[0].mxu0
      %3276 = vmatprep.mubr.f32.mxu0 0.0
      %3277 = vmatmul.mubr.f32.gmra.mrb[0].mxu0 %v3181
      %v3278 = vpop.f32.mrb[0].mxu0
      %v3279 = vadd.f32 %v3167, %v3278
      %v3280 = vpop.f32.mrb[0].mxu0
      %3281 = vmatprep.mubr.f32.mxu0 0.0
      %3282 = vmatmul.mubr.f32.gmra.mrb[0].mxu0 %v3184
      %v3283 = vpop.f32.mrb[0].mxu0
      %v3284 = vadd.f32 %v3167, %v3283
      %v3285 = vpop.f32.mrb[0].mxu0
      %3286 = vmatprep.mubr.f32.mxu0 0.0
      %3287 = vmatmul.mubr.f32.gmra.mrb[0].mxu0 %v3187
      %v3288 = vpop.f32.mrb[0].mxu0
      %v3289 = vadd.f32 %v3167, %v3288
      %v3290 = vpop.f32.mrb[0].mxu0
      %3291 = vmatprep.mubr.f32.mxu0 0.0
      %3292 = vmatmul.mubr.f32.gmra.mrb[0].mxu0 %v3190
      %v3293 = vpop.f32.mrb[0].mxu0
      %v3294 = vadd.f32 %v3167, %v3293
      %v3295 = vpop.f32.mrb[0].mxu0
      %3296 = vdwg.mxu0
      %3297 = vst.msk [vmem:[#allocation4 + $0x18] sm:$0xff] %vm754, %v3259
      %3298 = vst.msk [vmem:[#allocation4 + $0x20] sm:$0xff] %vm754, %v3264
      %3299 = vst.msk [vmem:[#allocation4 + $0x28] sm:$0xff] %vm754, %v3269
      %3300 = vst.msk [vmem:[#allocation4 + $0x30] sm:$0xff] %vm754, %v3274
      %3301 = vst.msk [vmem:[#allocation4 + $0x38] sm:$0xff] %vm754, %v3279
      %3302 = vst.msk [vmem:[#allocation4 + $0x40] sm:$0xff] %vm754, %v3284
      %3303 = vst.msk [vmem:[#allocation4 + $0x48] sm:$0xff] %vm754, %v3289
      %3304 = vst.msk [vmem:[#allocation4 + $0x50] sm:$0xff] %vm754, %v3294
      %v3305 = vld [vmem:[%s400] sm:$0x1]
      %v3306 = vld [vmem:[#allocation4 + $0x3] sm:$0xff]
      %v3307 = vld [vmem:[#allocation4 + $0xb] sm:$0xff]
      %v3308 = vld [vmem:[#allocation4 + $0x13] sm:$0xff]
      %v3309 = vld [vmem:[#allocation4 + $0x1b] sm:$0xff]
      %v3310 = vld [vmem:[#allocation4 + $0x23] sm:$0xff]
      %v3311 = vld [vmem:[#allocation4 + $0x2b] sm:$0xff]
      %v3312 = vld [vmem:[#allocation4 + $0x33] sm:$0xff]
      %v3313 = vld [vmem:[#allocation4 + $0x3b] sm:$0xff]
      %v3314 = vlaneseq
      %v3315 = vshrl.u32 %v3314, 7
      %v3316 = vsub.s32 0, %v3315
      %v3317 = vrot.slane %v3305, %v3316
      %v3318 = vmul.f32 %v3306, %v3317
      %v3319 = vmul.f32 %v3307, %v3317
      %v3320 = vmul.f32 %v3308, %v3317
      %v3321 = vmul.f32 %v3309, %v3317
      %v3322 = vmul.f32 %v3310, %v3317
      %v3323 = vmul.f32 %v3311, %v3317
      %v3324 = vmul.f32 %v3312, %v3317
      %v3325 = vmul.f32 %v3313, %v3317
      %v3326 = vld [vmem:[%s400 + $0x9] sm:$0x1]
      %v3327 = vld [vmem:[#allocation4 + $0x43] sm:$0xff]
      %v3328 = vld [vmem:[#allocation4 + $0x4b] sm:$0xff]
      %v3329 = vlaneseq
      %v3330 = vshrl.u32 %v3329, 7
      %v3331 = vsub.s32 0, %v3330
      %v3332 = vrot.slane %v3326, %v3331
      %v3333 = vmul.f32 %v3308, %v3332
      %v3334 = vmul.f32 %v3309, %v3332
      %v3335 = vmul.f32 %v3310, %v3332
      %v3336 = vmul.f32 %v3311, %v3332
      %v3337 = vmul.f32 %v3312, %v3332
      %v3338 = vmul.f32 %v3313, %v3332
      %v3339 = vmul.f32 %v3327, %v3332
      %v3340 = vmul.f32 %v3328, %v3332
      %v3341 = vadd.f32 %v3318, %v3333
      %v3342 = vadd.f32 %v3319, %v3334
      %v3343 = vadd.f32 %v3320, %v3335
      %v3344 = vadd.f32 %v3321, %v3336
      %v3345 = vadd.f32 %v3322, %v3337
      %v3346 = vadd.f32 %v3323, %v3338
      %v3347 = vadd.f32 %v3324, %v3339
      %v3348 = vadd.f32 %v3325, %v3340
      %v3349 = vld [vmem:[%s400 + $0x12] sm:$0x1]
      %v3350 = vld [vmem:[#allocation4 + $0x53] sm:$0xff]
      %v3351 = vld [vmem:[#allocation4 + $0x5b] sm:$0xff]
      %v3352 = vlaneseq
      %v3353 = vshrl.u32 %v3352, 7
      %v3354 = vsub.s32 0, %v3353
      %v3355 = vrot.slane %v3349, %v3354
      %v3356 = vmul.f32 %v3310, %v3355
      %v3357 = vmul.f32 %v3311, %v3355
      %v3358 = vmul.f32 %v3312, %v3355
      %v3359 = vmul.f32 %v3313, %v3355
      %v3360 = vmul.f32 %v3327, %v3355
      %v3361 = vmul.f32 %v3328, %v3355
      %v3362 = vmul.f32 %v3350, %v3355
      %v3363 = vmul.f32 %v3351, %v3355
      %v3364 = vadd.f32 %v3341, %v3356
      %v3365 = vadd.f32 %v3342, %v3357
      %v3366 = vadd.f32 %v3343, %v3358
      %v3367 = vadd.f32 %v3344, %v3359
      %v3368 = vadd.f32 %v3345, %v3360
      %v3369 = vadd.f32 %v3346, %v3361
      %v3370 = vadd.f32 %v3347, %v3362
      %v3371 = vadd.f32 %v3348, %v3363
      %v3372 = vld [vmem:[#allocation5] sm:$0xff]
      %v3373 = vld [vmem:[#allocation5 + $0x8] sm:$0xff]
      %v3374 = vld [vmem:[#allocation5 + $0x10] sm:$0xff]
      %v3375 = vld [vmem:[#allocation5 + $0x18] sm:$0xff]
      %v3376 = vld [vmem:[#allocation5 + $0x20] sm:$0xff]
      %v3377 = vld [vmem:[#allocation5 + $0x28] sm:$0xff]
      %v3378 = vld [vmem:[#allocation5 + $0x30] sm:$0xff]
      %v3379 = vld [vmem:[#allocation5 + $0x38] sm:$0xff]
      %v3380 = vmul.f32 %v3364, %v3372
      %v3381 = vmul.f32 %v3365, %v3373
      %v3382 = vmul.f32 %v3366, %v3374
      %v3383 = vmul.f32 %v3367, %v3375
      %v3384 = vmul.f32 %v3368, %v3376
      %v3385 = vmul.f32 %v3369, %v3377
      %v3386 = vmul.f32 %v3370, %v3378
      %v3387 = vmul.f32 %v3371, %v3379
      %v3388 = vadd.f32 %v3380, 0.0
      %v3389 = vadd.f32 %v3381, 0.0
      %v3390 = vadd.f32 %v3382, 0.0
      %v3391 = vadd.f32 %v3383, 0.0
      %v3392 = vadd.f32 %v3384, 0.0
      %v3393 = vadd.f32 %v3385, 0.0
      %v3394 = vadd.f32 %v3386, 0.0
      %v3395 = vadd.f32 %v3387, 0.0
      %v3396 = vld [vmem:[%s400 + $0x1] sm:$0x1]
      %v3397 = vld [vmem:[#allocation4 + $0x4] sm:$0xff]
      %v3398 = vld [vmem:[#allocation4 + $0xc] sm:$0xff]
      %v3399 = vld [vmem:[#allocation4 + $0x14] sm:$0xff]
      %v3400 = vld [vmem:[#allocation4 + $0x1c] sm:$0xff]
      %v3401 = vld [vmem:[#allocation4 + $0x24] sm:$0xff]
      %v3402 = vld [vmem:[#allocation4 + $0x2c] sm:$0xff]
      %v3403 = vld [vmem:[#allocation4 + $0x34] sm:$0xff]
      %v3404 = vld [vmem:[#allocation4 + $0x3c] sm:$0xff]
      %v3405 = vlaneseq
      %v3406 = vshrl.u32 %v3405, 7
      %v3407 = vsub.s32 0, %v3406
      %v3408 = vrot.slane %v3396, %v3407
      %v3409 = vmul.f32 %v3397, %v3408
      %v3410 = vmul.f32 %v3398, %v3408
      %v3411 = vmul.f32 %v3399, %v3408
      %v3412 = vmul.f32 %v3400, %v3408
      %v3413 = vmul.f32 %v3401, %v3408
      %v3414 = vmul.f32 %v3402, %v3408
      %v3415 = vmul.f32 %v3403, %v3408
      %v3416 = vmul.f32 %v3404, %v3408
      %v3417 = vld [vmem:[%s400 + $0xa] sm:$0x1]
      %v3418 = vld [vmem:[#allocation4 + $0x44] sm:$0xff]
      %v3419 = vld [vmem:[#allocation4 + $0x4c] sm:$0xff]
      %v3420 = vlaneseq
      %v3421 = vshrl.u32 %v3420, 7
      %v3422 = vsub.s32 0, %v3421
      %v3423 = vrot.slane %v3417, %v3422
      %v3424 = vmul.f32 %v3399, %v3423
      %v3425 = vmul.f32 %v3400, %v3423
      %v3426 = vmul.f32 %v3401, %v3423
      %v3427 = vmul.f32 %v3402, %v3423
      %v3428 = vmul.f32 %v3403, %v3423
      %v3429 = vmul.f32 %v3404, %v3423
      %v3430 = vmul.f32 %v3418, %v3423
      %v3431 = vmul.f32 %v3419, %v3423
      %v3432 = vadd.f32 %v3409, %v3424
      %v3433 = vadd.f32 %v3410, %v3425
      %v3434 = vadd.f32 %v3411, %v3426
      %v3435 = vadd.f32 %v3412, %v3427
      %v3436 = vadd.f32 %v3413, %v3428
      %v3437 = vadd.f32 %v3414, %v3429
      %v3438 = vadd.f32 %v3415, %v3430
      %v3439 = vadd.f32 %v3416, %v3431
      %v3440 = vld [vmem:[%s400 + $0x13] sm:$0x1]
      %v3441 = vld [vmem:[#allocation4 + $0x54] sm:$0xff]
      %v3442 = vld [vmem:[#allocation4 + $0x5c] sm:$0xff]
      %v3443 = vlaneseq
      %v3444 = vshrl.u32 %v3443, 7
      %v3445 = vsub.s32 0, %v3444
      %v3446 = vrot.slane %v3440, %v3445
      %v3447 = vmul.f32 %v3401, %v3446
      %v3448 = vmul.f32 %v3402, %v3446
      %v3449 = vmul.f32 %v3403, %v3446
      %v3450 = vmul.f32 %v3404, %v3446
      %v3451 = vmul.f32 %v3418, %v3446
      %v3452 = vmul.f32 %v3419, %v3446
      %v3453 = vmul.f32 %v3441, %v3446
      %v3454 = vmul.f32 %v3442, %v3446
      %v3455 = vadd.f32 %v3432, %v3447
      %v3456 = vadd.f32 %v3433, %v3448
      %v3457 = vadd.f32 %v3434, %v3449
      %v3458 = vadd.f32 %v3435, %v3450
      %v3459 = vadd.f32 %v3436, %v3451
      %v3460 = vadd.f32 %v3437, %v3452
      %v3461 = vadd.f32 %v3438, %v3453
      %v3462 = vadd.f32 %v3439, %v3454
      %s3463 = scalar_lea.vmem [#allocation5], 64
      %v3464 = vld [vmem:[%s3463] sm:$0xff]
      %v3465 = vld [vmem:[%s3463 + $0x8] sm:$0xff]
      %v3466 = vld [vmem:[%s3463 + $0x10] sm:$0xff]
      %v3467 = vld [vmem:[%s3463 + $0x18] sm:$0xff]
      %v3468 = vld [vmem:[%s3463 + $0x20] sm:$0xff]
      %v3469 = vld [vmem:[%s3463 + $0x28] sm:$0xff]
      %v3470 = vld [vmem:[%s3463 + $0x30] sm:$0xff]
      %v3471 = vld [vmem:[%s3463 + $0x38] sm:$0xff]
      %v3472 = vmul.f32 %v3455, %v3464
      %v3473 = vmul.f32 %v3456, %v3465
      %v3474 = vmul.f32 %v3457, %v3466
      %v3475 = vmul.f32 %v3458, %v3467
      %v3476 = vmul.f32 %v3459, %v3468
      %v3477 = vmul.f32 %v3460, %v3469
      %v3478 = vmul.f32 %v3461, %v3470
      %v3479 = vmul.f32 %v3462, %v3471
      %v3480 = vadd.f32 %v3388, %v3472
      %v3481 = vadd.f32 %v3389, %v3473
      %v3482 = vadd.f32 %v3390, %v3474
      %v3483 = vadd.f32 %v3391, %v3475
      %v3484 = vadd.f32 %v3392, %v3476
      %v3485 = vadd.f32 %v3393, %v3477
      %v3486 = vadd.f32 %v3394, %v3478
      %v3487 = vadd.f32 %v3395, %v3479
      %v3488 = vld [vmem:[%s400 + $0x2] sm:$0x1]
      %v3489 = vld [vmem:[#allocation4 + $0x5] sm:$0xff]
      %v3490 = vld [vmem:[#allocation4 + $0xd] sm:$0xff]
      %v3491 = vld [vmem:[#allocation4 + $0x15] sm:$0xff]
      %v3492 = vld [vmem:[#allocation4 + $0x1d] sm:$0xff]
      %v3493 = vld [vmem:[#allocation4 + $0x25] sm:$0xff]
      %v3494 = vld [vmem:[#allocation4 + $0x2d] sm:$0xff]
      %v3495 = vld [vmem:[#allocation4 + $0x35] sm:$0xff]
      %v3496 = vld [vmem:[#allocation4 + $0x3d] sm:$0xff]
      %v3497 = vlaneseq
      %v3498 = vshrl.u32 %v3497, 7
      %v3499 = vsub.s32 0, %v3498
      %v3500 = vrot.slane %v3488, %v3499
      %v3501 = vmul.f32 %v3489, %v3500
      %v3502 = vmul.f32 %v3490, %v3500
      %v3503 = vmul.f32 %v3491, %v3500
      %v3504 = vmul.f32 %v3492, %v3500
      %v3505 = vmul.f32 %v3493, %v3500
      %v3506 = vmul.f32 %v3494, %v3500
      %v3507 = vmul.f32 %v3495, %v3500
      %v3508 = vmul.f32 %v3496, %v3500
      %v3509 = vld [vmem:[%s400 + $0xb] sm:$0x1]
      %v3510 = vld [vmem:[#allocation4 + $0x45] sm:$0xff]
      %v3511 = vld [vmem:[#allocation4 + $0x4d] sm:$0xff]
      %v3512 = vlaneseq
      %v3513 = vshrl.u32 %v3512, 7
      %v3514 = vsub.s32 0, %v3513
      %v3515 = vrot.slane %v3509, %v3514
      %v3516 = vmul.f32 %v3491, %v3515
      %v3517 = vmul.f32 %v3492, %v3515
      %v3518 = vmul.f32 %v3493, %v3515
      %v3519 = vmul.f32 %v3494, %v3515
      %v3520 = vmul.f32 %v3495, %v3515
      %v3521 = vmul.f32 %v3496, %v3515
      %v3522 = vmul.f32 %v3510, %v3515
      %v3523 = vmul.f32 %v3511, %v3515
      %v3524 = vadd.f32 %v3501, %v3516
      %v3525 = vadd.f32 %v3502, %v3517
      %v3526 = vadd.f32 %v3503, %v3518
      %v3527 = vadd.f32 %v3504, %v3519
      %v3528 = vadd.f32 %v3505, %v3520
      %v3529 = vadd.f32 %v3506, %v3521
      %v3530 = vadd.f32 %v3507, %v3522
      %v3531 = vadd.f32 %v3508, %v3523
      %v3532 = vld [vmem:[%s400 + $0x14] sm:$0x1]
      %v3533 = vld [vmem:[#allocation4 + $0x55] sm:$0xff]
      %v3534 = vld [vmem:[#allocation4 + $0x5d] sm:$0xff]
      %v3535 = vlaneseq
      %v3536 = vshrl.u32 %v3535, 7
      %v3537 = vsub.s32 0, %v3536
      %v3538 = vrot.slane %v3532, %v3537
      %v3539 = vmul.f32 %v3493, %v3538
      %v3540 = vmul.f32 %v3494, %v3538
      %v3541 = vmul.f32 %v3495, %v3538
      %v3542 = vmul.f32 %v3496, %v3538
      %v3543 = vmul.f32 %v3510, %v3538
      %v3544 = vmul.f32 %v3511, %v3538
      %v3545 = vmul.f32 %v3533, %v3538
      %v3546 = vmul.f32 %v3534, %v3538
      %v3547 = vadd.f32 %v3524, %v3539
      %v3548 = vadd.f32 %v3525, %v3540
      %v3549 = vadd.f32 %v3526, %v3541
      %v3550 = vadd.f32 %v3527, %v3542
      %v3551 = vadd.f32 %v3528, %v3543
      %v3552 = vadd.f32 %v3529, %v3544
      %v3553 = vadd.f32 %v3530, %v3545
      %v3554 = vadd.f32 %v3531, %v3546
      %s3555 = scalar_lea.vmem [#allocation5], 128
      %v3556 = vld [vmem:[%s3555] sm:$0xff]
      %v3557 = vld [vmem:[%s3555 + $0x8] sm:$0xff]
      %v3558 = vld [vmem:[%s3555 + $0x10] sm:$0xff]
      %v3559 = vld [vmem:[%s3555 + $0x18] sm:$0xff]
      %v3560 = vld [vmem:[%s3555 + $0x20] sm:$0xff]
      %v3561 = vld [vmem:[%s3555 + $0x28] sm:$0xff]
      %v3562 = vld [vmem:[%s3555 + $0x30] sm:$0xff]
      %v3563 = vld [vmem:[%s3555 + $0x38] sm:$0xff]
      %v3564 = vmul.f32 %v3547, %v3556
      %v3565 = vmul.f32 %v3548, %v3557
      %v3566 = vmul.f32 %v3549, %v3558
      %v3567 = vmul.f32 %v3550, %v3559
      %v3568 = vmul.f32 %v3551, %v3560
      %v3569 = vmul.f32 %v3552, %v3561
      %v3570 = vmul.f32 %v3553, %v3562
      %v3571 = vmul.f32 %v3554, %v3563
      %v3572 = vadd.f32 %v3480, %v3564
      %v3573 = vadd.f32 %v3481, %v3565
      %v3574 = vadd.f32 %v3482, %v3566
      %v3575 = vadd.f32 %v3483, %v3567
      %v3576 = vadd.f32 %v3484, %v3568
      %v3577 = vadd.f32 %v3485, %v3569
      %v3578 = vadd.f32 %v3486, %v3570
      %v3579 = vadd.f32 %v3487, %v3571
      %v3580 = vld [vmem:[%s400 + $0x3] sm:$0x1]
      %v3581 = vld [vmem:[#allocation4 + $0x7] sm:$0xff]
      %v3582 = vld [vmem:[#allocation4 + $0xf] sm:$0xff]
      %v3583 = vld [vmem:[#allocation4 + $0x17] sm:$0xff]
      %v3584 = vld [vmem:[#allocation4 + $0x1f] sm:$0xff]
      %v3585 = vld [vmem:[#allocation4 + $0x27] sm:$0xff]
      %v3586 = vld [vmem:[#allocation4 + $0x2f] sm:$0xff]
      %v3587 = vld [vmem:[#allocation4 + $0x37] sm:$0xff]
      %v3588 = vld [vmem:[#allocation4 + $0x3f] sm:$0xff]
      %v3589 = vlaneseq
      %v3590 = vshrl.u32 %v3589, 7
      %v3591 = vsub.s32 0, %v3590
      %v3592 = vrot.slane %v3580, %v3591
      %v3593 = vmul.f32 %v3581, %v3592
      %v3594 = vmul.f32 %v3582, %v3592
      %v3595 = vmul.f32 %v3583, %v3592
      %v3596 = vmul.f32 %v3584, %v3592
      %v3597 = vmul.f32 %v3585, %v3592
      %v3598 = vmul.f32 %v3586, %v3592
      %v3599 = vmul.f32 %v3587, %v3592
      %v3600 = vmul.f32 %v3588, %v3592
      %v3601 = vld [vmem:[%s400 + $0xc] sm:$0x1]
      %v3602 = vld [vmem:[#allocation4 + $0x47] sm:$0xff]
      %v3603 = vld [vmem:[#allocation4 + $0x4f] sm:$0xff]
      %v3604 = vlaneseq
      %v3605 = vshrl.u32 %v3604, 7
      %v3606 = vsub.s32 0, %v3605
      %v3607 = vrot.slane %v3601, %v3606
      %v3608 = vmul.f32 %v3583, %v3607
      %v3609 = vmul.f32 %v3584, %v3607
      %v3610 = vmul.f32 %v3585, %v3607
      %v3611 = vmul.f32 %v3586, %v3607
      %v3612 = vmul.f32 %v3587, %v3607
      %v3613 = vmul.f32 %v3588, %v3607
      %v3614 = vmul.f32 %v3602, %v3607
      %v3615 = vmul.f32 %v3603, %v3607
      %v3616 = vadd.f32 %v3593, %v3608
      %v3617 = vadd.f32 %v3594, %v3609
      %v3618 = vadd.f32 %v3595, %v3610
      %v3619 = vadd.f32 %v3596, %v3611
      %v3620 = vadd.f32 %v3597, %v3612
      %v3621 = vadd.f32 %v3598, %v3613
      %v3622 = vadd.f32 %v3599, %v3614
      %v3623 = vadd.f32 %v3600, %v3615
      %v3624 = vld [vmem:[%s400 + $0x15] sm:$0x1]
      %v3625 = vld [vmem:[#allocation4 + $0x57] sm:$0xff]
      %v3626 = vld [vmem:[#allocation4 + $0x5f] sm:$0xff]
      %v3627 = vlaneseq
      %v3628 = vshrl.u32 %v3627, 7
      %v3629 = vsub.s32 0, %v3628
      %v3630 = vrot.slane %v3624, %v3629
      %v3631 = vmul.f32 %v3585, %v3630
      %v3632 = vmul.f32 %v3586, %v3630
      %v3633 = vmul.f32 %v3587, %v3630
      %v3634 = vmul.f32 %v3588, %v3630
      %v3635 = vmul.f32 %v3602, %v3630
      %v3636 = vmul.f32 %v3603, %v3630
      %v3637 = vmul.f32 %v3625, %v3630
      %v3638 = vmul.f32 %v3626, %v3630
      %v3639 = vadd.f32 %v3616, %v3631
      %v3640 = vadd.f32 %v3617, %v3632
      %v3641 = vadd.f32 %v3618, %v3633
      %v3642 = vadd.f32 %v3619, %v3634
      %v3643 = vadd.f32 %v3620, %v3635
      %v3644 = vadd.f32 %v3621, %v3636
      %v3645 = vadd.f32 %v3622, %v3637
      %v3646 = vadd.f32 %v3623, %v3638
      %s3647 = scalar_lea.vmem [#allocation5], 192
      %v3648 = vld [vmem:[%s3647] sm:$0xff]
      %v3649 = vld [vmem:[%s3647 + $0x8] sm:$0xff]
      %v3650 = vld [vmem:[%s3647 + $0x10] sm:$0xff]
      %v3651 = vld [vmem:[%s3647 + $0x18] sm:$0xff]
      %v3652 = vld [vmem:[%s3647 + $0x20] sm:$0xff]
      %v3653 = vld [vmem:[%s3647 + $0x28] sm:$0xff]
      %v3654 = vld [vmem:[%s3647 + $0x30] sm:$0xff]
      %v3655 = vld [vmem:[%s3647 + $0x38] sm:$0xff]
      %v3656 = vmul.f32 %v3639, %v3648
      %v3657 = vmul.f32 %v3640, %v3649
      %v3658 = vmul.f32 %v3641, %v3650
      %v3659 = vmul.f32 %v3642, %v3651
      %v3660 = vmul.f32 %v3643, %v3652
      %v3661 = vmul.f32 %v3644, %v3653
      %v3662 = vmul.f32 %v3645, %v3654
      %v3663 = vmul.f32 %v3646, %v3655
      %v3664 = vadd.f32 %v3572, %v3656
      %v3665 = vadd.f32 %v3573, %v3657
      %v3666 = vadd.f32 %v3574, %v3658
      %v3667 = vadd.f32 %v3575, %v3659
      %v3668 = vadd.f32 %v3576, %v3660
      %v3669 = vadd.f32 %v3577, %v3661
      %v3670 = vadd.f32 %v3578, %v3662
      %v3671 = vadd.f32 %v3579, %v3663
      %v3672 = vld [vmem:[%s400 + $0x4] sm:$0x1]
      %v3673 = vld [vmem:[#allocation4 + $0x8] sm:$0xff]
      %v3674 = vld [vmem:[#allocation4 + $0x10] sm:$0xff]
      %v3675 = vld [vmem:[#allocation4 + $0x18] sm:$0xff]
      %v3676 = vld [vmem:[#allocation4 + $0x20] sm:$0xff]
      %v3677 = vld [vmem:[#allocation4 + $0x28] sm:$0xff]
      %v3678 = vld [vmem:[#allocation4 + $0x30] sm:$0xff]
      %v3679 = vld [vmem:[#allocation4 + $0x38] sm:$0xff]
      %v3680 = vld [vmem:[#allocation4 + $0x40] sm:$0xff]
      %v3681 = vlaneseq
      %v3682 = vshrl.u32 %v3681, 7
      %v3683 = vsub.s32 0, %v3682
      %v3684 = vrot.slane %v3672, %v3683
      %v3685 = vmul.f32 %v3673, %v3684
      %v3686 = vmul.f32 %v3674, %v3684
      %v3687 = vmul.f32 %v3675, %v3684
      %v3688 = vmul.f32 %v3676, %v3684
      %v3689 = vmul.f32 %v3677, %v3684
      %v3690 = vmul.f32 %v3678, %v3684
      %v3691 = vmul.f32 %v3679, %v3684
      %v3692 = vmul.f32 %v3680, %v3684
      %v3693 = vld [vmem:[%s400 + $0xd] sm:$0x1]
      %v3694 = vld [vmem:[#allocation4 + $0x48] sm:$0xff]
      %v3695 = vld [vmem:[#allocation4 + $0x50] sm:$0xff]
      %v3696 = vlaneseq
      %v3697 = vshrl.u32 %v3696, 7
      %v3698 = vsub.s32 0, %v3697
      %v3699 = vrot.slane %v3693, %v3698
      %v3700 = vmul.f32 %v3675, %v3699
      %v3701 = vmul.f32 %v3676, %v3699
      %v3702 = vmul.f32 %v3677, %v3699
      %v3703 = vmul.f32 %v3678, %v3699
      %v3704 = vmul.f32 %v3679, %v3699
      %v3705 = vmul.f32 %v3680, %v3699
      %v3706 = vmul.f32 %v3694, %v3699
      %v3707 = vmul.f32 %v3695, %v3699
      %v3708 = vadd.f32 %v3685, %v3700
      %v3709 = vadd.f32 %v3686, %v3701
      %v3710 = vadd.f32 %v3687, %v3702
      %v3711 = vadd.f32 %v3688, %v3703
      %v3712 = vadd.f32 %v3689, %v3704
      %v3713 = vadd.f32 %v3690, %v3705
      %v3714 = vadd.f32 %v3691, %v3706
      %v3715 = vadd.f32 %v3692, %v3707
      %v3716 = vld [vmem:[%s400 + $0x16] sm:$0x1]
      %v3717 = vld [vmem:[#allocation4 + $0x58] sm:$0xff]
      %v3718 = vld [vmem:[#allocation4 + $0x60] sm:$0xff]
      %v3719 = vlaneseq
      %v3720 = vshrl.u32 %v3719, 7
      %v3721 = vsub.s32 0, %v3720
      %v3722 = vrot.slane %v3716, %v3721
      %v3723 = vmul.f32 %v3677, %v3722
      %v3724 = vmul.f32 %v3678, %v3722
      %v3725 = vmul.f32 %v3679, %v3722
      %v3726 = vmul.f32 %v3680, %v3722
      %v3727 = vmul.f32 %v3694, %v3722
      %v3728 = vmul.f32 %v3695, %v3722
      %v3729 = vmul.f32 %v3717, %v3722
      %v3730 = vmul.f32 %v3718, %v3722
      %v3731 = vadd.f32 %v3708, %v3723
      %v3732 = vadd.f32 %v3709, %v3724
      %v3733 = vadd.f32 %v3710, %v3725
      %v3734 = vadd.f32 %v3711, %v3726
      %v3735 = vadd.f32 %v3712, %v3727
      %v3736 = vadd.f32 %v3713, %v3728
      %v3737 = vadd.f32 %v3714, %v3729
      %v3738 = vadd.f32 %v3715, %v3730
      %v3739 = vadd.f32 %v3664, %v3731
      %v3740 = vadd.f32 %v3665, %v3732
      %v3741 = vadd.f32 %v3666, %v3733
      %v3742 = vadd.f32 %v3667, %v3734
      %v3743 = vadd.f32 %v3668, %v3735
      %v3744 = vadd.f32 %v3669, %v3736
      %v3745 = vadd.f32 %v3670, %v3737
      %v3746 = vadd.f32 %v3671, %v3738
      %v3747 = vld [vmem:[%s400 + $0x5] sm:$0x1]
      %v3748 = vld [vmem:[#allocation4 + $0x9] sm:$0xff]
      %v3749 = vld [vmem:[#allocation4 + $0x11] sm:$0xff]
      %v3750 = vld [vmem:[#allocation4 + $0x19] sm:$0xff]
      %v3751 = vld [vmem:[#allocation4 + $0x21] sm:$0xff]
      %v3752 = vld [vmem:[#allocation4 + $0x29] sm:$0xff]
      %v3753 = vld [vmem:[#allocation4 + $0x31] sm:$0xff]
      %v3754 = vld [vmem:[#allocation4 + $0x39] sm:$0xff]
      %v3755 = vld [vmem:[#allocation4 + $0x41] sm:$0xff]
      %v3756 = vlaneseq
      %v3757 = vshrl.u32 %v3756, 7
      %v3758 = vsub.s32 0, %v3757
      %v3759 = vrot.slane %v3747, %v3758
      %v3760 = vmul.f32 %v3748, %v3759
      %v3761 = vmul.f32 %v3749, %v3759
      %v3762 = vmul.f32 %v3750, %v3759
      %v3763 = vmul.f32 %v3751, %v3759
      %v3764 = vmul.f32 %v3752, %v3759
      %v3765 = vmul.f32 %v3753, %v3759
      %v3766 = vmul.f32 %v3754, %v3759
      %v3767 = vmul.f32 %v3755, %v3759
      %v3768 = vld [vmem:[%s400 + $0xe] sm:$0x1]
      %v3769 = vld [vmem:[#allocation4 + $0x49] sm:$0xff]
      %v3770 = vld [vmem:[#allocation4 + $0x51] sm:$0xff]
      %v3771 = vlaneseq
      %v3772 = vshrl.u32 %v3771, 7
      %v3773 = vsub.s32 0, %v3772
      %v3774 = vrot.slane %v3768, %v3773
      %v3775 = vmul.f32 %v3750, %v3774
      %v3776 = vmul.f32 %v3751, %v3774
      %v3777 = vmul.f32 %v3752, %v3774
      %v3778 = vmul.f32 %v3753, %v3774
      %v3779 = vmul.f32 %v3754, %v3774
      %v3780 = vmul.f32 %v3755, %v3774
      %v3781 = vmul.f32 %v3769, %v3774
      %v3782 = vmul.f32 %v3770, %v3774
      %v3783 = vadd.f32 %v3760, %v3775
      %v3784 = vadd.f32 %v3761, %v3776
      %v3785 = vadd.f32 %v3762, %v3777
      %v3786 = vadd.f32 %v3763, %v3778
      %v3787 = vadd.f32 %v3764, %v3779
      %v3788 = vadd.f32 %v3765, %v3780
      %v3789 = vadd.f32 %v3766, %v3781
      %v3790 = vadd.f32 %v3767, %v3782
      %v3791 = vld [vmem:[%s400 + $0x17] sm:$0x1]
      %v3792 = vld [vmem:[#allocation4 + $0x59] sm:$0xff]
      %v3793 = vld [vmem:[#allocation4 + $0x61] sm:$0xff]
      %v3794 = vlaneseq
      %v3795 = vshrl.u32 %v3794, 7
      %v3796 = vsub.s32 0, %v3795
      %v3797 = vrot.slane %v3791, %v3796
      %v3798 = vmul.f32 %v3752, %v3797
      %v3799 = vmul.f32 %v3753, %v3797
      %v3800 = vmul.f32 %v3754, %v3797
      %v3801 = vmul.f32 %v3755, %v3797
      %v3802 = vmul.f32 %v3769, %v3797
      %v3803 = vmul.f32 %v3770, %v3797
      %v3804 = vmul.f32 %v3792, %v3797
      %v3805 = vmul.f32 %v3793, %v3797
      %v3806 = vadd.f32 %v3783, %v3798
      %v3807 = vadd.f32 %v3784, %v3799
      %v3808 = vadd.f32 %v3785, %v3800
      %v3809 = vadd.f32 %v3786, %v3801
      %v3810 = vadd.f32 %v3787, %v3802
      %v3811 = vadd.f32 %v3788, %v3803
      %v3812 = vadd.f32 %v3789, %v3804
      %v3813 = vadd.f32 %v3790, %v3805
      %s3814 = scalar_lea.vmem [#allocation5], 320
      %v3815 = vld [vmem:[%s3814] sm:$0xff]
      %v3816 = vld [vmem:[%s3814 + $0x8] sm:$0xff]
      %v3817 = vld [vmem:[%s3814 + $0x10] sm:$0xff]
      %v3818 = vld [vmem:[%s3814 + $0x18] sm:$0xff]
      %v3819 = vld [vmem:[%s3814 + $0x20] sm:$0xff]
      %v3820 = vld [vmem:[%s3814 + $0x28] sm:$0xff]
      %v3821 = vld [vmem:[%s3814 + $0x30] sm:$0xff]
      %v3822 = vld [vmem:[%s3814 + $0x38] sm:$0xff]
      %v3823 = vmul.f32 %v3806, %v3815
      %v3824 = vmul.f32 %v3807, %v3816
      %v3825 = vmul.f32 %v3808, %v3817
      %v3826 = vmul.f32 %v3809, %v3818
      %v3827 = vmul.f32 %v3810, %v3819
      %v3828 = vmul.f32 %v3811, %v3820
      %v3829 = vmul.f32 %v3812, %v3821
      %v3830 = vmul.f32 %v3813, %v3822
      %v3831 = vadd.f32 %v3739, %v3823
      %v3832 = vadd.f32 %v3740, %v3824
      %v3833 = vadd.f32 %v3741, %v3825
      %v3834 = vadd.f32 %v3742, %v3826
      %v3835 = vadd.f32 %v3743, %v3827
      %v3836 = vadd.f32 %v3744, %v3828
      %v3837 = vadd.f32 %v3745, %v3829
      %v3838 = vadd.f32 %v3746, %v3830
      %v3839 = vld [vmem:[%s400 + $0x6] sm:$0x1]
      %v3840 = vlaneseq
      %v3841 = vshrl.u32 %v3840, 7
      %v3842 = vsub.s32 0, %v3841
      %v3843 = vrot.slane %v3839, %v3842
      %v3844 = vmul.f32 %v3307, %v3843
      %v3845 = vmul.f32 %v3308, %v3843
      %v3846 = vmul.f32 %v3309, %v3843
      %v3847 = vmul.f32 %v3310, %v3843
      %v3848 = vmul.f32 %v3311, %v3843
      %v3849 = vmul.f32 %v3312, %v3843
      %v3850 = vmul.f32 %v3313, %v3843
      %v3851 = vmul.f32 %v3327, %v3843
      %v3852 = vld [vmem:[%s400 + $0xf] sm:$0x1]
      %v3853 = vlaneseq
      %v3854 = vshrl.u32 %v3853, 7
      %v3855 = vsub.s32 0, %v3854
      %v3856 = vrot.slane %v3852, %v3855
      %v3857 = vmul.f32 %v3309, %v3856
      %v3858 = vmul.f32 %v3310, %v3856
      %v3859 = vmul.f32 %v3311, %v3856
      %v3860 = vmul.f32 %v3312, %v3856
      %v3861 = vmul.f32 %v3313, %v3856
      %v3862 = vmul.f32 %v3327, %v3856
      %v3863 = vmul.f32 %v3328, %v3856
      %v3864 = vmul.f32 %v3350, %v3856
      %v3865 = vadd.f32 %v3844, %v3857
      %v3866 = vadd.f32 %v3845, %v3858
      %v3867 = vadd.f32 %v3846, %v3859
      %v3868 = vadd.f32 %v3847, %v3860
      %v3869 = vadd.f32 %v3848, %v3861
      %v3870 = vadd.f32 %v3849, %v3862
      %v3871 = vadd.f32 %v3850, %v3863
      %v3872 = vadd.f32 %v3851, %v3864
      %v3873 = vld [vmem:[%s400 + $0x18] sm:$0x1]
      %v3874 = vld [vmem:[#allocation4 + $0x63] sm:$0xff]
      %v3875 = vlaneseq
      %v3876 = vshrl.u32 %v3875, 7
      %v3877 = vsub.s32 0, %v3876
      %v3878 = vrot.slane %v3873, %v3877
      %v3879 = vmul.f32 %v3311, %v3878
      %v3880 = vmul.f32 %v3312, %v3878
      %v3881 = vmul.f32 %v3313, %v3878
      %v3882 = vmul.f32 %v3327, %v3878
      %v3883 = vmul.f32 %v3328, %v3878
      %v3884 = vmul.f32 %v3350, %v3878
      %v3885 = vmul.f32 %v3351, %v3878
      %v3886 = vmul.f32 %v3874, %v3878
      %v3887 = vadd.f32 %v3865, %v3879
      %v3888 = vadd.f32 %v3866, %v3880
      %v3889 = vadd.f32 %v3867, %v3881
      %v3890 = vadd.f32 %v3868, %v3882
      %v3891 = vadd.f32 %v3869, %v3883
      %v3892 = vadd.f32 %v3870, %v3884
      %v3893 = vadd.f32 %v3871, %v3885
      %v3894 = vadd.f32 %v3872, %v3886
      %s3895 = scalar_lea.vmem [#allocation5], 384
      %v3896 = vld [vmem:[%s3895] sm:$0xff]
      %v3897 = vld [vmem:[%s3895 + $0x8] sm:$0xff]
      %v3898 = vld [vmem:[%s3895 + $0x10] sm:$0xff]
      %v3899 = vld [vmem:[%s3895 + $0x18] sm:$0xff]
      %v3900 = vld [vmem:[%s3895 + $0x20] sm:$0xff]
      %v3901 = vld [vmem:[%s3895 + $0x28] sm:$0xff]
      %v3902 = vld [vmem:[%s3895 + $0x30] sm:$0xff]
      %v3903 = vld [vmem:[%s3895 + $0x38] sm:$0xff]
      %v3904 = vmul.f32 %v3887, %v3896
      %v3905 = vmul.f32 %v3888, %v3897
      %v3906 = vmul.f32 %v3889, %v3898
      %v3907 = vmul.f32 %v3890, %v3899
      %v3908 = vmul.f32 %v3891, %v3900
      %v3909 = vmul.f32 %v3892, %v3901
      %v3910 = vmul.f32 %v3893, %v3902
      %v3911 = vmul.f32 %v3894, %v3903
      %v3912 = vadd.f32 %v3831, %v3904
      %v3913 = vadd.f32 %v3832, %v3905
      %v3914 = vadd.f32 %v3833, %v3906
      %v3915 = vadd.f32 %v3834, %v3907
      %v3916 = vadd.f32 %v3835, %v3908
      %v3917 = vadd.f32 %v3836, %v3909
      %v3918 = vadd.f32 %v3837, %v3910
      %v3919 = vadd.f32 %v3838, %v3911
      %v3920 = vld [vmem:[%s400 + $0x7] sm:$0x1]
      %v3921 = vlaneseq
      %v3922 = vshrl.u32 %v3921, 7
      %v3923 = vsub.s32 0, %v3922
      %v3924 = vrot.slane %v3920, %v3923
      %v3925 = vmul.f32 %v3398, %v3924
      %v3926 = vmul.f32 %v3399, %v3924
      %v3927 = vmul.f32 %v3400, %v3924
      %v3928 = vmul.f32 %v3401, %v3924
      %v3929 = vmul.f32 %v3402, %v3924
      %v3930 = vmul.f32 %v3403, %v3924
      %v3931 = vmul.f32 %v3404, %v3924
      %v3932 = vmul.f32 %v3418, %v3924
      %v3933 = vld [vmem:[%s400 + $0x10] sm:$0x1]
      %v3934 = vlaneseq
      %v3935 = vshrl.u32 %v3934, 7
      %v3936 = vsub.s32 0, %v3935
      %v3937 = vrot.slane %v3933, %v3936
      %v3938 = vmul.f32 %v3400, %v3937
      %v3939 = vmul.f32 %v3401, %v3937
      %v3940 = vmul.f32 %v3402, %v3937
      %v3941 = vmul.f32 %v3403, %v3937
      %v3942 = vmul.f32 %v3404, %v3937
      %v3943 = vmul.f32 %v3418, %v3937
      %v3944 = vmul.f32 %v3419, %v3937
      %v3945 = vmul.f32 %v3441, %v3937
      %v3946 = vadd.f32 %v3925, %v3938
      %v3947 = vadd.f32 %v3926, %v3939
      %v3948 = vadd.f32 %v3927, %v3940
      %v3949 = vadd.f32 %v3928, %v3941
      %v3950 = vadd.f32 %v3929, %v3942
      %v3951 = vadd.f32 %v3930, %v3943
      %v3952 = vadd.f32 %v3931, %v3944
      %v3953 = vadd.f32 %v3932, %v3945
      %v3954 = vld [vmem:[%s400 + $0x19] sm:$0x1]
      %v3955 = vld [vmem:[#allocation4 + $0x64] sm:$0xff]
      %v3956 = vlaneseq
      %v3957 = vshrl.u32 %v3956, 7
      %v3958 = vsub.s32 0, %v3957
      %v3959 = vrot.slane %v3954, %v3958
      %v3960 = vmul.f32 %v3402, %v3959
      %v3961 = vmul.f32 %v3403, %v3959
      %v3962 = vmul.f32 %v3404, %v3959
      %v3963 = vmul.f32 %v3418, %v3959
      %v3964 = vmul.f32 %v3419, %v3959
      %v3965 = vmul.f32 %v3441, %v3959
      %v3966 = vmul.f32 %v3442, %v3959
      %v3967 = vmul.f32 %v3955, %v3959
      %v3968 = vadd.f32 %v3946, %v3960
      %v3969 = vadd.f32 %v3947, %v3961
      %v3970 = vadd.f32 %v3948, %v3962
      %v3971 = vadd.f32 %v3949, %v3963
      %v3972 = vadd.f32 %v3950, %v3964
      %v3973 = vadd.f32 %v3951, %v3965
      %v3974 = vadd.f32 %v3952, %v3966
      %v3975 = vadd.f32 %v3953, %v3967
      %s3976 = scalar_lea.vmem [#allocation5], 448
      %v3977 = vld [vmem:[%s3976] sm:$0xff]
      %v3978 = vld [vmem:[%s3976 + $0x8] sm:$0xff]
      %v3979 = vld [vmem:[%s3976 + $0x10] sm:$0xff]
      %v3980 = vld [vmem:[%s3976 + $0x18] sm:$0xff]
      %v3981 = vld [vmem:[%s3976 + $0x20] sm:$0xff]
      %v3982 = vld [vmem:[%s3976 + $0x28] sm:$0xff]
      %v3983 = vld [vmem:[%s3976 + $0x30] sm:$0xff]
      %v3984 = vld [vmem:[%s3976 + $0x38] sm:$0xff]
      %v3985 = vmul.f32 %v3968, %v3977
      %v3986 = vmul.f32 %v3969, %v3978
      %v3987 = vmul.f32 %v3970, %v3979
      %v3988 = vmul.f32 %v3971, %v3980
      %v3989 = vmul.f32 %v3972, %v3981
      %v3990 = vmul.f32 %v3973, %v3982
      %v3991 = vmul.f32 %v3974, %v3983
      %v3992 = vmul.f32 %v3975, %v3984
      %v3993 = vadd.f32 %v3912, %v3985
      %v3994 = vadd.f32 %v3913, %v3986
      %v3995 = vadd.f32 %v3914, %v3987
      %v3996 = vadd.f32 %v3915, %v3988
      %v3997 = vadd.f32 %v3916, %v3989
      %v3998 = vadd.f32 %v3917, %v3990
      %v3999 = vadd.f32 %v3918, %v3991
      %v4000 = vadd.f32 %v3919, %v3992
      %v4001 = vld [vmem:[%s400 + $0x8] sm:$0x1]
      %v4002 = vlaneseq
      %v4003 = vshrl.u32 %v4002, 7
      %v4004 = vsub.s32 0, %v4003
      %v4005 = vrot.slane %v4001, %v4004
      %v4006 = vmul.f32 %v3490, %v4005
      %v4007 = vmul.f32 %v3491, %v4005
      %v4008 = vmul.f32 %v3492, %v4005
      %v4009 = vmul.f32 %v3493, %v4005
      %v4010 = vmul.f32 %v3494, %v4005
      %v4011 = vmul.f32 %v3495, %v4005
      %v4012 = vmul.f32 %v3496, %v4005
      %v4013 = vmul.f32 %v3510, %v4005
      %v4014 = vld [vmem:[%s400 + $0x11] sm:$0x1]
      %v4015 = vlaneseq
      %v4016 = vshrl.u32 %v4015, 7
      %v4017 = vsub.s32 0, %v4016
      %v4018 = vrot.slane %v4014, %v4017
      %v4019 = vmul.f32 %v3492, %v4018
      %v4020 = vmul.f32 %v3493, %v4018
      %v4021 = vmul.f32 %v3494, %v4018
      %v4022 = vmul.f32 %v3495, %v4018
      %v4023 = vmul.f32 %v3496, %v4018
      %v4024 = vmul.f32 %v3510, %v4018
      %v4025 = vmul.f32 %v3511, %v4018
      %v4026 = vmul.f32 %v3533, %v4018
      %v4027 = vadd.f32 %v4006, %v4019
      %v4028 = vadd.f32 %v4007, %v4020
      %v4029 = vadd.f32 %v4008, %v4021
      %v4030 = vadd.f32 %v4009, %v4022
      %v4031 = vadd.f32 %v4010, %v4023
      %v4032 = vadd.f32 %v4011, %v4024
      %v4033 = vadd.f32 %v4012, %v4025
      %v4034 = vadd.f32 %v4013, %v4026
      %v4035 = vld [vmem:[%s400 + $0x1a] sm:$0x1]
      %v4036 = vld [vmem:[#allocation4 + $0x65] sm:$0xff]
      %v4037 = vlaneseq
      %v4038 = vshrl.u32 %v4037, 7
      %v4039 = vsub.s32 0, %v4038
      %v4040 = vrot.slane %v4035, %v4039
      %v4041 = vmul.f32 %v3494, %v4040
      %v4042 = vmul.f32 %v3495, %v4040
      %v4043 = vmul.f32 %v3496, %v4040
      %v4044 = vmul.f32 %v3510, %v4040
      %v4045 = vmul.f32 %v3511, %v4040
      %v4046 = vmul.f32 %v3533, %v4040
      %v4047 = vmul.f32 %v3534, %v4040
      %v4048 = vmul.f32 %v4036, %v4040
      %v4049 = vadd.f32 %v4027, %v4041
      %v4050 = vadd.f32 %v4028, %v4042
      %v4051 = vadd.f32 %v4029, %v4043
      %v4052 = vadd.f32 %v4030, %v4044
      %v4053 = vadd.f32 %v4031, %v4045
      %v4054 = vadd.f32 %v4032, %v4046
      %v4055 = vadd.f32 %v4033, %v4047
      %v4056 = vadd.f32 %v4034, %v4048
      %s4057 = scalar_lea.vmem [#allocation5], 512
      %v4058 = vld [vmem:[%s4057] sm:$0xff]
      %v4059 = vld [vmem:[%s4057 + $0x8] sm:$0xff]
      %v4060 = vld [vmem:[%s4057 + $0x10] sm:$0xff]
      %v4061 = vld [vmem:[%s4057 + $0x18] sm:$0xff]
      %v4062 = vld [vmem:[%s4057 + $0x20] sm:$0xff]
      %v4063 = vld [vmem:[%s4057 + $0x28] sm:$0xff]
      %v4064 = vld [vmem:[%s4057 + $0x30] sm:$0xff]
      %v4065 = vld [vmem:[%s4057 + $0x38] sm:$0xff]
      %v4066 = vmul.f32 %v4049, %v4058
      %v4067 = vmul.f32 %v4050, %v4059
      %v4068 = vmul.f32 %v4051, %v4060
      %v4069 = vmul.f32 %v4052, %v4061
      %v4070 = vmul.f32 %v4053, %v4062
      %v4071 = vmul.f32 %v4054, %v4063
      %v4072 = vmul.f32 %v4055, %v4064
      %v4073 = vmul.f32 %v4056, %v4065
      %v4074 = vadd.f32 %v3993, %v4066
      %v4075 = vadd.f32 %v3994, %v4067
      %v4076 = vadd.f32 %v3995, %v4068
      %v4077 = vadd.f32 %v3996, %v4069
      %v4078 = vadd.f32 %v3997, %v4070
      %v4079 = vadd.f32 %v3998, %v4071
      %v4080 = vadd.f32 %v3999, %v4072
      %v4081 = vadd.f32 %v4000, %v4073
      %v4082 = vmul.f32 %v4074, 0.5
      %v4083 = vmul.f32 %v4075, 0.5
      %v4084 = vmul.f32 %v4076, 0.5
      %v4085 = vmul.f32 %v4077, 0.5
      %v4086 = vmul.f32 %v4078, 0.5
      %v4087 = vmul.f32 %v4079, 0.5
      %v4088 = vmul.f32 %v4080, 0.5
      %v4089 = vmul.f32 %v4081, 0.5
      %v4090 = vmul.f32 %v4074, 0.70710677
      %v4091 = vmul.f32 %v4075, 0.70710677
      %v4092 = vmul.f32 %v4076, 0.70710677
      %v4093 = vmul.f32 %v4077, 0.70710677
      %v4094 = vmul.f32 %v4078, 0.70710677
      %v4095 = vmul.f32 %v4079, 0.70710677
      %v4096 = vmul.f32 %v4080, 0.70710677
      %v4097 = vmul.f32 %v4081, 0.70710677
      %v4098 = vmax.f32 %v4090, -3.832507
      %v4099 = vmax.f32 %v4091, -3.832507
      %v4100 = vmax.f32 %v4092, -3.832507
      %v4101 = vmax.f32 %v4093, -3.832507
      %v4102 = vmax.f32 %v4094, -3.832507
      %v4103 = vmax.f32 %v4095, -3.832507
      %v4104 = vmax.f32 %v4096, -3.832507
      %v4105 = vmax.f32 %v4097, -3.832507
      %v4106 = vmin.f32 %v4098, 3.832507
      %v4107 = vmin.f32 %v4099, 3.832507
      %v4108 = vmin.f32 %v4100, 3.832507
      %v4109 = vmin.f32 %v4101, 3.832507
      %v4110 = vmin.f32 %v4102, 3.832507
      %v4111 = vmin.f32 %v4103, 3.832507
      %v4112 = vmin.f32 %v4104, 3.832507
      %v4113 = vmin.f32 %v4105, 3.832507
      %v4114 = vmul.f32 %v4106, %v4106
      %v4115 = vmul.f32 %v4107, %v4107
      %v4116 = vmul.f32 %v4108, %v4108
      %v4117 = vmul.f32 %v4109, %v4109
      %v4118 = vmul.f32 %v4110, %v4110
      %v4119 = vmul.f32 %v4111, %v4111
      %v4120 = vmul.f32 %v4112, %v4112
      %v4121 = vmul.f32 %v4113, %v4113
      %v4122 = vmul.f32 %v4114, 0.00022905065
      %v4123 = vmul.f32 %v4115, 0.00022905065
      %v4124 = vmul.f32 %v4116, 0.00022905065
      %v4125 = vmul.f32 %v4117, 0.00022905065
      %v4126 = vmul.f32 %v4118, 0.00022905065
      %v4127 = vmul.f32 %v4119, 0.00022905065
      %v4128 = vmul.f32 %v4120, 0.00022905065
      %v4129 = vmul.f32 %v4121, 0.00022905065
      %v4130 = vadd.f32 %v4122, 0.003408291
      %v4131 = vadd.f32 %v4123, 0.003408291
      %v4132 = vadd.f32 %v4124, 0.003408291
      %v4133 = vadd.f32 %v4125, 0.003408291
      %v4134 = vadd.f32 %v4126, 0.003408291
      %v4135 = vadd.f32 %v4127, 0.003408291
      %v4136 = vadd.f32 %v4128, 0.003408291
      %v4137 = vadd.f32 %v4129, 0.003408291
      %v4138 = vmul.f32 %v4130, %v4114
      %v4139 = vmul.f32 %v4131, %v4115
      %v4140 = vmul.f32 %v4132, %v4116
      %v4141 = vmul.f32 %v4133, %v4117
      %v4142 = vmul.f32 %v4134, %v4118
      %v4143 = vmul.f32 %v4135, %v4119
      %v4144 = vmul.f32 %v4136, %v4120
      %v4145 = vmul.f32 %v4137, %v4121
      %v4146 = vadd.f32 %v4138, 0.050955694
      %v4147 = vadd.f32 %v4139, 0.050955694
      %v4148 = vadd.f32 %v4140, 0.050955694
      %v4149 = vadd.f32 %v4141, 0.050955694
      %v4150 = vadd.f32 %v4142, 0.050955694
      %v4151 = vadd.f32 %v4143, 0.050955694
      %v4152 = vadd.f32 %v4144, 0.050955694
      %v4153 = vadd.f32 %v4145, 0.050955694
      %v4154 = vmul.f32 %v4146, %v4114
      %v4155 = vmul.f32 %v4147, %v4115
      %v4156 = vmul.f32 %v4148, %v4116
      %v4157 = vmul.f32 %v4149, %v4117
      %v4158 = vmul.f32 %v4150, %v4118
      %v4159 = vmul.f32 %v4151, %v4119
      %v4160 = vmul.f32 %v4152, %v4120
      %v4161 = vmul.f32 %v4153, %v4121
      %v4162 = vadd.f32 %v4154, 0.18520832
      %v4163 = vadd.f32 %v4155, 0.18520832
      %v4164 = vadd.f32 %v4156, 0.18520832
      %v4165 = vadd.f32 %v4157, 0.18520832
      %v4166 = vadd.f32 %v4158, 0.18520832
      %v4167 = vadd.f32 %v4159, 0.18520832
      %v4168 = vadd.f32 %v4160, 0.18520832
      %v4169 = vadd.f32 %v4161, 0.18520832
      %v4170 = vmul.f32 %v4162, %v4114
      %v4171 = vmul.f32 %v4163, %v4115
      %v4172 = vmul.f32 %v4164, %v4116
      %v4173 = vmul.f32 %v4165, %v4117
      %v4174 = vmul.f32 %v4166, %v4118
      %v4175 = vmul.f32 %v4167, %v4119
      %v4176 = vmul.f32 %v4168, %v4120
      %v4177 = vmul.f32 %v4169, %v4121
      %v4178 = vadd.f32 %v4170, 1.1283791
      %v4179 = vadd.f32 %v4171, 1.1283791
      %v4180 = vadd.f32 %v4172, 1.1283791
      %v4181 = vadd.f32 %v4173, 1.1283791
      %v4182 = vadd.f32 %v4174, 1.1283791
      %v4183 = vadd.f32 %v4175, 1.1283791
      %v4184 = vadd.f32 %v4176, 1.1283791
      %v4185 = vadd.f32 %v4177, 1.1283791
      %v4186 = vmul.f32 %v4114, -1.1791603e-07
      %v4187 = vmul.f32 %v4115, -1.1791603e-07
      %v4188 = vmul.f32 %v4116, -1.1791603e-07
      %v4189 = vmul.f32 %v4117, -1.1791603e-07
      %v4190 = vmul.f32 %v4118, -1.1791603e-07
      %v4191 = vmul.f32 %v4119, -1.1791603e-07
      %v4192 = vmul.f32 %v4120, -1.1791603e-07
      %v4193 = vmul.f32 %v4121, -1.1791603e-07
      %v4194 = vadd.f32 %v4186, 2.3547966e-05
      %v4195 = vadd.f32 %v4187, 2.3547966e-05
      %v4196 = vadd.f32 %v4188, 2.3547966e-05
      %v4197 = vadd.f32 %v4189, 2.3547966e-05
      %v4198 = vadd.f32 %v4190, 2.3547966e-05
      %v4199 = vadd.f32 %v4191, 2.3547966e-05
      %v4200 = vadd.f32 %v4192, 2.3547966e-05
      %v4201 = vadd.f32 %v4193, 2.3547966e-05
      %v4202 = vmul.f32 %v4194, %v4114
      %v4203 = vmul.f32 %v4195, %v4115
      %v4204 = vmul.f32 %v4196, %v4116
      %v4205 = vmul.f32 %v4197, %v4117
      %v4206 = vmul.f32 %v4198, %v4118
      %v4207 = vmul.f32 %v4199, %v4119
      %v4208 = vmul.f32 %v4200, %v4120
      %v4209 = vmul.f32 %v4201, %v4121
      %v4210 = vadd.f32 %v4202, 0.0010179626
      %v4211 = vadd.f32 %v4203, 0.0010179626
      %v4212 = vadd.f32 %v4204, 0.0010179626
      %v4213 = vadd.f32 %v4205, 0.0010179626
      %v4214 = vadd.f32 %v4206, 0.0010179626
      %v4215 = vadd.f32 %v4207, 0.0010179626
      %v4216 = vadd.f32 %v4208, 0.0010179626
      %v4217 = vadd.f32 %v4209, 0.0010179626
      %v4218 = vmul.f32 %v4210, %v4114
      %v4219 = vmul.f32 %v4211, %v4115
      %v4220 = vmul.f32 %v4212, %v4116
      %v4221 = vmul.f32 %v4213, %v4117
      %v4222 = vmul.f32 %v4214, %v4118
      %v4223 = vmul.f32 %v4215, %v4119
      %v4224 = vmul.f32 %v4216, %v4120
      %v4225 = vmul.f32 %v4217, %v4121
      %v4226 = vadd.f32 %v4218, 0.01407047
      %v4227 = vadd.f32 %v4219, 0.01407047
      %v4228 = vadd.f32 %v4220, 0.01407047
      %v4229 = vadd.f32 %v4221, 0.01407047
      %v4230 = vadd.f32 %v4222, 0.01407047
      %v4231 = vadd.f32 %v4223, 0.01407047
      %v4232 = vadd.f32 %v4224, 0.01407047
      %v4233 = vadd.f32 %v4225, 0.01407047
      %v4234 = vmul.f32 %v4226, %v4114
      %v4235 = vmul.f32 %v4227, %v4115
      %v4236 = vmul.f32 %v4228, %v4116
      %v4237 = vmul.f32 %v4229, %v4117
      %v4238 = vmul.f32 %v4230, %v4118
      %v4239 = vmul.f32 %v4231, %v4119
      %v4240 = vmul.f32 %v4232, %v4120
      %v4241 = vmul.f32 %v4233, %v4121
      %v4242 = vadd.f32 %v4234, 0.11098505
      %v4243 = vadd.f32 %v4235, 0.11098505
      %v4244 = vadd.f32 %v4236, 0.11098505
      %v4245 = vadd.f32 %v4237, 0.11098505
      %v4246 = vadd.f32 %v4238, 0.11098505
      %v4247 = vadd.f32 %v4239, 0.11098505
      %v4248 = vadd.f32 %v4240, 0.11098505
      %v4249 = vadd.f32 %v4241, 0.11098505
      %v4250 = vmul.f32 %v4242, %v4114
      %v4251 = vmul.f32 %v4243, %v4115
      %v4252 = vmul.f32 %v4244, %v4116
      %v4253 = vmul.f32 %v4245, %v4117
      %v4254 = vmul.f32 %v4246, %v4118
      %v4255 = vmul.f32 %v4247, %v4119
      %v4256 = vmul.f32 %v4248, %v4120
      %v4257 = vmul.f32 %v4249, %v4121
      %v4258 = vadd.f32 %v4250, 0.49746925
      %v4259 = vadd.f32 %v4251, 0.49746925
      %v4260 = vadd.f32 %v4252, 0.49746925
      %v4261 = vadd.f32 %v4253, 0.49746925
      %v4262 = vadd.f32 %v4254, 0.49746925
      %v4263 = vadd.f32 %v4255, 0.49746925
      %v4264 = vadd.f32 %v4256, 0.49746925
      %v4265 = vadd.f32 %v4257, 0.49746925
      %v4266 = vmul.f32 %v4258, %v4114
      %v4267 = vmul.f32 %v4259, %v4115
      %v4268 = vmul.f32 %v4260, %v4116
      %v4269 = vmul.f32 %v4261, %v4117
      %v4270 = vmul.f32 %v4262, %v4118
      %v4271 = vmul.f32 %v4263, %v4119
      %v4272 = vmul.f32 %v4264, %v4120
      %v4273 = vmul.f32 %v4265, %v4121
      %v4274 = vadd.f32 %v4266, 1.0
      %v4275 = vadd.f32 %v4267, 1.0
      %v4276 = vadd.f32 %v4268, 1.0
      %v4277 = vadd.f32 %v4269, 1.0
      %v4278 = vadd.f32 %v4270, 1.0
      %v4279 = vadd.f32 %v4271, 1.0
      %v4280 = vadd.f32 %v4272, 1.0
      %v4281 = vadd.f32 %v4273, 1.0
      %v4282 = vrcp.pop %v4274
      %v4283 = vrcp.pop %v4275
      %v4284 = vrcp.pop %v4276
      %v4285 = vrcp.pop %v4277
      %v4286 = vrcp.pop %v4278
      %v4287 = vrcp.pop %v4279
      %v4288 = vrcp.pop %v4280
      %v4289 = vrcp.pop %v4281
      %v4290 = vmul.f32 %v4274, %v4282
      %v4291 = vmul.f32 %v4275, %v4283
      %v4292 = vmul.f32 %v4276, %v4284
      %v4293 = vmul.f32 %v4277, %v4285
      %v4294 = vmul.f32 %v4278, %v4286
      %v4295 = vmul.f32 %v4279, %v4287
      %v4296 = vmul.f32 %v4280, %v4288
      %v4297 = vmul.f32 %v4281, %v4289
      %v4298 = vsub.f32 2.0, %v4290
      %v4299 = vsub.f32 2.0, %v4291
      %v4300 = vsub.f32 2.0, %v4292
      %v4301 = vsub.f32 2.0, %v4293
      %v4302 = vsub.f32 2.0, %v4294
      %v4303 = vsub.f32 2.0, %v4295
      %v4304 = vsub.f32 2.0, %v4296
      %v4305 = vsub.f32 2.0, %v4297
      %v4306 = vmul.f32 %v4282, %v4298
      %v4307 = vmul.f32 %v4283, %v4299
      %v4308 = vmul.f32 %v4284, %v4300
      %v4309 = vmul.f32 %v4285, %v4301
      %v4310 = vmul.f32 %v4286, %v4302
      %v4311 = vmul.f32 %v4287, %v4303
      %v4312 = vmul.f32 %v4288, %v4304
      %v4313 = vmul.f32 %v4289, %v4305
      %v4314 = vmul.f32 %v4106, %v4178
      %v4315 = vmul.f32 %v4107, %v4179
      %v4316 = vmul.f32 %v4108, %v4180
      %v4317 = vmul.f32 %v4109, %v4181
      %v4318 = vmul.f32 %v4110, %v4182
      %v4319 = vmul.f32 %v4111, %v4183
      %v4320 = vmul.f32 %v4112, %v4184
      %v4321 = vmul.f32 %v4113, %v4185
      %v4322 = vmul.f32 %v4314, %v4306
      %v4323 = vmul.f32 %v4315, %v4307
      %v4324 = vmul.f32 %v4316, %v4308
      %v4325 = vmul.f32 %v4317, %v4309
      %v4326 = vmul.f32 %v4318, %v4310
      %v4327 = vmul.f32 %v4319, %v4311
      %v4328 = vmul.f32 %v4320, %v4312
      %v4329 = vmul.f32 %v4321, %v4313
      %v4330 = vadd.f32 %v4322, 1.0
      %v4331 = vadd.f32 %v4323, 1.0
      %v4332 = vadd.f32 %v4324, 1.0
      %v4333 = vadd.f32 %v4325, 1.0
      %v4334 = vadd.f32 %v4326, 1.0
      %v4335 = vadd.f32 %v4327, 1.0
      %v4336 = vadd.f32 %v4328, 1.0
      %v4337 = vadd.f32 %v4329, 1.0
      %v4338 = vmul.f32 %v4082, %v4330
      %v4339 = vmul.f32 %v4083, %v4331
      %v4340 = vmul.f32 %v4084, %v4332
      %v4341 = vmul.f32 %v4085, %v4333
      %v4342 = vmul.f32 %v4086, %v4334
      %v4343 = vmul.f32 %v4087, %v4335
      %v4344 = vmul.f32 %v4088, %v4336
      %v4345 = vmul.f32 %v4089, %v4337
      %v4346 = vsel %vm754, %v4338, 0.0
      %4347 = vadd.xlane.f32.xlu0 %v4346
      %v4348 = vpop.xlane.xlu0 %4347
      %v4349 = vsel %vm754, %v4339, 0.0
      %4350 = vadd.xlane.f32.xlu0 %v4349
      %v4351 = vpop.xlane.xlu0 %4350
      %v4352 = vsel %vm754, %v4340, 0.0
      %4353 = vadd.xlane.f32.xlu0 %v4352
      %v4354 = vpop.xlane.xlu0 %4353
      %v4355 = vsel %vm754, %v4341, 0.0
      %4356 = vadd.xlane.f32.xlu0 %v4355
      %v4357 = vpop.xlane.xlu0 %4356
      %v4358 = vsel %vm754, %v4342, 0.0
      %4359 = vadd.xlane.f32.xlu0 %v4358
      %v4360 = vpop.xlane.xlu0 %4359
      %v4361 = vsel %vm754, %v4343, 0.0
      %4362 = vadd.xlane.f32.xlu0 %v4361
      %v4363 = vpop.xlane.xlu0 %4362
      %v4364 = vsel %vm754, %v4344, 0.0
      %4365 = vadd.xlane.f32.xlu0 %v4364
      %v4366 = vpop.xlane.xlu0 %4365
      %v4367 = vsel %vm754, %v4345, 0.0
      %4368 = vadd.xlane.f32.xlu0 %v4367
      %v4369 = vpop.xlane.xlu0 %4368
      %v4370 = vmul.f32 %v4348, %v3044
      %v4371 = vmul.f32 %v4351, %v3044
      %v4372 = vmul.f32 %v4354, %v3044
      %v4373 = vmul.f32 %v4357, %v3044
      %v4374 = vmul.f32 %v4360, %v3044
      %v4375 = vmul.f32 %v4363, %v3044
      %v4376 = vmul.f32 %v4366, %v3044
      %v4377 = vmul.f32 %v4369, %v3044
      %v4378 = vsub.f32 %v4338, %v4370
      %v4379 = vsub.f32 %v4339, %v4371
      %v4380 = vsub.f32 %v4340, %v4372
      %v4381 = vsub.f32 %v4341, %v4373
      %v4382 = vsub.f32 %v4342, %v4374
      %v4383 = vsub.f32 %v4343, %v4375
      %v4384 = vsub.f32 %v4344, %v4376
      %v4385 = vsub.f32 %v4345, %v4377
      %v4386 = vmul.f32 %v4378, %v4378
      %v4387 = vmul.f32 %v4379, %v4379
      %v4388 = vmul.f32 %v4380, %v4380
      %v4389 = vmul.f32 %v4381, %v4381
      %v4390 = vmul.f32 %v4382, %v4382
      %v4391 = vmul.f32 %v4383, %v4383
      %v4392 = vmul.f32 %v4384, %v4384
      %v4393 = vmul.f32 %v4385, %v4385
      %v4394 = vsel %vm754, %v4386, 0.0
      %4395 = vadd.xlane.f32.xlu0 %v4394
      %v4396 = vpop.xlane.xlu0 %4395
      %v4397 = vsel %vm754, %v4387, 0.0
      %4398 = vadd.xlane.f32.xlu0 %v4397
      %v4399 = vpop.xlane.xlu0 %4398
      %v4400 = vsel %vm754, %v4388, 0.0
      %4401 = vadd.xlane.f32.xlu0 %v4400
      %v4402 = vpop.xlane.xlu0 %4401
      %v4403 = vsel %vm754, %v4389, 0.0
      %4404 = vadd.xlane.f32.xlu0 %v4403
      %v4405 = vpop.xlane.xlu0 %4404
      %v4406 = vsel %vm754, %v4390, 0.0
      %4407 = vadd.xlane.f32.xlu0 %v4406
      %v4408 = vpop.xlane.xlu0 %4407
      %v4409 = vsel %vm754, %v4391, 0.0
      %4410 = vadd.xlane.f32.xlu0 %v4409
      %v4411 = vpop.xlane.xlu0 %4410
      %v4412 = vsel %vm754, %v4392, 0.0
      %4413 = vadd.xlane.f32.xlu0 %v4412
      %v4414 = vpop.xlane.xlu0 %4413
      %v4415 = vsel %vm754, %v4393, 0.0
      %4416 = vadd.xlane.f32.xlu0 %v4415
      %v4417 = vpop.xlane.xlu0 %4416
      %v4418 = vmul.f32 %v4396, %v3044
      %v4419 = vmul.f32 %v4399, %v3044
      %v4420 = vmul.f32 %v4402, %v3044
      %v4421 = vmul.f32 %v4405, %v3044
      %v4422 = vmul.f32 %v4408, %v3044
      %v4423 = vmul.f32 %v4411, %v3044
      %v4424 = vmul.f32 %v4414, %v3044
      %v4425 = vmul.f32 %v4417, %v3044
      %v4426 = vld [vmem:[%s405 + $0x5] sm:$0x1]
      %v4427 = vld [vmem:[%s405 + $0x6] sm:$0x1]
      %v4428 = vadd.f32 %v4418, 1e-05
      %v4429 = vadd.f32 %v4419, 1e-05
      %v4430 = vadd.f32 %v4420, 1e-05
      %v4431 = vadd.f32 %v4421, 1e-05
      %v4432 = vadd.f32 %v4422, 1e-05
      %v4433 = vadd.f32 %v4423, 1e-05
      %v4434 = vadd.f32 %v4424, 1e-05
      %v4435 = vadd.f32 %v4425, 1e-05
      %v4436 = vrsqrt.pop %v4428
      %v4437 = vrsqrt.pop %v4429
      %v4438 = vrsqrt.pop %v4430
      %v4439 = vrsqrt.pop %v4431
      %v4440 = vrsqrt.pop %v4432
      %v4441 = vrsqrt.pop %v4433
      %v4442 = vrsqrt.pop %v4434
      %v4443 = vrsqrt.pop %v4435
      %v4444 = vmul.f32 %v4378, %v4436
      %v4445 = vmul.f32 %v4379, %v4437
      %v4446 = vmul.f32 %v4380, %v4438
      %v4447 = vmul.f32 %v4381, %v4439
      %v4448 = vmul.f32 %v4382, %v4440
      %v4449 = vmul.f32 %v4383, %v4441
      %v4450 = vmul.f32 %v4384, %v4442
      %v4451 = vmul.f32 %v4385, %v4443
      %v4452 = vlaneseq
      %v4453 = vshrl.u32 %v4452, 7
      %v4454 = vsub.s32 0, %v4453
      %v4455 = vrot.slane %v4426, %v4454
      %v4456 = vmul.f32 %v4444, %v4455
      %v4457 = vmul.f32 %v4445, %v4455
      %v4458 = vmul.f32 %v4446, %v4455
      %v4459 = vmul.f32 %v4447, %v4455
      %v4460 = vmul.f32 %v4448, %v4455
      %v4461 = vmul.f32 %v4449, %v4455
      %v4462 = vmul.f32 %v4450, %v4455
      %v4463 = vmul.f32 %v4451, %v4455
      %v4464 = vlaneseq
      %v4465 = vshrl.u32 %v4464, 7
      %v4466 = vsub.s32 0, %v4465
      %v4467 = vrot.slane %v4427, %v4466
      %v4468 = vadd.f32 %v4456, %v4467
      %v4469 = vadd.f32 %v4457, %v4467
      %v4470 = vadd.f32 %v4458, %v4467
      %v4471 = vadd.f32 %v4459, %v4467
      %v4472 = vadd.f32 %v4460, %v4467
      %v4473 = vadd.f32 %v4461, %v4467
      %v4474 = vadd.f32 %v4462, %v4467
      %v4475 = vadd.f32 %v4463, %v4467
      %v4476 = vadd.f32 %v3259, %v4468
      %v4477 = vadd.f32 %v3264, %v4469
      %v4478 = vadd.f32 %v3269, %v4470
      %v4479 = vadd.f32 %v3274, %v4471
      %v4480 = vadd.f32 %v3279, %v4472
      %v4481 = vadd.f32 %v3284, %v4473
      %v4482 = vadd.f32 %v3289, %v4474
      %v4483 = vadd.f32 %v3294, %v4475
      %v4484 = vadd.f32 %v3259, %v4476
      %v4485 = vadd.f32 %v3264, %v4477
      %v4486 = vadd.f32 %v3269, %v4478
      %v4487 = vadd.f32 %v3274, %v4479
      %v4488 = vadd.f32 %v3279, %v4480
      %v4489 = vadd.f32 %v3284, %v4481
      %v4490 = vadd.f32 %v3289, %v4482
      %v4491 = vadd.f32 %v3294, %v4483
      %4492 = vst.msk [vmem:[#allocation4 + $0x18] sm:$0xff] %vm754, %v4476
      %4493 = vst.msk [vmem:[#allocation4 + $0x20] sm:$0xff] %vm754, %v4477
      %4494 = vst.msk [vmem:[#allocation4 + $0x28] sm:$0xff] %vm754, %v4478
      %4495 = vst.msk [vmem:[#allocation4 + $0x30] sm:$0xff] %vm754, %v4479
      %4496 = vst.msk [vmem:[#allocation4 + $0x38] sm:$0xff] %vm754, %v4480
      %4497 = vst.msk [vmem:[#allocation4 + $0x40] sm:$0xff] %vm754, %v4481
      %4498 = vst.msk [vmem:[#allocation4 + $0x48] sm:$0xff] %vm754, %v4482
      %4499 = vst.msk [vmem:[#allocation4 + $0x50] sm:$0xff] %vm754, %v4483
      %v4500 = vld [vmem:[%s400 + $0x1b] sm:$0x1]
      %v4501 = vld [vmem:[#allocation4 + $0x3] sm:$0xff]
      %v4502 = vld [vmem:[#allocation4 + $0xb] sm:$0xff]
      %v4503 = vld [vmem:[#allocation4 + $0x13] sm:$0xff]
      %v4504 = vld [vmem:[#allocation4 + $0x1b] sm:$0xff]
      %v4505 = vld [vmem:[#allocation4 + $0x23] sm:$0xff]
      %v4506 = vld [vmem:[#allocation4 + $0x2b] sm:$0xff]
      %v4507 = vld [vmem:[#allocation4 + $0x33] sm:$0xff]
      %v4508 = vld [vmem:[#allocation4 + $0x3b] sm:$0xff]
      %v4509 = vlaneseq
      %v4510 = vshrl.u32 %v4509, 7
      %v4511 = vsub.s32 0, %v4510
      %v4512 = vrot.slane %v4500, %v4511
      %v4513 = vmul.f32 %v4501, %v4512
      %v4514 = vmul.f32 %v4502, %v4512
      %v4515 = vmul.f32 %v4503, %v4512
      %v4516 = vmul.f32 %v4504, %v4512
      %v4517 = vmul.f32 %v4505, %v4512
      %v4518 = vmul.f32 %v4506, %v4512
      %v4519 = vmul.f32 %v4507, %v4512
      %v4520 = vmul.f32 %v4508, %v4512
      %v4521 = vld [vmem:[%s400 + $0x24] sm:$0x1]
      %v4522 = vld [vmem:[#allocation4 + $0x43] sm:$0xff]
      %v4523 = vld [vmem:[#allocation4 + $0x4b] sm:$0xff]
      %v4524 = vlaneseq
      %v4525 = vshrl.u32 %v4524, 7
      %v4526 = vsub.s32 0, %v4525
      %v4527 = vrot.slane %v4521, %v4526
      %v4528 = vmul.f32 %v4503, %v4527
      %v4529 = vmul.f32 %v4504, %v4527
      %v4530 = vmul.f32 %v4505, %v4527
      %v4531 = vmul.f32 %v4506, %v4527
      %v4532 = vmul.f32 %v4507, %v4527
      %v4533 = vmul.f32 %v4508, %v4527
      %v4534 = vmul.f32 %v4522, %v4527
      %v4535 = vmul.f32 %v4523, %v4527
      %v4536 = vadd.f32 %v4513, %v4528
      %v4537 = vadd.f32 %v4514, %v4529
      %v4538 = vadd.f32 %v4515, %v4530
      %v4539 = vadd.f32 %v4516, %v4531
      %v4540 = vadd.f32 %v4517, %v4532
      %v4541 = vadd.f32 %v4518, %v4533
      %v4542 = vadd.f32 %v4519, %v4534
      %v4543 = vadd.f32 %v4520, %v4535
      %v4544 = vld [vmem:[%s400 + $0x2d] sm:$0x1]
      %v4545 = vld [vmem:[#allocation4 + $0x53] sm:$0xff]
      %v4546 = vld [vmem:[#allocation4 + $0x5b] sm:$0xff]
      %v4547 = vlaneseq
      %v4548 = vshrl.u32 %v4547, 7
      %v4549 = vsub.s32 0, %v4548
      %v4550 = vrot.slane %v4544, %v4549
      %v4551 = vmul.f32 %v4505, %v4550
      %v4552 = vmul.f32 %v4506, %v4550
      %v4553 = vmul.f32 %v4507, %v4550
      %v4554 = vmul.f32 %v4508, %v4550
      %v4555 = vmul.f32 %v4522, %v4550
      %v4556 = vmul.f32 %v4523, %v4550
      %v4557 = vmul.f32 %v4545, %v4550
      %v4558 = vmul.f32 %v4546, %v4550
      %v4559 = vadd.f32 %v4536, %v4551
      %v4560 = vadd.f32 %v4537, %v4552
      %v4561 = vadd.f32 %v4538, %v4553
      %v4562 = vadd.f32 %v4539, %v4554
      %v4563 = vadd.f32 %v4540, %v4555
      %v4564 = vadd.f32 %v4541, %v4556
      %v4565 = vadd.f32 %v4542, %v4557
      %v4566 = vadd.f32 %v4543, %v4558
      %v4567 = vld [vmem:[#allocation5] sm:$0xff]
      %v4568 = vld [vmem:[#allocation5 + $0x8] sm:$0xff]
      %v4569 = vld [vmem:[#allocation5 + $0x10] sm:$0xff]
      %v4570 = vld [vmem:[#allocation5 + $0x18] sm:$0xff]
      %v4571 = vld [vmem:[#allocation5 + $0x20] sm:$0xff]
      %v4572 = vld [vmem:[#allocation5 + $0x28] sm:$0xff]
      %v4573 = vld [vmem:[#allocation5 + $0x30] sm:$0xff]
      %v4574 = vld [vmem:[#allocation5 + $0x38] sm:$0xff]
      %v4575 = vmul.f32 %v4559, %v4567
      %v4576 = vmul.f32 %v4560, %v4568
      %v4577 = vmul.f32 %v4561, %v4569
      %v4578 = vmul.f32 %v4562, %v4570
      %v4579 = vmul.f32 %v4563, %v4571
      %v4580 = vmul.f32 %v4564, %v4572
      %v4581 = vmul.f32 %v4565, %v4573
      %v4582 = vmul.f32 %v4566, %v4574
      %v4583 = vadd.f32 %v4575, 0.0
      %v4584 = vadd.f32 %v4576, 0.0
      %v4585 = vadd.f32 %v4577, 0.0
      %v4586 = vadd.f32 %v4578, 0.0
      %v4587 = vadd.f32 %v4579, 0.0
      %v4588 = vadd.f32 %v4580, 0.0
      %v4589 = vadd.f32 %v4581, 0.0
      %v4590 = vadd.f32 %v4582, 0.0
      %v4591 = vld [vmem:[%s400 + $0x1c] sm:$0x1]
      %v4592 = vld [vmem:[#allocation4 + $0x4] sm:$0xff]
      %v4593 = vld [vmem:[#allocation4 + $0xc] sm:$0xff]
      %v4594 = vld [vmem:[#allocation4 + $0x14] sm:$0xff]
      %v4595 = vld [vmem:[#allocation4 + $0x1c] sm:$0xff]
      %v4596 = vld [vmem:[#allocation4 + $0x24] sm:$0xff]
      %v4597 = vld [vmem:[#allocation4 + $0x2c] sm:$0xff]
      %v4598 = vld [vmem:[#allocation4 + $0x34] sm:$0xff]
      %v4599 = vld [vmem:[#allocation4 + $0x3c] sm:$0xff]
      %v4600 = vlaneseq
      %v4601 = vshrl.u32 %v4600, 7
      %v4602 = vsub.s32 0, %v4601
      %v4603 = vrot.slane %v4591, %v4602
      %v4604 = vmul.f32 %v4592, %v4603
      %v4605 = vmul.f32 %v4593, %v4603
      %v4606 = vmul.f32 %v4594, %v4603
      %v4607 = vmul.f32 %v4595, %v4603
      %v4608 = vmul.f32 %v4596, %v4603
      %v4609 = vmul.f32 %v4597, %v4603
      %v4610 = vmul.f32 %v4598, %v4603
      %v4611 = vmul.f32 %v4599, %v4603
      %v4612 = vld [vmem:[%s400 + $0x25] sm:$0x1]
      %v4613 = vld [vmem:[#allocation4 + $0x44] sm:$0xff]
      %v4614 = vld [vmem:[#allocation4 + $0x4c] sm:$0xff]
      %v4615 = vlaneseq
      %v4616 = vshrl.u32 %v4615, 7
      %v4617 = vsub.s32 0, %v4616
      %v4618 = vrot.slane %v4612, %v4617
      %v4619 = vmul.f32 %v4594, %v4618
      %v4620 = vmul.f32 %v4595, %v4618
      %v4621 = vmul.f32 %v4596, %v4618
      %v4622 = vmul.f32 %v4597, %v4618
      %v4623 = vmul.f32 %v4598, %v4618
      %v4624 = vmul.f32 %v4599, %v4618
      %v4625 = vmul.f32 %v4613, %v4618
      %v4626 = vmul.f32 %v4614, %v4618
      %v4627 = vadd.f32 %v4604, %v4619
      %v4628 = vadd.f32 %v4605, %v4620
      %v4629 = vadd.f32 %v4606, %v4621
      %v4630 = vadd.f32 %v4607, %v4622
      %v4631 = vadd.f32 %v4608, %v4623
      %v4632 = vadd.f32 %v4609, %v4624
      %v4633 = vadd.f32 %v4610, %v4625
      %v4634 = vadd.f32 %v4611, %v4626
      %v4635 = vld [vmem:[%s400 + $0x2e] sm:$0x1]
      %v4636 = vld [vmem:[#allocation4 + $0x54] sm:$0xff]
      %v4637 = vld [vmem:[#allocation4 + $0x5c] sm:$0xff]
      %v4638 = vlaneseq
      %v4639 = vshrl.u32 %v4638, 7
      %v4640 = vsub.s32 0, %v4639
      %v4641 = vrot.slane %v4635, %v4640
      %v4642 = vmul.f32 %v4596, %v4641
      %v4643 = vmul.f32 %v4597, %v4641
      %v4644 = vmul.f32 %v4598, %v4641
      %v4645 = vmul.f32 %v4599, %v4641
      %v4646 = vmul.f32 %v4613, %v4641
      %v4647 = vmul.f32 %v4614, %v4641
      %v4648 = vmul.f32 %v4636, %v4641
      %v4649 = vmul.f32 %v4637, %v4641
      %v4650 = vadd.f32 %v4627, %v4642
      %v4651 = vadd.f32 %v4628, %v4643
      %v4652 = vadd.f32 %v4629, %v4644
      %v4653 = vadd.f32 %v4630, %v4645
      %v4654 = vadd.f32 %v4631, %v4646
      %v4655 = vadd.f32 %v4632, %v4647
      %v4656 = vadd.f32 %v4633, %v4648
      %v4657 = vadd.f32 %v4634, %v4649
      %v4658 = vld [vmem:[%s3463] sm:$0xff]
      %v4659 = vld [vmem:[%s3463 + $0x8] sm:$0xff]
      %v4660 = vld [vmem:[%s3463 + $0x10] sm:$0xff]
      %v4661 = vld [vmem:[%s3463 + $0x18] sm:$0xff]
      %v4662 = vld [vmem:[%s3463 + $0x20] sm:$0xff]
      %v4663 = vld [vmem:[%s3463 + $0x28] sm:$0xff]
      %v4664 = vld [vmem:[%s3463 + $0x30] sm:$0xff]
      %v4665 = vld [vmem:[%s3463 + $0x38] sm:$0xff]
      %v4666 = vmul.f32 %v4650, %v4658
      %v4667 = vmul.f32 %v4651, %v4659
      %v4668 = vmul.f32 %v4652, %v4660
      %v4669 = vmul.f32 %v4653, %v4661
      %v4670 = vmul.f32 %v4654, %v4662
      %v4671 = vmul.f32 %v4655, %v4663
      %v4672 = vmul.f32 %v4656, %v4664
      %v4673 = vmul.f32 %v4657, %v4665
      %v4674 = vadd.f32 %v4583, %v4666
      %v4675 = vadd.f32 %v4584, %v4667
      %v4676 = vadd.f32 %v4585, %v4668
      %v4677 = vadd.f32 %v4586, %v4669
      %v4678 = vadd.f32 %v4587, %v4670
      %v4679 = vadd.f32 %v4588, %v4671
      %v4680 = vadd.f32 %v4589, %v4672
      %v4681 = vadd.f32 %v4590, %v4673
      %v4682 = vld [vmem:[%s400 + $0x1d] sm:$0x1]
      %v4683 = vld [vmem:[#allocation4 + $0x5] sm:$0xff]
      %v4684 = vld [vmem:[#allocation4 + $0xd] sm:$0xff]
      %v4685 = vld [vmem:[#allocation4 + $0x15] sm:$0xff]
      %v4686 = vld [vmem:[#allocation4 + $0x1d] sm:$0xff]
      %v4687 = vld [vmem:[#allocation4 + $0x25] sm:$0xff]
      %v4688 = vld [vmem:[#allocation4 + $0x2d] sm:$0xff]
      %v4689 = vld [vmem:[#allocation4 + $0x35] sm:$0xff]
      %v4690 = vld [vmem:[#allocation4 + $0x3d] sm:$0xff]
      %v4691 = vlaneseq
      %v4692 = vshrl.u32 %v4691, 7
      %v4693 = vsub.s32 0, %v4692
      %v4694 = vrot.slane %v4682, %v4693
      %v4695 = vmul.f32 %v4683, %v4694
      %v4696 = vmul.f32 %v4684, %v4694
      %v4697 = vmul.f32 %v4685, %v4694
      %v4698 = vmul.f32 %v4686, %v4694
      %v4699 = vmul.f32 %v4687, %v4694
      %v4700 = vmul.f32 %v4688, %v4694
      %v4701 = vmul.f32 %v4689, %v4694
      %v4702 = vmul.f32 %v4690, %v4694
      %v4703 = vld [vmem:[%s400 + $0x26] sm:$0x1]
      %v4704 = vld [vmem:[#allocation4 + $0x45] sm:$0xff]
      %v4705 = vld [vmem:[#allocation4 + $0x4d] sm:$0xff]
      %v4706 = vlaneseq
      %v4707 = vshrl.u32 %v4706, 7
      %v4708 = vsub.s32 0, %v4707
      %v4709 = vrot.slane %v4703, %v4708
      %v4710 = vmul.f32 %v4685, %v4709
      %v4711 = vmul.f32 %v4686, %v4709
      %v4712 = vmul.f32 %v4687, %v4709
      %v4713 = vmul.f32 %v4688, %v4709
      %v4714 = vmul.f32 %v4689, %v4709
      %v4715 = vmul.f32 %v4690, %v4709
      %v4716 = vmul.f32 %v4704, %v4709
      %v4717 = vmul.f32 %v4705, %v4709
      %v4718 = vadd.f32 %v4695, %v4710
      %v4719 = vadd.f32 %v4696, %v4711
      %v4720 = vadd.f32 %v4697, %v4712
      %v4721 = vadd.f32 %v4698, %v4713
      %v4722 = vadd.f32 %v4699, %v4714
      %v4723 = vadd.f32 %v4700, %v4715
      %v4724 = vadd.f32 %v4701, %v4716
      %v4725 = vadd.f32 %v4702, %v4717
      %v4726 = vld [vmem:[%s400 + $0x2f] sm:$0x1]
      %v4727 = vld [vmem:[#allocation4 + $0x55] sm:$0xff]
      %v4728 = vld [vmem:[#allocation4 + $0x5d] sm:$0xff]
      %v4729 = vlaneseq
      %v4730 = vshrl.u32 %v4729, 7
      %v4731 = vsub.s32 0, %v4730
      %v4732 = vrot.slane %v4726, %v4731
      %v4733 = vmul.f32 %v4687, %v4732
      %v4734 = vmul.f32 %v4688, %v4732
      %v4735 = vmul.f32 %v4689, %v4732
      %v4736 = vmul.f32 %v4690, %v4732
      %v4737 = vmul.f32 %v4704, %v4732
      %v4738 = vmul.f32 %v4705, %v4732
      %v4739 = vmul.f32 %v4727, %v4732
      %v4740 = vmul.f32 %v4728, %v4732
      %v4741 = vadd.f32 %v4718, %v4733
      %v4742 = vadd.f32 %v4719, %v4734
      %v4743 = vadd.f32 %v4720, %v4735
      %v4744 = vadd.f32 %v4721, %v4736
      %v4745 = vadd.f32 %v4722, %v4737
      %v4746 = vadd.f32 %v4723, %v4738
      %v4747 = vadd.f32 %v4724, %v4739
      %v4748 = vadd.f32 %v4725, %v4740
      %v4749 = vld [vmem:[%s3555] sm:$0xff]
      %v4750 = vld [vmem:[%s3555 + $0x8] sm:$0xff]
      %v4751 = vld [vmem:[%s3555 + $0x10] sm:$0xff]
      %v4752 = vld [vmem:[%s3555 + $0x18] sm:$0xff]
      %v4753 = vld [vmem:[%s3555 + $0x20] sm:$0xff]
      %v4754 = vld [vmem:[%s3555 + $0x28] sm:$0xff]
      %v4755 = vld [vmem:[%s3555 + $0x30] sm:$0xff]
      %v4756 = vld [vmem:[%s3555 + $0x38] sm:$0xff]
      %v4757 = vmul.f32 %v4741, %v4749
      %v4758 = vmul.f32 %v4742, %v4750
      %v4759 = vmul.f32 %v4743, %v4751
      %v4760 = vmul.f32 %v4744, %v4752
      %v4761 = vmul.f32 %v4745, %v4753
      %v4762 = vmul.f32 %v4746, %v4754
      %v4763 = vmul.f32 %v4747, %v4755
      %v4764 = vmul.f32 %v4748, %v4756
      %v4765 = vadd.f32 %v4674, %v4757
      %v4766 = vadd.f32 %v4675, %v4758
      %v4767 = vadd.f32 %v4676, %v4759
      %v4768 = vadd.f32 %v4677, %v4760
      %v4769 = vadd.f32 %v4678, %v4761
      %v4770 = vadd.f32 %v4679, %v4762
      %v4771 = vadd.f32 %v4680, %v4763
      %v4772 = vadd.f32 %v4681, %v4764
      %v4773 = vld [vmem:[%s400 + $0x1e] sm:$0x1]
      %v4774 = vld [vmem:[#allocation4 + $0x7] sm:$0xff]
      %v4775 = vld [vmem:[#allocation4 + $0xf] sm:$0xff]
      %v4776 = vld [vmem:[#allocation4 + $0x17] sm:$0xff]
      %v4777 = vld [vmem:[#allocation4 + $0x1f] sm:$0xff]
      %v4778 = vld [vmem:[#allocation4 + $0x27] sm:$0xff]
      %v4779 = vld [vmem:[#allocation4 + $0x2f] sm:$0xff]
      %v4780 = vld [vmem:[#allocation4 + $0x37] sm:$0xff]
      %v4781 = vld [vmem:[#allocation4 + $0x3f] sm:$0xff]
      %v4782 = vlaneseq
      %v4783 = vshrl.u32 %v4782, 7
      %v4784 = vsub.s32 0, %v4783
      %v4785 = vrot.slane %v4773, %v4784
      %v4786 = vmul.f32 %v4774, %v4785
      %v4787 = vmul.f32 %v4775, %v4785
      %v4788 = vmul.f32 %v4776, %v4785
      %v4789 = vmul.f32 %v4777, %v4785
      %v4790 = vmul.f32 %v4778, %v4785
      %v4791 = vmul.f32 %v4779, %v4785
      %v4792 = vmul.f32 %v4780, %v4785
      %v4793 = vmul.f32 %v4781, %v4785
      %v4794 = vld [vmem:[%s400 + $0x27] sm:$0x1]
      %v4795 = vld [vmem:[#allocation4 + $0x47] sm:$0xff]
      %v4796 = vld [vmem:[#allocation4 + $0x4f] sm:$0xff]
      %v4797 = vlaneseq
      %v4798 = vshrl.u32 %v4797, 7
      %v4799 = vsub.s32 0, %v4798
      %v4800 = vrot.slane %v4794, %v4799
      %v4801 = vmul.f32 %v4776, %v4800
      %v4802 = vmul.f32 %v4777, %v4800
      %v4803 = vmul.f32 %v4778, %v4800
      %v4804 = vmul.f32 %v4779, %v4800
      %v4805 = vmul.f32 %v4780, %v4800
      %v4806 = vmul.f32 %v4781, %v4800
      %v4807 = vmul.f32 %v4795, %v4800
      %v4808 = vmul.f32 %v4796, %v4800
      %v4809 = vadd.f32 %v4786, %v4801
      %v4810 = vadd.f32 %v4787, %v4802
      %v4811 = vadd.f32 %v4788, %v4803
      %v4812 = vadd.f32 %v4789, %v4804
      %v4813 = vadd.f32 %v4790, %v4805
      %v4814 = vadd.f32 %v4791, %v4806
      %v4815 = vadd.f32 %v4792, %v4807
      %v4816 = vadd.f32 %v4793, %v4808
      %v4817 = vld [vmem:[%s400 + $0x30] sm:$0x1]
      %v4818 = vld [vmem:[#allocation4 + $0x57] sm:$0xff]
      %v4819 = vld [vmem:[#allocation4 + $0x5f] sm:$0xff]
      %v4820 = vlaneseq
      %v4821 = vshrl.u32 %v4820, 7
      %v4822 = vsub.s32 0, %v4821
      %v4823 = vrot.slane %v4817, %v4822
      %v4824 = vmul.f32 %v4778, %v4823
      %v4825 = vmul.f32 %v4779, %v4823
      %v4826 = vmul.f32 %v4780, %v4823
      %v4827 = vmul.f32 %v4781, %v4823
      %v4828 = vmul.f32 %v4795, %v4823
      %v4829 = vmul.f32 %v4796, %v4823
      %v4830 = vmul.f32 %v4818, %v4823
      %v4831 = vmul.f32 %v4819, %v4823
      %v4832 = vadd.f32 %v4809, %v4824
      %v4833 = vadd.f32 %v4810, %v4825
      %v4834 = vadd.f32 %v4811, %v4826
      %v4835 = vadd.f32 %v4812, %v4827
      %v4836 = vadd.f32 %v4813, %v4828
      %v4837 = vadd.f32 %v4814, %v4829
      %v4838 = vadd.f32 %v4815, %v4830
      %v4839 = vadd.f32 %v4816, %v4831
      %v4840 = vld [vmem:[%s3647] sm:$0xff]
      %v4841 = vld [vmem:[%s3647 + $0x8] sm:$0xff]
      %v4842 = vld [vmem:[%s3647 + $0x10] sm:$0xff]
      %v4843 = vld [vmem:[%s3647 + $0x18] sm:$0xff]
      %v4844 = vld [vmem:[%s3647 + $0x20] sm:$0xff]
      %v4845 = vld [vmem:[%s3647 + $0x28] sm:$0xff]
      %v4846 = vld [vmem:[%s3647 + $0x30] sm:$0xff]
      %v4847 = vld [vmem:[%s3647 + $0x38] sm:$0xff]
      %v4848 = vmul.f32 %v4832, %v4840
      %v4849 = vmul.f32 %v4833, %v4841
      %v4850 = vmul.f32 %v4834, %v4842
      %v4851 = vmul.f32 %v4835, %v4843
      %v4852 = vmul.f32 %v4836, %v4844
      %v4853 = vmul.f32 %v4837, %v4845
      %v4854 = vmul.f32 %v4838, %v4846
      %v4855 = vmul.f32 %v4839, %v4847
      %v4856 = vadd.f32 %v4765, %v4848
      %v4857 = vadd.f32 %v4766, %v4849
      %v4858 = vadd.f32 %v4767, %v4850
      %v4859 = vadd.f32 %v4768, %v4851
      %v4860 = vadd.f32 %v4769, %v4852
      %v4861 = vadd.f32 %v4770, %v4853
      %v4862 = vadd.f32 %v4771, %v4854
      %v4863 = vadd.f32 %v4772, %v4855
      %v4864 = vld [vmem:[%s400 + $0x1f] sm:$0x1]
      %v4865 = vld [vmem:[#allocation4 + $0x8] sm:$0xff]
      %v4866 = vld [vmem:[#allocation4 + $0x10] sm:$0xff]
      %v4867 = vld [vmem:[#allocation4 + $0x18] sm:$0xff]
      %v4868 = vld [vmem:[#allocation4 + $0x20] sm:$0xff]
      %v4869 = vld [vmem:[#allocation4 + $0x28] sm:$0xff]
      %v4870 = vld [vmem:[#allocation4 + $0x30] sm:$0xff]
      %v4871 = vld [vmem:[#allocation4 + $0x38] sm:$0xff]
      %v4872 = vld [vmem:[#allocation4 + $0x40] sm:$0xff]
      %v4873 = vlaneseq
      %v4874 = vshrl.u32 %v4873, 7
      %v4875 = vsub.s32 0, %v4874
      %v4876 = vrot.slane %v4864, %v4875
      %v4877 = vmul.f32 %v4865, %v4876
      %v4878 = vmul.f32 %v4866, %v4876
      %v4879 = vmul.f32 %v4867, %v4876
      %v4880 = vmul.f32 %v4868, %v4876
      %v4881 = vmul.f32 %v4869, %v4876
      %v4882 = vmul.f32 %v4870, %v4876
      %v4883 = vmul.f32 %v4871, %v4876
      %v4884 = vmul.f32 %v4872, %v4876
      %v4885 = vld [vmem:[%s400 + $0x28] sm:$0x1]
      %v4886 = vld [vmem:[#allocation4 + $0x48] sm:$0xff]
      %v4887 = vld [vmem:[#allocation4 + $0x50] sm:$0xff]
      %v4888 = vlaneseq
      %v4889 = vshrl.u32 %v4888, 7
      %v4890 = vsub.s32 0, %v4889
      %v4891 = vrot.slane %v4885, %v4890
      %v4892 = vmul.f32 %v4867, %v4891
      %v4893 = vmul.f32 %v4868, %v4891
      %v4894 = vmul.f32 %v4869, %v4891
      %v4895 = vmul.f32 %v4870, %v4891
      %v4896 = vmul.f32 %v4871, %v4891
      %v4897 = vmul.f32 %v4872, %v4891
      %v4898 = vmul.f32 %v4886, %v4891
      %v4899 = vmul.f32 %v4887, %v4891
      %v4900 = vadd.f32 %v4877, %v4892
      %v4901 = vadd.f32 %v4878, %v4893
      %v4902 = vadd.f32 %v4879, %v4894
      %v4903 = vadd.f32 %v4880, %v4895
      %v4904 = vadd.f32 %v4881, %v4896
      %v4905 = vadd.f32 %v4882, %v4897
      %v4906 = vadd.f32 %v4883, %v4898
      %v4907 = vadd.f32 %v4884, %v4899
      %v4908 = vld [vmem:[%s400 + $0x31] sm:$0x1]
      %v4909 = vld [vmem:[#allocation4 + $0x58] sm:$0xff]
      %v4910 = vld [vmem:[#allocation4 + $0x60] sm:$0xff]
      %v4911 = vlaneseq
      %v4912 = vshrl.u32 %v4911, 7
      %v4913 = vsub.s32 0, %v4912
      %v4914 = vrot.slane %v4908, %v4913
      %v4915 = vmul.f32 %v4869, %v4914
      %v4916 = vmul.f32 %v4870, %v4914
      %v4917 = vmul.f32 %v4871, %v4914
      %v4918 = vmul.f32 %v4872, %v4914
      %v4919 = vmul.f32 %v4886, %v4914
      %v4920 = vmul.f32 %v4887, %v4914
      %v4921 = vmul.f32 %v4909, %v4914
      %v4922 = vmul.f32 %v4910, %v4914
      %v4923 = vadd.f32 %v4900, %v4915
      %v4924 = vadd.f32 %v4901, %v4916
      %v4925 = vadd.f32 %v4902, %v4917
      %v4926 = vadd.f32 %v4903, %v4918
      %v4927 = vadd.f32 %v4904, %v4919
      %v4928 = vadd.f32 %v4905, %v4920
      %v4929 = vadd.f32 %v4906, %v4921
      %v4930 = vadd.f32 %v4907, %v4922
      %v4931 = vadd.f32 %v4856, %v4923
      %v4932 = vadd.f32 %v4857, %v4924
      %v4933 = vadd.f32 %v4858, %v4925
      %v4934 = vadd.f32 %v4859, %v4926
      %v4935 = vadd.f32 %v4860, %v4927
      %v4936 = vadd.f32 %v4861, %v4928
      %v4937 = vadd.f32 %v4862, %v4929
      %v4938 = vadd.f32 %v4863, %v4930
      %v4939 = vld [vmem:[%s400 + $0x20] sm:$0x1]
      %v4940 = vld [vmem:[#allocation4 + $0x9] sm:$0xff]
      %v4941 = vld [vmem:[#allocation4 + $0x11] sm:$0xff]
      %v4942 = vld [vmem:[#allocation4 + $0x19] sm:$0xff]
      %v4943 = vld [vmem:[#allocation4 + $0x21] sm:$0xff]
      %v4944 = vld [vmem:[#allocation4 + $0x29] sm:$0xff]
      %v4945 = vld [vmem:[#allocation4 + $0x31] sm:$0xff]
      %v4946 = vld [vmem:[#allocation4 + $0x39] sm:$0xff]
      %v4947 = vld [vmem:[#allocation4 + $0x41] sm:$0xff]
      %v4948 = vlaneseq
      %v4949 = vshrl.u32 %v4948, 7
      %v4950 = vsub.s32 0, %v4949
      %v4951 = vrot.slane %v4939, %v4950
      %v4952 = vmul.f32 %v4940, %v4951
      %v4953 = vmul.f32 %v4941, %v4951
      %v4954 = vmul.f32 %v4942, %v4951
      %v4955 = vmul.f32 %v4943, %v4951
      %v4956 = vmul.f32 %v4944, %v4951
      %v4957 = vmul.f32 %v4945, %v4951
      %v4958 = vmul.f32 %v4946, %v4951
      %v4959 = vmul.f32 %v4947, %v4951
      %v4960 = vld [vmem:[%s400 + $0x29] sm:$0x1]
      %v4961 = vld [vmem:[#allocation4 + $0x49] sm:$0xff]
      %v4962 = vld [vmem:[#allocation4 + $0x51] sm:$0xff]
      %v4963 = vlaneseq
      %v4964 = vshrl.u32 %v4963, 7
      %v4965 = vsub.s32 0, %v4964
      %v4966 = vrot.slane %v4960, %v4965
      %v4967 = vmul.f32 %v4942, %v4966
      %v4968 = vmul.f32 %v4943, %v4966
      %v4969 = vmul.f32 %v4944, %v4966
      %v4970 = vmul.f32 %v4945, %v4966
      %v4971 = vmul.f32 %v4946, %v4966
      %v4972 = vmul.f32 %v4947, %v4966
      %v4973 = vmul.f32 %v4961, %v4966
      %v4974 = vmul.f32 %v4962, %v4966
      %v4975 = vadd.f32 %v4952, %v4967
      %v4976 = vadd.f32 %v4953, %v4968
      %v4977 = vadd.f32 %v4954, %v4969
      %v4978 = vadd.f32 %v4955, %v4970
      %v4979 = vadd.f32 %v4956, %v4971
      %v4980 = vadd.f32 %v4957, %v4972
      %v4981 = vadd.f32 %v4958, %v4973
      %v4982 = vadd.f32 %v4959, %v4974
      %v4983 = vld [vmem:[%s400 + $0x32] sm:$0x1]
      %v4984 = vld [vmem:[#allocation4 + $0x59] sm:$0xff]
      %v4985 = vld [vmem:[#allocation4 + $0x61] sm:$0xff]
      %v4986 = vlaneseq
      %v4987 = vshrl.u32 %v4986, 7
      %v4988 = vsub.s32 0, %v4987
      %v4989 = vrot.slane %v4983, %v4988
      %v4990 = vmul.f32 %v4944, %v4989
      %v4991 = vmul.f32 %v4945, %v4989
      %v4992 = vmul.f32 %v4946, %v4989
      %v4993 = vmul.f32 %v4947, %v4989
      %v4994 = vmul.f32 %v4961, %v4989
      %v4995 = vmul.f32 %v4962, %v4989
      %v4996 = vmul.f32 %v4984, %v4989
      %v4997 = vmul.f32 %v4985, %v4989
      %v4998 = vadd.f32 %v4975, %v4990
      %v4999 = vadd.f32 %v4976, %v4991
      %v5000 = vadd.f32 %v4977, %v4992
      %v5001 = vadd.f32 %v4978, %v4993
      %v5002 = vadd.f32 %v4979, %v4994
      %v5003 = vadd.f32 %v4980, %v4995
      %v5004 = vadd.f32 %v4981, %v4996
      %v5005 = vadd.f32 %v4982, %v4997
      %v5006 = vld [vmem:[%s3814] sm:$0xff]
      %v5007 = vld [vmem:[%s3814 + $0x8] sm:$0xff]
      %v5008 = vld [vmem:[%s3814 + $0x10] sm:$0xff]
      %v5009 = vld [vmem:[%s3814 + $0x18] sm:$0xff]
      %v5010 = vld [vmem:[%s3814 + $0x20] sm:$0xff]
      %v5011 = vld [vmem:[%s3814 + $0x28] sm:$0xff]
      %v5012 = vld [vmem:[%s3814 + $0x30] sm:$0xff]
      %v5013 = vld [vmem:[%s3814 + $0x38] sm:$0xff]
      %v5014 = vmul.f32 %v4998, %v5006
      %v5015 = vmul.f32 %v4999, %v5007
      %v5016 = vmul.f32 %v5000, %v5008
      %v5017 = vmul.f32 %v5001, %v5009
      %v5018 = vmul.f32 %v5002, %v5010
      %v5019 = vmul.f32 %v5003, %v5011
      %v5020 = vmul.f32 %v5004, %v5012
      %v5021 = vmul.f32 %v5005, %v5013
      %v5022 = vadd.f32 %v4931, %v5014
      %v5023 = vadd.f32 %v4932, %v5015
      %v5024 = vadd.f32 %v4933, %v5016
      %v5025 = vadd.f32 %v4934, %v5017
      %v5026 = vadd.f32 %v4935, %v5018
      %v5027 = vadd.f32 %v4936, %v5019
      %v5028 = vadd.f32 %v4937, %v5020
      %v5029 = vadd.f32 %v4938, %v5021
      %v5030 = vld [vmem:[%s400 + $0x21] sm:$0x1]
      %v5031 = vlaneseq
      %v5032 = vshrl.u32 %v5031, 7
      %v5033 = vsub.s32 0, %v5032
      %v5034 = vrot.slane %v5030, %v5033
      %v5035 = vmul.f32 %v4502, %v5034
      %v5036 = vmul.f32 %v4503, %v5034
      %v5037 = vmul.f32 %v4504, %v5034
      %v5038 = vmul.f32 %v4505, %v5034
      %v5039 = vmul.f32 %v4506, %v5034
      %v5040 = vmul.f32 %v4507, %v5034
      %v5041 = vmul.f32 %v4508, %v5034
      %v5042 = vmul.f32 %v4522, %v5034
      %v5043 = vld [vmem:[%s400 + $0x2a] sm:$0x1]
      %v5044 = vlaneseq
      %v5045 = vshrl.u32 %v5044, 7
      %v5046 = vsub.s32 0, %v5045
      %v5047 = vrot.slane %v5043, %v5046
      %v5048 = vmul.f32 %v4504, %v5047
      %v5049 = vmul.f32 %v4505, %v5047
      %v5050 = vmul.f32 %v4506, %v5047
      %v5051 = vmul.f32 %v4507, %v5047
      %v5052 = vmul.f32 %v4508, %v5047
      %v5053 = vmul.f32 %v4522, %v5047
      %v5054 = vmul.f32 %v4523, %v5047
      %v5055 = vmul.f32 %v4545, %v5047
      %v5056 = vadd.f32 %v5035, %v5048
      %v5057 = vadd.f32 %v5036, %v5049
      %v5058 = vadd.f32 %v5037, %v5050
      %v5059 = vadd.f32 %v5038, %v5051
      %v5060 = vadd.f32 %v5039, %v5052
      %v5061 = vadd.f32 %v5040, %v5053
      %v5062 = vadd.f32 %v5041, %v5054
      %v5063 = vadd.f32 %v5042, %v5055
      %v5064 = vld [vmem:[%s400 + $0x33] sm:$0x1]
      %v5065 = vld [vmem:[#allocation4 + $0x63] sm:$0xff]
      %v5066 = vlaneseq
      %v5067 = vshrl.u32 %v5066, 7
      %v5068 = vsub.s32 0, %v5067
      %v5069 = vrot.slane %v5064, %v5068
      %v5070 = vmul.f32 %v4506, %v5069
      %v5071 = vmul.f32 %v4507, %v5069
      %v5072 = vmul.f32 %v4508, %v5069
      %v5073 = vmul.f32 %v4522, %v5069
      %v5074 = vmul.f32 %v4523, %v5069
      %v5075 = vmul.f32 %v4545, %v5069
      %v5076 = vmul.f32 %v4546, %v5069
      %v5077 = vmul.f32 %v5065, %v5069
      %v5078 = vadd.f32 %v5056, %v5070
      %v5079 = vadd.f32 %v5057, %v5071
      %v5080 = vadd.f32 %v5058, %v5072
      %v5081 = vadd.f32 %v5059, %v5073
      %v5082 = vadd.f32 %v5060, %v5074
      %v5083 = vadd.f32 %v5061, %v5075
      %v5084 = vadd.f32 %v5062, %v5076
      %v5085 = vadd.f32 %v5063, %v5077
      %v5086 = vld [vmem:[%s3895] sm:$0xff]
      %v5087 = vld [vmem:[%s3895 + $0x8] sm:$0xff]
      %v5088 = vld [vmem:[%s3895 + $0x10] sm:$0xff]
      %v5089 = vld [vmem:[%s3895 + $0x18] sm:$0xff]
      %v5090 = vld [vmem:[%s3895 + $0x20] sm:$0xff]
      %v5091 = vld [vmem:[%s3895 + $0x28] sm:$0xff]
      %v5092 = vld [vmem:[%s3895 + $0x30] sm:$0xff]
      %v5093 = vld [vmem:[%s3895 + $0x38] sm:$0xff]
      %v5094 = vmul.f32 %v5078, %v5086
      %v5095 = vmul.f32 %v5079, %v5087
      %v5096 = vmul.f32 %v5080, %v5088
      %v5097 = vmul.f32 %v5081, %v5089
      %v5098 = vmul.f32 %v5082, %v5090
      %v5099 = vmul.f32 %v5083, %v5091
      %v5100 = vmul.f32 %v5084, %v5092
      %v5101 = vmul.f32 %v5085, %v5093
      %v5102 = vadd.f32 %v5022, %v5094
      %v5103 = vadd.f32 %v5023, %v5095
      %v5104 = vadd.f32 %v5024, %v5096
      %v5105 = vadd.f32 %v5025, %v5097
      %v5106 = vadd.f32 %v5026, %v5098
      %v5107 = vadd.f32 %v5027, %v5099
      %v5108 = vadd.f32 %v5028, %v5100
      %v5109 = vadd.f32 %v5029, %v5101
      %v5110 = vld [vmem:[%s400 + $0x22] sm:$0x1]
      %v5111 = vlaneseq
      %v5112 = vshrl.u32 %v5111, 7
      %v5113 = vsub.s32 0, %v5112
      %v5114 = vrot.slane %v5110, %v5113
      %v5115 = vmul.f32 %v4593, %v5114
      %v5116 = vmul.f32 %v4594, %v5114
      %v5117 = vmul.f32 %v4595, %v5114
      %v5118 = vmul.f32 %v4596, %v5114
      %v5119 = vmul.f32 %v4597, %v5114
      %v5120 = vmul.f32 %v4598, %v5114
      %v5121 = vmul.f32 %v4599, %v5114
      %v5122 = vmul.f32 %v4613, %v5114
      %v5123 = vld [vmem:[%s400 + $0x2b] sm:$0x1]
      %v5124 = vlaneseq
      %v5125 = vshrl.u32 %v5124, 7
      %v5126 = vsub.s32 0, %v5125
      %v5127 = vrot.slane %v5123, %v5126
      %v5128 = vmul.f32 %v4595, %v5127
      %v5129 = vmul.f32 %v4596, %v5127
      %v5130 = vmul.f32 %v4597, %v5127
      %v5131 = vmul.f32 %v4598, %v5127
      %v5132 = vmul.f32 %v4599, %v5127
      %v5133 = vmul.f32 %v4613, %v5127
      %v5134 = vmul.f32 %v4614, %v5127
      %v5135 = vmul.f32 %v4636, %v5127
      %v5136 = vadd.f32 %v5115, %v5128
      %v5137 = vadd.f32 %v5116, %v5129
      %v5138 = vadd.f32 %v5117, %v5130
      %v5139 = vadd.f32 %v5118, %v5131
      %v5140 = vadd.f32 %v5119, %v5132
      %v5141 = vadd.f32 %v5120, %v5133
      %v5142 = vadd.f32 %v5121, %v5134
      %v5143 = vadd.f32 %v5122, %v5135
      %v5144 = vld [vmem:[%s400 + $0x34] sm:$0x1]
      %v5145 = vld [vmem:[#allocation4 + $0x64] sm:$0xff]
      %v5146 = vlaneseq
      %v5147 = vshrl.u32 %v5146, 7
      %v5148 = vsub.s32 0, %v5147
      %v5149 = vrot.slane %v5144, %v5148
      %v5150 = vmul.f32 %v4597, %v5149
      %v5151 = vmul.f32 %v4598, %v5149
      %v5152 = vmul.f32 %v4599, %v5149
      %v5153 = vmul.f32 %v4613, %v5149
      %v5154 = vmul.f32 %v4614, %v5149
      %v5155 = vmul.f32 %v4636, %v5149
      %v5156 = vmul.f32 %v4637, %v5149
      %v5157 = vmul.f32 %v5145, %v5149
      %v5158 = vadd.f32 %v5136, %v5150
      %v5159 = vadd.f32 %v5137, %v5151
      %v5160 = vadd.f32 %v5138, %v5152
      %v5161 = vadd.f32 %v5139, %v5153
      %v5162 = vadd.f32 %v5140, %v5154
      %v5163 = vadd.f32 %v5141, %v5155
      %v5164 = vadd.f32 %v5142, %v5156
      %v5165 = vadd.f32 %v5143, %v5157
      %v5166 = vld [vmem:[%s3976] sm:$0xff]
      %v5167 = vld [vmem:[%s3976 + $0x8] sm:$0xff]
      %v5168 = vld [vmem:[%s3976 + $0x10] sm:$0xff]
      %v5169 = vld [vmem:[%s3976 + $0x18] sm:$0xff]
      %v5170 = vld [vmem:[%s3976 + $0x20] sm:$0xff]
      %v5171 = vld [vmem:[%s3976 + $0x28] sm:$0xff]
      %v5172 = vld [vmem:[%s3976 + $0x30] sm:$0xff]
      %v5173 = vld [vmem:[%s3976 + $0x38] sm:$0xff]
      %v5174 = vmul.f32 %v5158, %v5166
      %v5175 = vmul.f32 %v5159, %v5167
      %v5176 = vmul.f32 %v5160, %v5168
      %v5177 = vmul.f32 %v5161, %v5169
      %v5178 = vmul.f32 %v5162, %v5170
      %v5179 = vmul.f32 %v5163, %v5171
      %v5180 = vmul.f32 %v5164, %v5172
      %v5181 = vmul.f32 %v5165, %v5173
      %v5182 = vadd.f32 %v5102, %v5174
      %v5183 = vadd.f32 %v5103, %v5175
      %v5184 = vadd.f32 %v5104, %v5176
      %v5185 = vadd.f32 %v5105, %v5177
      %v5186 = vadd.f32 %v5106, %v5178
      %v5187 = vadd.f32 %v5107, %v5179
      %v5188 = vadd.f32 %v5108, %v5180
      %v5189 = vadd.f32 %v5109, %v5181
      %v5190 = vld [vmem:[%s400 + $0x23] sm:$0x1]
      %v5191 = vlaneseq
      %v5192 = vshrl.u32 %v5191, 7
      %v5193 = vsub.s32 0, %v5192
      %v5194 = vrot.slane %v5190, %v5193
      %v5195 = vmul.f32 %v4684, %v5194
      %v5196 = vmul.f32 %v4685, %v5194
      %v5197 = vmul.f32 %v4686, %v5194
      %v5198 = vmul.f32 %v4687, %v5194
      %v5199 = vmul.f32 %v4688, %v5194
      %v5200 = vmul.f32 %v4689, %v5194
      %v5201 = vmul.f32 %v4690, %v5194
      %v5202 = vmul.f32 %v4704, %v5194
      %v5203 = vld [vmem:[%s400 + $0x2c] sm:$0x1]
      %v5204 = vlaneseq
      %v5205 = vshrl.u32 %v5204, 7
      %v5206 = vsub.s32 0, %v5205
      %v5207 = vrot.slane %v5203, %v5206
      %v5208 = vmul.f32 %v4686, %v5207
      %v5209 = vmul.f32 %v4687, %v5207
      %v5210 = vmul.f32 %v4688, %v5207
      %v5211 = vmul.f32 %v4689, %v5207
      %v5212 = vmul.f32 %v4690, %v5207
      %v5213 = vmul.f32 %v4704, %v5207
      %v5214 = vmul.f32 %v4705, %v5207
      %v5215 = vmul.f32 %v4727, %v5207
      %v5216 = vadd.f32 %v5195, %v5208
      %v5217 = vadd.f32 %v5196, %v5209
      %v5218 = vadd.f32 %v5197, %v5210
      %v5219 = vadd.f32 %v5198, %v5211
      %v5220 = vadd.f32 %v5199, %v5212
      %v5221 = vadd.f32 %v5200, %v5213
      %v5222 = vadd.f32 %v5201, %v5214
      %v5223 = vadd.f32 %v5202, %v5215
      %v5224 = vld [vmem:[%s400 + $0x35] sm:$0x1]
      %v5225 = vld [vmem:[#allocation4 + $0x65] sm:$0xff]
      %v5226 = vlaneseq
      %v5227 = vshrl.u32 %v5226, 7
      %v5228 = vsub.s32 0, %v5227
      %v5229 = vrot.slane %v5224, %v5228
      %v5230 = vmul.f32 %v4688, %v5229
      %v5231 = vmul.f32 %v4689, %v5229
      %v5232 = vmul.f32 %v4690, %v5229
      %v5233 = vmul.f32 %v4704, %v5229
      %v5234 = vmul.f32 %v4705, %v5229
      %v5235 = vmul.f32 %v4727, %v5229
      %v5236 = vmul.f32 %v4728, %v5229
      %v5237 = vmul.f32 %v5225, %v5229
      %v5238 = vadd.f32 %v5216, %v5230
      %v5239 = vadd.f32 %v5217, %v5231
      %v5240 = vadd.f32 %v5218, %v5232
      %v5241 = vadd.f32 %v5219, %v5233
      %v5242 = vadd.f32 %v5220, %v5234
      %v5243 = vadd.f32 %v5221, %v5235
      %v5244 = vadd.f32 %v5222, %v5236
      %v5245 = vadd.f32 %v5223, %v5237
      %v5246 = vld [vmem:[%s4057] sm:$0xff]
      %v5247 = vld [vmem:[%s4057 + $0x8] sm:$0xff]
      %v5248 = vld [vmem:[%s4057 + $0x10] sm:$0xff]
      %v5249 = vld [vmem:[%s4057 + $0x18] sm:$0xff]
      %v5250 = vld [vmem:[%s4057 + $0x20] sm:$0xff]
      %v5251 = vld [vmem:[%s4057 + $0x28] sm:$0xff]
      %v5252 = vld [vmem:[%s4057 + $0x30] sm:$0xff]
      %v5253 = vld [vmem:[%s4057 + $0x38] sm:$0xff]
      %v5254 = vmul.f32 %v5238, %v5246
      %v5255 = vmul.f32 %v5239, %v5247
      %v5256 = vmul.f32 %v5240, %v5248
      %v5257 = vmul.f32 %v5241, %v5249
      %v5258 = vmul.f32 %v5242, %v5250
      %v5259 = vmul.f32 %v5243, %v5251
      %v5260 = vmul.f32 %v5244, %v5252
      %v5261 = vmul.f32 %v5245, %v5253
      %v5262 = vadd.f32 %v5182, %v5254
      %v5263 = vadd.f32 %v5183, %v5255
      %v5264 = vadd.f32 %v5184, %v5256
      %v5265 = vadd.f32 %v5185, %v5257
      %v5266 = vadd.f32 %v5186, %v5258
      %v5267 = vadd.f32 %v5187, %v5259
      %v5268 = vadd.f32 %v5188, %v5260
      %v5269 = vadd.f32 %v5189, %v5261
      %v5270 = vmul.f32 %v5262, 0.5
      %v5271 = vmul.f32 %v5263, 0.5
      %v5272 = vmul.f32 %v5264, 0.5
      %v5273 = vmul.f32 %v5265, 0.5
      %v5274 = vmul.f32 %v5266, 0.5
      %v5275 = vmul.f32 %v5267, 0.5
      %v5276 = vmul.f32 %v5268, 0.5
      %v5277 = vmul.f32 %v5269, 0.5
      %v5278 = vmul.f32 %v5262, 0.70710677
      %v5279 = vmul.f32 %v5263, 0.70710677
      %v5280 = vmul.f32 %v5264, 0.70710677
      %v5281 = vmul.f32 %v5265, 0.70710677
      %v5282 = vmul.f32 %v5266, 0.70710677
      %v5283 = vmul.f32 %v5267, 0.70710677
      %v5284 = vmul.f32 %v5268, 0.70710677
      %v5285 = vmul.f32 %v5269, 0.70710677
      %v5286 = vmax.f32 %v5278, -3.832507
      %v5287 = vmax.f32 %v5279, -3.832507
      %v5288 = vmax.f32 %v5280, -3.832507
      %v5289 = vmax.f32 %v5281, -3.832507
      %v5290 = vmax.f32 %v5282, -3.832507
      %v5291 = vmax.f32 %v5283, -3.832507
      %v5292 = vmax.f32 %v5284, -3.832507
      %v5293 = vmax.f32 %v5285, -3.832507
      %v5294 = vmin.f32 %v5286, 3.832507
      %v5295 = vmin.f32 %v5287, 3.832507
      %v5296 = vmin.f32 %v5288, 3.832507
      %v5297 = vmin.f32 %v5289, 3.832507
      %v5298 = vmin.f32 %v5290, 3.832507
      %v5299 = vmin.f32 %v5291, 3.832507
      %v5300 = vmin.f32 %v5292, 3.832507
      %v5301 = vmin.f32 %v5293, 3.832507
      %v5302 = vmul.f32 %v5294, %v5294
      %v5303 = vmul.f32 %v5295, %v5295
      %v5304 = vmul.f32 %v5296, %v5296
      %v5305 = vmul.f32 %v5297, %v5297
      %v5306 = vmul.f32 %v5298, %v5298
      %v5307 = vmul.f32 %v5299, %v5299
      %v5308 = vmul.f32 %v5300, %v5300
      %v5309 = vmul.f32 %v5301, %v5301
      %v5310 = vmul.f32 %v5302, 0.00022905065
      %v5311 = vmul.f32 %v5303, 0.00022905065
      %v5312 = vmul.f32 %v5304, 0.00022905065
      %v5313 = vmul.f32 %v5305, 0.00022905065
      %v5314 = vmul.f32 %v5306, 0.00022905065
      %v5315 = vmul.f32 %v5307, 0.00022905065
      %v5316 = vmul.f32 %v5308, 0.00022905065
      %v5317 = vmul.f32 %v5309, 0.00022905065
      %v5318 = vadd.f32 %v5310, 0.003408291
      %v5319 = vadd.f32 %v5311, 0.003408291
      %v5320 = vadd.f32 %v5312, 0.003408291
      %v5321 = vadd.f32 %v5313, 0.003408291
      %v5322 = vadd.f32 %v5314, 0.003408291
      %v5323 = vadd.f32 %v5315, 0.003408291
      %v5324 = vadd.f32 %v5316, 0.003408291
      %v5325 = vadd.f32 %v5317, 0.003408291
      %v5326 = vmul.f32 %v5318, %v5302
      %v5327 = vmul.f32 %v5319, %v5303
      %v5328 = vmul.f32 %v5320, %v5304
      %v5329 = vmul.f32 %v5321, %v5305
      %v5330 = vmul.f32 %v5322, %v5306
      %v5331 = vmul.f32 %v5323, %v5307
      %v5332 = vmul.f32 %v5324, %v5308
      %v5333 = vmul.f32 %v5325, %v5309
      %v5334 = vadd.f32 %v5326, 0.050955694
      %v5335 = vadd.f32 %v5327, 0.050955694
      %v5336 = vadd.f32 %v5328, 0.050955694
      %v5337 = vadd.f32 %v5329, 0.050955694
      %v5338 = vadd.f32 %v5330, 0.050955694
      %v5339 = vadd.f32 %v5331, 0.050955694
      %v5340 = vadd.f32 %v5332, 0.050955694
      %v5341 = vadd.f32 %v5333, 0.050955694
      %v5342 = vmul.f32 %v5334, %v5302
      %v5343 = vmul.f32 %v5335, %v5303
      %v5344 = vmul.f32 %v5336, %v5304
      %v5345 = vmul.f32 %v5337, %v5305
      %v5346 = vmul.f32 %v5338, %v5306
      %v5347 = vmul.f32 %v5339, %v5307
      %v5348 = vmul.f32 %v5340, %v5308
      %v5349 = vmul.f32 %v5341, %v5309
      %v5350 = vadd.f32 %v5342, 0.18520832
      %v5351 = vadd.f32 %v5343, 0.18520832
      %v5352 = vadd.f32 %v5344, 0.18520832
      %v5353 = vadd.f32 %v5345, 0.18520832
      %v5354 = vadd.f32 %v5346, 0.18520832
      %v5355 = vadd.f32 %v5347, 0.18520832
      %v5356 = vadd.f32 %v5348, 0.18520832
      %v5357 = vadd.f32 %v5349, 0.18520832
      %v5358 = vmul.f32 %v5350, %v5302
      %v5359 = vmul.f32 %v5351, %v5303
      %v5360 = vmul.f32 %v5352, %v5304
      %v5361 = vmul.f32 %v5353, %v5305
      %v5362 = vmul.f32 %v5354, %v5306
      %v5363 = vmul.f32 %v5355, %v5307
      %v5364 = vmul.f32 %v5356, %v5308
      %v5365 = vmul.f32 %v5357, %v5309
      %v5366 = vadd.f32 %v5358, 1.1283791
      %v5367 = vadd.f32 %v5359, 1.1283791
      %v5368 = vadd.f32 %v5360, 1.1283791
      %v5369 = vadd.f32 %v5361, 1.1283791
      %v5370 = vadd.f32 %v5362, 1.1283791
      %v5371 = vadd.f32 %v5363, 1.1283791
      %v5372 = vadd.f32 %v5364, 1.1283791
      %v5373 = vadd.f32 %v5365, 1.1283791
      %v5374 = vmul.f32 %v5302, -1.1791603e-07
      %v5375 = vmul.f32 %v5303, -1.1791603e-07
      %v5376 = vmul.f32 %v5304, -1.1791603e-07
      %v5377 = vmul.f32 %v5305, -1.1791603e-07
      %v5378 = vmul.f32 %v5306, -1.1791603e-07
      %v5379 = vmul.f32 %v5307, -1.1791603e-07
      %v5380 = vmul.f32 %v5308, -1.1791603e-07
      %v5381 = vmul.f32 %v5309, -1.1791603e-07
      %v5382 = vadd.f32 %v5374, 2.3547966e-05
      %v5383 = vadd.f32 %v5375, 2.3547966e-05
      %v5384 = vadd.f32 %v5376, 2.3547966e-05
      %v5385 = vadd.f32 %v5377, 2.3547966e-05
      %v5386 = vadd.f32 %v5378, 2.3547966e-05
      %v5387 = vadd.f32 %v5379, 2.3547966e-05
      %v5388 = vadd.f32 %v5380, 2.3547966e-05
      %v5389 = vadd.f32 %v5381, 2.3547966e-05
      %v5390 = vmul.f32 %v5382, %v5302
      %v5391 = vmul.f32 %v5383, %v5303
      %v5392 = vmul.f32 %v5384, %v5304
      %v5393 = vmul.f32 %v5385, %v5305
      %v5394 = vmul.f32 %v5386, %v5306
      %v5395 = vmul.f32 %v5387, %v5307
      %v5396 = vmul.f32 %v5388, %v5308
      %v5397 = vmul.f32 %v5389, %v5309
      %v5398 = vadd.f32 %v5390, 0.0010179626
      %v5399 = vadd.f32 %v5391, 0.0010179626
      %v5400 = vadd.f32 %v5392, 0.0010179626
      %v5401 = vadd.f32 %v5393, 0.0010179626
      %v5402 = vadd.f32 %v5394, 0.0010179626
      %v5403 = vadd.f32 %v5395, 0.0010179626
      %v5404 = vadd.f32 %v5396, 0.0010179626
      %v5405 = vadd.f32 %v5397, 0.0010179626
      %v5406 = vmul.f32 %v5398, %v5302
      %v5407 = vmul.f32 %v5399, %v5303
      %v5408 = vmul.f32 %v5400, %v5304
      %v5409 = vmul.f32 %v5401, %v5305
      %v5410 = vmul.f32 %v5402, %v5306
      %v5411 = vmul.f32 %v5403, %v5307
      %v5412 = vmul.f32 %v5404, %v5308
      %v5413 = vmul.f32 %v5405, %v5309
      %v5414 = vadd.f32 %v5406, 0.01407047
      %v5415 = vadd.f32 %v5407, 0.01407047
      %v5416 = vadd.f32 %v5408, 0.01407047
      %v5417 = vadd.f32 %v5409, 0.01407047
      %v5418 = vadd.f32 %v5410, 0.01407047
      %v5419 = vadd.f32 %v5411, 0.01407047
      %v5420 = vadd.f32 %v5412, 0.01407047
      %v5421 = vadd.f32 %v5413, 0.01407047
      %v5422 = vmul.f32 %v5414, %v5302
      %v5423 = vmul.f32 %v5415, %v5303
      %v5424 = vmul.f32 %v5416, %v5304
      %v5425 = vmul.f32 %v5417, %v5305
      %v5426 = vmul.f32 %v5418, %v5306
      %v5427 = vmul.f32 %v5419, %v5307
      %v5428 = vmul.f32 %v5420, %v5308
      %v5429 = vmul.f32 %v5421, %v5309
      %v5430 = vadd.f32 %v5422, 0.11098505
      %v5431 = vadd.f32 %v5423, 0.11098505
      %v5432 = vadd.f32 %v5424, 0.11098505
      %v5433 = vadd.f32 %v5425, 0.11098505
      %v5434 = vadd.f32 %v5426, 0.11098505
      %v5435 = vadd.f32 %v5427, 0.11098505
      %v5436 = vadd.f32 %v5428, 0.11098505
      %v5437 = vadd.f32 %v5429, 0.11098505
      %v5438 = vmul.f32 %v5430, %v5302
      %v5439 = vmul.f32 %v5431, %v5303
      %v5440 = vmul.f32 %v5432, %v5304
      %v5441 = vmul.f32 %v5433, %v5305
      %v5442 = vmul.f32 %v5434, %v5306
      %v5443 = vmul.f32 %v5435, %v5307
      %v5444 = vmul.f32 %v5436, %v5308
      %v5445 = vmul.f32 %v5437, %v5309
      %v5446 = vadd.f32 %v5438, 0.49746925
      %v5447 = vadd.f32 %v5439, 0.49746925
      %v5448 = vadd.f32 %v5440, 0.49746925
      %v5449 = vadd.f32 %v5441, 0.49746925
      %v5450 = vadd.f32 %v5442, 0.49746925
      %v5451 = vadd.f32 %v5443, 0.49746925
      %v5452 = vadd.f32 %v5444, 0.49746925
      %v5453 = vadd.f32 %v5445, 0.49746925
      %v5454 = vmul.f32 %v5446, %v5302
      %v5455 = vmul.f32 %v5447, %v5303
      %v5456 = vmul.f32 %v5448, %v5304
      %v5457 = vmul.f32 %v5449, %v5305
      %v5458 = vmul.f32 %v5450, %v5306
      %v5459 = vmul.f32 %v5451, %v5307
      %v5460 = vmul.f32 %v5452, %v5308
      %v5461 = vmul.f32 %v5453, %v5309
      %v5462 = vadd.f32 %v5454, 1.0
      %v5463 = vadd.f32 %v5455, 1.0
      %v5464 = vadd.f32 %v5456, 1.0
      %v5465 = vadd.f32 %v5457, 1.0
      %v5466 = vadd.f32 %v5458, 1.0
      %v5467 = vadd.f32 %v5459, 1.0
      %v5468 = vadd.f32 %v5460, 1.0
      %v5469 = vadd.f32 %v5461, 1.0
      %v5470 = vrcp.pop %v5462
      %v5471 = vrcp.pop %v5463
      %v5472 = vrcp.pop %v5464
      %v5473 = vrcp.pop %v5465
      %v5474 = vrcp.pop %v5466
      %v5475 = vrcp.pop %v5467
      %v5476 = vrcp.pop %v5468
      %v5477 = vrcp.pop %v5469
      %v5478 = vmul.f32 %v5462, %v5470
      %v5479 = vmul.f32 %v5463, %v5471
      %v5480 = vmul.f32 %v5464, %v5472
      %v5481 = vmul.f32 %v5465, %v5473
      %v5482 = vmul.f32 %v5466, %v5474
      %v5483 = vmul.f32 %v5467, %v5475
      %v5484 = vmul.f32 %v5468, %v5476
      %v5485 = vmul.f32 %v5469, %v5477
      %v5486 = vsub.f32 2.0, %v5478
      %v5487 = vsub.f32 2.0, %v5479
      %v5488 = vsub.f32 2.0, %v5480
      %v5489 = vsub.f32 2.0, %v5481
      %v5490 = vsub.f32 2.0, %v5482
      %v5491 = vsub.f32 2.0, %v5483
      %v5492 = vsub.f32 2.0, %v5484
      %v5493 = vsub.f32 2.0, %v5485
      %v5494 = vmul.f32 %v5470, %v5486
      %v5495 = vmul.f32 %v5471, %v5487
      %v5496 = vmul.f32 %v5472, %v5488
      %v5497 = vmul.f32 %v5473, %v5489
      %v5498 = vmul.f32 %v5474, %v5490
      %v5499 = vmul.f32 %v5475, %v5491
      %v5500 = vmul.f32 %v5476, %v5492
      %v5501 = vmul.f32 %v5477, %v5493
      %v5502 = vmul.f32 %v5294, %v5366
      %v5503 = vmul.f32 %v5295, %v5367
      %v5504 = vmul.f32 %v5296, %v5368
      %v5505 = vmul.f32 %v5297, %v5369
      %v5506 = vmul.f32 %v5298, %v5370
      %v5507 = vmul.f32 %v5299, %v5371
      %v5508 = vmul.f32 %v5300, %v5372
      %v5509 = vmul.f32 %v5301, %v5373
      %v5510 = vmul.f32 %v5502, %v5494
      %v5511 = vmul.f32 %v5503, %v5495
      %v5512 = vmul.f32 %v5504, %v5496
      %v5513 = vmul.f32 %v5505, %v5497
      %v5514 = vmul.f32 %v5506, %v5498
      %v5515 = vmul.f32 %v5507, %v5499
      %v5516 = vmul.f32 %v5508, %v5500
      %v5517 = vmul.f32 %v5509, %v5501
      %v5518 = vadd.f32 %v5510, 1.0
      %v5519 = vadd.f32 %v5511, 1.0
      %v5520 = vadd.f32 %v5512, 1.0
      %v5521 = vadd.f32 %v5513, 1.0
      %v5522 = vadd.f32 %v5514, 1.0
      %v5523 = vadd.f32 %v5515, 1.0
      %v5524 = vadd.f32 %v5516, 1.0
      %v5525 = vadd.f32 %v5517, 1.0
      %v5526 = vmul.f32 %v5270, %v5518
      %v5527 = vmul.f32 %v5271, %v5519
      %v5528 = vmul.f32 %v5272, %v5520
      %v5529 = vmul.f32 %v5273, %v5521
      %v5530 = vmul.f32 %v5274, %v5522
      %v5531 = vmul.f32 %v5275, %v5523
      %v5532 = vmul.f32 %v5276, %v5524
      %v5533 = vmul.f32 %v5277, %v5525
      %v5534 = vsel %vm754, %v5526, 0.0
      %5535 = vadd.xlane.f32.xlu0 %v5534
      %v5536 = vpop.xlane.xlu0 %5535
      %v5537 = vsel %vm754, %v5527, 0.0
      %5538 = vadd.xlane.f32.xlu0 %v5537
      %v5539 = vpop.xlane.xlu0 %5538
      %v5540 = vsel %vm754, %v5528, 0.0
      %5541 = vadd.xlane.f32.xlu0 %v5540
      %v5542 = vpop.xlane.xlu0 %5541
      %v5543 = vsel %vm754, %v5529, 0.0
      %5544 = vadd.xlane.f32.xlu0 %v5543
      %v5545 = vpop.xlane.xlu0 %5544
      %v5546 = vsel %vm754, %v5530, 0.0
      %5547 = vadd.xlane.f32.xlu0 %v5546
      %v5548 = vpop.xlane.xlu0 %5547
      %v5549 = vsel %vm754, %v5531, 0.0
      %5550 = vadd.xlane.f32.xlu0 %v5549
      %v5551 = vpop.xlane.xlu0 %5550
      %v5552 = vsel %vm754, %v5532, 0.0
      %5553 = vadd.xlane.f32.xlu0 %v5552
      %v5554 = vpop.xlane.xlu0 %5553
      %v5555 = vsel %vm754, %v5533, 0.0
      %5556 = vadd.xlane.f32.xlu0 %v5555
      %v5557 = vpop.xlane.xlu0 %5556
      %v5558 = vmul.f32 %v5536, %v3044
      %v5559 = vmul.f32 %v5539, %v3044
      %v5560 = vmul.f32 %v5542, %v3044
      %v5561 = vmul.f32 %v5545, %v3044
      %v5562 = vmul.f32 %v5548, %v3044
      %v5563 = vmul.f32 %v5551, %v3044
      %v5564 = vmul.f32 %v5554, %v3044
      %v5565 = vmul.f32 %v5557, %v3044
      %v5566 = vsub.f32 %v5526, %v5558
      %v5567 = vsub.f32 %v5527, %v5559
      %v5568 = vsub.f32 %v5528, %v5560
      %v5569 = vsub.f32 %v5529, %v5561
      %v5570 = vsub.f32 %v5530, %v5562
      %v5571 = vsub.f32 %v5531, %v5563
      %v5572 = vsub.f32 %v5532, %v5564
      %v5573 = vsub.f32 %v5533, %v5565
      %v5574 = vmul.f32 %v5566, %v5566
      %v5575 = vmul.f32 %v5567, %v5567
      %v5576 = vmul.f32 %v5568, %v5568
      %v5577 = vmul.f32 %v5569, %v5569
      %v5578 = vmul.f32 %v5570, %v5570
      %v5579 = vmul.f32 %v5571, %v5571
      %v5580 = vmul.f32 %v5572, %v5572
      %v5581 = vmul.f32 %v5573, %v5573
      %v5582 = vsel %vm754, %v5574, 0.0
      %5583 = vadd.xlane.f32.xlu0 %v5582
      %v5584 = vpop.xlane.xlu0 %5583
      %v5585 = vsel %vm754, %v5575, 0.0
      %5586 = vadd.xlane.f32.xlu0 %v5585
      %v5587 = vpop.xlane.xlu0 %5586
      %v5588 = vsel %vm754, %v5576, 0.0
      %5589 = vadd.xlane.f32.xlu0 %v5588
      %v5590 = vpop.xlane.xlu0 %5589
      %v5591 = vsel %vm754, %v5577, 0.0
      %5592 = vadd.xlane.f32.xlu0 %v5591
      %v5593 = vpop.xlane.xlu0 %5592
      %v5594 = vsel %vm754, %v5578, 0.0
      %5595 = vadd.xlane.f32.xlu0 %v5594
      %v5596 = vpop.xlane.xlu0 %5595
      %v5597 = vsel %vm754, %v5579, 0.0
      %5598 = vadd.xlane.f32.xlu0 %v5597
      %v5599 = vpop.xlane.xlu0 %5598
      %v5600 = vsel %vm754, %v5580, 0.0
      %5601 = vadd.xlane.f32.xlu0 %v5600
      %v5602 = vpop.xlane.xlu0 %5601
      %v5603 = vsel %vm754, %v5581, 0.0
      %5604 = vadd.xlane.f32.xlu0 %v5603
      %v5605 = vpop.xlane.xlu0 %5604
      %v5606 = vmul.f32 %v5584, %v3044
      %v5607 = vmul.f32 %v5587, %v3044
      %v5608 = vmul.f32 %v5590, %v3044
      %v5609 = vmul.f32 %v5593, %v3044
      %v5610 = vmul.f32 %v5596, %v3044
      %v5611 = vmul.f32 %v5599, %v3044
      %v5612 = vmul.f32 %v5602, %v3044
      %v5613 = vmul.f32 %v5605, %v3044
      %v5614 = vld [vmem:[%s405 + $0x7] sm:$0x1]
      %v5615 = vld [vmem:[%s405 + $0x8] sm:$0x1]
      %v5616 = vadd.f32 %v5606, 1e-05
      %v5617 = vadd.f32 %v5607, 1e-05
      %v5618 = vadd.f32 %v5608, 1e-05
      %v5619 = vadd.f32 %v5609, 1e-05
      %v5620 = vadd.f32 %v5610, 1e-05
      %v5621 = vadd.f32 %v5611, 1e-05
      %v5622 = vadd.f32 %v5612, 1e-05
      %v5623 = vadd.f32 %v5613, 1e-05
      %v5624 = vrsqrt.pop %v5616
      %v5625 = vrsqrt.pop %v5617
      %v5626 = vrsqrt.pop %v5618
      %v5627 = vrsqrt.pop %v5619
      %v5628 = vrsqrt.pop %v5620
      %v5629 = vrsqrt.pop %v5621
      %v5630 = vrsqrt.pop %v5622
      %v5631 = vrsqrt.pop %v5623
      %v5632 = vmul.f32 %v5566, %v5624
      %v5633 = vmul.f32 %v5567, %v5625
      %v5634 = vmul.f32 %v5568, %v5626
      %v5635 = vmul.f32 %v5569, %v5627
      %v5636 = vmul.f32 %v5570, %v5628
      %v5637 = vmul.f32 %v5571, %v5629
      %v5638 = vmul.f32 %v5572, %v5630
      %v5639 = vmul.f32 %v5573, %v5631
      %v5640 = vlaneseq
      %v5641 = vshrl.u32 %v5640, 7
      %v5642 = vsub.s32 0, %v5641
      %v5643 = vrot.slane %v5614, %v5642
      %v5644 = vmul.f32 %v5632, %v5643
      %v5645 = vmul.f32 %v5633, %v5643
      %v5646 = vmul.f32 %v5634, %v5643
      %v5647 = vmul.f32 %v5635, %v5643
      %v5648 = vmul.f32 %v5636, %v5643
      %v5649 = vmul.f32 %v5637, %v5643
      %v5650 = vmul.f32 %v5638, %v5643
      %v5651 = vmul.f32 %v5639, %v5643
      %v5652 = vlaneseq
      %v5653 = vshrl.u32 %v5652, 7
      %v5654 = vsub.s32 0, %v5653
      %v5655 = vrot.slane %v5615, %v5654
      %v5656 = vadd.f32 %v5644, %v5655
      %v5657 = vadd.f32 %v5645, %v5655
      %v5658 = vadd.f32 %v5646, %v5655
      %v5659 = vadd.f32 %v5647, %v5655
      %v5660 = vadd.f32 %v5648, %v5655
      %v5661 = vadd.f32 %v5649, %v5655
      %v5662 = vadd.f32 %v5650, %v5655
      %v5663 = vadd.f32 %v5651, %v5655
      %v5664 = vadd.f32 %v4484, %v5656
      %v5665 = vadd.f32 %v4485, %v5657
      %v5666 = vadd.f32 %v4486, %v5658
      %v5667 = vadd.f32 %v4487, %v5659
      %v5668 = vadd.f32 %v4488, %v5660
      %v5669 = vadd.f32 %v4489, %v5661
      %v5670 = vadd.f32 %v4490, %v5662
      %v5671 = vadd.f32 %v4491, %v5663
      %v5672 = vadd.f32 %v4484, %v5664
      %v5673 = vadd.f32 %v4485, %v5665
      %v5674 = vadd.f32 %v4486, %v5666
      %v5675 = vadd.f32 %v4487, %v5667
      %v5676 = vadd.f32 %v4488, %v5668
      %v5677 = vadd.f32 %v4489, %v5669
      %v5678 = vadd.f32 %v4490, %v5670
      %v5679 = vadd.f32 %v4491, %v5671
      %5680 = vst.msk [vmem:[#allocation4 + $0x18] sm:$0xff] %vm754, %v5664
      %5681 = vst.msk [vmem:[#allocation4 + $0x20] sm:$0xff] %vm754, %v5665
      %5682 = vst.msk [vmem:[#allocation4 + $0x28] sm:$0xff] %vm754, %v5666
      %5683 = vst.msk [vmem:[#allocation4 + $0x30] sm:$0xff] %vm754, %v5667
      %5684 = vst.msk [vmem:[#allocation4 + $0x38] sm:$0xff] %vm754, %v5668
      %5685 = vst.msk [vmem:[#allocation4 + $0x40] sm:$0xff] %vm754, %v5669
      %5686 = vst.msk [vmem:[#allocation4 + $0x48] sm:$0xff] %vm754, %v5670
      %5687 = vst.msk [vmem:[#allocation4 + $0x50] sm:$0xff] %vm754, %v5671
      %v5688 = vld [vmem:[%s400 + $0x36] sm:$0x1]
      %v5689 = vld [vmem:[#allocation4 + $0x3] sm:$0xff]
      %v5690 = vld [vmem:[#allocation4 + $0xb] sm:$0xff]
      %v5691 = vld [vmem:[#allocation4 + $0x13] sm:$0xff]
      %v5692 = vld [vmem:[#allocation4 + $0x1b] sm:$0xff]
      %v5693 = vld [vmem:[#allocation4 + $0x23] sm:$0xff]
      %v5694 = vld [vmem:[#allocation4 + $0x2b] sm:$0xff]
      %v5695 = vld [vmem:[#allocation4 + $0x33] sm:$0xff]
      %v5696 = vld [vmem:[#allocation4 + $0x3b] sm:$0xff]
      %v5697 = vlaneseq
      %v5698 = vshrl.u32 %v5697, 7
      %v5699 = vsub.s32 0, %v5698
      %v5700 = vrot.slane %v5688, %v5699
      %v5701 = vmul.f32 %v5689, %v5700
      %v5702 = vmul.f32 %v5690, %v5700
      %v5703 = vmul.f32 %v5691, %v5700
      %v5704 = vmul.f32 %v5692, %v5700
      %v5705 = vmul.f32 %v5693, %v5700
      %v5706 = vmul.f32 %v5694, %v5700
      %v5707 = vmul.f32 %v5695, %v5700
      %v5708 = vmul.f32 %v5696, %v5700
      %v5709 = vld [vmem:[%s400 + $0x3f] sm:$0x1]
      %v5710 = vld [vmem:[#allocation4 + $0x43] sm:$0xff]
      %v5711 = vld [vmem:[#allocation4 + $0x4b] sm:$0xff]
      %v5712 = vlaneseq
      %v5713 = vshrl.u32 %v5712, 7
      %v5714 = vsub.s32 0, %v5713
      %v5715 = vrot.slane %v5709, %v5714
      %v5716 = vmul.f32 %v5691, %v5715
      %v5717 = vmul.f32 %v5692, %v5715
      %v5718 = vmul.f32 %v5693, %v5715
      %v5719 = vmul.f32 %v5694, %v5715
      %v5720 = vmul.f32 %v5695, %v5715
      %v5721 = vmul.f32 %v5696, %v5715
      %v5722 = vmul.f32 %v5710, %v5715
      %v5723 = vmul.f32 %v5711, %v5715
      %v5724 = vadd.f32 %v5701, %v5716
      %v5725 = vadd.f32 %v5702, %v5717
      %v5726 = vadd.f32 %v5703, %v5718
      %v5727 = vadd.f32 %v5704, %v5719
      %v5728 = vadd.f32 %v5705, %v5720
      %v5729 = vadd.f32 %v5706, %v5721
      %v5730 = vadd.f32 %v5707, %v5722
      %v5731 = vadd.f32 %v5708, %v5723
      %v5732 = vld [vmem:[%s400 + $0x48] sm:$0x1]
      %v5733 = vld [vmem:[#allocation4 + $0x53] sm:$0xff]
      %v5734 = vld [vmem:[#allocation4 + $0x5b] sm:$0xff]
      %v5735 = vlaneseq
      %v5736 = vshrl.u32 %v5735, 7
      %v5737 = vsub.s32 0, %v5736
      %v5738 = vrot.slane %v5732, %v5737
      %v5739 = vmul.f32 %v5693, %v5738
      %v5740 = vmul.f32 %v5694, %v5738
      %v5741 = vmul.f32 %v5695, %v5738
      %v5742 = vmul.f32 %v5696, %v5738
      %v5743 = vmul.f32 %v5710, %v5738
      %v5744 = vmul.f32 %v5711, %v5738
      %v5745 = vmul.f32 %v5733, %v5738
      %v5746 = vmul.f32 %v5734, %v5738
      %v5747 = vadd.f32 %v5724, %v5739
      %v5748 = vadd.f32 %v5725, %v5740
      %v5749 = vadd.f32 %v5726, %v5741
      %v5750 = vadd.f32 %v5727, %v5742
      %v5751 = vadd.f32 %v5728, %v5743
      %v5752 = vadd.f32 %v5729, %v5744
      %v5753 = vadd.f32 %v5730, %v5745
      %v5754 = vadd.f32 %v5731, %v5746
      %v5755 = vld [vmem:[#allocation5] sm:$0xff]
      %v5756 = vld [vmem:[#allocation5 + $0x8] sm:$0xff]
      %v5757 = vld [vmem:[#allocation5 + $0x10] sm:$0xff]
      %v5758 = vld [vmem:[#allocation5 + $0x18] sm:$0xff]
      %v5759 = vld [vmem:[#allocation5 + $0x20] sm:$0xff]
      %v5760 = vld [vmem:[#allocation5 + $0x28] sm:$0xff]
      %v5761 = vld [vmem:[#allocation5 + $0x30] sm:$0xff]
      %v5762 = vld [vmem:[#allocation5 + $0x38] sm:$0xff]
      %v5763 = vmul.f32 %v5747, %v5755
      %v5764 = vmul.f32 %v5748, %v5756
      %v5765 = vmul.f32 %v5749, %v5757
      %v5766 = vmul.f32 %v5750, %v5758
      %v5767 = vmul.f32 %v5751, %v5759
      %v5768 = vmul.f32 %v5752, %v5760
      %v5769 = vmul.f32 %v5753, %v5761
      %v5770 = vmul.f32 %v5754, %v5762
      %v5771 = vadd.f32 %v5763, 0.0
      %v5772 = vadd.f32 %v5764, 0.0
      %v5773 = vadd.f32 %v5765, 0.0
      %v5774 = vadd.f32 %v5766, 0.0
      %v5775 = vadd.f32 %v5767, 0.0
      %v5776 = vadd.f32 %v5768, 0.0
      %v5777 = vadd.f32 %v5769, 0.0
      %v5778 = vadd.f32 %v5770, 0.0
      %v5779 = vld [vmem:[%s400 + $0x37] sm:$0x1]
      %v5780 = vld [vmem:[#allocation4 + $0x4] sm:$0xff]
      %v5781 = vld [vmem:[#allocation4 + $0xc] sm:$0xff]
      %v5782 = vld [vmem:[#allocation4 + $0x14] sm:$0xff]
      %v5783 = vld [vmem:[#allocation4 + $0x1c] sm:$0xff]
      %v5784 = vld [vmem:[#allocation4 + $0x24] sm:$0xff]
      %v5785 = vld [vmem:[#allocation4 + $0x2c] sm:$0xff]
      %v5786 = vld [vmem:[#allocation4 + $0x34] sm:$0xff]
      %v5787 = vld [vmem:[#allocation4 + $0x3c] sm:$0xff]
      %v5788 = vlaneseq
      %v5789 = vshrl.u32 %v5788, 7
      %v5790 = vsub.s32 0, %v5789
      %v5791 = vrot.slane %v5779, %v5790
      %v5792 = vmul.f32 %v5780, %v5791
      %v5793 = vmul.f32 %v5781, %v5791
      %v5794 = vmul.f32 %v5782, %v5791
      %v5795 = vmul.f32 %v5783, %v5791
      %v5796 = vmul.f32 %v5784, %v5791
      %v5797 = vmul.f32 %v5785, %v5791
      %v5798 = vmul.f32 %v5786, %v5791
      %v5799 = vmul.f32 %v5787, %v5791
      %v5800 = vld [vmem:[%s400 + $0x40] sm:$0x1]
      %v5801 = vld [vmem:[#allocation4 + $0x44] sm:$0xff]
      %v5802 = vld [vmem:[#allocation4 + $0x4c] sm:$0xff]
      %v5803 = vlaneseq
      %v5804 = vshrl.u32 %v5803, 7
      %v5805 = vsub.s32 0, %v5804
      %v5806 = vrot.slane %v5800, %v5805
      %v5807 = vmul.f32 %v5782, %v5806
      %v5808 = vmul.f32 %v5783, %v5806
      %v5809 = vmul.f32 %v5784, %v5806
      %v5810 = vmul.f32 %v5785, %v5806
      %v5811 = vmul.f32 %v5786, %v5806
      %v5812 = vmul.f32 %v5787, %v5806
      %v5813 = vmul.f32 %v5801, %v5806
      %v5814 = vmul.f32 %v5802, %v5806
      %v5815 = vadd.f32 %v5792, %v5807
      %v5816 = vadd.f32 %v5793, %v5808
      %v5817 = vadd.f32 %v5794, %v5809
      %v5818 = vadd.f32 %v5795, %v5810
      %v5819 = vadd.f32 %v5796, %v5811
      %v5820 = vadd.f32 %v5797, %v5812
      %v5821 = vadd.f32 %v5798, %v5813
      %v5822 = vadd.f32 %v5799, %v5814
      %v5823 = vld [vmem:[%s400 + $0x49] sm:$0x1]
      %v5824 = vld [vmem:[#allocation4 + $0x54] sm:$0xff]
      %v5825 = vld [vmem:[#allocation4 + $0x5c] sm:$0xff]
      %v5826 = vlaneseq
      %v5827 = vshrl.u32 %v5826, 7
      %v5828 = vsub.s32 0, %v5827
      %v5829 = vrot.slane %v5823, %v5828
      %v5830 = vmul.f32 %v5784, %v5829
      %v5831 = vmul.f32 %v5785, %v5829
      %v5832 = vmul.f32 %v5786, %v5829
      %v5833 = vmul.f32 %v5787, %v5829
      %v5834 = vmul.f32 %v5801, %v5829
      %v5835 = vmul.f32 %v5802, %v5829
      %v5836 = vmul.f32 %v5824, %v5829
      %v5837 = vmul.f32 %v5825, %v5829
      %v5838 = vadd.f32 %v5815, %v5830
      %v5839 = vadd.f32 %v5816, %v5831
      %v5840 = vadd.f32 %v5817, %v5832
      %v5841 = vadd.f32 %v5818, %v5833
      %v5842 = vadd.f32 %v5819, %v5834
      %v5843 = vadd.f32 %v5820, %v5835
      %v5844 = vadd.f32 %v5821, %v5836
      %v5845 = vadd.f32 %v5822, %v5837
      %v5846 = vld [vmem:[%s3463] sm:$0xff]
      %v5847 = vld [vmem:[%s3463 + $0x8] sm:$0xff]
      %v5848 = vld [vmem:[%s3463 + $0x10] sm:$0xff]
      %v5849 = vld [vmem:[%s3463 + $0x18] sm:$0xff]
      %v5850 = vld [vmem:[%s3463 + $0x20] sm:$0xff]
      %v5851 = vld [vmem:[%s3463 + $0x28] sm:$0xff]
      %v5852 = vld [vmem:[%s3463 + $0x30] sm:$0xff]
      %v5853 = vld [vmem:[%s3463 + $0x38] sm:$0xff]
      %v5854 = vmul.f32 %v5838, %v5846
      %v5855 = vmul.f32 %v5839, %v5847
      %v5856 = vmul.f32 %v5840, %v5848
      %v5857 = vmul.f32 %v5841, %v5849
      %v5858 = vmul.f32 %v5842, %v5850
      %v5859 = vmul.f32 %v5843, %v5851
      %v5860 = vmul.f32 %v5844, %v5852
      %v5861 = vmul.f32 %v5845, %v5853
      %v5862 = vadd.f32 %v5771, %v5854
      %v5863 = vadd.f32 %v5772, %v5855
      %v5864 = vadd.f32 %v5773, %v5856
      %v5865 = vadd.f32 %v5774, %v5857
      %v5866 = vadd.f32 %v5775, %v5858
      %v5867 = vadd.f32 %v5776, %v5859
      %v5868 = vadd.f32 %v5777, %v5860
      %v5869 = vadd.f32 %v5778, %v5861
      %v5870 = vld [vmem:[%s400 + $0x38] sm:$0x1]
      %v5871 = vld [vmem:[#allocation4 + $0x5] sm:$0xff]
      %v5872 = vld [vmem:[#allocation4 + $0xd] sm:$0xff]
      %v5873 = vld [vmem:[#allocation4 + $0x15] sm:$0xff]
      %v5874 = vld [vmem:[#allocation4 + $0x1d] sm:$0xff]
      %v5875 = vld [vmem:[#allocation4 + $0x25] sm:$0xff]
      %v5876 = vld [vmem:[#allocation4 + $0x2d] sm:$0xff]
      %v5877 = vld [vmem:[#allocation4 + $0x35] sm:$0xff]
      %v5878 = vld [vmem:[#allocation4 + $0x3d] sm:$0xff]
      %v5879 = vlaneseq
      %v5880 = vshrl.u32 %v5879, 7
      %v5881 = vsub.s32 0, %v5880
      %v5882 = vrot.slane %v5870, %v5881
      %v5883 = vmul.f32 %v5871, %v5882
      %v5884 = vmul.f32 %v5872, %v5882
      %v5885 = vmul.f32 %v5873, %v5882
      %v5886 = vmul.f32 %v5874, %v5882
      %v5887 = vmul.f32 %v5875, %v5882
      %v5888 = vmul.f32 %v5876, %v5882
      %v5889 = vmul.f32 %v5877, %v5882
      %v5890 = vmul.f32 %v5878, %v5882
      %v5891 = vld [vmem:[%s400 + $0x41] sm:$0x1]
      %v5892 = vld [vmem:[#allocation4 + $0x45] sm:$0xff]
      %v5893 = vld [vmem:[#allocation4 + $0x4d] sm:$0xff]
      %v5894 = vlaneseq
      %v5895 = vshrl.u32 %v5894, 7
      %v5896 = vsub.s32 0, %v5895
      %v5897 = vrot.slane %v5891, %v5896
      %v5898 = vmul.f32 %v5873, %v5897
      %v5899 = vmul.f32 %v5874, %v5897
      %v5900 = vmul.f32 %v5875, %v5897
      %v5901 = vmul.f32 %v5876, %v5897
      %v5902 = vmul.f32 %v5877, %v5897
      %v5903 = vmul.f32 %v5878, %v5897
      %v5904 = vmul.f32 %v5892, %v5897
      %v5905 = vmul.f32 %v5893, %v5897
      %v5906 = vadd.f32 %v5883, %v5898
      %v5907 = vadd.f32 %v5884, %v5899
      %v5908 = vadd.f32 %v5885, %v5900
      %v5909 = vadd.f32 %v5886, %v5901
      %v5910 = vadd.f32 %v5887, %v5902
      %v5911 = vadd.f32 %v5888, %v5903
      %v5912 = vadd.f32 %v5889, %v5904
      %v5913 = vadd.f32 %v5890, %v5905
      %v5914 = vld [vmem:[%s400 + $0x4a] sm:$0x1]
      %v5915 = vld [vmem:[#allocation4 + $0x55] sm:$0xff]
      %v5916 = vld [vmem:[#allocation4 + $0x5d] sm:$0xff]
      %v5917 = vlaneseq
      %v5918 = vshrl.u32 %v5917, 7
      %v5919 = vsub.s32 0, %v5918
      %v5920 = vrot.slane %v5914, %v5919
      %v5921 = vmul.f32 %v5875, %v5920
      %v5922 = vmul.f32 %v5876, %v5920
      %v5923 = vmul.f32 %v5877, %v5920
      %v5924 = vmul.f32 %v5878, %v5920
      %v5925 = vmul.f32 %v5892, %v5920
      %v5926 = vmul.f32 %v5893, %v5920
      %v5927 = vmul.f32 %v5915, %v5920
      %v5928 = vmul.f32 %v5916, %v5920
      %v5929 = vadd.f32 %v5906, %v5921
      %v5930 = vadd.f32 %v5907, %v5922
      %v5931 = vadd.f32 %v5908, %v5923
      %v5932 = vadd.f32 %v5909, %v5924
      %v5933 = vadd.f32 %v5910, %v5925
      %v5934 = vadd.f32 %v5911, %v5926
      %v5935 = vadd.f32 %v5912, %v5927
      %v5936 = vadd.f32 %v5913, %v5928
      %v5937 = vld [vmem:[%s3555] sm:$0xff]
      %v5938 = vld [vmem:[%s3555 + $0x8] sm:$0xff]
      %v5939 = vld [vmem:[%s3555 + $0x10] sm:$0xff]
      %v5940 = vld [vmem:[%s3555 + $0x18] sm:$0xff]
      %v5941 = vld [vmem:[%s3555 + $0x20] sm:$0xff]
      %v5942 = vld [vmem:[%s3555 + $0x28] sm:$0xff]
      %v5943 = vld [vmem:[%s3555 + $0x30] sm:$0xff]
      %v5944 = vld [vmem:[%s3555 + $0x38] sm:$0xff]
      %v5945 = vmul.f32 %v5929, %v5937
      %v5946 = vmul.f32 %v5930, %v5938
      %v5947 = vmul.f32 %v5931, %v5939
      %v5948 = vmul.f32 %v5932, %v5940
      %v5949 = vmul.f32 %v5933, %v5941
      %v5950 = vmul.f32 %v5934, %v5942
      %v5951 = vmul.f32 %v5935, %v5943
      %v5952 = vmul.f32 %v5936, %v5944
      %v5953 = vadd.f32 %v5862, %v5945
      %v5954 = vadd.f32 %v5863, %v5946
      %v5955 = vadd.f32 %v5864, %v5947
      %v5956 = vadd.f32 %v5865, %v5948
      %v5957 = vadd.f32 %v5866, %v5949
      %v5958 = vadd.f32 %v5867, %v5950
      %v5959 = vadd.f32 %v5868, %v5951
      %v5960 = vadd.f32 %v5869, %v5952
      %v5961 = vld [vmem:[%s400 + $0x39] sm:$0x1]
      %v5962 = vld [vmem:[#allocation4 + $0x7] sm:$0xff]
      %v5963 = vld [vmem:[#allocation4 + $0xf] sm:$0xff]
      %v5964 = vld [vmem:[#allocation4 + $0x17] sm:$0xff]
      %v5965 = vld [vmem:[#allocation4 + $0x1f] sm:$0xff]
      %v5966 = vld [vmem:[#allocation4 + $0x27] sm:$0xff]
      %v5967 = vld [vmem:[#allocation4 + $0x2f] sm:$0xff]
      %v5968 = vld [vmem:[#allocation4 + $0x37] sm:$0xff]
      %v5969 = vld [vmem:[#allocation4 + $0x3f] sm:$0xff]
      %v5970 = vlaneseq
      %v5971 = vshrl.u32 %v5970, 7
      %v5972 = vsub.s32 0, %v5971
      %v5973 = vrot.slane %v5961, %v5972
      %v5974 = vmul.f32 %v5962, %v5973
      %v5975 = vmul.f32 %v5963, %v5973
      %v5976 = vmul.f32 %v5964, %v5973
      %v5977 = vmul.f32 %v5965, %v5973
      %v5978 = vmul.f32 %v5966, %v5973
      %v5979 = vmul.f32 %v5967, %v5973
      %v5980 = vmul.f32 %v5968, %v5973
      %v5981 = vmul.f32 %v5969, %v5973
      %v5982 = vld [vmem:[%s400 + $0x42] sm:$0x1]
      %v5983 = vld [vmem:[#allocation4 + $0x47] sm:$0xff]
      %v5984 = vld [vmem:[#allocation4 + $0x4f] sm:$0xff]
      %v5985 = vlaneseq
      %v5986 = vshrl.u32 %v5985, 7
      %v5987 = vsub.s32 0, %v5986
      %v5988 = vrot.slane %v5982, %v5987
      %v5989 = vmul.f32 %v5964, %v5988
      %v5990 = vmul.f32 %v5965, %v5988
      %v5991 = vmul.f32 %v5966, %v5988
      %v5992 = vmul.f32 %v5967, %v5988
      %v5993 = vmul.f32 %v5968, %v5988
      %v5994 = vmul.f32 %v5969, %v5988
      %v5995 = vmul.f32 %v5983, %v5988
      %v5996 = vmul.f32 %v5984, %v5988
      %v5997 = vadd.f32 %v5974, %v5989
      %v5998 = vadd.f32 %v5975, %v5990
      %v5999 = vadd.f32 %v5976, %v5991
      %v6000 = vadd.f32 %v5977, %v5992
      %v6001 = vadd.f32 %v5978, %v5993
      %v6002 = vadd.f32 %v5979, %v5994
      %v6003 = vadd.f32 %v5980, %v5995
      %v6004 = vadd.f32 %v5981, %v5996
      %v6005 = vld [vmem:[%s400 + $0x4b] sm:$0x1]
      %v6006 = vld [vmem:[#allocation4 + $0x57] sm:$0xff]
      %v6007 = vld [vmem:[#allocation4 + $0x5f] sm:$0xff]
      %v6008 = vlaneseq
      %v6009 = vshrl.u32 %v6008, 7
      %v6010 = vsub.s32 0, %v6009
      %v6011 = vrot.slane %v6005, %v6010
      %v6012 = vmul.f32 %v5966, %v6011
      %v6013 = vmul.f32 %v5967, %v6011
      %v6014 = vmul.f32 %v5968, %v6011
      %v6015 = vmul.f32 %v5969, %v6011
      %v6016 = vmul.f32 %v5983, %v6011
      %v6017 = vmul.f32 %v5984, %v6011
      %v6018 = vmul.f32 %v6006, %v6011
      %v6019 = vmul.f32 %v6007, %v6011
      %v6020 = vadd.f32 %v5997, %v6012
      %v6021 = vadd.f32 %v5998, %v6013
      %v6022 = vadd.f32 %v5999, %v6014
      %v6023 = vadd.f32 %v6000, %v6015
      %v6024 = vadd.f32 %v6001, %v6016
      %v6025 = vadd.f32 %v6002, %v6017
      %v6026 = vadd.f32 %v6003, %v6018
      %v6027 = vadd.f32 %v6004, %v6019
      %v6028 = vld [vmem:[%s3647] sm:$0xff]
      %v6029 = vld [vmem:[%s3647 + $0x8] sm:$0xff]
      %v6030 = vld [vmem:[%s3647 + $0x10] sm:$0xff]
      %v6031 = vld [vmem:[%s3647 + $0x18] sm:$0xff]
      %v6032 = vld [vmem:[%s3647 + $0x20] sm:$0xff]
      %v6033 = vld [vmem:[%s3647 + $0x28] sm:$0xff]
      %v6034 = vld [vmem:[%s3647 + $0x30] sm:$0xff]
      %v6035 = vld [vmem:[%s3647 + $0x38] sm:$0xff]
      %v6036 = vmul.f32 %v6020, %v6028
      %v6037 = vmul.f32 %v6021, %v6029
      %v6038 = vmul.f32 %v6022, %v6030
      %v6039 = vmul.f32 %v6023, %v6031
      %v6040 = vmul.f32 %v6024, %v6032
      %v6041 = vmul.f32 %v6025, %v6033
      %v6042 = vmul.f32 %v6026, %v6034
      %v6043 = vmul.f32 %v6027, %v6035
      %v6044 = vadd.f32 %v5953, %v6036
      %v6045 = vadd.f32 %v5954, %v6037
      %v6046 = vadd.f32 %v5955, %v6038
      %v6047 = vadd.f32 %v5956, %v6039
      %v6048 = vadd.f32 %v5957, %v6040
      %v6049 = vadd.f32 %v5958, %v6041
      %v6050 = vadd.f32 %v5959, %v6042
      %v6051 = vadd.f32 %v5960, %v6043
      %v6052 = vld [vmem:[%s400 + $0x3a] sm:$0x1]
      %v6053 = vld [vmem:[#allocation4 + $0x8] sm:$0xff]
      %v6054 = vld [vmem:[#allocation4 + $0x10] sm:$0xff]
      %v6055 = vld [vmem:[#allocation4 + $0x18] sm:$0xff]
      %v6056 = vld [vmem:[#allocation4 + $0x20] sm:$0xff]
      %v6057 = vld [vmem:[#allocation4 + $0x28] sm:$0xff]
      %v6058 = vld [vmem:[#allocation4 + $0x30] sm:$0xff]
      %v6059 = vld [vmem:[#allocation4 + $0x38] sm:$0xff]
      %v6060 = vld [vmem:[#allocation4 + $0x40] sm:$0xff]
      %v6061 = vlaneseq
      %v6062 = vshrl.u32 %v6061, 7
      %v6063 = vsub.s32 0, %v6062
      %v6064 = vrot.slane %v6052, %v6063
      %v6065 = vmul.f32 %v6053, %v6064
      %v6066 = vmul.f32 %v6054, %v6064
      %v6067 = vmul.f32 %v6055, %v6064
      %v6068 = vmul.f32 %v6056, %v6064
      %v6069 = vmul.f32 %v6057, %v6064
      %v6070 = vmul.f32 %v6058, %v6064
      %v6071 = vmul.f32 %v6059, %v6064
      %v6072 = vmul.f32 %v6060, %v6064
      %v6073 = vld [vmem:[%s400 + $0x43] sm:$0x1]
      %v6074 = vld [vmem:[#allocation4 + $0x48] sm:$0xff]
      %v6075 = vld [vmem:[#allocation4 + $0x50] sm:$0xff]
      %v6076 = vlaneseq
      %v6077 = vshrl.u32 %v6076, 7
      %v6078 = vsub.s32 0, %v6077
      %v6079 = vrot.slane %v6073, %v6078
      %v6080 = vmul.f32 %v6055, %v6079
      %v6081 = vmul.f32 %v6056, %v6079
      %v6082 = vmul.f32 %v6057, %v6079
      %v6083 = vmul.f32 %v6058, %v6079
      %v6084 = vmul.f32 %v6059, %v6079
      %v6085 = vmul.f32 %v6060, %v6079
      %v6086 = vmul.f32 %v6074, %v6079
      %v6087 = vmul.f32 %v6075, %v6079
      %v6088 = vadd.f32 %v6065, %v6080
      %v6089 = vadd.f32 %v6066, %v6081
      %v6090 = vadd.f32 %v6067, %v6082
      %v6091 = vadd.f32 %v6068, %v6083
      %v6092 = vadd.f32 %v6069, %v6084
      %v6093 = vadd.f32 %v6070, %v6085
      %v6094 = vadd.f32 %v6071, %v6086
      %v6095 = vadd.f32 %v6072, %v6087
      %v6096 = vld [vmem:[%s400 + $0x4c] sm:$0x1]
      %v6097 = vld [vmem:[#allocation4 + $0x58] sm:$0xff]
      %v6098 = vld [vmem:[#allocation4 + $0x60] sm:$0xff]
      %v6099 = vlaneseq
      %v6100 = vshrl.u32 %v6099, 7
      %v6101 = vsub.s32 0, %v6100
      %v6102 = vrot.slane %v6096, %v6101
      %v6103 = vmul.f32 %v6057, %v6102
      %v6104 = vmul.f32 %v6058, %v6102
      %v6105 = vmul.f32 %v6059, %v6102
      %v6106 = vmul.f32 %v6060, %v6102
      %v6107 = vmul.f32 %v6074, %v6102
      %v6108 = vmul.f32 %v6075, %v6102
      %v6109 = vmul.f32 %v6097, %v6102
      %v6110 = vmul.f32 %v6098, %v6102
      %v6111 = vadd.f32 %v6088, %v6103
      %v6112 = vadd.f32 %v6089, %v6104
      %v6113 = vadd.f32 %v6090, %v6105
      %v6114 = vadd.f32 %v6091, %v6106
      %v6115 = vadd.f32 %v6092, %v6107
      %v6116 = vadd.f32 %v6093, %v6108
      %v6117 = vadd.f32 %v6094, %v6109
      %v6118 = vadd.f32 %v6095, %v6110
      %v6119 = vadd.f32 %v6044, %v6111
      %v6120 = vadd.f32 %v6045, %v6112
      %v6121 = vadd.f32 %v6046, %v6113
      %v6122 = vadd.f32 %v6047, %v6114
      %v6123 = vadd.f32 %v6048, %v6115
      %v6124 = vadd.f32 %v6049, %v6116
      %v6125 = vadd.f32 %v6050, %v6117
      %v6126 = vadd.f32 %v6051, %v6118
      %v6127 = vld [vmem:[%s400 + $0x3b] sm:$0x1]
      %v6128 = vld [vmem:[#allocation4 + $0x9] sm:$0xff]
      %v6129 = vld [vmem:[#allocation4 + $0x11] sm:$0xff]
      %v6130 = vld [vmem:[#allocation4 + $0x19] sm:$0xff]
      %v6131 = vld [vmem:[#allocation4 + $0x21] sm:$0xff]
      %v6132 = vld [vmem:[#allocation4 + $0x29] sm:$0xff]
      %v6133 = vld [vmem:[#allocation4 + $0x31] sm:$0xff]
      %v6134 = vld [vmem:[#allocation4 + $0x39] sm:$0xff]
      %v6135 = vld [vmem:[#allocation4 + $0x41] sm:$0xff]
      %v6136 = vlaneseq
      %v6137 = vshrl.u32 %v6136, 7
      %v6138 = vsub.s32 0, %v6137
      %v6139 = vrot.slane %v6127, %v6138
      %v6140 = vmul.f32 %v6128, %v6139
      %v6141 = vmul.f32 %v6129, %v6139
      %v6142 = vmul.f32 %v6130, %v6139
      %v6143 = vmul.f32 %v6131, %v6139
      %v6144 = vmul.f32 %v6132, %v6139
      %v6145 = vmul.f32 %v6133, %v6139
      %v6146 = vmul.f32 %v6134, %v6139
      %v6147 = vmul.f32 %v6135, %v6139
      %v6148 = vld [vmem:[%s400 + $0x44] sm:$0x1]
      %v6149 = vld [vmem:[#allocation4 + $0x49] sm:$0xff]
      %v6150 = vld [vmem:[#allocation4 + $0x51] sm:$0xff]
      %v6151 = vlaneseq
      %v6152 = vshrl.u32 %v6151, 7
      %v6153 = vsub.s32 0, %v6152
      %v6154 = vrot.slane %v6148, %v6153
      %v6155 = vmul.f32 %v6130, %v6154
      %v6156 = vmul.f32 %v6131, %v6154
      %v6157 = vmul.f32 %v6132, %v6154
      %v6158 = vmul.f32 %v6133, %v6154
      %v6159 = vmul.f32 %v6134, %v6154
      %v6160 = vmul.f32 %v6135, %v6154
      %v6161 = vmul.f32 %v6149, %v6154
      %v6162 = vmul.f32 %v6150, %v6154
      %v6163 = vadd.f32 %v6140, %v6155
      %v6164 = vadd.f32 %v6141, %v6156
      %v6165 = vadd.f32 %v6142, %v6157
      %v6166 = vadd.f32 %v6143, %v6158
      %v6167 = vadd.f32 %v6144, %v6159
      %v6168 = vadd.f32 %v6145, %v6160
      %v6169 = vadd.f32 %v6146, %v6161
      %v6170 = vadd.f32 %v6147, %v6162
      %v6171 = vld [vmem:[%s400 + $0x4d] sm:$0x1]
      %v6172 = vld [vmem:[#allocation4 + $0x59] sm:$0xff]
      %v6173 = vld [vmem:[#allocation4 + $0x61] sm:$0xff]
      %v6174 = vlaneseq
      %v6175 = vshrl.u32 %v6174, 7
      %v6176 = vsub.s32 0, %v6175
      %v6177 = vrot.slane %v6171, %v6176
      %v6178 = vmul.f32 %v6132, %v6177
      %v6179 = vmul.f32 %v6133, %v6177
      %v6180 = vmul.f32 %v6134, %v6177
      %v6181 = vmul.f32 %v6135, %v6177
      %v6182 = vmul.f32 %v6149, %v6177
      %v6183 = vmul.f32 %v6150, %v6177
      %v6184 = vmul.f32 %v6172, %v6177
      %v6185 = vmul.f32 %v6173, %v6177
      %v6186 = vadd.f32 %v6163, %v6178
      %v6187 = vadd.f32 %v6164, %v6179
      %v6188 = vadd.f32 %v6165, %v6180
      %v6189 = vadd.f32 %v6166, %v6181
      %v6190 = vadd.f32 %v6167, %v6182
      %v6191 = vadd.f32 %v6168, %v6183
      %v6192 = vadd.f32 %v6169, %v6184
      %v6193 = vadd.f32 %v6170, %v6185
      %v6194 = vld [vmem:[%s3814] sm:$0xff]
      %v6195 = vld [vmem:[%s3814 + $0x8] sm:$0xff]
      %v6196 = vld [vmem:[%s3814 + $0x10] sm:$0xff]
      %v6197 = vld [vmem:[%s3814 + $0x18] sm:$0xff]
      %v6198 = vld [vmem:[%s3814 + $0x20] sm:$0xff]
      %v6199 = vld [vmem:[%s3814 + $0x28] sm:$0xff]
      %v6200 = vld [vmem:[%s3814 + $0x30] sm:$0xff]
      %v6201 = vld [vmem:[%s3814 + $0x38] sm:$0xff]
      %v6202 = vmul.f32 %v6186, %v6194
      %v6203 = vmul.f32 %v6187, %v6195
      %v6204 = vmul.f32 %v6188, %v6196
      %v6205 = vmul.f32 %v6189, %v6197
      %v6206 = vmul.f32 %v6190, %v6198
      %v6207 = vmul.f32 %v6191, %v6199
      %v6208 = vmul.f32 %v6192, %v6200
      %v6209 = vmul.f32 %v6193, %v6201
      %v6210 = vadd.f32 %v6119, %v6202
      %v6211 = vadd.f32 %v6120, %v6203
      %v6212 = vadd.f32 %v6121, %v6204
      %v6213 = vadd.f32 %v6122, %v6205
      %v6214 = vadd.f32 %v6123, %v6206
      %v6215 = vadd.f32 %v6124, %v6207
      %v6216 = vadd.f32 %v6125, %v6208
      %v6217 = vadd.f32 %v6126, %v6209
      %v6218 = vld [vmem:[%s400 + $0x3c] sm:$0x1]
      %v6219 = vlaneseq
      %v6220 = vshrl.u32 %v6219, 7
      %v6221 = vsub.s32 0, %v6220
      %v6222 = vrot.slane %v6218, %v6221
      %v6223 = vmul.f32 %v5690, %v6222
      %v6224 = vmul.f32 %v5691, %v6222
      %v6225 = vmul.f32 %v5692, %v6222
      %v6226 = vmul.f32 %v5693, %v6222
      %v6227 = vmul.f32 %v5694, %v6222
      %v6228 = vmul.f32 %v5695, %v6222
      %v6229 = vmul.f32 %v5696, %v6222
      %v6230 = vmul.f32 %v5710, %v6222
      %v6231 = vld [vmem:[%s400 + $0x45] sm:$0x1]
      %v6232 = vlaneseq
      %v6233 = vshrl.u32 %v6232, 7
      %v6234 = vsub.s32 0, %v6233
      %v6235 = vrot.slane %v6231, %v6234
      %v6236 = vmul.f32 %v5692, %v6235
      %v6237 = vmul.f32 %v5693, %v6235
      %v6238 = vmul.f32 %v5694, %v6235
      %v6239 = vmul.f32 %v5695, %v6235
      %v6240 = vmul.f32 %v5696, %v6235
      %v6241 = vmul.f32 %v5710, %v6235
      %v6242 = vmul.f32 %v5711, %v6235
      %v6243 = vmul.f32 %v5733, %v6235
      %v6244 = vadd.f32 %v6223, %v6236
      %v6245 = vadd.f32 %v6224, %v6237
      %v6246 = vadd.f32 %v6225, %v6238
      %v6247 = vadd.f32 %v6226, %v6239
      %v6248 = vadd.f32 %v6227, %v6240
      %v6249 = vadd.f32 %v6228, %v6241
      %v6250 = vadd.f32 %v6229, %v6242
      %v6251 = vadd.f32 %v6230, %v6243
      %v6252 = vld [vmem:[%s400 + $0x4e] sm:$0x1]
      %v6253 = vld [vmem:[#allocation4 + $0x63] sm:$0xff]
      %v6254 = vlaneseq
      %v6255 = vshrl.u32 %v6254, 7
      %v6256 = vsub.s32 0, %v6255
      %v6257 = vrot.slane %v6252, %v6256
      %v6258 = vmul.f32 %v5694, %v6257
      %v6259 = vmul.f32 %v5695, %v6257
      %v6260 = vmul.f32 %v5696, %v6257
      %v6261 = vmul.f32 %v5710, %v6257
      %v6262 = vmul.f32 %v5711, %v6257
      %v6263 = vmul.f32 %v5733, %v6257
      %v6264 = vmul.f32 %v5734, %v6257
      %v6265 = vmul.f32 %v6253, %v6257
      %v6266 = vadd.f32 %v6244, %v6258
      %v6267 = vadd.f32 %v6245, %v6259
      %v6268 = vadd.f32 %v6246, %v6260
      %v6269 = vadd.f32 %v6247, %v6261
      %v6270 = vadd.f32 %v6248, %v6262
      %v6271 = vadd.f32 %v6249, %v6263
      %v6272 = vadd.f32 %v6250, %v6264
      %v6273 = vadd.f32 %v6251, %v6265
      %v6274 = vld [vmem:[%s3895] sm:$0xff]
      %v6275 = vld [vmem:[%s3895 + $0x8] sm:$0xff]
      %v6276 = vld [vmem:[%s3895 + $0x10] sm:$0xff]
      %v6277 = vld [vmem:[%s3895 + $0x18] sm:$0xff]
      %v6278 = vld [vmem:[%s3895 + $0x20] sm:$0xff]
      %v6279 = vld [vmem:[%s3895 + $0x28] sm:$0xff]
      %v6280 = vld [vmem:[%s3895 + $0x30] sm:$0xff]
      %v6281 = vld [vmem:[%s3895 + $0x38] sm:$0xff]
      %v6282 = vmul.f32 %v6266, %v6274
      %v6283 = vmul.f32 %v6267, %v6275
      %v6284 = vmul.f32 %v6268, %v6276
      %v6285 = vmul.f32 %v6269, %v6277
      %v6286 = vmul.f32 %v6270, %v6278
      %v6287 = vmul.f32 %v6271, %v6279
      %v6288 = vmul.f32 %v6272, %v6280
      %v6289 = vmul.f32 %v6273, %v6281
      %v6290 = vadd.f32 %v6210, %v6282
      %v6291 = vadd.f32 %v6211, %v6283
      %v6292 = vadd.f32 %v6212, %v6284
      %v6293 = vadd.f32 %v6213, %v6285
      %v6294 = vadd.f32 %v6214, %v6286
      %v6295 = vadd.f32 %v6215, %v6287
      %v6296 = vadd.f32 %v6216, %v6288
      %v6297 = vadd.f32 %v6217, %v6289
      %v6298 = vld [vmem:[%s400 + $0x3d] sm:$0x1]
      %v6299 = vlaneseq
      %v6300 = vshrl.u32 %v6299, 7
      %v6301 = vsub.s32 0, %v6300
      %v6302 = vrot.slane %v6298, %v6301
      %v6303 = vmul.f32 %v5781, %v6302
      %v6304 = vmul.f32 %v5782, %v6302
      %v6305 = vmul.f32 %v5783, %v6302
      %v6306 = vmul.f32 %v5784, %v6302
      %v6307 = vmul.f32 %v5785, %v6302
      %v6308 = vmul.f32 %v5786, %v6302
      %v6309 = vmul.f32 %v5787, %v6302
      %v6310 = vmul.f32 %v5801, %v6302
      %v6311 = vld [vmem:[%s400 + $0x46] sm:$0x1]
      %v6312 = vlaneseq
      %v6313 = vshrl.u32 %v6312, 7
      %v6314 = vsub.s32 0, %v6313
      %v6315 = vrot.slane %v6311, %v6314
      %v6316 = vmul.f32 %v5783, %v6315
      %v6317 = vmul.f32 %v5784, %v6315
      %v6318 = vmul.f32 %v5785, %v6315
      %v6319 = vmul.f32 %v5786, %v6315
      %v6320 = vmul.f32 %v5787, %v6315
      %v6321 = vmul.f32 %v5801, %v6315
      %v6322 = vmul.f32 %v5802, %v6315
      %v6323 = vmul.f32 %v5824, %v6315
      %v6324 = vadd.f32 %v6303, %v6316
      %v6325 = vadd.f32 %v6304, %v6317
      %v6326 = vadd.f32 %v6305, %v6318
      %v6327 = vadd.f32 %v6306, %v6319
      %v6328 = vadd.f32 %v6307, %v6320
      %v6329 = vadd.f32 %v6308, %v6321
      %v6330 = vadd.f32 %v6309, %v6322
      %v6331 = vadd.f32 %v6310, %v6323
      %v6332 = vld [vmem:[%s400 + $0x4f] sm:$0x1]
      %v6333 = vld [vmem:[#allocation4 + $0x64] sm:$0xff]
      %v6334 = vlaneseq
      %v6335 = vshrl.u32 %v6334, 7
      %v6336 = vsub.s32 0, %v6335
      %v6337 = vrot.slane %v6332, %v6336
      %v6338 = vmul.f32 %v5785, %v6337
      %v6339 = vmul.f32 %v5786, %v6337
      %v6340 = vmul.f32 %v5787, %v6337
      %v6341 = vmul.f32 %v5801, %v6337
      %v6342 = vmul.f32 %v5802, %v6337
      %v6343 = vmul.f32 %v5824, %v6337
      %v6344 = vmul.f32 %v5825, %v6337
      %v6345 = vmul.f32 %v6333, %v6337
      %v6346 = vadd.f32 %v6324, %v6338
      %v6347 = vadd.f32 %v6325, %v6339
      %v6348 = vadd.f32 %v6326, %v6340
      %v6349 = vadd.f32 %v6327, %v6341
      %v6350 = vadd.f32 %v6328, %v6342
      %v6351 = vadd.f32 %v6329, %v6343
      %v6352 = vadd.f32 %v6330, %v6344
      %v6353 = vadd.f32 %v6331, %v6345
      %v6354 = vld [vmem:[%s3976] sm:$0xff]
      %v6355 = vld [vmem:[%s3976 + $0x8] sm:$0xff]
      %v6356 = vld [vmem:[%s3976 + $0x10] sm:$0xff]
      %v6357 = vld [vmem:[%s3976 + $0x18] sm:$0xff]
      %v6358 = vld [vmem:[%s3976 + $0x20] sm:$0xff]
      %v6359 = vld [vmem:[%s3976 + $0x28] sm:$0xff]
      %v6360 = vld [vmem:[%s3976 + $0x30] sm:$0xff]
      %v6361 = vld [vmem:[%s3976 + $0x38] sm:$0xff]
      %v6362 = vmul.f32 %v6346, %v6354
      %v6363 = vmul.f32 %v6347, %v6355
      %v6364 = vmul.f32 %v6348, %v6356
      %v6365 = vmul.f32 %v6349, %v6357
      %v6366 = vmul.f32 %v6350, %v6358
      %v6367 = vmul.f32 %v6351, %v6359
      %v6368 = vmul.f32 %v6352, %v6360
      %v6369 = vmul.f32 %v6353, %v6361
      %v6370 = vadd.f32 %v6290, %v6362
      %v6371 = vadd.f32 %v6291, %v6363
      %v6372 = vadd.f32 %v6292, %v6364
      %v6373 = vadd.f32 %v6293, %v6365
      %v6374 = vadd.f32 %v6294, %v6366
      %v6375 = vadd.f32 %v6295, %v6367
      %v6376 = vadd.f32 %v6296, %v6368
      %v6377 = vadd.f32 %v6297, %v6369
      %v6378 = vld [vmem:[%s400 + $0x3e] sm:$0x1]
      %v6379 = vlaneseq
      %v6380 = vshrl.u32 %v6379, 7
      %v6381 = vsub.s32 0, %v6380
      %v6382 = vrot.slane %v6378, %v6381
      %v6383 = vmul.f32 %v5872, %v6382
      %v6384 = vmul.f32 %v5873, %v6382
      %v6385 = vmul.f32 %v5874, %v6382
      %v6386 = vmul.f32 %v5875, %v6382
      %v6387 = vmul.f32 %v5876, %v6382
      %v6388 = vmul.f32 %v5877, %v6382
      %v6389 = vmul.f32 %v5878, %v6382
      %v6390 = vmul.f32 %v5892, %v6382
      %v6391 = vld [vmem:[%s400 + $0x47] sm:$0x1]
      %v6392 = vlaneseq
      %v6393 = vshrl.u32 %v6392, 7
      %v6394 = vsub.s32 0, %v6393
      %v6395 = vrot.slane %v6391, %v6394
      %v6396 = vmul.f32 %v5874, %v6395
      %v6397 = vmul.f32 %v5875, %v6395
      %v6398 = vmul.f32 %v5876, %v6395
      %v6399 = vmul.f32 %v5877, %v6395
      %v6400 = vmul.f32 %v5878, %v6395
      %v6401 = vmul.f32 %v5892, %v6395
      %v6402 = vmul.f32 %v5893, %v6395
      %v6403 = vmul.f32 %v5915, %v6395
      %v6404 = vadd.f32 %v6383, %v6396
      %v6405 = vadd.f32 %v6384, %v6397
      %v6406 = vadd.f32 %v6385, %v6398
      %v6407 = vadd.f32 %v6386, %v6399
      %v6408 = vadd.f32 %v6387, %v6400
      %v6409 = vadd.f32 %v6388, %v6401
      %v6410 = vadd.f32 %v6389, %v6402
      %v6411 = vadd.f32 %v6390, %v6403
      %v6412 = vld [vmem:[%s400 + $0x50] sm:$0x1]
      %v6413 = vld [vmem:[#allocation4 + $0x65] sm:$0xff]
      %v6414 = vlaneseq
      %v6415 = vshrl.u32 %v6414, 7
      %v6416 = vsub.s32 0, %v6415
      %v6417 = vrot.slane %v6412, %v6416
      %v6418 = vmul.f32 %v5876, %v6417
      %v6419 = vmul.f32 %v5877, %v6417
      %v6420 = vmul.f32 %v5878, %v6417
      %v6421 = vmul.f32 %v5892, %v6417
      %v6422 = vmul.f32 %v5893, %v6417
      %v6423 = vmul.f32 %v5915, %v6417
      %v6424 = vmul.f32 %v5916, %v6417
      %v6425 = vmul.f32 %v6413, %v6417
      %v6426 = vadd.f32 %v6404, %v6418
      %v6427 = vadd.f32 %v6405, %v6419
      %v6428 = vadd.f32 %v6406, %v6420
      %v6429 = vadd.f32 %v6407, %v6421
      %v6430 = vadd.f32 %v6408, %v6422
      %v6431 = vadd.f32 %v6409, %v6423
      %v6432 = vadd.f32 %v6410, %v6424
      %v6433 = vadd.f32 %v6411, %v6425
      %v6434 = vld [vmem:[%s4057] sm:$0xff]
      %v6435 = vld [vmem:[%s4057 + $0x8] sm:$0xff]
      %v6436 = vld [vmem:[%s4057 + $0x10] sm:$0xff]
      %v6437 = vld [vmem:[%s4057 + $0x18] sm:$0xff]
      %v6438 = vld [vmem:[%s4057 + $0x20] sm:$0xff]
      %v6439 = vld [vmem:[%s4057 + $0x28] sm:$0xff]
      %v6440 = vld [vmem:[%s4057 + $0x30] sm:$0xff]
      %v6441 = vld [vmem:[%s4057 + $0x38] sm:$0xff]
      %v6442 = vmul.f32 %v6426, %v6434
      %v6443 = vmul.f32 %v6427, %v6435
      %v6444 = vmul.f32 %v6428, %v6436
      %v6445 = vmul.f32 %v6429, %v6437
      %v6446 = vmul.f32 %v6430, %v6438
      %v6447 = vmul.f32 %v6431, %v6439
      %v6448 = vmul.f32 %v6432, %v6440
      %v6449 = vmul.f32 %v6433, %v6441
      %v6450 = vadd.f32 %v6370, %v6442
      %v6451 = vadd.f32 %v6371, %v6443
      %v6452 = vadd.f32 %v6372, %v6444
      %v6453 = vadd.f32 %v6373, %v6445
      %v6454 = vadd.f32 %v6374, %v6446
      %v6455 = vadd.f32 %v6375, %v6447
      %v6456 = vadd.f32 %v6376, %v6448
      %v6457 = vadd.f32 %v6377, %v6449
      %v6458 = vmul.f32 %v6450, 0.5
      %v6459 = vmul.f32 %v6451, 0.5
      %v6460 = vmul.f32 %v6452, 0.5
      %v6461 = vmul.f32 %v6453, 0.5
      %v6462 = vmul.f32 %v6454, 0.5
      %v6463 = vmul.f32 %v6455, 0.5
      %v6464 = vmul.f32 %v6456, 0.5
      %v6465 = vmul.f32 %v6457, 0.5
      %v6466 = vmul.f32 %v6450, 0.70710677
      %v6467 = vmul.f32 %v6451, 0.70710677
      %v6468 = vmul.f32 %v6452, 0.70710677
      %v6469 = vmul.f32 %v6453, 0.70710677
      %v6470 = vmul.f32 %v6454, 0.70710677
      %v6471 = vmul.f32 %v6455, 0.70710677
      %v6472 = vmul.f32 %v6456, 0.70710677
      %v6473 = vmul.f32 %v6457, 0.70710677
      %v6474 = vmax.f32 %v6466, -3.832507
      %v6475 = vmax.f32 %v6467, -3.832507
      %v6476 = vmax.f32 %v6468, -3.832507
      %v6477 = vmax.f32 %v6469, -3.832507
      %v6478 = vmax.f32 %v6470, -3.832507
      %v6479 = vmax.f32 %v6471, -3.832507
      %v6480 = vmax.f32 %v6472, -3.832507
      %v6481 = vmax.f32 %v6473, -3.832507
      %v6482 = vmin.f32 %v6474, 3.832507
      %v6483 = vmin.f32 %v6475, 3.832507
      %v6484 = vmin.f32 %v6476, 3.832507
      %v6485 = vmin.f32 %v6477, 3.832507
      %v6486 = vmin.f32 %v6478, 3.832507
      %v6487 = vmin.f32 %v6479, 3.832507
      %v6488 = vmin.f32 %v6480, 3.832507
      %v6489 = vmin.f32 %v6481, 3.832507
      %v6490 = vmul.f32 %v6482, %v6482
      %v6491 = vmul.f32 %v6483, %v6483
      %v6492 = vmul.f32 %v6484, %v6484
      %v6493 = vmul.f32 %v6485, %v6485
      %v6494 = vmul.f32 %v6486, %v6486
      %v6495 = vmul.f32 %v6487, %v6487
      %v6496 = vmul.f32 %v6488, %v6488
      %v6497 = vmul.f32 %v6489, %v6489
      %v6498 = vmul.f32 %v6490, 0.00022905065
      %v6499 = vmul.f32 %v6491, 0.00022905065
      %v6500 = vmul.f32 %v6492, 0.00022905065
      %v6501 = vmul.f32 %v6493, 0.00022905065
      %v6502 = vmul.f32 %v6494, 0.00022905065
      %v6503 = vmul.f32 %v6495, 0.00022905065
      %v6504 = vmul.f32 %v6496, 0.00022905065
      %v6505 = vmul.f32 %v6497, 0.00022905065
      %v6506 = vadd.f32 %v6498, 0.003408291
      %v6507 = vadd.f32 %v6499, 0.003408291
      %v6508 = vadd.f32 %v6500, 0.003408291
      %v6509 = vadd.f32 %v6501, 0.003408291
      %v6510 = vadd.f32 %v6502, 0.003408291
      %v6511 = vadd.f32 %v6503, 0.003408291
      %v6512 = vadd.f32 %v6504, 0.003408291
      %v6513 = vadd.f32 %v6505, 0.003408291
      %v6514 = vmul.f32 %v6506, %v6490
      %v6515 = vmul.f32 %v6507, %v6491
      %v6516 = vmul.f32 %v6508, %v6492
      %v6517 = vmul.f32 %v6509, %v6493
      %v6518 = vmul.f32 %v6510, %v6494
      %v6519 = vmul.f32 %v6511, %v6495
      %v6520 = vmul.f32 %v6512, %v6496
      %v6521 = vmul.f32 %v6513, %v6497
      %v6522 = vadd.f32 %v6514, 0.050955694
      %v6523 = vadd.f32 %v6515, 0.050955694
      %v6524 = vadd.f32 %v6516, 0.050955694
      %v6525 = vadd.f32 %v6517, 0.050955694
      %v6526 = vadd.f32 %v6518, 0.050955694
      %v6527 = vadd.f32 %v6519, 0.050955694
      %v6528 = vadd.f32 %v6520, 0.050955694
      %v6529 = vadd.f32 %v6521, 0.050955694
      %v6530 = vmul.f32 %v6522, %v6490
      %v6531 = vmul.f32 %v6523, %v6491
      %v6532 = vmul.f32 %v6524, %v6492
      %v6533 = vmul.f32 %v6525, %v6493
      %v6534 = vmul.f32 %v6526, %v6494
      %v6535 = vmul.f32 %v6527, %v6495
      %v6536 = vmul.f32 %v6528, %v6496
      %v6537 = vmul.f32 %v6529, %v6497
      %v6538 = vadd.f32 %v6530, 0.18520832
      %v6539 = vadd.f32 %v6531, 0.18520832
      %v6540 = vadd.f32 %v6532, 0.18520832
      %v6541 = vadd.f32 %v6533, 0.18520832
      %v6542 = vadd.f32 %v6534, 0.18520832
      %v6543 = vadd.f32 %v6535, 0.18520832
      %v6544 = vadd.f32 %v6536, 0.18520832
      %v6545 = vadd.f32 %v6537, 0.18520832
      %v6546 = vmul.f32 %v6538, %v6490
      %v6547 = vmul.f32 %v6539, %v6491
      %v6548 = vmul.f32 %v6540, %v6492
      %v6549 = vmul.f32 %v6541, %v6493
      %v6550 = vmul.f32 %v6542, %v6494
      %v6551 = vmul.f32 %v6543, %v6495
      %v6552 = vmul.f32 %v6544, %v6496
      %v6553 = vmul.f32 %v6545, %v6497
      %v6554 = vadd.f32 %v6546, 1.1283791
      %v6555 = vadd.f32 %v6547, 1.1283791
      %v6556 = vadd.f32 %v6548, 1.1283791
      %v6557 = vadd.f32 %v6549, 1.1283791
      %v6558 = vadd.f32 %v6550, 1.1283791
      %v6559 = vadd.f32 %v6551, 1.1283791
      %v6560 = vadd.f32 %v6552, 1.1283791
      %v6561 = vadd.f32 %v6553, 1.1283791
      %v6562 = vmul.f32 %v6490, -1.1791603e-07
      %v6563 = vmul.f32 %v6491, -1.1791603e-07
      %v6564 = vmul.f32 %v6492, -1.1791603e-07
      %v6565 = vmul.f32 %v6493, -1.1791603e-07
      %v6566 = vmul.f32 %v6494, -1.1791603e-07
      %v6567 = vmul.f32 %v6495, -1.1791603e-07
      %v6568 = vmul.f32 %v6496, -1.1791603e-07
      %v6569 = vmul.f32 %v6497, -1.1791603e-07
      %v6570 = vadd.f32 %v6562, 2.3547966e-05
      %v6571 = vadd.f32 %v6563, 2.3547966e-05
      %v6572 = vadd.f32 %v6564, 2.3547966e-05
      %v6573 = vadd.f32 %v6565, 2.3547966e-05
      %v6574 = vadd.f32 %v6566, 2.3547966e-05
      %v6575 = vadd.f32 %v6567, 2.3547966e-05
      %v6576 = vadd.f32 %v6568, 2.3547966e-05
      %v6577 = vadd.f32 %v6569, 2.3547966e-05
      %v6578 = vmul.f32 %v6570, %v6490
      %v6579 = vmul.f32 %v6571, %v6491
      %v6580 = vmul.f32 %v6572, %v6492
      %v6581 = vmul.f32 %v6573, %v6493
      %v6582 = vmul.f32 %v6574, %v6494
      %v6583 = vmul.f32 %v6575, %v6495
      %v6584 = vmul.f32 %v6576, %v6496
      %v6585 = vmul.f32 %v6577, %v6497
      %v6586 = vadd.f32 %v6578, 0.0010179626
      %v6587 = vadd.f32 %v6579, 0.0010179626
      %v6588 = vadd.f32 %v6580, 0.0010179626
      %v6589 = vadd.f32 %v6581, 0.0010179626
      %v6590 = vadd.f32 %v6582, 0.0010179626
      %v6591 = vadd.f32 %v6583, 0.0010179626
      %v6592 = vadd.f32 %v6584, 0.0010179626
      %v6593 = vadd.f32 %v6585, 0.0010179626
      %v6594 = vmul.f32 %v6586, %v6490
      %v6595 = vmul.f32 %v6587, %v6491
      %v6596 = vmul.f32 %v6588, %v6492
      %v6597 = vmul.f32 %v6589, %v6493
      %v6598 = vmul.f32 %v6590, %v6494
      %v6599 = vmul.f32 %v6591, %v6495
      %v6600 = vmul.f32 %v6592, %v6496
      %v6601 = vmul.f32 %v6593, %v6497
      %v6602 = vadd.f32 %v6594, 0.01407047
      %v6603 = vadd.f32 %v6595, 0.01407047
      %v6604 = vadd.f32 %v6596, 0.01407047
      %v6605 = vadd.f32 %v6597, 0.01407047
      %v6606 = vadd.f32 %v6598, 0.01407047
      %v6607 = vadd.f32 %v6599, 0.01407047
      %v6608 = vadd.f32 %v6600, 0.01407047
      %v6609 = vadd.f32 %v6601, 0.01407047
      %v6610 = vmul.f32 %v6602, %v6490
      %v6611 = vmul.f32 %v6603, %v6491
      %v6612 = vmul.f32 %v6604, %v6492
      %v6613 = vmul.f32 %v6605, %v6493
      %v6614 = vmul.f32 %v6606, %v6494
      %v6615 = vmul.f32 %v6607, %v6495
      %v6616 = vmul.f32 %v6608, %v6496
      %v6617 = vmul.f32 %v6609, %v6497
      %v6618 = vadd.f32 %v6610, 0.11098505
      %v6619 = vadd.f32 %v6611, 0.11098505
      %v6620 = vadd.f32 %v6612, 0.11098505
      %v6621 = vadd.f32 %v6613, 0.11098505
      %v6622 = vadd.f32 %v6614, 0.11098505
      %v6623 = vadd.f32 %v6615, 0.11098505
      %v6624 = vadd.f32 %v6616, 0.11098505
      %v6625 = vadd.f32 %v6617, 0.11098505
      %v6626 = vmul.f32 %v6618, %v6490
      %v6627 = vmul.f32 %v6619, %v6491
      %v6628 = vmul.f32 %v6620, %v6492
      %v6629 = vmul.f32 %v6621, %v6493
      %v6630 = vmul.f32 %v6622, %v6494
      %v6631 = vmul.f32 %v6623, %v6495
      %v6632 = vmul.f32 %v6624, %v6496
      %v6633 = vmul.f32 %v6625, %v6497
      %v6634 = vadd.f32 %v6626, 0.49746925
      %v6635 = vadd.f32 %v6627, 0.49746925
      %v6636 = vadd.f32 %v6628, 0.49746925
      %v6637 = vadd.f32 %v6629, 0.49746925
      %v6638 = vadd.f32 %v6630, 0.49746925
      %v6639 = vadd.f32 %v6631, 0.49746925
      %v6640 = vadd.f32 %v6632, 0.49746925
      %v6641 = vadd.f32 %v6633, 0.49746925
      %v6642 = vmul.f32 %v6634, %v6490
      %v6643 = vmul.f32 %v6635, %v6491
      %v6644 = vmul.f32 %v6636, %v6492
      %v6645 = vmul.f32 %v6637, %v6493
      %v6646 = vmul.f32 %v6638, %v6494
      %v6647 = vmul.f32 %v6639, %v6495
      %v6648 = vmul.f32 %v6640, %v6496
      %v6649 = vmul.f32 %v6641, %v6497
      %v6650 = vadd.f32 %v6642, 1.0
      %v6651 = vadd.f32 %v6643, 1.0
      %v6652 = vadd.f32 %v6644, 1.0
      %v6653 = vadd.f32 %v6645, 1.0
      %v6654 = vadd.f32 %v6646, 1.0
      %v6655 = vadd.f32 %v6647, 1.0
      %v6656 = vadd.f32 %v6648, 1.0
      %v6657 = vadd.f32 %v6649, 1.0
      %v6658 = vrcp.pop %v6650
      %v6659 = vrcp.pop %v6651
      %v6660 = vrcp.pop %v6652
      %v6661 = vrcp.pop %v6653
      %v6662 = vrcp.pop %v6654
      %v6663 = vrcp.pop %v6655
      %v6664 = vrcp.pop %v6656
      %v6665 = vrcp.pop %v6657
      %v6666 = vmul.f32 %v6650, %v6658
      %v6667 = vmul.f32 %v6651, %v6659
      %v6668 = vmul.f32 %v6652, %v6660
      %v6669 = vmul.f32 %v6653, %v6661
      %v6670 = vmul.f32 %v6654, %v6662
      %v6671 = vmul.f32 %v6655, %v6663
      %v6672 = vmul.f32 %v6656, %v6664
      %v6673 = vmul.f32 %v6657, %v6665
      %v6674 = vsub.f32 2.0, %v6666
      %v6675 = vsub.f32 2.0, %v6667
      %v6676 = vsub.f32 2.0, %v6668
      %v6677 = vsub.f32 2.0, %v6669
      %v6678 = vsub.f32 2.0, %v6670
      %v6679 = vsub.f32 2.0, %v6671
      %v6680 = vsub.f32 2.0, %v6672
      %v6681 = vsub.f32 2.0, %v6673
      %v6682 = vmul.f32 %v6658, %v6674
      %v6683 = vmul.f32 %v6659, %v6675
      %v6684 = vmul.f32 %v6660, %v6676
      %v6685 = vmul.f32 %v6661, %v6677
      %v6686 = vmul.f32 %v6662, %v6678
      %v6687 = vmul.f32 %v6663, %v6679
      %v6688 = vmul.f32 %v6664, %v6680
      %v6689 = vmul.f32 %v6665, %v6681
      %v6690 = vmul.f32 %v6482, %v6554
      %v6691 = vmul.f32 %v6483, %v6555
      %v6692 = vmul.f32 %v6484, %v6556
      %v6693 = vmul.f32 %v6485, %v6557
      %v6694 = vmul.f32 %v6486, %v6558
      %v6695 = vmul.f32 %v6487, %v6559
      %v6696 = vmul.f32 %v6488, %v6560
      %v6697 = vmul.f32 %v6489, %v6561
      %v6698 = vmul.f32 %v6690, %v6682
      %v6699 = vmul.f32 %v6691, %v6683
      %v6700 = vmul.f32 %v6692, %v6684
      %v6701 = vmul.f32 %v6693, %v6685
      %v6702 = vmul.f32 %v6694, %v6686
      %v6703 = vmul.f32 %v6695, %v6687
      %v6704 = vmul.f32 %v6696, %v6688
      %v6705 = vmul.f32 %v6697, %v6689
      %v6706 = vadd.f32 %v6698, 1.0
      %v6707 = vadd.f32 %v6699, 1.0
      %v6708 = vadd.f32 %v6700, 1.0
      %v6709 = vadd.f32 %v6701, 1.0
      %v6710 = vadd.f32 %v6702, 1.0
      %v6711 = vadd.f32 %v6703, 1.0
      %v6712 = vadd.f32 %v6704, 1.0
      %v6713 = vadd.f32 %v6705, 1.0
      %v6714 = vmul.f32 %v6458, %v6706
      %v6715 = vmul.f32 %v6459, %v6707
      %v6716 = vmul.f32 %v6460, %v6708
      %v6717 = vmul.f32 %v6461, %v6709
      %v6718 = vmul.f32 %v6462, %v6710
      %v6719 = vmul.f32 %v6463, %v6711
      %v6720 = vmul.f32 %v6464, %v6712
      %v6721 = vmul.f32 %v6465, %v6713
      %v6722 = vsel %vm754, %v6714, 0.0
      %6723 = vadd.xlane.f32.xlu0 %v6722
      %v6724 = vpop.xlane.xlu0 %6723
      %v6725 = vsel %vm754, %v6715, 0.0
      %6726 = vadd.xlane.f32.xlu0 %v6725
      %v6727 = vpop.xlane.xlu0 %6726
      %v6728 = vsel %vm754, %v6716, 0.0
      %6729 = vadd.xlane.f32.xlu0 %v6728
      %v6730 = vpop.xlane.xlu0 %6729
      %v6731 = vsel %vm754, %v6717, 0.0
      %6732 = vadd.xlane.f32.xlu0 %v6731
      %v6733 = vpop.xlane.xlu0 %6732
      %v6734 = vsel %vm754, %v6718, 0.0
      %6735 = vadd.xlane.f32.xlu0 %v6734
      %v6736 = vpop.xlane.xlu0 %6735
      %v6737 = vsel %vm754, %v6719, 0.0
      %6738 = vadd.xlane.f32.xlu0 %v6737
      %v6739 = vpop.xlane.xlu0 %6738
      %v6740 = vsel %vm754, %v6720, 0.0
      %6741 = vadd.xlane.f32.xlu0 %v6740
      %v6742 = vpop.xlane.xlu0 %6741
      %v6743 = vsel %vm754, %v6721, 0.0
      %6744 = vadd.xlane.f32.xlu0 %v6743
      %v6745 = vpop.xlane.xlu0 %6744
      %v6746 = vmul.f32 %v6724, %v3044
      %v6747 = vmul.f32 %v6727, %v3044
      %v6748 = vmul.f32 %v6730, %v3044
      %v6749 = vmul.f32 %v6733, %v3044
      %v6750 = vmul.f32 %v6736, %v3044
      %v6751 = vmul.f32 %v6739, %v3044
      %v6752 = vmul.f32 %v6742, %v3044
      %v6753 = vmul.f32 %v6745, %v3044
      %v6754 = vsub.f32 %v6714, %v6746
      %v6755 = vsub.f32 %v6715, %v6747
      %v6756 = vsub.f32 %v6716, %v6748
      %v6757 = vsub.f32 %v6717, %v6749
      %v6758 = vsub.f32 %v6718, %v6750
      %v6759 = vsub.f32 %v6719, %v6751
      %v6760 = vsub.f32 %v6720, %v6752
      %v6761 = vsub.f32 %v6721, %v6753
      %v6762 = vmul.f32 %v6754, %v6754
      %v6763 = vmul.f32 %v6755, %v6755
      %v6764 = vmul.f32 %v6756, %v6756
      %v6765 = vmul.f32 %v6757, %v6757
      %v6766 = vmul.f32 %v6758, %v6758
      %v6767 = vmul.f32 %v6759, %v6759
      %v6768 = vmul.f32 %v6760, %v6760
      %v6769 = vmul.f32 %v6761, %v6761
      %v6770 = vsel %vm754, %v6762, 0.0
      %6771 = vadd.xlane.f32.xlu0 %v6770
      %v6772 = vpop.xlane.xlu0 %6771
      %v6773 = vsel %vm754, %v6763, 0.0
      %6774 = vadd.xlane.f32.xlu0 %v6773
      %v6775 = vpop.xlane.xlu0 %6774
      %v6776 = vsel %vm754, %v6764, 0.0
      %6777 = vadd.xlane.f32.xlu0 %v6776
      %v6778 = vpop.xlane.xlu0 %6777
      %v6779 = vsel %vm754, %v6765, 0.0
      %6780 = vadd.xlane.f32.xlu0 %v6779
      %v6781 = vpop.xlane.xlu0 %6780
      %v6782 = vsel %vm754, %v6766, 0.0
      %6783 = vadd.xlane.f32.xlu0 %v6782
      %v6784 = vpop.xlane.xlu0 %6783
      %v6785 = vsel %vm754, %v6767, 0.0
      %6786 = vadd.xlane.f32.xlu0 %v6785
      %v6787 = vpop.xlane.xlu0 %6786
      %v6788 = vsel %vm754, %v6768, 0.0
      %6789 = vadd.xlane.f32.xlu0 %v6788
      %v6790 = vpop.xlane.xlu0 %6789
      %v6791 = vsel %vm754, %v6769, 0.0
      %6792 = vadd.xlane.f32.xlu0 %v6791
      %v6793 = vpop.xlane.xlu0 %6792
      %v6794 = vmul.f32 %v6772, %v3044
      %v6795 = vmul.f32 %v6775, %v3044
      %v6796 = vmul.f32 %v6778, %v3044
      %v6797 = vmul.f32 %v6781, %v3044
      %v6798 = vmul.f32 %v6784, %v3044
      %v6799 = vmul.f32 %v6787, %v3044
      %v6800 = vmul.f32 %v6790, %v3044
      %v6801 = vmul.f32 %v6793, %v3044
      %v6802 = vld [vmem:[%s405 + $0x9] sm:$0x1]
      %v6803 = vld [vmem:[%s405 + $0xa] sm:$0x1]
      %v6804 = vadd.f32 %v6794, 1e-05
      %v6805 = vadd.f32 %v6795, 1e-05
      %v6806 = vadd.f32 %v6796, 1e-05
      %v6807 = vadd.f32 %v6797, 1e-05
      %v6808 = vadd.f32 %v6798, 1e-05
      %v6809 = vadd.f32 %v6799, 1e-05
      %v6810 = vadd.f32 %v6800, 1e-05
      %v6811 = vadd.f32 %v6801, 1e-05
      %v6812 = vrsqrt.pop %v6804
      %v6813 = vrsqrt.pop %v6805
      %v6814 = vrsqrt.pop %v6806
      %v6815 = vrsqrt.pop %v6807
      %v6816 = vrsqrt.pop %v6808
      %v6817 = vrsqrt.pop %v6809
      %v6818 = vrsqrt.pop %v6810
      %v6819 = vrsqrt.pop %v6811
      %v6820 = vmul.f32 %v6754, %v6812
      %v6821 = vmul.f32 %v6755, %v6813
      %v6822 = vmul.f32 %v6756, %v6814
      %v6823 = vmul.f32 %v6757, %v6815
      %v6824 = vmul.f32 %v6758, %v6816
      %v6825 = vmul.f32 %v6759, %v6817
      %v6826 = vmul.f32 %v6760, %v6818
      %v6827 = vmul.f32 %v6761, %v6819
      %v6828 = vlaneseq
      %v6829 = vshrl.u32 %v6828, 7
      %v6830 = vsub.s32 0, %v6829
      %v6831 = vrot.slane %v6802, %v6830
      %v6832 = vmul.f32 %v6820, %v6831
      %v6833 = vmul.f32 %v6821, %v6831
      %v6834 = vmul.f32 %v6822, %v6831
      %v6835 = vmul.f32 %v6823, %v6831
      %v6836 = vmul.f32 %v6824, %v6831
      %v6837 = vmul.f32 %v6825, %v6831
      %v6838 = vmul.f32 %v6826, %v6831
      %v6839 = vmul.f32 %v6827, %v6831
      %v6840 = vlaneseq
      %v6841 = vshrl.u32 %v6840, 7
      %v6842 = vsub.s32 0, %v6841
      %v6843 = vrot.slane %v6803, %v6842
      %v6844 = vadd.f32 %v6832, %v6843
      %v6845 = vadd.f32 %v6833, %v6843
      %v6846 = vadd.f32 %v6834, %v6843
      %v6847 = vadd.f32 %v6835, %v6843
      %v6848 = vadd.f32 %v6836, %v6843
      %v6849 = vadd.f32 %v6837, %v6843
      %v6850 = vadd.f32 %v6838, %v6843
      %v6851 = vadd.f32 %v6839, %v6843
      %v6852 = vadd.f32 %v5672, %v6844
      %v6853 = vadd.f32 %v5673, %v6845
      %v6854 = vadd.f32 %v5674, %v6846
      %v6855 = vadd.f32 %v5675, %v6847
      %v6856 = vadd.f32 %v5676, %v6848
      %v6857 = vadd.f32 %v5677, %v6849
      %v6858 = vadd.f32 %v5678, %v6850
      %v6859 = vadd.f32 %v5679, %v6851
      %v6860 = vld [vmem:[%s395] sm:$0xff]
      %v6861 = vld [vmem:[%s395 + $0x8] sm:$0xff]
      %v6862 = vld [vmem:[%s395 + $0x10] sm:$0xff]
      %v6863 = vld [vmem:[%s395 + $0x18] sm:$0xff]
      %v6864 = vld [vmem:[%s405 + $0x4] sm:$0x1]
      %v6865 = vlaneseq
      %v6866 = vshrl.u32 %v6865, 7
      %v6867 = vsub.s32 0, %v6866
      %v6868 = vrot.slane %v6864, %v6867
      %v6870 = vsel %vm754, %v6852, 0
      %v6873 = vsel %vm754, %v6853, 0
      %v6876 = vsel %vm754, %v6854, 0
      %v6879 = vsel %vm754, %v6855, 0
      %v6882 = vsel %vm754, %v6856, 0
      %v6885 = vsel %vm754, %v6857, 0
      %v6888 = vsel %vm754, %v6858, 0
      %v6891 = vsel %vm754, %v6859, 0
      %6893 = vmatprep.subr.mxu0 0.0
      %6894 = vmatpush1.msra.mxu0 %v6860
      %6895 = vmatprep.subr.mxu0 0.0
      %6896 = vmatpush1.msra.mxu0 %v6861
      %6897 = vmatprep.subr.mxu0 0.0
      %6898 = vmatpush1.msra.mxu0 %v6862
      %6899 = vmatprep.subr.mxu0 0.0
      %6900 = vmatpush1.msra.mxu0 %v6863
      %6901 = vmatprep.subr.mxu0 0.0
      %6902 = vmatpush1.msra.mxu0 0.0
      %6903 = vmatprep.subr.mxu0 0.0
      %6904 = vmatpush1.msra.mxu0 0.0
      %6905 = vmatprep.subr.mxu0 0.0
      %6906 = vmatpush1.msra.mxu0 0.0
      %6907 = vmatprep.subr.mxu0 0.0
      %6908 = vmatpush1.msra.mxu0 0.0
      %6909 = vmatprep.subr.mxu0 0.0
      %6910 = vmatpush1.msra.mxu0 0.0
      %6911 = vmatprep.subr.mxu0 0.0
      %6912 = vmatpush1.msra.mxu0 0.0
      %6913 = vmatprep.subr.mxu0 0.0
      %6914 = vmatpush1.msra.mxu0 0.0
      %6915 = vmatprep.subr.mxu0 0.0
      %6916 = vmatpush1.msra.mxu0 0.0
      %6917 = vmatprep.subr.mxu0 0.0
      %6918 = vmatpush1.msra.mxu0 0.0
      %6919 = vmatprep.subr.mxu0 0.0
      %6920 = vmatpush1.msra.mxu0 0.0
      %6921 = vmatprep.subr.mxu0 0.0
      %6922 = vmatpush1.msra.mxu0 0.0
      %6923 = vmatprep.subr.mxu0 0.0
      %6924 = vmatpush1.msra.mxu0 0.0
      %6925 = vmatprep.subr.mxu0 0.0
      %6926 = vmatpush1.msra.mxu0 0.0
      %6927 = vmatprep.subr.mxu0 0.0
      %6928 = vmatpush1.msra.mxu0 0.0
      %6929 = vmatprep.subr.mxu0 0.0
      %6930 = vmatpush1.msra.mxu0 0.0
      %6931 = vmatprep.subr.mxu0 0.0
      %6932 = vmatpush1.msra.mxu0 0.0
      %6933 = vmatprep.subr.mxu0 0.0
      %6934 = vmatpush1.msra.mxu0 0.0
      %6935 = vmatprep.subr.mxu0 0.0
      %6936 = vmatpush1.msra.mxu0 0.0
      %6937 = vmatprep.subr.mxu0 0.0
      %6938 = vmatpush1.msra.mxu0 0.0
      %6939 = vmatprep.subr.mxu0 0.0
      %6940 = vmatpush1.msra.mxu0 0.0
      %6941 = vmatprep.subr.mxu0 0.0
      %6942 = vmatpush1.msra.mxu0 0.0
      %6943 = vmatprep.subr.mxu0 0.0
      %6944 = vmatpush1.msra.mxu0 0.0
      %6945 = vmatprep.subr.mxu0 0.0
      %6946 = vmatpush1.msra.mxu0 0.0
      %6947 = vmatprep.subr.mxu0 0.0
      %6948 = vmatpush1.msra.mxu0 0.0
      %6949 = vmatprep.subr.mxu0 0.0
      %6950 = vmatpush1.msra.mxu0 0.0
      %6951 = vmatprep.subr.mxu0 0.0
      %6952 = vmatpush1.msra.mxu0 0.0
      %6953 = vmatprep.subr.mxu0 0.0
      %6954 = vmatpush1.msra.mxu0 0.0
      %6955 = vmatprep.subr.mxu0 0.0
      %6956 = vmatpush1.msra.mxu0 0.0
      %6957 = vmatprep.mubr.f32.mxu0 0.0
      %6958 = vmatmul.mubr.f32.gmra.mrb[0].mxu0 %v6870
      %v6959 = vpop.f32.mrb[0].mxu0
      %v6960 = vadd.f32 %v6868, %v6959
      %v6961 = vpop.f32.mrb[0].mxu0
      %6962 = vmatprep.mubr.f32.mxu0 0.0
      %6963 = vmatmul.mubr.f32.gmra.mrb[0].mxu0 %v6873
      %v6964 = vpop.f32.mrb[0].mxu0
      %v6965 = vadd.f32 %v6868, %v6964
      %v6966 = vpop.f32.mrb[0].mxu0
      %6967 = vmatprep.mubr.f32.mxu0 0.0
      %6968 = vmatmul.mubr.f32.gmra.mrb[0].mxu0 %v6876
      %v6969 = vpop.f32.mrb[0].mxu0
      %v6970 = vadd.f32 %v6868, %v6969
      %v6971 = vpop.f32.mrb[0].mxu0
      %6972 = vmatprep.mubr.f32.mxu0 0.0
      %6973 = vmatmul.mubr.f32.gmra.mrb[0].mxu0 %v6879
      %v6974 = vpop.f32.mrb[0].mxu0
      %v6975 = vadd.f32 %v6868, %v6974
      %v6976 = vpop.f32.mrb[0].mxu0
      %6977 = vmatprep.mubr.f32.mxu0 0.0
      %6978 = vmatmul.mubr.f32.gmra.mrb[0].mxu0 %v6882
      %v6979 = vpop.f32.mrb[0].mxu0
      %v6980 = vadd.f32 %v6868, %v6979
      %v6981 = vpop.f32.mrb[0].mxu0
      %6982 = vmatprep.mubr.f32.mxu0 0.0
      %6983 = vmatmul.mubr.f32.gmra.mrb[0].mxu0 %v6885
      %v6984 = vpop.f32.mrb[0].mxu0
      %v6985 = vadd.f32 %v6868, %v6984
      %v6986 = vpop.f32.mrb[0].mxu0
      %6987 = vmatprep.mubr.f32.mxu0 0.0
      %6988 = vmatmul.mubr.f32.gmra.mrb[0].mxu0 %v6888
      %v6989 = vpop.f32.mrb[0].mxu0
      %v6990 = vadd.f32 %v6868, %v6989
      %v6991 = vpop.f32.mrb[0].mxu0
      %6992 = vmatprep.mubr.f32.mxu0 0.0
      %6993 = vmatmul.mubr.f32.gmra.mrb[0].mxu0 %v6891
      %v6994 = vpop.f32.mrb[0].mxu0
      %v6995 = vadd.f32 %v6868, %v6994
      %v6996 = vpop.f32.mrb[0].mxu0
      %6997 = vdwg.mxu0
      %v6998 = vsel %vm754, %v6960, 0.0
      %6999 = vadd.xlane.f32.xlu0 %v6998
      %v7000 = vpop.xlane.xlu0 %6999
      %v7001 = vsel %vm754, %v6965, 0.0
      %7002 = vadd.xlane.f32.xlu0 %v7001
      %v7003 = vpop.xlane.xlu0 %7002
      %v7004 = vsel %vm754, %v6970, 0.0
      %7005 = vadd.xlane.f32.xlu0 %v7004
      %v7006 = vpop.xlane.xlu0 %7005
      %v7007 = vsel %vm754, %v6975, 0.0
      %7008 = vadd.xlane.f32.xlu0 %v7007
      %v7009 = vpop.xlane.xlu0 %7008
      %v7010 = vsel %vm754, %v6980, 0.0
      %7011 = vadd.xlane.f32.xlu0 %v7010
      %v7012 = vpop.xlane.xlu0 %7011
      %v7013 = vsel %vm754, %v6985, 0.0
      %7014 = vadd.xlane.f32.xlu0 %v7013
      %v7015 = vpop.xlane.xlu0 %7014
      %v7016 = vsel %vm754, %v6990, 0.0
      %7017 = vadd.xlane.f32.xlu0 %v7016
      %v7018 = vpop.xlane.xlu0 %7017
      %v7019 = vsel %vm754, %v6995, 0.0
      %7020 = vadd.xlane.f32.xlu0 %v7019
      %v7021 = vpop.xlane.xlu0 %7020
      %v7022 = vmul.f32 %v7000, %v3044
      %v7023 = vmul.f32 %v7003, %v3044
      %v7024 = vmul.f32 %v7006, %v3044
      %v7025 = vmul.f32 %v7009, %v3044
      %v7026 = vmul.f32 %v7012, %v3044
      %v7027 = vmul.f32 %v7015, %v3044
      %v7028 = vmul.f32 %v7018, %v3044
      %v7029 = vmul.f32 %v7021, %v3044
      %v7030 = vsub.f32 %v6960, %v7022
      %v7031 = vsub.f32 %v6965, %v7023
      %v7032 = vsub.f32 %v6970, %v7024
      %v7033 = vsub.f32 %v6975, %v7025
      %v7034 = vsub.f32 %v6980, %v7026
      %v7035 = vsub.f32 %v6985, %v7027
      %v7036 = vsub.f32 %v6990, %v7028
      %v7037 = vsub.f32 %v6995, %v7029
      %v7038 = vmul.f32 %v7030, %v7030
      %v7039 = vmul.f32 %v7031, %v7031
      %v7040 = vmul.f32 %v7032, %v7032
      %v7041 = vmul.f32 %v7033, %v7033
      %v7042 = vmul.f32 %v7034, %v7034
      %v7043 = vmul.f32 %v7035, %v7035
      %v7044 = vmul.f32 %v7036, %v7036
      %v7045 = vmul.f32 %v7037, %v7037
      %v7046 = vsel %vm754, %v7038, 0.0
      %7047 = vadd.xlane.f32.xlu0 %v7046
      %v7048 = vpop.xlane.xlu0 %7047
      %v7049 = vsel %vm754, %v7039, 0.0
      %7050 = vadd.xlane.f32.xlu0 %v7049
      %v7051 = vpop.xlane.xlu0 %7050
      %v7052 = vsel %vm754, %v7040, 0.0
      %7053 = vadd.xlane.f32.xlu0 %v7052
      %v7054 = vpop.xlane.xlu0 %7053
      %v7055 = vsel %vm754, %v7041, 0.0
      %7056 = vadd.xlane.f32.xlu0 %v7055
      %v7057 = vpop.xlane.xlu0 %7056
      %v7058 = vsel %vm754, %v7042, 0.0
      %7059 = vadd.xlane.f32.xlu0 %v7058
      %v7060 = vpop.xlane.xlu0 %7059
      %v7061 = vsel %vm754, %v7043, 0.0
      %7062 = vadd.xlane.f32.xlu0 %v7061
      %v7063 = vpop.xlane.xlu0 %7062
      %v7064 = vsel %vm754, %v7044, 0.0
      %7065 = vadd.xlane.f32.xlu0 %v7064
      %v7066 = vpop.xlane.xlu0 %7065
      %v7067 = vsel %vm754, %v7045, 0.0
      %7068 = vadd.xlane.f32.xlu0 %v7067
      %v7069 = vpop.xlane.xlu0 %7068
      %v7070 = vmul.f32 %v7048, %v3044
      %v7071 = vmul.f32 %v7051, %v3044
      %v7072 = vmul.f32 %v7054, %v3044
      %v7073 = vmul.f32 %v7057, %v3044
      %v7074 = vmul.f32 %v7060, %v3044
      %v7075 = vmul.f32 %v7063, %v3044
      %v7076 = vmul.f32 %v7066, %v3044
      %v7077 = vmul.f32 %v7069, %v3044
      %v7078 = vld [vmem:[%s405 + $0xb] sm:$0x1]
      %v7079 = vld [vmem:[%s405 + $0xc] sm:$0x1]
      %v7080 = vadd.f32 %v7070, 1e-05
      %v7081 = vadd.f32 %v7071, 1e-05
      %v7082 = vadd.f32 %v7072, 1e-05
      %v7083 = vadd.f32 %v7073, 1e-05
      %v7084 = vadd.f32 %v7074, 1e-05
      %v7085 = vadd.f32 %v7075, 1e-05
      %v7086 = vadd.f32 %v7076, 1e-05
      %v7087 = vadd.f32 %v7077, 1e-05
      %v7088 = vrsqrt.pop %v7080
      %v7089 = vrsqrt.pop %v7081
      %v7090 = vrsqrt.pop %v7082
      %v7091 = vrsqrt.pop %v7083
      %v7092 = vrsqrt.pop %v7084
      %v7093 = vrsqrt.pop %v7085
      %v7094 = vrsqrt.pop %v7086
      %v7095 = vrsqrt.pop %v7087
      %v7096 = vmul.f32 %v7030, %v7088
      %v7097 = vmul.f32 %v7031, %v7089
      %v7098 = vmul.f32 %v7032, %v7090
      %v7099 = vmul.f32 %v7033, %v7091
      %v7100 = vmul.f32 %v7034, %v7092
      %v7101 = vmul.f32 %v7035, %v7093
      %v7102 = vmul.f32 %v7036, %v7094
      %v7103 = vmul.f32 %v7037, %v7095
      %v7104 = vlaneseq
      %v7105 = vshrl.u32 %v7104, 7
      %v7106 = vsub.s32 0, %v7105
      %v7107 = vrot.slane %v7078, %v7106
      %v7108 = vmul.f32 %v7096, %v7107
      %v7109 = vmul.f32 %v7097, %v7107
      %v7110 = vmul.f32 %v7098, %v7107
      %v7111 = vmul.f32 %v7099, %v7107
      %v7112 = vmul.f32 %v7100, %v7107
      %v7113 = vmul.f32 %v7101, %v7107
      %v7114 = vmul.f32 %v7102, %v7107
      %v7115 = vmul.f32 %v7103, %v7107
      %v7116 = vlaneseq
      %v7117 = vshrl.u32 %v7116, 7
      %v7118 = vsub.s32 0, %v7117
      %v7119 = vrot.slane %v7079, %v7118
      %v7120 = vadd.f32 %v7108, %v7119
      %v7121 = vadd.f32 %v7109, %v7119
      %v7122 = vadd.f32 %v7110, %v7119
      %v7123 = vadd.f32 %v7111, %v7119
      %v7124 = vadd.f32 %v7112, %v7119
      %v7125 = vadd.f32 %v7113, %v7119
      %v7126 = vadd.f32 %v7114, %v7119
      %v7127 = vadd.f32 %v7115, %v7119
      %v7128 = vadd.f32 %v3151, %v7120
      %v7129 = vadd.f32 %v3152, %v7121
      %v7130 = vadd.f32 %v3153, %v7122
      %v7131 = vadd.f32 %v3154, %v7123
      %v7132 = vadd.f32 %v3155, %v7124
      %v7133 = vadd.f32 %v3156, %v7125
      %v7134 = vadd.f32 %v3157, %v7126
      %v7135 = vadd.f32 %v3158, %v7127
      %7136 = vst.msk [vmem:[#allocation6] sm:$0xff] %vm754, %v7128
      %7137 = vst.msk [vmem:[#allocation6 + $0x8] sm:$0xff] %vm754, %v7129
      %7138 = vst.msk [vmem:[#allocation6 + $0x10] sm:$0xff] %vm754, %v7130
      %7139 = vst.msk [vmem:[#allocation6 + $0x18] sm:$0xff] %vm754, %v7131
      %7140 = vst.msk [vmem:[#allocation6 + $0x20] sm:$0xff] %vm754, %v7132
      %7141 = vst.msk [vmem:[#allocation6 + $0x28] sm:$0xff] %vm754, %v7133
      %7142 = vst.msk [vmem:[#allocation6 + $0x30] sm:$0xff] %vm754, %v7134
      %7143 = vst.msk [vmem:[#allocation6 + $0x38] sm:$0xff] %vm754, %v7135
      %p7144 = scmp.eq.s32.totalorder %s23, 1
      // Predicated region
      $region53: #{mrformer_forward.1} parent=47 // pred_check
        %p7145 = pneg %p7144
      $region54: #{mrformer_forward.1} parent=47 // pred_check_branch
        %7147 = sbr.rel (%p7145) target = $region56
      $region55: #{mrformer_forward.1} parent=47 // pred_region
        %7148 = vst.msk [vmem:[%s410] sm:$0xff] %vm754, %v7128
        %7149 = vst.msk [vmem:[%s410 + $0x8] sm:$0xff] %vm754, %v7129
        %7150 = vst.msk [vmem:[%s410 + $0x10] sm:$0xff] %vm754, %v7130
        %7151 = vst.msk [vmem:[%s410 + $0x18] sm:$0xff] %vm754, %v7131
        %7152 = vst.msk [vmem:[%s410 + $0x20] sm:$0xff] %vm754, %v7132
        %7153 = vst.msk [vmem:[%s410 + $0x28] sm:$0xff] %vm754, %v7133
        %7154 = vst.msk [vmem:[%s410 + $0x30] sm:$0xff] %vm754, %v7134
        %7155 = vst.msk [vmem:[%s410 + $0x38] sm:$0xff] %vm754, %v7135
      $region56: #{mrformer_forward.1} parent=47 // pred_fallthru
        _
      %p7156 = scmp.lt.s32.totalorder %s22, 1
      %s7157 = scalar_select %p7156, %s22, 1
      %s7158 = smul.addr %s7157, 8
      %s7159 = smul.addr %s7158, 8
      %s7160 = scalar_lea.vmem %s7, %s7159
      // Predicated region
      $region57: #{mrformer_forward.1} parent=47 // pred_check
        %p7161 = pneg %p230
      $region58: #{mrformer_forward.1} parent=47 // pred_check_branch
        %7163 = sbr.rel (%p7161) target = $region60
      $region59: #{mrformer_forward.1} parent=47 // pred_region
        _
      $region60: #{mrformer_forward.1} parent=47 // pred_fallthru
        _
    $region48: #{mrformer_forward.1} parent=5 // pred_fallthru
      _
    %p7164 = scmp.le.s32.totalorder 2, %s13
    // Predicated region
    $region61: #{mrformer_forward.1} parent=5 // pred_check
      %p7165 = pneg %p7164
    $region62: #{mrformer_forward.1} parent=5 // pred_check_branch
      %7167 = sbr.rel (%p7165) target = $region64
    $region63: #{mrformer_forward.1} parent=5 // pred_region
      %s7168 = ssub.s32 %s13, 2
      // Predicated region
      $region65: #{mrformer_forward.1} parent=63 // pred_check
        %p7169 = pneg %p236
      $region66: #{mrformer_forward.1} parent=63 // pred_check_branch
        %7171 = sbr.rel (%p7169) target = $region68
      $region67: #{mrformer_forward.1} parent=63 // pred_region
        %p7172 = scmp.lt.s32.totalorder %s24, 1
        %s7173 = scalar_select %p7172, %s24, 1
        %s7174 = smul.addr %s7173, 8
        %s7175 = smul.addr %s7174, 8
        %s7176 = scalar_lea.vmem %s7, %s7175
      $region68: #{mrformer_forward.1} parent=63 // pred_fallthru
        _
    $region64: #{mrformer_forward.1} parent=5 // pred_fallthru
      _
  $region6: #{mrformer_forward.1} parent=0 // loop_footer
    %s17 = sadd.s32 1, %s13
  $region7: #{mrformer_forward.1} parent=0 // loop_footer_branch
    %12 = sbr.rel target = $region3
  $region8: #{mrformer_forward.1} parent=0 // loop_exit
    _

</llo_original>
